<compile_context>
chip_gen: v7x
topology: tpu7x:2x2x1
jax: 0.10.0
libtpu: 0.0.40
codegen_flags: <defaults>
</compile_context>

<pallas_src>
import functools

import jax
import jax.numpy as jnp
from jax import lax
from jax.experimental import pallas as pl
from jax.experimental.pallas import tpu as pltpu

NUM_CLASSES = 57
FEAT_DIM = 2048
WV_DIM = 512
ATTN_DIM = 128
CONV1_OUT = 64
CONV1_K = 7
LOGIT_PAD = 128                    # 57 real logits + pad (lane-dense store)
VMEM_BUDGET = 20 * 1024 * 1024     # per-step working-set target for the stem kernel
VMEM_LIMIT = 48 * 1024 * 1024      # scoped VMEM limit (<= v7x 64 MiB physical)


# ----------------------------------------------------------------- kernels ---

def _stem_kernel(p_ref, cw_ref, pw_ref, o_ref, *, ft, ho, wo):
    """Fused conv1 (im2col matmul) + ReLU + 3x3/s2/p1 maxpool + global mean +
    64->2048 projection for a tile of `ft` frames.

    Only the final (ft, 2048) feature block leaves VMEM: the (M, 64) stem
    activation, the pooled map and the pre-projection vector all stay on-chip.
    """
    hp, wp = ho // 2, wo // 2
    k = p_ref.shape[-1]
    ch = cw_ref.shape[-1]

    # conv1 as one im2col matmul over all ft*Ho*Wo output positions.
    p = p_ref[...].reshape(ft * ho * wo, k)          # leading-dim merge (HoWo % 8 == 0)
    y = jnp.dot(p, cw_ref[...], preferred_element_type=jnp.float32)   # (M, 64)
    y = jnp.maximum(y, 0.0)                          # ReLU (>=0 makes zero padding exact below)

    # ----- maxpool 3x3, stride 2, pad 1 (H direction) ------------------------
    # pooled row hp uses conv rows {2hp-1, 2hp, 2hp+1}.  Splitting the row axis
    # as (hp, 2) is layout-free when Wo % 8 == 0, so the stride-2 selection is a
    # static index on a leading dim; row 2hp-1 is the previous pair's 2nd row.
    y = y.reshape(ft, hp, 2, wo, ch)
    r0 = y[:, :, 0]                                                    # row 2hp
    r1 = y[:, :, 1]                                                    # row 2hp+1
    rm1 = jnp.concatenate([jnp.zeros_like(r1[:, :1]), r1[:, :-1]], axis=1)  # row 2hp-1
    rowmax = jnp.maximum(jnp.maximum(r0, r1), rm1)                     # (ft, hp, wo, ch)

    # ----- maxpool (W direction) at full W resolution -------------------------
    # m3[w] = max(rowmax[w-1], rowmax[w], rowmax[w+1]); zero boundary is exact
    # because ReLU output >= 0.  The stride-2 column selection is folded into
    # the global mean below (even-column mask), so no strided slicing is needed.
    zc = jnp.zeros_like(rowmax[:, :, :1])
    left = jnp.concatenate([zc, rowmax[:, :, :-1]], axis=2)
    right = jnp.concatenate([rowmax[:, :, 1:], zc], axis=2)
    m3 = jnp.maximum(jnp.maximum(rowmax, left), right)                 # (ft, hp, wo, ch)

    # Global average pool over the pooled (hp, wp) map == mean of m3 at even w.
    wi = lax.broadcasted_iota(jnp.int32, m3.shape, 2)
    pooled_sum = jnp.sum(jnp.where((wi % 2) == 0, m3, 0.0), axis=(1, 2))   # (ft, ch)
    pooled_mean = pooled_sum * (1.0 / float(hp * wp))

    # TODO(synk): bn1 + the 16 ResNet50 bottleneck blocks (layer1..layer4) are
    # not reproduced; stand-in = this 64->2048 projection so downstream shapes
    # (B, T, 2048) match the reference model exactly.
    feats = jnp.dot(pooled_mean.astype(jnp.bfloat16), pw_ref[...],
                    preferred_element_type=jnp.float32)                # (ft, 2048)
    o_ref[...] = feats.astype(o_ref.dtype)[None]


def _head_kernel(f_ref, wv_w_ref, wv_b_ref, w1_w_ref, w1_b_ref,
                 v_w_ref, v_b_ref, pw_ref, pb_ref, o_ref):
    """WV linear + SelfAttention(2048, 128) + Prediction for one batch.

    All T frames of the batch are resident, so the softmax over time and the
    attention-weighted context sum are straightforward in-block reductions.
    """
    f = f_ref[0]                                                       # (T, 2048) bf16

    # x_v = WV(x);  h = tanh(W1(x));  score = V(h)
    xv = jnp.dot(f, wv_w_ref[...],
                 preferred_element_type=jnp.float32) + wv_b_ref[...]   # (T, 512)
    h = jnp.tanh(jnp.dot(f, w1_w_ref[...],
                         preferred_element_type=jnp.float32) + w1_b_ref[...])  # (T, 128)
    score = jnp.sum(h * v_w_ref[...], axis=-1, keepdims=True) + v_b_ref[...]   # (T, 1)

    # softmax over time (torch Softmax(dim=1)) and attention-weighted context.
    e = jnp.exp(score - jnp.max(score, axis=0, keepdims=True))
    attn = e / jnp.sum(e, axis=0, keepdims=True)                       # (T, 1)
    ctx = jnp.sum(attn * xv, axis=0, keepdims=True)                    # (1, 512)

    out = jnp.dot(ctx.astype(jnp.bfloat16), pw_ref[...],
                  preferred_element_type=jnp.float32) + pb_ref[...]    # (1, 128)
    o_ref[...] = out[None]


# ---------------------------------------------------------------- wrappers ---

def _frames_per_tile(nf, howo, k_feat):
    """Largest divisor of nf whose per-step working set fits the VMEM budget."""
    per_frame = (2 * howo * k_feat * 2            # patches block (bf16, double-buffered)
                 + 4 * howo * CONV1_OUT * 4       # f32 conv + pooling intermediates
                 + 2 * FEAT_DIM * 2)              # output block (bf16, double-buffered)
    cap = max(1, VMEM_BUDGET // per_frame)
    best = 1
    for d in range(1, nf + 1):
        if nf % d == 0 and d <= cap:
            best = d
    return best


def stem_pallas(patches, conv_w_mat, proj_w, ho, wo):
    nf, howo, k = patches.shape
    ft = _frames_per_tile(nf, howo, k)
    nt = nf // ft
    feats = pl.pallas_call(
        functools.partial(_stem_kernel, ft=ft, ho=ho, wo=wo),
        out_shape=jax.ShapeDtypeStruct((nt, ft, FEAT_DIM), jnp.bfloat16),
        grid=(nt,),
        in_specs=[pl.BlockSpec((ft, howo, k), lambda i: (i, 0, 0)),
                  pl.BlockSpec((k, CONV1_OUT), lambda i: (0, 0)),
                  pl.BlockSpec((CONV1_OUT, FEAT_DIM), lambda i: (0, 0))],
        out_specs=pl.BlockSpec((1, ft, FEAT_DIM), lambda i: (i, 0, 0)),
        compiler_params=pltpu.CompilerParams(
            dimension_semantics=("parallel",),
            vmem_limit_bytes=VMEM_LIMIT),
    )(patches, conv_w_mat, proj_w)
    return feats.reshape(nf, FEAT_DIM)


def head_pallas(feats_btd, hp):
    b, t, d = feats_btd.shape
    logits = pl.pallas_call(
        _head_kernel,
        out_shape=jax.ShapeDtypeStruct((b, 1, LOGIT_PAD), jnp.float32),
        grid=(b,),
        in_specs=[pl.BlockSpec((1, t, d), lambda i: (i, 0, 0)),
                  pl.BlockSpec((d, WV_DIM), lambda i: (0, 0)),
                  pl.BlockSpec((1, WV_DIM), lambda i: (0, 0)),
                  pl.BlockSpec((d, ATTN_DIM), lambda i: (0, 0)),
                  pl.BlockSpec((1, ATTN_DIM), lambda i: (0, 0)),
                  pl.BlockSpec((1, ATTN_DIM), lambda i: (0, 0)),
                  pl.BlockSpec((1, 1), lambda i: (0, 0)),
                  pl.BlockSpec((WV_DIM, LOGIT_PAD), lambda i: (0, 0)),
                  pl.BlockSpec((1, LOGIT_PAD), lambda i: (0, 0))],
        out_specs=pl.BlockSpec((1, 1, LOGIT_PAD), lambda i: (i, 0, 0)),
        compiler_params=pltpu.CompilerParams(dimension_semantics=("parallel",)),
    )(feats_btd, hp["wv_w"], hp["wv_b"], hp["w1_w"], hp["w1_b"],
      hp["v_w"], hp["v_b"], hp["pred_w"], hp["pred_b"])
    return logits[:, 0, :NUM_CLASSES]


# ----------------------------------------------------------------- forward ---

@jax.jit
def fibernet_forward(x, params):
    B, T, C, H, W = x.shape
    NF = B * T

    # conv1 (4->64, 7x7, stride 2, pad 3, bias=False) consumed as im2col.
    # TODO(synk): the im2col tensor is still materialized by XLA; fusing patch
    # extraction into the stem kernel (raw frame in HBM + halo DMA) would also
    # remove this tensor's HBM write+read.
    frames = x.reshape(NF, C, H, W).transpose(0, 2, 3, 1).astype(jnp.bfloat16)
    patches = lax.conv_general_dilated_patches(
        frames, filter_shape=(CONV1_K, CONV1_K), window_strides=(2, 2),
        padding=((3, 3), (3, 3)),
        dimension_numbers=("NHWC", "HWIO", "NHWC"))          # (NF, Ho, Wo, C*49)
    Ho, Wo = patches.shape[1], patches.shape[2]
    assert Ho % 2 == 0 and Wo % 2 == 0, "stem pooling assumes even conv1 output"
    K = C * CONV1_K * CONV1_K
    patches = patches.reshape(NF, Ho * Wo, K)

    # conv_general_dilated_patches orders features channel-major (c, kh, kw),
    # matching the (out, c, kh, kw) -> (out, c*kh*kw) flatten of the torch weight.
    conv_w_mat = params["conv1_w"].reshape(CONV1_OUT, K).T.astype(jnp.bfloat16)
    proj_w = params["proj_w"].astype(jnp.bfloat16)

    # Fused stem: conv1 + ReLU + maxpool + GAP + 64->2048 projection per frame.
    feats = stem_pallas(patches, conv_w_mat, proj_w, Ho, Wo)   # (NF, 2048) bf16

    # WV + SelfAttention + Prediction, one grid step per batch.
    head_params = {
        "wv_w": params["wv_w"].astype(jnp.bfloat16),
        "wv_b": params["wv_b"],
        "w1_w": params["w1_w"].astype(jnp.bfloat16),
        "w1_b": params["w1_b"],
        "v_w": params["v_w"],
        "v_b": params["v_b"],
        "pred_w": jnp.pad(params["pred_w"],
                          ((0, 0), (0, LOGIT_PAD - NUM_CLASSES))).astype(jnp.bfloat16),
        "pred_b": jnp.pad(params["pred_b"], ((0, 0), (0, LOGIT_PAD - NUM_CLASSES))),
    }
    return head_pallas(feats.reshape(B, T, FEAT_DIM), head_params)   # (B, 57)


def init_params(key):
    ks = jax.random.split(key, 6)

    def lin(k, fan_in, shape):
        return jax.random.normal(k, shape, jnp.float32) / jnp.sqrt(float(fan_in))

    return {
        "conv1_w": lin(ks[0], 4 * CONV1_K * CONV1_K, (CONV1_OUT, 4, CONV1_K, CONV1_K)),
        "proj_w":  lin(ks[1], CONV1_OUT, (CONV1_OUT, FEAT_DIM)),
        "wv_w":    lin(ks[2], FEAT_DIM, (FEAT_DIM, WV_DIM)),
        "wv_b":    jnp.zeros((1, WV_DIM), jnp.float32),
        "w1_w":    lin(ks[3], FEAT_DIM, (FEAT_DIM, ATTN_DIM)),
        "w1_b":    jnp.zeros((1, ATTN_DIM), jnp.float32),
        "v_w":     lin(ks[4], ATTN_DIM, (1, ATTN_DIM)),   # row form of Linear(128 -> 1)
        "v_b":     jnp.zeros((1, 1), jnp.float32),
        "pred_w":  lin(ks[5], WV_DIM, (WV_DIM, NUM_CLASSES)),
        "pred_b":  jnp.zeros((1, NUM_CLASSES), jnp.float32),
    }


if __name__ == "__main__":
    key = jax.random.PRNGKey(0)
    k_x, k_p = jax.random.split(key)
    B, T, C, H, W = 2, 3, 4, 16, 16
    x = jax.random.normal(k_x, (B, T, C, H, W), jnp.float32)
    params = init_params(k_p)

    logits = fibernet_forward(x, params)
    jax.block_until_ready(logits)
    assert logits.shape == (B, NUM_CLASSES), logits.shape
    assert bool(jnp.all(jnp.isfinite(logits)))
    print("KERNEL_OK")
</pallas_src>

<mosaic_0001>
module attributes {stable_mosaic.version = 11 : i64} {
  func.func @_stem_kernel(%arg0: i32, %arg1: memref<6x64x196xbf16, #tpu.memory_space<vmem>>, %arg2: memref<196x64xbf16, #tpu.memory_space<vmem>>, %arg3: memref<64x2048xbf16, #tpu.memory_space<vmem>>, %arg4: memref<1x6x2048xbf16, #tpu.memory_space<vmem>>) attributes {dimension_semantics = [#tpu.dimension_semantics<parallel>], iteration_bounds = array<i64: 1>, scalar_prefetch = 0 : i64, scratch_operands = 0 : i64, tpu.core_type = #tpu.core_type<tc>, window_params = [{transform_indices = @transform_0, window_bounds = array<i64: 6, 64, 196>}, {pipeline_mode = #tpu.pipeline_mode<synchronous>, transform_indices = @transform_1, window_bounds = array<i64: 196, 64>}, {pipeline_mode = #tpu.pipeline_mode<synchronous>, transform_indices = @transform_2, window_bounds = array<i64: 64, 2048>}, {transform_indices = @transform_3, window_bounds = array<i64: 1, 6, 2048>}]} {
    %c0 = arith.constant 0 : index
    %c0_0 = arith.constant 0 : index
    %c0_1 = arith.constant 0 : index
    %0 = vector.load %arg1[%c0, %c0_0, %c0_1] : memref<6x64x196xbf16, #tpu.memory_space<vmem>>, vector<6x64x196xbf16>
    %1 = vector.shape_cast %0 : vector<6x64x196xbf16> to vector<384x196xbf16>
    %c0_2 = arith.constant 0 : index
    %c0_3 = arith.constant 0 : index
    %2 = vector.load %arg2[%c0_2, %c0_3] : memref<196x64xbf16, #tpu.memory_space<vmem>>, vector<196x64xbf16>
    %cst = arith.constant dense<0.000000e+00> : vector<384x64xf32>
    %3 = tpu.matmul %1, %2, %cst {dimension_numbers = #tpu.dot_dimension_numbers<[1], [0], [0], [1], [0, 0, 1, 1], [], []>} : vector<384x196xbf16>, vector<196x64xbf16>, vector<384x64xf32> -> vector<384x64xf32>
    %cst_4 = arith.constant 0.000000e+00 : f32
    %4 = vector.broadcast %cst_4 : f32 to vector<384x64xf32>
    %5 = arith.maximumf %3, %4 : vector<384x64xf32>
    %6 = vector.shape_cast %5 : vector<384x64xf32> to vector<6x4x2x8x64xf32>
    %7 = vector.extract_strided_slice %6 {offsets = [0, 0, 0, 0, 0], sizes = [6, 4, 1, 8, 64], strides = [1, 1, 1, 1, 1]} : vector<6x4x2x8x64xf32> to vector<6x4x1x8x64xf32>
    %8 = vector.shape_cast %7 : vector<6x4x1x8x64xf32> to vector<6x4x8x64xf32>
    %9 = vector.extract_strided_slice %6 {offsets = [0, 0, 1, 0, 0], sizes = [6, 4, 1, 8, 64], strides = [1, 1, 1, 1, 1]} : vector<6x4x2x8x64xf32> to vector<6x4x1x8x64xf32>
    %10 = vector.shape_cast %9 : vector<6x4x1x8x64xf32> to vector<6x4x8x64xf32>
    %cst_5 = arith.constant 0.000000e+00 : f32
    %11 = vector.broadcast %cst_5 : f32 to vector<6x1x8x64xf32>
    %12 = vector.extract_strided_slice %10 {offsets = [0, 0, 0, 0], sizes = [6, 3, 8, 64], strides = [1, 1, 1, 1]} : vector<6x4x8x64xf32> to vector<6x3x8x64xf32>
    %13 = tpu.concatenate %11, %12 in 1 : vector<6x1x8x64xf32>, vector<6x3x8x64xf32> -> vector<6x4x8x64xf32>
    %14 = arith.maximumf %8, %10 : vector<6x4x8x64xf32>
    %15 = arith.maximumf %14, %13 : vector<6x4x8x64xf32>
    %cst_6 = arith.constant 0.000000e+00 : f32
    %16 = vector.broadcast %cst_6 : f32 to vector<6x4x1x64xf32>
    %17 = vector.extract_strided_slice %15 {offsets = [0, 0, 0, 0], sizes = [6, 4, 7, 64], strides = [1, 1, 1, 1]} : vector<6x4x8x64xf32> to vector<6x4x7x64xf32>
    %18 = tpu.concatenate %16, %17 in 2 : vector<6x4x1x64xf32>, vector<6x4x7x64xf32> -> vector<6x4x8x64xf32>
    %19 = vector.extract_strided_slice %15 {offsets = [0, 0, 1, 0], sizes = [6, 4, 7, 64], strides = [1, 1, 1, 1]} : vector<6x4x8x64xf32> to vector<6x4x7x64xf32>
    %20 = tpu.concatenate %19, %16 in 2 : vector<6x4x7x64xf32>, vector<6x4x1x64xf32> -> vector<6x4x8x64xf32>
    %21 = arith.maximumf %15, %18 : vector<6x4x8x64xf32>
    %22 = arith.maximumf %21, %20 : vector<6x4x8x64xf32>
    %23 = tpu.iota {dimensions = array<i32: 2>} : vector<6x4x8x64xi32>
    %c2_i32 = arith.constant 2 : i32
    %c0_i32 = arith.constant 0 : i32
    %24 = arith.cmpi eq, %c2_i32, %c0_i32 : i32
    %c1_i32 = arith.constant 1 : i32
    %25 = arith.select %24, %c1_i32, %c2_i32 : i32
    %26 = vector.broadcast %25 : i32 to vector<6x4x8x64xi32>
    %27 = arith.remsi %23, %26 : vector<6x4x8x64xi32>
    %c0_i32_7 = arith.constant 0 : i32
    %28 = vector.broadcast %c0_i32_7 : i32 to vector<6x4x8x64xi32>
    %29 = arith.cmpi ne, %27, %28 : vector<6x4x8x64xi32>
    %c0_i32_8 = arith.constant 0 : i32
    %30 = vector.broadcast %c0_i32_8 : i32 to vector<6x4x8x64xi32>
    %31 = arith.cmpi slt, %27, %30 : vector<6x4x8x64xi32>
    %c0_i32_9 = arith.constant 0 : i32
    %32 = arith.cmpi slt, %25, %c0_i32_9 : i32
    %33 = vector.broadcast %32 : i1 to vector<6x4x8x64xi1>
    %34 = vector.broadcast %33 : vector<6x4x8x64xi1> to vector<6x4x8x64xi1>
    %35 = arith.xori %31, %34 : vector<6x4x8x64xi1>
    %36 = arith.andi %35, %29 : vector<6x4x8x64xi1>
    %37 = vector.broadcast %25 : i32 to vector<6x4x8x64xi32>
    %38 = arith.addi %27, %37 : vector<6x4x8x64xi32>
    %39 = arith.select %36, %38, %27 : vector<6x4x8x64xi1>, vector<6x4x8x64xi32>
    %c0_i32_10 = arith.constant 0 : i32
    %40 = vector.broadcast %c0_i32_10 : i32 to vector<6x4x8x64xi32>
    %41 = arith.cmpi eq, %39, %40 : vector<6x4x8x64xi32>
    %cst_11 = arith.constant 0.000000e+00 : f32
    %42 = vector.broadcast %cst_11 : f32 to vector<6x4x8x64xf32>
    %43 = arith.select %41, %22, %42 : vector<6x4x8x64xi1>, vector<6x4x8x64xf32>
    %cst_12 = arith.constant dense<0.000000e+00> : vector<6x64xf32>
    %44 = vector.multi_reduction <add>, %43, %cst_12 [1, 2] : vector<6x4x8x64xf32> to vector<6x64xf32>
    %cst_13 = arith.constant 6.250000e-02 : f32
    %45 = vector.broadcast %cst_13 : f32 to vector<6x64xf32>
    %46 = arith.mulf %44, %45 : vector<6x64xf32>
    %47 = arith.truncf %46 : vector<6x64xf32> to vector<6x64xbf16>
    %c0_14 = arith.constant 0 : index
    %c0_15 = arith.constant 0 : index
    %48 = vector.load %arg3[%c0_14, %c0_15] : memref<64x2048xbf16, #tpu.memory_space<vmem>>, vector<64x2048xbf16>
    %cst_16 = arith.constant dense<0.000000e+00> : vector<6x2048xf32>
    %49 = tpu.matmul %47, %48, %cst_16 {dimension_numbers = #tpu.dot_dimension_numbers<[1], [0], [0], [1], [0, 0, 1, 1], [], []>} : vector<6x64xbf16>, vector<64x2048xbf16>, vector<6x2048xf32> -> vector<6x2048xf32>
    %50 = arith.truncf %49 : vector<6x2048xf32> to vector<6x2048xbf16>
    %51 = vector.shape_cast %50 : vector<6x2048xbf16> to vector<1x6x2048xbf16>
    %c0_17 = arith.constant 0 : index
    %c0_18 = arith.constant 0 : index
    %c0_19 = arith.constant 0 : index
    %52 = vector.load %arg4[%c0_17, %c0_18, %c0_19] : memref<1x6x2048xbf16, #tpu.memory_space<vmem>>, vector<1x6x2048xbf16>
    tpu.vector_store %arg4[%c0_17, %c0_18, %c0_19], %51 {strides = array<i32>} : memref<1x6x2048xbf16, #tpu.memory_space<vmem>>, vector<1x6x2048xbf16>,
    return
  }
  func.func @transform_0(%arg0: i32) -> (i32, i32, i32) {
    %c0_i32 = arith.constant 0 : i32
    %c0_i32_0 = arith.constant 0 : i32
    %c0_i32_1 = arith.constant 0 : i32
    return %arg0, %c0_i32, %c0_i32_0 : i32, i32, i32
  }
  func.func @transform_1(%arg0: i32) -> (i32, i32) {
    %c0_i32 = arith.constant 0 : i32
    %c0_i32_0 = arith.constant 0 : i32
    %c0_i32_1 = arith.constant 0 : i32
    return %c0_i32, %c0_i32_0 : i32, i32
  }
  func.func @transform_2(%arg0: i32) -> (i32, i32) {
    %c0_i32 = arith.constant 0 : i32
    %c0_i32_0 = arith.constant 0 : i32
    %c0_i32_1 = arith.constant 0 : i32
    return %c0_i32, %c0_i32_0 : i32, i32
  }
  func.func @transform_3(%arg0: i32) -> (i32, i32, i32) {
    %c0_i32 = arith.constant 0 : i32
    %c0_i32_0 = arith.constant 0 : i32
    %c0_i32_1 = arith.constant 0 : i32
    return %arg0, %c0_i32, %c0_i32_0 : i32, i32, i32
  }
}

module attributes {stable_mosaic.version = 11 : i64} {
  func.func @_head_kernel(%arg0: i32, %arg1: memref<1x3x2048xbf16, #tpu.memory_space<vmem>>, %arg2: memref<2048x512xbf16, #tpu.memory_space<vmem>>, %arg3: memref<1x512xf32, #tpu.memory_space<vmem>>, %arg4: memref<2048x128xbf16, #tpu.memory_space<vmem>>, %arg5: memref<1x128xf32, #tpu.memory_space<vmem>>, %arg6: memref<1x128xf32, #tpu.memory_space<vmem>>, %arg7: memref<1x1xf32, #tpu.memory_space<vmem>>, %arg8: memref<512x128xbf16, #tpu.memory_space<vmem>>, %arg9: memref<1x128xf32, #tpu.memory_space<vmem>>, %arg10: memref<1x1x128xf32, #tpu.memory_space<vmem>>) attributes {dimension_semantics = [#tpu.dimension_semantics<parallel>], iteration_bounds = array<i64: 2>, scalar_prefetch = 0 : i64, scratch_operands = 0 : i64, tpu.core_type = #tpu.core_type<tc>, window_params = [{transform_indices = @transform_0, window_bounds = array<i64: 1, 3, 2048>}, {pipeline_mode = #tpu.pipeline_mode<synchronous>, transform_indices = @transform_1, window_bounds = array<i64: 2048, 512>}, {pipeline_mode = #tpu.pipeline_mode<synchronous>, transform_indices = @transform_2, window_bounds = array<i64: 1, 512>}, {pipeline_mode = #tpu.pipeline_mode<synchronous>, transform_indices = @transform_3, window_bounds = array<i64: 2048, 128>}, {pipeline_mode = #tpu.pipeline_mode<synchronous>, transform_indices = @transform_4, window_bounds = array<i64: 1, 128>}, {pipeline_mode = #tpu.pipeline_mode<synchronous>, transform_indices = @transform_5, window_bounds = array<i64: 1, 128>}, {pipeline_mode = #tpu.pipeline_mode<synchronous>, transform_indices = @transform_6, window_bounds = array<i64: 1, 1>}, {pipeline_mode = #tpu.pipeline_mode<synchronous>, transform_indices = @transform_7, window_bounds = array<i64: 512, 128>}, {pipeline_mode = #tpu.pipeline_mode<synchronous>, transform_indices = @transform_8, window_bounds = array<i64: 1, 128>}, {transform_indices = @transform_9, window_bounds = array<i64: 1, 1, 128>}]} {
    %c0 = arith.constant 0 : index
    %c0_0 = arith.constant 0 : index
    %c0_1 = arith.constant 0 : index
    %0 = vector.load %arg1[%c0, %c0_0, %c0_1] : memref<1x3x2048xbf16, #tpu.memory_space<vmem>>, vector<1x3x2048xbf16>
    %1 = vector.shape_cast %0 : vector<1x3x2048xbf16> to vector<3x2048xbf16>
    %c0_2 = arith.constant 0 : index
    %c0_3 = arith.constant 0 : index
    %2 = vector.load %arg2[%c0_2, %c0_3] : memref<2048x512xbf16, #tpu.memory_space<vmem>>, vector<2048x512xbf16>
    %cst = arith.constant dense<0.000000e+00> : vector<3x512xf32>
    %3 = tpu.matmul %1, %2, %cst {dimension_numbers = #tpu.dot_dimension_numbers<[1], [0], [0], [1], [0, 0, 1, 1], [], []>} : vector<3x2048xbf16>, vector<2048x512xbf16>, vector<3x512xf32> -> vector<3x512xf32>
    %c0_4 = arith.constant 0 : index
    %c0_5 = arith.constant 0 : index
    %4 = vector.load %arg3[%c0_4, %c0_5] : memref<1x512xf32, #tpu.memory_space<vmem>>, vector<1x512xf32>
    %5 = vector.broadcast %4 : vector<1x512xf32> to vector<3x512xf32>
    %6 = arith.addf %3, %5 : vector<3x512xf32>
    %c0_6 = arith.constant 0 : index
    %c0_7 = arith.constant 0 : index
    %7 = vector.load %arg4[%c0_6, %c0_7] : memref<2048x128xbf16, #tpu.memory_space<vmem>>, vector<2048x128xbf16>
    %cst_8 = arith.constant dense<0.000000e+00> : vector<3x128xf32>
    %8 = tpu.matmul %1, %7, %cst_8 {dimension_numbers = #tpu.dot_dimension_numbers<[1], [0], [0], [1], [0, 0, 1, 1], [], []>} : vector<3x2048xbf16>, vector<2048x128xbf16>, vector<3x128xf32> -> vector<3x128xf32>
    %c0_9 = arith.constant 0 : index
    %c0_10 = arith.constant 0 : index
    %9 = vector.load %arg5[%c0_9, %c0_10] : memref<1x128xf32, #tpu.memory_space<vmem>>, vector<1x128xf32>
    %10 = vector.broadcast %9 : vector<1x128xf32> to vector<3x128xf32>
    %11 = arith.addf %8, %10 : vector<3x128xf32>
    %12 = math.tanh %11 : vector<3x128xf32>
    %c0_11 = arith.constant 0 : index
    %c0_12 = arith.constant 0 : index
    %13 = vector.load %arg6[%c0_11, %c0_12] : memref<1x128xf32, #tpu.memory_space<vmem>>, vector<1x128xf32>
    %14 = vector.broadcast %13 : vector<1x128xf32> to vector<3x128xf32>
    %15 = arith.mulf %12, %14 : vector<3x128xf32>
    %cst_13 = arith.constant dense<0.000000e+00> : vector<3xf32>
    %16 = vector.multi_reduction <add>, %15, %cst_13 [1] : vector<3x128xf32> to vector<3xf32>
    %17 = vector.shape_cast %16 : vector<3xf32> to vector<3x1xf32>
    %c0_14 = arith.constant 0 : index
    %c0_15 = arith.constant 0 : index
    %18 = vector.load %arg7[%c0_14, %c0_15] : memref<1x1xf32, #tpu.memory_space<vmem>>, vector<1x1xf32>
    %19 = vector.broadcast %18 : vector<1x1xf32> to vector<3x1xf32>
    %20 = arith.addf %17, %19 : vector<3x1xf32>
    %cst_16 = arith.constant dense<0xFF800000> : vector<1xf32>
    %21 = vector.multi_reduction <maximumf>, %20, %cst_16 [0] : vector<3x1xf32> to vector<1xf32>
    %22 = vector.shape_cast %21 : vector<1xf32> to vector<1x1xf32>
    %23 = vector.broadcast %22 : vector<1x1xf32> to vector<3x1xf32>
    %24 = arith.subf %20, %23 : vector<3x1xf32>
    %25 = math.exp %24 : vector<3x1xf32>
    %cst_17 = arith.constant dense<0.000000e+00> : vector<1xf32>
    %26 = vector.multi_reduction <add>, %25, %cst_17 [0] : vector<3x1xf32> to vector<1xf32>
    %27 = vector.shape_cast %26 : vector<1xf32> to vector<1x1xf32>
    %28 = vector.broadcast %27 : vector<1x1xf32> to vector<3x1xf32>
    %29 = arith.divf %25, %28 : vector<3x1xf32>
    %30 = vector.broadcast %29 : vector<3x1xf32> to vector<3x512xf32>
    %31 = arith.mulf %30, %6 : vector<3x512xf32>
    %cst_18 = arith.constant dense<0.000000e+00> : vector<512xf32>
    %32 = vector.multi_reduction <add>, %31, %cst_18 [0] : vector<3x512xf32> to vector<512xf32>
    %33 = vector.shape_cast %32 : vector<512xf32> to vector<1x512xf32>
    %34 = arith.truncf %33 : vector<1x512xf32> to vector<1x512xbf16>
    %c0_19 = arith.constant 0 : index
    %c0_20 = arith.constant 0 : index
    %35 = vector.load %arg8[%c0_19, %c0_20] : memref<512x128xbf16, #tpu.memory_space<vmem>>, vector<512x128xbf16>
    %cst_21 = arith.constant dense<0.000000e+00> : vector<1x128xf32>
    %36 = tpu.matmul %34, %35, %cst_21 {dimension_numbers = #tpu.dot_dimension_numbers<[1], [0], [0], [1], [0, 0, 1, 1], [], []>} : vector<1x512xbf16>, vector<512x128xbf16>, vector<1x128xf32> -> vector<1x128xf32>
    %c0_22 = arith.constant 0 : index
    %c0_23 = arith.constant 0 : index
    %37 = vector.load %arg9[%c0_22, %c0_23] : memref<1x128xf32, #tpu.memory_space<vmem>>, vector<1x128xf32>
    %38 = arith.addf %36, %37 : vector<1x128xf32>
    %39 = vector.shape_cast %38 : vector<1x128xf32> to vector<1x1x128xf32>
    %c0_24 = arith.constant 0 : index
    %c0_25 = arith.constant 0 : index
    %c0_26 = arith.constant 0 : index
    %40 = vector.load %arg10[%c0_24, %c0_25, %c0_26] : memref<1x1x128xf32, #tpu.memory_space<vmem>>, vector<1x1x128xf32>
    tpu.vector_store %arg10[%c0_24, %c0_25, %c0_26], %39 {strides = array<i32>} : memref<1x1x128xf32, #tpu.memory_space<vmem>>, vector<1x1x128xf32>,
    return
  }
  func.func @transform_0(%arg0: i32) -> (i32, i32, i32) {
    %c0_i32 = arith.constant 0 : i32
    %c0_i32_0 = arith.constant 0 : i32
    %c0_i32_1 = arith.constant 0 : i32
    return %arg0, %c0_i32, %c0_i32_0 : i32, i32, i32
  }
  func.func @transform_1(%arg0: i32) -> (i32, i32) {
    %c0_i32 = arith.constant 0 : i32
    %c0_i32_0 = arith.constant 0 : i32
    %c0_i32_1 = arith.constant 0 : i32
    return %c0_i32, %c0_i32_0 : i32, i32
  }
  func.func @transform_2(%arg0: i32) -> (i32, i32) {
    %c0_i32 = arith.constant 0 : i32
    %c0_i32_0 = arith.constant 0 : i32
    %c0_i32_1 = arith.constant 0 : i32
    return %c0_i32, %c0_i32_0 : i32, i32
  }
  func.func @transform_3(%arg0: i32) -> (i32, i32) {
    %c0_i32 = arith.constant 0 : i32
    %c0_i32_0 = arith.constant 0 : i32
    %c0_i32_1 = arith.constant 0 : i32
    return %c0_i32, %c0_i32_0 : i32, i32
  }
  func.func @transform_4(%arg0: i32) -> (i32, i32) {
    %c0_i32 = arith.constant 0 : i32
    %c0_i32_0 = arith.constant 0 : i32
    %c0_i32_1 = arith.constant 0 : i32
    return %c0_i32, %c0_i32_0 : i32, i32
  }
  func.func @transform_5(%arg0: i32) -> (i32, i32) {
    %c0_i32 = arith.constant 0 : i32
    %c0_i32_0 = arith.constant 0 : i32
    %c0_i32_1 = arith.constant 0 : i32
    return %c0_i32, %c0_i32_0 : i32, i32
  }
  func.func @transform_6(%arg0: i32) -> (i32, i32) {
    %c0_i32 = arith.constant 0 : i32
    %c0_i32_0 = arith.constant 0 : i32
    %c0_i32_1 = arith.constant 0 : i32
    return %c0_i32, %c0_i32_0 : i32, i32
  }
  func.func @transform_7(%arg0: i32) -> (i32, i32) {
    %c0_i32 = arith.constant 0 : i32
    %c0_i32_0 = arith.constant 0 : i32
    %c0_i32_1 = arith.constant 0 : i32
    return %c0_i32, %c0_i32_0 : i32, i32
  }
  func.func @transform_8(%arg0: i32) -> (i32, i32) {
    %c0_i32 = arith.constant 0 : i32
    %c0_i32_0 = arith.constant 0 : i32
    %c0_i32_1 = arith.constant 0 : i32
    return %c0_i32, %c0_i32_0 : i32, i32
  }
  func.func @transform_9(%arg0: i32) -> (i32, i32, i32) {
    %c0_i32 = arith.constant 0 : i32
    %c0_i32_0 = arith.constant 0 : i32
    %c0_i32_1 = arith.constant 0 : i32
    return %arg0, %c0_i32, %c0_i32_0 : i32, i32, i32
  }
}

</mosaic_0001>

<llo_original>
// kernel: fibernet_forward.2
$region0: #{fibernet_forward.2}
  #allocation0 [shape = 'u32[]', space=smem, size = 0x4, offset = 0x4, fixed_abs, tag = 'smem constant byte address 0x4 - core index']
  #allocation1 [shape = 'u32[144,128]{1,0:T(1,128)}', space=vmem, size = 0x12000, scoped, tag = 'internal scratch']
  %s0 = inlined_call_operand.vmem [shape: bf16[6,64,196], index: 0, kind: input, shape index: {}]
  %s1 = inlined_call_operand.vmem [shape: bf16[196,64], index: 1, kind: input, shape index: {}]
  %s2 = inlined_call_operand.vmem [shape: bf16[64,2048], index: 2, kind: input, shape index: {}]
  %s3 = inlined_call_operand.vmem [shape: bf16[1,6,2048], index: 3, kind: output, shape index: {}]
  %s4 = sld [smem:[#allocation0]]
  $region22: #{fibernet_forward.2} parent=0
    _
  %s6 = ssub.s32 1, %s4
  %s7 = scalar_select 0, %s6, %s4
  // Predicated region
  $region2: #{fibernet_forward.2} parent=0 // pred_check
    _
  $region3: #{fibernet_forward.2} parent=0 // pred_check_branch
    %9 = sbr.rel (0) target = $region5
  $region4: #{fibernet_forward.2} parent=0 // pred_region
    _
  $region5: #{fibernet_forward.2} parent=0 // pred_fallthru
    _
  // Predicated region
  $region6: #{fibernet_forward.2} parent=0 // pred_check
    _
  $region7: #{fibernet_forward.2} parent=0 // pred_check_branch
    %11 = sbr.rel (0) target = $region9
  $region8: #{fibernet_forward.2} parent=0 // pred_region
    _
  $region9: #{fibernet_forward.2} parent=0 // pred_fallthru
    _
  // Predicated region
  $region10: #{fibernet_forward.2} parent=0 // pred_check
    _
  $region11: #{fibernet_forward.2} parent=0 // pred_check_branch
    %13 = sbr.rel (0) target = $region13
  $region12: #{fibernet_forward.2} parent=0 // pred_region
    _
  $region13: #{fibernet_forward.2} parent=0 // pred_fallthru
    _
  %v15 = vld [vmem:[%s0] sm:$0xff]
  %v16 = vld [vmem:[%s0 + $0x8] sm:$0xff]
  %v17 = vld [vmem:[%s0 + $0x10] sm:$0xff]
  %v18 = vld [vmem:[%s0 + $0x18] sm:$0xff]
  %v19 = vld [vmem:[%s0 + $0x20] sm:$0xff]
  %v20 = vld [vmem:[%s0 + $0x28] sm:$0xff]
  %v21 = vld [vmem:[%s0 + $0x30] sm:$0xff]
  %v22 = vld [vmem:[%s0 + $0x38] sm:$0xff]
  %v23 = vld [vmem:[%s0 + $0x40] sm:$0xff]
  %v24 = vld [vmem:[%s0 + $0x48] sm:$0xff]
  %v25 = vld [vmem:[%s0 + $0x50] sm:$0xff]
  %v26 = vld [vmem:[%s0 + $0x58] sm:$0xff]
  %v27 = vld [vmem:[%s0 + $0x60] sm:$0xff]
  %v28 = vld [vmem:[%s0 + $0x68] sm:$0xff]
  %v29 = vld [vmem:[%s0 + $0x70] sm:$0xff]
  %v30 = vld [vmem:[%s0 + $0x78] sm:$0xff]
  %v31 = vld [vmem:[%s0 + $0x80] sm:$0xff]
  %v32 = vld [vmem:[%s0 + $0x88] sm:$0xff]
  %v33 = vld [vmem:[%s0 + $0x90] sm:$0xff]
  %v34 = vld [vmem:[%s0 + $0x98] sm:$0xff]
  %v35 = vld [vmem:[%s0 + $0xa0] sm:$0xff]
  %v36 = vld [vmem:[%s0 + $0xa8] sm:$0xff]
  %v37 = vld [vmem:[%s0 + $0xb0] sm:$0xff]
  %v38 = vld [vmem:[%s0 + $0xb8] sm:$0xff]
  %v39 = vld [vmem:[%s0 + $0xc0] sm:$0xff]
  %v40 = vld [vmem:[%s0 + $0xc8] sm:$0xff]
  %v41 = vld [vmem:[%s0 + $0xd0] sm:$0xff]
  %v42 = vld [vmem:[%s0 + $0xd8] sm:$0xff]
  %v43 = vld [vmem:[%s0 + $0xe0] sm:$0xff]
  %v44 = vld [vmem:[%s0 + $0xe8] sm:$0xff]
  %v45 = vld [vmem:[%s0 + $0xf0] sm:$0xff]
  %v46 = vld [vmem:[%s0 + $0xf8] sm:$0xff]
  %v47 = vld [vmem:[%s0 + $0x100] sm:$0xff]
  %v48 = vld [vmem:[%s0 + $0x108] sm:$0xff]
  %v49 = vld [vmem:[%s0 + $0x110] sm:$0xff]
  %v50 = vld [vmem:[%s0 + $0x118] sm:$0xff]
  %v51 = vld [vmem:[%s0 + $0x120] sm:$0xff]
  %v52 = vld [vmem:[%s0 + $0x128] sm:$0xff]
  %v53 = vld [vmem:[%s0 + $0x130] sm:$0xff]
  %v54 = vld [vmem:[%s0 + $0x138] sm:$0xff]
  %v55 = vld [vmem:[%s0 + $0x140] sm:$0xff]
  %v56 = vld [vmem:[%s0 + $0x148] sm:$0xff]
  %v57 = vld [vmem:[%s0 + $0x150] sm:$0xff]
  %v58 = vld [vmem:[%s0 + $0x158] sm:$0xff]
  %v59 = vld [vmem:[%s0 + $0x160] sm:$0xff]
  %v60 = vld [vmem:[%s0 + $0x168] sm:$0xff]
  %v61 = vld [vmem:[%s0 + $0x170] sm:$0xff]
  %v62 = vld [vmem:[%s0 + $0x178] sm:$0xff]
  %v63 = vld [vmem:[%s1] sm:$0xf]
  %v64 = vld [vmem:[%s1 + $0x4] sm:$0xf]
  %v65 = vld [vmem:[%s1 + $0x8] sm:$0xf]
  %v66 = vld [vmem:[%s1 + $0xc] sm:$0xf]
  %v67 = vld [vmem:[%s1 + $0x10] sm:$0xf]
  %v68 = vld [vmem:[%s1 + $0x14] sm:$0xf]
  %v69 = vld [vmem:[%s1 + $0x18] sm:$0xf]
  %v70 = vld [vmem:[%s1 + $0x1c] sm:$0xf]
  %v71 = vld [vmem:[%s1 + $0x20] sm:$0xf]
  %v72 = vld [vmem:[%s1 + $0x24] sm:$0xf]
  %v73 = vld [vmem:[%s1 + $0x28] sm:$0xf]
  %v74 = vld [vmem:[%s1 + $0x2c] sm:$0xf]
  %v75 = vld [vmem:[%s1 + $0x30] sm:$0xf]
  %v76 = vld [vmem:[%s1 + $0x34] sm:$0xf]
  %v77 = vld [vmem:[%s1 + $0x38] sm:$0xf]
  %v78 = vld [vmem:[%s1 + $0x3c] sm:$0xf]
  %v79 = vld [vmem:[%s1 + $0x40] sm:$0xf]
  %v80 = vld [vmem:[%s1 + $0x44] sm:$0xf]
  %v81 = vld [vmem:[%s1 + $0x48] sm:$0xf]
  %v82 = vld [vmem:[%s1 + $0x4c] sm:$0xf]
  %v83 = vld [vmem:[%s1 + $0x50] sm:$0xf]
  %v84 = vld [vmem:[%s1 + $0x54] sm:$0xf]
  %v85 = vld [vmem:[%s1 + $0x58] sm:$0xf]
  %v86 = vld [vmem:[%s1 + $0x5c] sm:$0xf]
  %v87 = vld [vmem:[%s1 + $0x60] sm:$0x3]
  %v136 = vunpack.c.l.b16 %v15
  %v137 = vunpack.c.h.b16 %v15
  %v138 = vunpack.c.l.b16 %v16
  %v139 = vunpack.c.h.b16 %v16
  %v140 = vunpack.c.l.b16 %v17
  %v141 = vunpack.c.h.b16 %v17
  %v142 = vunpack.c.l.b16 %v18
  %v143 = vunpack.c.h.b16 %v18
  %v144 = vunpack.c.l.b16 %v19
  %v145 = vunpack.c.h.b16 %v19
  %v146 = vunpack.c.l.b16 %v20
  %v147 = vunpack.c.h.b16 %v20
  %v148 = vunpack.c.l.b16 %v21
  %v149 = vunpack.c.h.b16 %v21
  %v150 = vunpack.c.l.b16 %v22
  %v151 = vunpack.c.h.b16 %v22
  %v152 = vunpack.c.l.b16 %v23
  %v153 = vunpack.c.h.b16 %v23
  %v154 = vunpack.c.l.b16 %v24
  %v155 = vunpack.c.h.b16 %v24
  %v156 = vunpack.c.l.b16 %v25
  %v157 = vunpack.c.h.b16 %v25
  %v158 = vunpack.c.l.b16 %v26
  %v159 = vunpack.c.h.b16 %v26
  %v160 = vunpack.c.l.b16 %v27
  %v161 = vunpack.c.h.b16 %v27
  %v162 = vunpack.c.l.b16 %v28
  %v163 = vunpack.c.h.b16 %v28
  %v164 = vunpack.c.l.b16 %v29
  %v165 = vunpack.c.h.b16 %v29
  %v166 = vunpack.c.l.b16 %v30
  %v167 = vunpack.c.h.b16 %v30
  %v168 = vunpack.c.l.b16 %v31
  %v169 = vunpack.c.h.b16 %v31
  %v170 = vunpack.c.l.b16 %v32
  %v171 = vunpack.c.h.b16 %v32
  %v172 = vunpack.c.l.b16 %v33
  %v173 = vunpack.c.h.b16 %v33
  %v174 = vunpack.c.l.b16 %v34
  %v175 = vunpack.c.h.b16 %v34
  %v176 = vunpack.c.l.b16 %v35
  %v177 = vunpack.c.h.b16 %v35
  %v178 = vunpack.c.l.b16 %v36
  %v179 = vunpack.c.h.b16 %v36
  %v180 = vunpack.c.l.b16 %v37
  %v181 = vunpack.c.h.b16 %v37
  %v182 = vunpack.c.l.b16 %v38
  %v183 = vunpack.c.h.b16 %v38
  %v184 = vunpack.c.l.b16 %v39
  %v185 = vunpack.c.h.b16 %v39
  %v186 = vunpack.c.l.b16 %v40
  %v187 = vunpack.c.h.b16 %v40
  %v188 = vunpack.c.l.b16 %v41
  %v189 = vunpack.c.h.b16 %v41
  %v190 = vunpack.c.l.b16 %v42
  %v191 = vunpack.c.h.b16 %v42
  %v192 = vunpack.c.l.b16 %v43
  %v193 = vunpack.c.h.b16 %v43
  %v194 = vunpack.c.l.b16 %v44
  %v195 = vunpack.c.h.b16 %v44
  %v196 = vunpack.c.l.b16 %v45
  %v197 = vunpack.c.h.b16 %v45
  %v198 = vunpack.c.l.b16 %v46
  %v199 = vunpack.c.h.b16 %v46
  %v200 = vunpack.c.l.b16 %v47
  %v201 = vunpack.c.h.b16 %v47
  %v202 = vunpack.c.l.b16 %v48
  %v203 = vunpack.c.h.b16 %v48
  %v204 = vunpack.c.l.b16 %v49
  %v205 = vunpack.c.h.b16 %v49
  %v206 = vunpack.c.l.b16 %v50
  %v207 = vunpack.c.h.b16 %v50
  %v208 = vunpack.c.l.b16 %v51
  %v209 = vunpack.c.h.b16 %v51
  %v210 = vunpack.c.l.b16 %v52
  %v211 = vunpack.c.h.b16 %v52
  %v212 = vunpack.c.l.b16 %v53
  %v213 = vunpack.c.h.b16 %v53
  %v214 = vunpack.c.l.b16 %v54
  %v215 = vunpack.c.h.b16 %v54
  %v216 = vunpack.c.l.b16 %v55
  %v217 = vunpack.c.h.b16 %v55
  %v218 = vunpack.c.l.b16 %v56
  %v219 = vunpack.c.h.b16 %v56
  %v220 = vunpack.c.l.b16 %v57
  %v221 = vunpack.c.h.b16 %v57
  %v222 = vunpack.c.l.b16 %v58
  %v223 = vunpack.c.h.b16 %v58
  %v224 = vunpack.c.l.b16 %v59
  %v225 = vunpack.c.h.b16 %v59
  %v226 = vunpack.c.l.b16 %v60
  %v227 = vunpack.c.h.b16 %v60
  %v228 = vunpack.c.l.b16 %v61
  %v229 = vunpack.c.h.b16 %v61
  %v230 = vunpack.c.l.b16 %v62
  %v231 = vunpack.c.h.b16 %v62
  %v232 = vpack.c.b16 %v138, %v136
  %v233 = vpack.c.b16 %v139, %v137
  %v234 = vpack.c.b16 %v142, %v140
  %v235 = vpack.c.b16 %v143, %v141
  %v236 = vpack.c.b16 %v146, %v144
  %v237 = vpack.c.b16 %v147, %v145
  %v238 = vpack.c.b16 %v150, %v148
  %v239 = vpack.c.b16 %v151, %v149
  %v240 = vpack.c.b16 %v154, %v152
  %v241 = vpack.c.b16 %v155, %v153
  %v242 = vpack.c.b16 %v158, %v156
  %v243 = vpack.c.b16 %v159, %v157
  %v244 = vpack.c.b16 %v162, %v160
  %v245 = vpack.c.b16 %v163, %v161
  %v246 = vpack.c.b16 %v166, %v164
  %v247 = vpack.c.b16 %v167, %v165
  %v248 = vpack.c.b16 %v170, %v168
  %v249 = vpack.c.b16 %v171, %v169
  %v250 = vpack.c.b16 %v174, %v172
  %v251 = vpack.c.b16 %v175, %v173
  %v252 = vpack.c.b16 %v178, %v176
  %v253 = vpack.c.b16 %v179, %v177
  %v254 = vpack.c.b16 %v182, %v180
  %v255 = vpack.c.b16 %v183, %v181
  %v256 = vpack.c.b16 %v186, %v184
  %v257 = vpack.c.b16 %v187, %v185
  %v258 = vpack.c.b16 %v190, %v188
  %v259 = vpack.c.b16 %v191, %v189
  %v260 = vpack.c.b16 %v194, %v192
  %v261 = vpack.c.b16 %v195, %v193
  %v262 = vpack.c.b16 %v198, %v196
  %v263 = vpack.c.b16 %v199, %v197
  %v264 = vpack.c.b16 %v202, %v200
  %v265 = vpack.c.b16 %v203, %v201
  %v266 = vpack.c.b16 %v206, %v204
  %v267 = vpack.c.b16 %v207, %v205
  %v268 = vpack.c.b16 %v210, %v208
  %v269 = vpack.c.b16 %v211, %v209
  %v270 = vpack.c.b16 %v214, %v212
  %v271 = vpack.c.b16 %v215, %v213
  %v272 = vpack.c.b16 %v218, %v216
  %v273 = vpack.c.b16 %v219, %v217
  %v274 = vpack.c.b16 %v222, %v220
  %v275 = vpack.c.b16 %v223, %v221
  %v276 = vpack.c.b16 %v226, %v224
  %v277 = vpack.c.b16 %v227, %v225
  %v278 = vpack.c.b16 %v230, %v228
  %v279 = vpack.c.b16 %v231, %v229
  %v329 = vunpack.c.l.b16 %v63
  %v330 = vunpack.c.l.b16 %v64
  %v331 = vunpack.c.l.b16 %v65
  %v332 = vunpack.c.l.b16 %v66
  %v333 = vunpack.c.l.b16 %v67
  %v334 = vunpack.c.l.b16 %v68
  %v335 = vunpack.c.l.b16 %v69
  %v336 = vunpack.c.l.b16 %v70
  %v337 = vunpack.c.l.b16 %v71
  %v338 = vunpack.c.l.b16 %v72
  %v339 = vunpack.c.l.b16 %v73
  %v340 = vunpack.c.l.b16 %v74
  %v341 = vunpack.c.l.b16 %v75
  %v342 = vunpack.c.l.b16 %v76
  %v343 = vunpack.c.l.b16 %v77
  %v344 = vunpack.c.l.b16 %v78
  %v345 = vunpack.c.l.b16 %v79
  %v346 = vunpack.c.l.b16 %v80
  %v347 = vunpack.c.l.b16 %v81
  %v348 = vunpack.c.l.b16 %v82
  %v349 = vunpack.c.l.b16 %v83
  %v350 = vunpack.c.l.b16 %v84
  %v351 = vunpack.c.l.b16 %v85
  %v352 = vunpack.c.l.b16 %v86
  %v353 = vunpack.c.l.b16 %v87
  %v354 = vpack.c.b16 %v330, %v329
  %v355 = vpack.c.b16 %v332, %v331
  %v356 = vpack.c.b16 %v334, %v333
  %v357 = vpack.c.b16 %v336, %v335
  %v358 = vpack.c.b16 %v338, %v337
  %v359 = vpack.c.b16 %v340, %v339
  %v360 = vpack.c.b16 %v342, %v341
  %v361 = vpack.c.b16 %v344, %v343
  %v362 = vpack.c.b16 %v346, %v345
  %v363 = vpack.c.b16 %v348, %v347
  %v364 = vpack.c.b16 %v350, %v349
  %v365 = vpack.c.b16 %v352, %v351
  %v366 = vpack.c.b16 %v353, %v353
  %vm379 = vcmask 556032
  %v381 = vsel %vm379, %v233, 0
  %v384 = vsel %vm379, %v235, 0
  %v387 = vsel %vm379, %v237, 0
  %v390 = vsel %vm379, %v239, 0
  %v393 = vsel %vm379, %v241, 0
  %v396 = vsel %vm379, %v243, 0
  %v399 = vsel %vm379, %v245, 0
  %v402 = vsel %vm379, %v247, 0
  %v405 = vsel %vm379, %v249, 0
  %v408 = vsel %vm379, %v251, 0
  %v411 = vsel %vm379, %v253, 0
  %v414 = vsel %vm379, %v255, 0
  %v417 = vsel %vm379, %v257, 0
  %v420 = vsel %vm379, %v259, 0
  %v423 = vsel %vm379, %v261, 0
  %v426 = vsel %vm379, %v263, 0
  %v429 = vsel %vm379, %v265, 0
  %v432 = vsel %vm379, %v267, 0
  %v435 = vsel %vm379, %v269, 0
  %v438 = vsel %vm379, %v271, 0
  %v441 = vsel %vm379, %v273, 0
  %v444 = vsel %vm379, %v275, 0
  %v447 = vsel %vm379, %v277, 0
  %v450 = vsel %vm379, %v279, 0
  %vm452 = vcmask 1041408
  %v454 = vsel %vm452, %v366, 0
  %456 = vmatprep.subr.bf16.mxu0 0
  %457 = vmatpush1.bf16.msra.mxu0 %v354
  %458 = vmatprep.subr.bf16.mxu0 0
  %459 = vmatpush1.bf16.msra.mxu0 %v355
  %460 = vmatprep.subr.bf16.mxu0 0
  %461 = vmatpush1.bf16.msra.mxu0 %v356
  %462 = vmatprep.subr.bf16.mxu0 0
  %463 = vmatpush1.bf16.msra.mxu0 %v357
  %464 = vmatprep.subr.bf16.mxu0 0
  %465 = vmatpush1.bf16.msra.mxu0 %v358
  %466 = vmatprep.subr.bf16.mxu0 0
  %467 = vmatpush1.bf16.msra.mxu0 %v359
  %468 = vmatprep.subr.bf16.mxu0 0
  %469 = vmatpush1.bf16.msra.mxu0 %v360
  %470 = vmatprep.subr.bf16.mxu0 0
  %471 = vmatpush1.bf16.msra.mxu0 %v361
  %472 = vmatprep.subr.bf16.mxu0 0
  %473 = vmatpush1.bf16.msra.mxu0 %v362
  %474 = vmatprep.subr.bf16.mxu0 0
  %475 = vmatpush1.bf16.msra.mxu0 %v363
  %476 = vmatprep.subr.bf16.mxu0 0
  %477 = vmatpush1.bf16.msra.mxu0 %v364
  %478 = vmatprep.subr.bf16.mxu0 0
  %479 = vmatpush1.bf16.msra.mxu0 %v365
  %480 = vmatprep.subr.bf16.mxu0 0
  %481 = vmatpush1.bf16.msra.mxu0 %v454
  %482 = vmatprep.subr.bf16.mxu0 0
  %483 = vmatpush1.bf16.msra.mxu0 0
  %484 = vmatprep.subr.bf16.mxu0 0
  %485 = vmatpush1.bf16.msra.mxu0 0
  %486 = vmatprep.subr.bf16.mxu0 0
  %487 = vmatpush1.bf16.msra.mxu0 0
  %488 = vmatprep.mubr.bf16.mxu0 %v381
  %489 = vmatmul.mubr.bf16.gmra.mrb[0].mxu0 %v232
  %v490 = vpop.f32.mrb[0].mxu0
  %v491 = vadd.f32 0.0, %v490
  %v492 = vpop.f32.mrb[0].mxu0
  %v493 = vpop.f32.mrb[0].mxu0
  %v494 = vadd.f32 0.0, %v493
  %v495 = vpop.f32.mrb[0].mxu0
  %496 = vmatprep.mubr.bf16.mxu0 %v384
  %497 = vmatmul.mubr.bf16.gmra.mrb[0].mxu0 %v234
  %v498 = vpop.f32.mrb[0].mxu0
  %v499 = vadd.f32 0.0, %v498
  %v500 = vpop.f32.mrb[0].mxu0
  %v501 = vpop.f32.mrb[0].mxu0
  %v502 = vadd.f32 0.0, %v501
  %v503 = vpop.f32.mrb[0].mxu0
  %504 = vmatprep.mubr.bf16.mxu0 %v387
  %505 = vmatmul.mubr.bf16.gmra.mrb[0].mxu0 %v236
  %v506 = vpop.f32.mrb[0].mxu0
  %v507 = vadd.f32 0.0, %v506
  %v508 = vpop.f32.mrb[0].mxu0
  %v509 = vpop.f32.mrb[0].mxu0
  %v510 = vadd.f32 0.0, %v509
  %v511 = vpop.f32.mrb[0].mxu0
  %512 = vmatprep.mubr.bf16.mxu0 %v390
  %513 = vmatmul.mubr.bf16.gmra.mrb[0].mxu0 %v238
  %v514 = vpop.f32.mrb[0].mxu0
  %v515 = vadd.f32 0.0, %v514
  %v516 = vpop.f32.mrb[0].mxu0
  %v517 = vpop.f32.mrb[0].mxu0
  %v518 = vadd.f32 0.0, %v517
  %v519 = vpop.f32.mrb[0].mxu0
  %520 = vmatprep.mubr.bf16.mxu0 %v393
  %521 = vmatmul.mubr.bf16.gmra.mrb[0].mxu0 %v240
  %v522 = vpop.f32.mrb[0].mxu0
  %v523 = vadd.f32 0.0, %v522
  %v524 = vpop.f32.mrb[0].mxu0
  %v525 = vpop.f32.mrb[0].mxu0
  %v526 = vadd.f32 0.0, %v525
  %v527 = vpop.f32.mrb[0].mxu0
  %528 = vmatprep.mubr.bf16.mxu0 %v396
  %529 = vmatmul.mubr.bf16.gmra.mrb[0].mxu0 %v242
  %v530 = vpop.f32.mrb[0].mxu0
  %v531 = vadd.f32 0.0, %v530
  %v532 = vpop.f32.mrb[0].mxu0
  %v533 = vpop.f32.mrb[0].mxu0
  %v534 = vadd.f32 0.0, %v533
  %v535 = vpop.f32.mrb[0].mxu0
  %536 = vmatprep.mubr.bf16.mxu0 %v399
  %537 = vmatmul.mubr.bf16.gmra.mrb[0].mxu0 %v244
  %v538 = vpop.f32.mrb[0].mxu0
  %v539 = vadd.f32 0.0, %v538
  %v540 = vpop.f32.mrb[0].mxu0
  %v541 = vpop.f32.mrb[0].mxu0
  %v542 = vadd.f32 0.0, %v541
  %v543 = vpop.f32.mrb[0].mxu0
  %544 = vmatprep.mubr.bf16.mxu0 %v402
  %545 = vmatmul.mubr.bf16.gmra.mrb[0].mxu0 %v246
  %v546 = vpop.f32.mrb[0].mxu0
  %v547 = vadd.f32 0.0, %v546
  %v548 = vpop.f32.mrb[0].mxu0
  %v549 = vpop.f32.mrb[0].mxu0
  %v550 = vadd.f32 0.0, %v549
  %v551 = vpop.f32.mrb[0].mxu0
  %552 = vmatprep.mubr.bf16.mxu0 %v405
  %553 = vmatmul.mubr.bf16.gmra.mrb[0].mxu0 %v248
  %v554 = vpop.f32.mrb[0].mxu0
  %v555 = vadd.f32 0.0, %v554
  %v556 = vpop.f32.mrb[0].mxu0
  %v557 = vpop.f32.mrb[0].mxu0
  %v558 = vadd.f32 0.0, %v557
  %v559 = vpop.f32.mrb[0].mxu0
  %560 = vmatprep.mubr.bf16.mxu0 %v408
  %561 = vmatmul.mubr.bf16.gmra.mrb[0].mxu0 %v250
  %v562 = vpop.f32.mrb[0].mxu0
  %v563 = vadd.f32 0.0, %v562
  %v564 = vpop.f32.mrb[0].mxu0
  %v565 = vpop.f32.mrb[0].mxu0
  %v566 = vadd.f32 0.0, %v565
  %v567 = vpop.f32.mrb[0].mxu0
  %568 = vmatprep.mubr.bf16.mxu0 %v411
  %569 = vmatmul.mubr.bf16.gmra.mrb[0].mxu0 %v252
  %v570 = vpop.f32.mrb[0].mxu0
  %v571 = vadd.f32 0.0, %v570
  %v572 = vpop.f32.mrb[0].mxu0
  %v573 = vpop.f32.mrb[0].mxu0
  %v574 = vadd.f32 0.0, %v573
  %v575 = vpop.f32.mrb[0].mxu0
  %576 = vmatprep.mubr.bf16.mxu0 %v414
  %577 = vmatmul.mubr.bf16.gmra.mrb[0].mxu0 %v254
  %v578 = vpop.f32.mrb[0].mxu0
  %v579 = vadd.f32 0.0, %v578
  %v580 = vpop.f32.mrb[0].mxu0
  %v581 = vpop.f32.mrb[0].mxu0
  %v582 = vadd.f32 0.0, %v581
  %v583 = vpop.f32.mrb[0].mxu0
  %584 = vmatprep.mubr.bf16.mxu0 %v417
  %585 = vmatmul.mubr.bf16.gmra.mrb[0].mxu0 %v256
  %v586 = vpop.f32.mrb[0].mxu0
  %v587 = vadd.f32 0.0, %v586
  %v588 = vpop.f32.mrb[0].mxu0
  %v589 = vpop.f32.mrb[0].mxu0
  %v590 = vadd.f32 0.0, %v589
  %v591 = vpop.f32.mrb[0].mxu0
  %592 = vmatprep.mubr.bf16.mxu0 %v420
  %593 = vmatmul.mubr.bf16.gmra.mrb[0].mxu0 %v258
  %v594 = vpop.f32.mrb[0].mxu0
  %v595 = vadd.f32 0.0, %v594
  %v596 = vpop.f32.mrb[0].mxu0
  %v597 = vpop.f32.mrb[0].mxu0
  %v598 = vadd.f32 0.0, %v597
  %v599 = vpop.f32.mrb[0].mxu0
  %600 = vmatprep.mubr.bf16.mxu0 %v423
  %601 = vmatmul.mubr.bf16.gmra.mrb[0].mxu0 %v260
  %v602 = vpop.f32.mrb[0].mxu0
  %v603 = vadd.f32 0.0, %v602
  %v604 = vpop.f32.mrb[0].mxu0
  %v605 = vpop.f32.mrb[0].mxu0
  %v606 = vadd.f32 0.0, %v605
  %v607 = vpop.f32.mrb[0].mxu0
  %608 = vmatprep.mubr.bf16.mxu0 %v426
  %609 = vmatmul.mubr.bf16.gmra.mrb[0].mxu0 %v262
  %v610 = vpop.f32.mrb[0].mxu0
  %v611 = vadd.f32 0.0, %v610
  %v612 = vpop.f32.mrb[0].mxu0
  %v613 = vpop.f32.mrb[0].mxu0
  %v614 = vadd.f32 0.0, %v613
  %v615 = vpop.f32.mrb[0].mxu0
  %616 = vmatprep.mubr.bf16.mxu0 %v429
  %617 = vmatmul.mubr.bf16.gmra.mrb[0].mxu0 %v264
  %v618 = vpop.f32.mrb[0].mxu0
  %v619 = vadd.f32 0.0, %v618
  %v620 = vpop.f32.mrb[0].mxu0
  %v621 = vpop.f32.mrb[0].mxu0
  %v622 = vadd.f32 0.0, %v621
  %v623 = vpop.f32.mrb[0].mxu0
  %624 = vmatprep.mubr.bf16.mxu0 %v432
  %625 = vmatmul.mubr.bf16.gmra.mrb[0].mxu0 %v266
  %v626 = vpop.f32.mrb[0].mxu0
  %v627 = vadd.f32 0.0, %v626
  %v628 = vpop.f32.mrb[0].mxu0
  %v629 = vpop.f32.mrb[0].mxu0
  %v630 = vadd.f32 0.0, %v629
  %v631 = vpop.f32.mrb[0].mxu0
  %632 = vmatprep.mubr.bf16.mxu0 %v435
  %633 = vmatmul.mubr.bf16.gmra.mrb[0].mxu0 %v268
  %v634 = vpop.f32.mrb[0].mxu0
  %v635 = vadd.f32 0.0, %v634
  %v636 = vpop.f32.mrb[0].mxu0
  %v637 = vpop.f32.mrb[0].mxu0
  %v638 = vadd.f32 0.0, %v637
  %v639 = vpop.f32.mrb[0].mxu0
  %640 = vmatprep.mubr.bf16.mxu0 %v438
  %641 = vmatmul.mubr.bf16.gmra.mrb[0].mxu0 %v270
  %v642 = vpop.f32.mrb[0].mxu0
  %v643 = vadd.f32 0.0, %v642
  %v644 = vpop.f32.mrb[0].mxu0
  %v645 = vpop.f32.mrb[0].mxu0
  %v646 = vadd.f32 0.0, %v645
  %v647 = vpop.f32.mrb[0].mxu0
  %648 = vmatprep.mubr.bf16.mxu0 %v441
  %649 = vmatmul.mubr.bf16.gmra.mrb[0].mxu0 %v272
  %v650 = vpop.f32.mrb[0].mxu0
  %v651 = vadd.f32 0.0, %v650
  %v652 = vpop.f32.mrb[0].mxu0
  %v653 = vpop.f32.mrb[0].mxu0
  %v654 = vadd.f32 0.0, %v653
  %v655 = vpop.f32.mrb[0].mxu0
  %656 = vmatprep.mubr.bf16.mxu0 %v444
  %657 = vmatmul.mubr.bf16.gmra.mrb[0].mxu0 %v274
  %v658 = vpop.f32.mrb[0].mxu0
  %v659 = vadd.f32 0.0, %v658
  %v660 = vpop.f32.mrb[0].mxu0
  %v661 = vpop.f32.mrb[0].mxu0
  %v662 = vadd.f32 0.0, %v661
  %v663 = vpop.f32.mrb[0].mxu0
  %664 = vmatprep.mubr.bf16.mxu0 %v447
  %665 = vmatmul.mubr.bf16.gmra.mrb[0].mxu0 %v276
  %v666 = vpop.f32.mrb[0].mxu0
  %v667 = vadd.f32 0.0, %v666
  %v668 = vpop.f32.mrb[0].mxu0
  %v669 = vpop.f32.mrb[0].mxu0
  %v670 = vadd.f32 0.0, %v669
  %v671 = vpop.f32.mrb[0].mxu0
  %672 = vmatprep.mubr.bf16.mxu0 %v450
  %673 = vmatmul.mubr.bf16.gmra.mrb[0].mxu0 %v278
  %v674 = vpop.f32.mrb[0].mxu0
  %v675 = vadd.f32 0.0, %v674
  %v676 = vpop.f32.mrb[0].mxu0
  %v677 = vpop.f32.mrb[0].mxu0
  %v678 = vadd.f32 0.0, %v677
  %v679 = vpop.f32.mrb[0].mxu0
  %680 = vdwg.mxu0
  %v681 = vmax.f32 %v491, 0.0
  %v682 = vmax.f32 %v494, 0.0
  %v683 = vmax.f32 %v499, 0.0
  %v684 = vmax.f32 %v502, 0.0
  %v685 = vmax.f32 %v507, 0.0
  %v686 = vmax.f32 %v510, 0.0
  %v687 = vmax.f32 %v515, 0.0
  %v688 = vmax.f32 %v518, 0.0
  %v689 = vmax.f32 %v523, 0.0
  %v690 = vmax.f32 %v526, 0.0
  %v691 = vmax.f32 %v531, 0.0
  %v692 = vmax.f32 %v534, 0.0
  %v693 = vmax.f32 %v539, 0.0
  %v694 = vmax.f32 %v542, 0.0
  %v695 = vmax.f32 %v547, 0.0
  %v696 = vmax.f32 %v550, 0.0
  %v697 = vmax.f32 %v555, 0.0
  %v698 = vmax.f32 %v558, 0.0
  %v699 = vmax.f32 %v563, 0.0
  %v700 = vmax.f32 %v566, 0.0
  %v701 = vmax.f32 %v571, 0.0
  %v702 = vmax.f32 %v574, 0.0
  %v703 = vmax.f32 %v579, 0.0
  %v704 = vmax.f32 %v582, 0.0
  %v705 = vmax.f32 %v587, 0.0
  %v706 = vmax.f32 %v590, 0.0
  %v707 = vmax.f32 %v595, 0.0
  %v708 = vmax.f32 %v598, 0.0
  %v709 = vmax.f32 %v603, 0.0
  %v710 = vmax.f32 %v606, 0.0
  %v711 = vmax.f32 %v611, 0.0
  %v712 = vmax.f32 %v614, 0.0
  %v713 = vmax.f32 %v619, 0.0
  %v714 = vmax.f32 %v622, 0.0
  %v715 = vmax.f32 %v627, 0.0
  %v716 = vmax.f32 %v630, 0.0
  %v717 = vmax.f32 %v635, 0.0
  %v718 = vmax.f32 %v638, 0.0
  %v719 = vmax.f32 %v643, 0.0
  %v720 = vmax.f32 %v646, 0.0
  %v721 = vmax.f32 %v651, 0.0
  %v722 = vmax.f32 %v654, 0.0
  %v723 = vmax.f32 %v659, 0.0
  %v724 = vmax.f32 %v662, 0.0
  %v725 = vmax.f32 %v667, 0.0
  %v726 = vmax.f32 %v670, 0.0
  %v727 = vmax.f32 %v675, 0.0
  %v728 = vmax.f32 %v678, 0.0
  %v729 = vmax.f32 %v681, %v682
  %v730 = vmax.f32 %v683, %v684
  %v731 = vmax.f32 %v685, %v686
  %v732 = vmax.f32 %v687, %v688
  %v733 = vmax.f32 %v689, %v690
  %v734 = vmax.f32 %v691, %v692
  %v735 = vmax.f32 %v693, %v694
  %v736 = vmax.f32 %v695, %v696
  %v737 = vmax.f32 %v697, %v698
  %v738 = vmax.f32 %v699, %v700
  %v739 = vmax.f32 %v701, %v702
  %v740 = vmax.f32 %v703, %v704
  %v741 = vmax.f32 %v705, %v706
  %v742 = vmax.f32 %v707, %v708
  %v743 = vmax.f32 %v709, %v710
  %v744 = vmax.f32 %v711, %v712
  %v745 = vmax.f32 %v713, %v714
  %v746 = vmax.f32 %v715, %v716
  %v747 = vmax.f32 %v717, %v718
  %v748 = vmax.f32 %v719, %v720
  %v749 = vmax.f32 %v721, %v722
  %v750 = vmax.f32 %v723, %v724
  %v751 = vmax.f32 %v725, %v726
  %v752 = vmax.f32 %v727, %v728
  %v753 = vmax.f32 %v729, 0.0
  %v754 = vmax.f32 %v730, %v682
  %v755 = vmax.f32 %v731, %v684
  %v756 = vmax.f32 %v732, %v686
  %v757 = vmax.f32 %v733, 0.0
  %v758 = vmax.f32 %v734, %v690
  %v759 = vmax.f32 %v735, %v692
  %v760 = vmax.f32 %v736, %v694
  %v761 = vmax.f32 %v737, 0.0
  %v762 = vmax.f32 %v738, %v698
  %v763 = vmax.f32 %v739, %v700
  %v764 = vmax.f32 %v740, %v702
  %v765 = vmax.f32 %v741, 0.0
  %v766 = vmax.f32 %v742, %v706
  %v767 = vmax.f32 %v743, %v708
  %v768 = vmax.f32 %v744, %v710
  %v769 = vmax.f32 %v745, 0.0
  %v770 = vmax.f32 %v746, %v714
  %v771 = vmax.f32 %v747, %v716
  %v772 = vmax.f32 %v748, %v718
  %v773 = vmax.f32 %v749, 0.0
  %v774 = vmax.f32 %v750, %v722
  %v775 = vmax.f32 %v751, %v724
  %v776 = vmax.f32 %v752, %v726
  %v801 = vrot.slane %v753, 7
  %v802 = vrot.slane %v754, 7
  %v803 = vrot.slane %v755, 7
  %v804 = vrot.slane %v756, 7
  %v805 = vrot.slane %v757, 7
  %v806 = vrot.slane %v758, 7
  %v807 = vrot.slane %v759, 7
  %v808 = vrot.slane %v760, 7
  %v809 = vrot.slane %v761, 7
  %v810 = vrot.slane %v762, 7
  %v811 = vrot.slane %v763, 7
  %v812 = vrot.slane %v764, 7
  %v813 = vrot.slane %v765, 7
  %v814 = vrot.slane %v766, 7
  %v815 = vrot.slane %v767, 7
  %v816 = vrot.slane %v768, 7
  %v817 = vrot.slane %v769, 7
  %v818 = vrot.slane %v770, 7
  %v819 = vrot.slane %v771, 7
  %v820 = vrot.slane %v772, 7
  %v821 = vrot.slane %v773, 7
  %v822 = vrot.slane %v774, 7
  %v823 = vrot.slane %v775, 7
  %v824 = vrot.slane %v776, 7
  %vm849 = vcmask 1040384
  %v850 = vsel %vm849, 0.0, %v801
  %v851 = vsel %vm849, 0.0, %v802
  %v852 = vsel %vm849, 0.0, %v803
  %v853 = vsel %vm849, 0.0, %v804
  %v854 = vsel %vm849, 0.0, %v805
  %v855 = vsel %vm849, 0.0, %v806
  %v856 = vsel %vm849, 0.0, %v807
  %v857 = vsel %vm849, 0.0, %v808
  %v858 = vsel %vm849, 0.0, %v809
  %v859 = vsel %vm849, 0.0, %v810
  %v860 = vsel %vm849, 0.0, %v811
  %v861 = vsel %vm849, 0.0, %v812
  %v862 = vsel %vm849, 0.0, %v813
  %v863 = vsel %vm849, 0.0, %v814
  %v864 = vsel %vm849, 0.0, %v815
  %v865 = vsel %vm849, 0.0, %v816
  %v866 = vsel %vm849, 0.0, %v817
  %v867 = vsel %vm849, 0.0, %v818
  %v868 = vsel %vm849, 0.0, %v819
  %v869 = vsel %vm849, 0.0, %v820
  %v870 = vsel %vm849, 0.0, %v821
  %v871 = vsel %vm849, 0.0, %v822
  %v872 = vsel %vm849, 0.0, %v823
  %v873 = vsel %vm849, 0.0, %v824
  %v874 = vrot.slane %v753, 1
  %v875 = vrot.slane %v754, 1
  %v876 = vrot.slane %v755, 1
  %v877 = vrot.slane %v756, 1
  %v878 = vrot.slane %v757, 1
  %v879 = vrot.slane %v758, 1
  %v880 = vrot.slane %v759, 1
  %v881 = vrot.slane %v760, 1
  %v882 = vrot.slane %v761, 1
  %v883 = vrot.slane %v762, 1
  %v884 = vrot.slane %v763, 1
  %v885 = vrot.slane %v764, 1
  %v886 = vrot.slane %v765, 1
  %v887 = vrot.slane %v766, 1
  %v888 = vrot.slane %v767, 1
  %v889 = vrot.slane %v768, 1
  %v890 = vrot.slane %v769, 1
  %v891 = vrot.slane %v770, 1
  %v892 = vrot.slane %v771, 1
  %v893 = vrot.slane %v772, 1
  %v894 = vrot.slane %v773, 1
  %v895 = vrot.slane %v774, 1
  %v896 = vrot.slane %v775, 1
  %v897 = vrot.slane %v776, 1
  %vm922 = vcmask 1046528
  %v923 = vsel %vm922, %v874, 0.0
  %v924 = vsel %vm922, %v875, 0.0
  %v925 = vsel %vm922, %v876, 0.0
  %v926 = vsel %vm922, %v877, 0.0
  %v927 = vsel %vm922, %v878, 0.0
  %v928 = vsel %vm922, %v879, 0.0
  %v929 = vsel %vm922, %v880, 0.0
  %v930 = vsel %vm922, %v881, 0.0
  %v931 = vsel %vm922, %v882, 0.0
  %v932 = vsel %vm922, %v883, 0.0
  %v933 = vsel %vm922, %v884, 0.0
  %v934 = vsel %vm922, %v885, 0.0
  %v935 = vsel %vm922, %v886, 0.0
  %v936 = vsel %vm922, %v887, 0.0
  %v937 = vsel %vm922, %v888, 0.0
  %v938 = vsel %vm922, %v889, 0.0
  %v939 = vsel %vm922, %v890, 0.0
  %v940 = vsel %vm922, %v891, 0.0
  %v941 = vsel %vm922, %v892, 0.0
  %v942 = vsel %vm922, %v893, 0.0
  %v943 = vsel %vm922, %v894, 0.0
  %v944 = vsel %vm922, %v895, 0.0
  %v945 = vsel %vm922, %v896, 0.0
  %v946 = vsel %vm922, %v897, 0.0
  %v947 = vmax.f32 %v753, %v850
  %v948 = vmax.f32 %v754, %v851
  %v949 = vmax.f32 %v755, %v852
  %v950 = vmax.f32 %v756, %v853
  %v951 = vmax.f32 %v757, %v854
  %v952 = vmax.f32 %v758, %v855
  %v953 = vmax.f32 %v759, %v856
  %v954 = vmax.f32 %v760, %v857
  %v955 = vmax.f32 %v761, %v858
  %v956 = vmax.f32 %v762, %v859
  %v957 = vmax.f32 %v763, %v860
  %v958 = vmax.f32 %v764, %v861
  %v959 = vmax.f32 %v765, %v862
  %v960 = vmax.f32 %v766, %v863
  %v961 = vmax.f32 %v767, %v864
  %v962 = vmax.f32 %v768, %v865
  %v963 = vmax.f32 %v769, %v866
  %v964 = vmax.f32 %v770, %v867
  %v965 = vmax.f32 %v771, %v868
  %v966 = vmax.f32 %v772, %v869
  %v967 = vmax.f32 %v773, %v870
  %v968 = vmax.f32 %v774, %v871
  %v969 = vmax.f32 %v775, %v872
  %v970 = vmax.f32 %v776, %v873
  %v971 = vmax.f32 %v947, %v923
  %v972 = vmax.f32 %v948, %v924
  %v973 = vmax.f32 %v949, %v925
  %v974 = vmax.f32 %v950, %v926
  %v975 = vmax.f32 %v951, %v927
  %v976 = vmax.f32 %v952, %v928
  %v977 = vmax.f32 %v953, %v929
  %v978 = vmax.f32 %v954, %v930
  %v979 = vmax.f32 %v955, %v931
  %v980 = vmax.f32 %v956, %v932
  %v981 = vmax.f32 %v957, %v933
  %v982 = vmax.f32 %v958, %v934
  %v983 = vmax.f32 %v959, %v935
  %v984 = vmax.f32 %v960, %v936
  %v985 = vmax.f32 %v961, %v937
  %v986 = vmax.f32 %v962, %v938
  %v987 = vmax.f32 %v963, %v939
  %v988 = vmax.f32 %v964, %v940
  %v989 = vmax.f32 %v965, %v941
  %v990 = vmax.f32 %v966, %v942
  %v991 = vmax.f32 %v967, %v943
  %v992 = vmax.f32 %v968, %v944
  %v993 = vmax.f32 %v969, %v945
  %v994 = vmax.f32 %v970, %v946
  %v995 = vlaneseq
  %v996 = vshrl.u32 %v995, 7
  %vm997 = vcmp.lt.s32.totalorder %v996, 0
  %v998 = vsub.s32 0, %v996
  %v999 = vsel %vm997, %v998, %v996
  %v1000 = vshrl.u32 %v999, 1
  %v1001 = vand.u32 %v999, 1
  %v1002 = vsub.s32 0, %v1001
  %v1003 = vsel %vm997, %v1002, %v1001
  %vm1004 = vcmp.ne.s32.totalorder %v1003, 0
  %vm1005 = vcmp.lt.s32.totalorder %v1003, 0
  %vm1006 = vmand %vm1005, %vm1004
  %v1007 = vadd.s32 %v1003, 2
  %v1008 = vsel %vm1006, %v1007, %v1003
  %vm1009 = vcmp.eq.s32.totalorder %v1008, 0
  %v1010 = vsel %vm1009, %v971, 0.0
  %v1011 = vsel %vm1009, %v972, 0.0
  %v1012 = vsel %vm1009, %v973, 0.0
  %v1013 = vsel %vm1009, %v974, 0.0
  %v1014 = vsel %vm1009, %v975, 0.0
  %v1015 = vsel %vm1009, %v976, 0.0
  %v1016 = vsel %vm1009, %v977, 0.0
  %v1017 = vsel %vm1009, %v978, 0.0
  %v1018 = vsel %vm1009, %v979, 0.0
  %v1019 = vsel %vm1009, %v980, 0.0
  %v1020 = vsel %vm1009, %v981, 0.0
  %v1021 = vsel %vm1009, %v982, 0.0
  %v1022 = vsel %vm1009, %v983, 0.0
  %v1023 = vsel %vm1009, %v984, 0.0
  %v1024 = vsel %vm1009, %v985, 0.0
  %v1025 = vsel %vm1009, %v986, 0.0
  %v1026 = vsel %vm1009, %v987, 0.0
  %v1027 = vsel %vm1009, %v988, 0.0
  %v1028 = vsel %vm1009, %v989, 0.0
  %v1029 = vsel %vm1009, %v990, 0.0
  %v1030 = vsel %vm1009, %v991, 0.0
  %v1031 = vsel %vm1009, %v992, 0.0
  %v1032 = vsel %vm1009, %v993, 0.0
  %v1033 = vsel %vm1009, %v994, 0.0
  %vm1034 = vcmask 523264
  %v1035 = vsel %vm1034, %v1010, 0.0
  %v1036 = vsel %vm1034, %v1011, 0.0
  %v1037 = vadd.f32 %v1035, %v1036
  %v1038 = vsel %vm1034, %v1012, 0.0
  %v1039 = vadd.f32 %v1037, %v1038
  %v1040 = vsel %vm1034, %v1013, 0.0
  %v1041 = vadd.f32 %v1039, %v1040
  %v1042 = vrot.slane %v1041, 4
  %v1043 = vadd.f32 %v1041, %v1042
  %v1044 = vrot.slane %v1043, 2
  %v1045 = vadd.f32 %v1043, %v1044
  %v1046 = vrot.slane %v1045, 1
  %v1047 = vadd.f32 %v1045, %v1046
  %v1048 = vsel %vm1034, %v1014, 0.0
  %v1049 = vsel %vm1034, %v1015, 0.0
  %v1050 = vadd.f32 %v1048, %v1049
  %v1051 = vsel %vm1034, %v1016, 0.0
  %v1052 = vadd.f32 %v1050, %v1051
  %v1053 = vsel %vm1034, %v1017, 0.0
  %v1054 = vadd.f32 %v1052, %v1053
  %v1055 = vrot.slane %v1054, 4
  %v1056 = vadd.f32 %v1054, %v1055
  %v1057 = vrot.slane %v1056, 2
  %v1058 = vadd.f32 %v1056, %v1057
  %v1059 = vrot.slane %v1058, 1
  %v1060 = vadd.f32 %v1058, %v1059
  %v1061 = vsel %vm1034, %v1018, 0.0
  %v1062 = vsel %vm1034, %v1019, 0.0
  %v1063 = vadd.f32 %v1061, %v1062
  %v1064 = vsel %vm1034, %v1020, 0.0
  %v1065 = vadd.f32 %v1063, %v1064
  %v1066 = vsel %vm1034, %v1021, 0.0
  %v1067 = vadd.f32 %v1065, %v1066
  %v1068 = vrot.slane %v1067, 4
  %v1069 = vadd.f32 %v1067, %v1068
  %v1070 = vrot.slane %v1069, 2
  %v1071 = vadd.f32 %v1069, %v1070
  %v1072 = vrot.slane %v1071, 1
  %v1073 = vadd.f32 %v1071, %v1072
  %v1074 = vsel %vm1034, %v1022, 0.0
  %v1075 = vsel %vm1034, %v1023, 0.0
  %v1076 = vadd.f32 %v1074, %v1075
  %v1077 = vsel %vm1034, %v1024, 0.0
  %v1078 = vadd.f32 %v1076, %v1077
  %v1079 = vsel %vm1034, %v1025, 0.0
  %v1080 = vadd.f32 %v1078, %v1079
  %v1081 = vrot.slane %v1080, 4
  %v1082 = vadd.f32 %v1080, %v1081
  %v1083 = vrot.slane %v1082, 2
  %v1084 = vadd.f32 %v1082, %v1083
  %v1085 = vrot.slane %v1084, 1
  %v1086 = vadd.f32 %v1084, %v1085
  %v1087 = vsel %vm1034, %v1026, 0.0
  %v1088 = vsel %vm1034, %v1027, 0.0
  %v1089 = vadd.f32 %v1087, %v1088
  %v1090 = vsel %vm1034, %v1028, 0.0
  %v1091 = vadd.f32 %v1089, %v1090
  %v1092 = vsel %vm1034, %v1029, 0.0
  %v1093 = vadd.f32 %v1091, %v1092
  %v1094 = vrot.slane %v1093, 4
  %v1095 = vadd.f32 %v1093, %v1094
  %v1096 = vrot.slane %v1095, 2
  %v1097 = vadd.f32 %v1095, %v1096
  %v1098 = vrot.slane %v1097, 1
  %v1099 = vadd.f32 %v1097, %v1098
  %v1100 = vsel %vm1034, %v1030, 0.0
  %v1101 = vsel %vm1034, %v1031, 0.0
  %v1102 = vadd.f32 %v1100, %v1101
  %v1103 = vsel %vm1034, %v1032, 0.0
  %v1104 = vadd.f32 %v1102, %v1103
  %v1105 = vsel %vm1034, %v1033, 0.0
  %v1106 = vadd.f32 %v1104, %v1105
  %v1107 = vrot.slane %v1106, 4
  %v1108 = vadd.f32 %v1106, %v1107
  %v1109 = vrot.slane %v1108, 2
  %v1110 = vadd.f32 %v1108, %v1109
  %v1111 = vrot.slane %v1110, 1
  %v1112 = vadd.f32 %v1110, %v1111
  %v1113 = vmul.f32 %v1047, 0.0625
  %v1114 = vmul.f32 %v1060, 0.0625
  %v1115 = vmul.f32 %v1073, 0.0625
  %v1116 = vmul.f32 %v1086, 0.0625
  %v1117 = vmul.f32 %v1099, 0.0625
  %v1118 = vmul.f32 %v1112, 0.0625
  %v1119 = vpack.c.bf16 %v1113, %v1113
  %v1120 = vpack.c.bf16 %v1114, %v1114
  %v1121 = vpack.c.bf16 %v1115, %v1115
  %v1122 = vpack.c.bf16 %v1116, %v1116
  %v1123 = vpack.c.bf16 %v1117, %v1117
  %v1124 = vpack.c.bf16 %v1118, %v1118
  %v1125 = vld [vmem:[%s2] sm:$0xff]
  %v1126 = vld [vmem:[%s2 + $0x8] sm:$0xff]
  %v1127 = vld [vmem:[%s2 + $0x10] sm:$0xff]
  %v1128 = vld [vmem:[%s2 + $0x18] sm:$0xff]
  %v1129 = vld [vmem:[%s2 + $0x20] sm:$0xff]
  %v1130 = vld [vmem:[%s2 + $0x28] sm:$0xff]
  %v1131 = vld [vmem:[%s2 + $0x30] sm:$0xff]
  %v1132 = vld [vmem:[%s2 + $0x38] sm:$0xff]
  %v1133 = vld [vmem:[%s2 + $0x40] sm:$0xff]
  %v1134 = vld [vmem:[%s2 + $0x48] sm:$0xff]
  %v1135 = vld [vmem:[%s2 + $0x50] sm:$0xff]
  %v1136 = vld [vmem:[%s2 + $0x58] sm:$0xff]
  %v1137 = vld [vmem:[%s2 + $0x60] sm:$0xff]
  %v1138 = vld [vmem:[%s2 + $0x68] sm:$0xff]
  %v1139 = vld [vmem:[%s2 + $0x70] sm:$0xff]
  %v1140 = vld [vmem:[%s2 + $0x78] sm:$0xff]
  %v1141 = vld [vmem:[%s2 + $0x80] sm:$0xff]
  %v1142 = vld [vmem:[%s2 + $0x88] sm:$0xff]
  %v1143 = vld [vmem:[%s2 + $0x90] sm:$0xff]
  %v1144 = vld [vmem:[%s2 + $0x98] sm:$0xff]
  %v1145 = vld [vmem:[%s2 + $0xa0] sm:$0xff]
  %v1146 = vld [vmem:[%s2 + $0xa8] sm:$0xff]
  %v1147 = vld [vmem:[%s2 + $0xb0] sm:$0xff]
  %v1148 = vld [vmem:[%s2 + $0xb8] sm:$0xff]
  %v1149 = vld [vmem:[%s2 + $0xc0] sm:$0xff]
  %v1150 = vld [vmem:[%s2 + $0xc8] sm:$0xff]
  %v1151 = vld [vmem:[%s2 + $0xd0] sm:$0xff]
  %v1152 = vld [vmem:[%s2 + $0xd8] sm:$0xff]
  %v1153 = vld [vmem:[%s2 + $0xe0] sm:$0xff]
  %v1154 = vld [vmem:[%s2 + $0xe8] sm:$0xff]
  %v1155 = vld [vmem:[%s2 + $0xf0] sm:$0xff]
  %v1156 = vld [vmem:[%s2 + $0xf8] sm:$0xff]
  %v1157 = vld [vmem:[%s2 + $0x100] sm:$0xff]
  %v1158 = vld [vmem:[%s2 + $0x108] sm:$0xff]
  %v1159 = vld [vmem:[%s2 + $0x110] sm:$0xff]
  %v1160 = vld [vmem:[%s2 + $0x118] sm:$0xff]
  %v1161 = vld [vmem:[%s2 + $0x120] sm:$0xff]
  %v1162 = vld [vmem:[%s2 + $0x128] sm:$0xff]
  %v1163 = vld [vmem:[%s2 + $0x130] sm:$0xff]
  %v1164 = vld [vmem:[%s2 + $0x138] sm:$0xff]
  %v1165 = vld [vmem:[%s2 + $0x140] sm:$0xff]
  %v1166 = vld [vmem:[%s2 + $0x148] sm:$0xff]
  %v1167 = vld [vmem:[%s2 + $0x150] sm:$0xff]
  %v1168 = vld [vmem:[%s2 + $0x158] sm:$0xff]
  %v1169 = vld [vmem:[%s2 + $0x160] sm:$0xff]
  %v1170 = vld [vmem:[%s2 + $0x168] sm:$0xff]
  %v1171 = vld [vmem:[%s2 + $0x170] sm:$0xff]
  %v1172 = vld [vmem:[%s2 + $0x178] sm:$0xff]
  %v1173 = vld [vmem:[%s2 + $0x180] sm:$0xff]
  %v1174 = vld [vmem:[%s2 + $0x188] sm:$0xff]
  %v1175 = vld [vmem:[%s2 + $0x190] sm:$0xff]
  %v1176 = vld [vmem:[%s2 + $0x198] sm:$0xff]
  %v1177 = vld [vmem:[%s2 + $0x1a0] sm:$0xff]
  %v1178 = vld [vmem:[%s2 + $0x1a8] sm:$0xff]
  %v1179 = vld [vmem:[%s2 + $0x1b0] sm:$0xff]
  %v1180 = vld [vmem:[%s2 + $0x1b8] sm:$0xff]
  %v1181 = vld [vmem:[%s2 + $0x1c0] sm:$0xff]
  %v1182 = vld [vmem:[%s2 + $0x1c8] sm:$0xff]
  %v1183 = vld [vmem:[%s2 + $0x1d0] sm:$0xff]
  %v1184 = vld [vmem:[%s2 + $0x1d8] sm:$0xff]
  %v1185 = vld [vmem:[%s2 + $0x1e0] sm:$0xff]
  %v1186 = vld [vmem:[%s2 + $0x1e8] sm:$0xff]
  %v1187 = vld [vmem:[%s2 + $0x1f0] sm:$0xff]
  %v1188 = vld [vmem:[%s2 + $0x1f8] sm:$0xff]
  %v1195 = vunpack.c.l.b16 %v1119
  %v1196 = vunpack.c.l.b16 %v1120
  %v1197 = vunpack.c.l.b16 %v1121
  %v1198 = vunpack.c.l.b16 %v1122
  %v1199 = vunpack.c.l.b16 %v1123
  %v1200 = vunpack.c.l.b16 %v1124
  %vm1201 = vcmask 1041409
  %v1202 = vsel %vm1201, %v1196, %v1195
  %vm1203 = vcmask 1042434
  %v1204 = vsel %vm1203, %v1197, %v1202
  %vm1205 = vcmask 1043459
  %v1206 = vsel %vm1205, %v1198, %v1204
  %vm1207 = vcmask 1044484
  %v1208 = vsel %vm1207, %v1199, %v1206
  %vm1209 = vcmask 1045509
  %v1210 = vsel %vm1209, %v1200, %v1208
  %v1211 = vpack.c.b16 %v1210, %v1210
  %v1276 = vunpack.c.l.b16 %v1125
  %v1277 = vunpack.c.h.b16 %v1125
  %v1278 = vunpack.c.l.b16 %v1126
  %v1279 = vunpack.c.h.b16 %v1126
  %v1280 = vunpack.c.l.b16 %v1127
  %v1281 = vunpack.c.h.b16 %v1127
  %v1282 = vunpack.c.l.b16 %v1128
  %v1283 = vunpack.c.h.b16 %v1128
  %v1284 = vunpack.c.l.b16 %v1129
  %v1285 = vunpack.c.h.b16 %v1129
  %v1286 = vunpack.c.l.b16 %v1130
  %v1287 = vunpack.c.h.b16 %v1130
  %v1288 = vunpack.c.l.b16 %v1131
  %v1289 = vunpack.c.h.b16 %v1131
  %v1290 = vunpack.c.l.b16 %v1132
  %v1291 = vunpack.c.h.b16 %v1132
  %v1292 = vunpack.c.l.b16 %v1133
  %v1293 = vunpack.c.h.b16 %v1133
  %v1294 = vunpack.c.l.b16 %v1134
  %v1295 = vunpack.c.h.b16 %v1134
  %v1296 = vunpack.c.l.b16 %v1135
  %v1297 = vunpack.c.h.b16 %v1135
  %v1298 = vunpack.c.l.b16 %v1136
  %v1299 = vunpack.c.h.b16 %v1136
  %v1300 = vunpack.c.l.b16 %v1137
  %v1301 = vunpack.c.h.b16 %v1137
  %v1302 = vunpack.c.l.b16 %v1138
  %v1303 = vunpack.c.h.b16 %v1138
  %v1304 = vunpack.c.l.b16 %v1139
  %v1305 = vunpack.c.h.b16 %v1139
  %v1306 = vunpack.c.l.b16 %v1140
  %v1307 = vunpack.c.h.b16 %v1140
  %v1308 = vunpack.c.l.b16 %v1141
  %v1309 = vunpack.c.h.b16 %v1141
  %v1310 = vunpack.c.l.b16 %v1142
  %v1311 = vunpack.c.h.b16 %v1142
  %v1312 = vunpack.c.l.b16 %v1143
  %v1313 = vunpack.c.h.b16 %v1143
  %v1314 = vunpack.c.l.b16 %v1144
  %v1315 = vunpack.c.h.b16 %v1144
  %v1316 = vunpack.c.l.b16 %v1145
  %v1317 = vunpack.c.h.b16 %v1145
  %v1318 = vunpack.c.l.b16 %v1146
  %v1319 = vunpack.c.h.b16 %v1146
  %v1320 = vunpack.c.l.b16 %v1147
  %v1321 = vunpack.c.h.b16 %v1147
  %v1322 = vunpack.c.l.b16 %v1148
  %v1323 = vunpack.c.h.b16 %v1148
  %v1324 = vunpack.c.l.b16 %v1149
  %v1325 = vunpack.c.h.b16 %v1149
  %v1326 = vunpack.c.l.b16 %v1150
  %v1327 = vunpack.c.h.b16 %v1150
  %v1328 = vunpack.c.l.b16 %v1151
  %v1329 = vunpack.c.h.b16 %v1151
  %v1330 = vunpack.c.l.b16 %v1152
  %v1331 = vunpack.c.h.b16 %v1152
  %v1332 = vunpack.c.l.b16 %v1153
  %v1333 = vunpack.c.h.b16 %v1153
  %v1334 = vunpack.c.l.b16 %v1154
  %v1335 = vunpack.c.h.b16 %v1154
  %v1336 = vunpack.c.l.b16 %v1155
  %v1337 = vunpack.c.h.b16 %v1155
  %v1338 = vunpack.c.l.b16 %v1156
  %v1339 = vunpack.c.h.b16 %v1156
  %v1340 = vunpack.c.l.b16 %v1157
  %v1341 = vunpack.c.h.b16 %v1157
  %v1342 = vunpack.c.l.b16 %v1158
  %v1343 = vunpack.c.h.b16 %v1158
  %v1344 = vunpack.c.l.b16 %v1159
  %v1345 = vunpack.c.h.b16 %v1159
  %v1346 = vunpack.c.l.b16 %v1160
  %v1347 = vunpack.c.h.b16 %v1160
  %v1348 = vunpack.c.l.b16 %v1161
  %v1349 = vunpack.c.h.b16 %v1161
  %v1350 = vunpack.c.l.b16 %v1162
  %v1351 = vunpack.c.h.b16 %v1162
  %v1352 = vunpack.c.l.b16 %v1163
  %v1353 = vunpack.c.h.b16 %v1163
  %v1354 = vunpack.c.l.b16 %v1164
  %v1355 = vunpack.c.h.b16 %v1164
  %v1356 = vunpack.c.l.b16 %v1165
  %v1357 = vunpack.c.h.b16 %v1165
  %v1358 = vunpack.c.l.b16 %v1166
  %v1359 = vunpack.c.h.b16 %v1166
  %v1360 = vunpack.c.l.b16 %v1167
  %v1361 = vunpack.c.h.b16 %v1167
  %v1362 = vunpack.c.l.b16 %v1168
  %v1363 = vunpack.c.h.b16 %v1168
  %v1364 = vunpack.c.l.b16 %v1169
  %v1365 = vunpack.c.h.b16 %v1169
  %v1366 = vunpack.c.l.b16 %v1170
  %v1367 = vunpack.c.h.b16 %v1170
  %v1368 = vunpack.c.l.b16 %v1171
  %v1369 = vunpack.c.h.b16 %v1171
  %v1370 = vunpack.c.l.b16 %v1172
  %v1371 = vunpack.c.h.b16 %v1172
  %v1372 = vunpack.c.l.b16 %v1173
  %v1373 = vunpack.c.h.b16 %v1173
  %v1374 = vunpack.c.l.b16 %v1174
  %v1375 = vunpack.c.h.b16 %v1174
  %v1376 = vunpack.c.l.b16 %v1175
  %v1377 = vunpack.c.h.b16 %v1175
  %v1378 = vunpack.c.l.b16 %v1176
  %v1379 = vunpack.c.h.b16 %v1176
  %v1380 = vunpack.c.l.b16 %v1177
  %v1381 = vunpack.c.h.b16 %v1177
  %v1382 = vunpack.c.l.b16 %v1178
  %v1383 = vunpack.c.h.b16 %v1178
  %v1384 = vunpack.c.l.b16 %v1179
  %v1385 = vunpack.c.h.b16 %v1179
  %v1386 = vunpack.c.l.b16 %v1180
  %v1387 = vunpack.c.h.b16 %v1180
  %v1388 = vunpack.c.l.b16 %v1181
  %v1389 = vunpack.c.h.b16 %v1181
  %v1390 = vunpack.c.l.b16 %v1182
  %v1391 = vunpack.c.h.b16 %v1182
  %v1392 = vunpack.c.l.b16 %v1183
  %v1393 = vunpack.c.h.b16 %v1183
  %v1394 = vunpack.c.l.b16 %v1184
  %v1395 = vunpack.c.h.b16 %v1184
  %v1396 = vunpack.c.l.b16 %v1185
  %v1397 = vunpack.c.h.b16 %v1185
  %v1398 = vunpack.c.l.b16 %v1186
  %v1399 = vunpack.c.h.b16 %v1186
  %v1400 = vunpack.c.l.b16 %v1187
  %v1401 = vunpack.c.h.b16 %v1187
  %v1402 = vunpack.c.l.b16 %v1188
  %v1403 = vunpack.c.h.b16 %v1188
  %v1404 = vpack.c.b16 %v1292, %v1276
  %v1405 = vpack.c.b16 %v1293, %v1277
  %v1406 = vpack.c.b16 %v1294, %v1278
  %v1407 = vpack.c.b16 %v1295, %v1279
  %v1408 = vpack.c.b16 %v1296, %v1280
  %v1409 = vpack.c.b16 %v1297, %v1281
  %v1410 = vpack.c.b16 %v1298, %v1282
  %v1411 = vpack.c.b16 %v1299, %v1283
  %v1412 = vpack.c.b16 %v1300, %v1284
  %v1413 = vpack.c.b16 %v1301, %v1285
  %v1414 = vpack.c.b16 %v1302, %v1286
  %v1415 = vpack.c.b16 %v1303, %v1287
  %v1416 = vpack.c.b16 %v1304, %v1288
  %v1417 = vpack.c.b16 %v1305, %v1289
  %v1418 = vpack.c.b16 %v1306, %v1290
  %v1419 = vpack.c.b16 %v1307, %v1291
  %v1420 = vpack.c.b16 %v1324, %v1308
  %v1421 = vpack.c.b16 %v1325, %v1309
  %v1422 = vpack.c.b16 %v1326, %v1310
  %v1423 = vpack.c.b16 %v1327, %v1311
  %v1424 = vpack.c.b16 %v1328, %v1312
  %v1425 = vpack.c.b16 %v1329, %v1313
  %v1426 = vpack.c.b16 %v1330, %v1314
  %v1427 = vpack.c.b16 %v1331, %v1315
  %v1428 = vpack.c.b16 %v1332, %v1316
  %v1429 = vpack.c.b16 %v1333, %v1317
  %v1430 = vpack.c.b16 %v1334, %v1318
  %v1431 = vpack.c.b16 %v1335, %v1319
  %v1432 = vpack.c.b16 %v1336, %v1320
  %v1433 = vpack.c.b16 %v1337, %v1321
  %v1434 = vpack.c.b16 %v1338, %v1322
  %v1435 = vpack.c.b16 %v1339, %v1323
  %v1436 = vpack.c.b16 %v1356, %v1340
  %v1437 = vpack.c.b16 %v1357, %v1341
  %v1438 = vpack.c.b16 %v1358, %v1342
  %v1439 = vpack.c.b16 %v1359, %v1343
  %v1440 = vpack.c.b16 %v1360, %v1344
  %v1441 = vpack.c.b16 %v1361, %v1345
  %v1442 = vpack.c.b16 %v1362, %v1346
  %v1443 = vpack.c.b16 %v1363, %v1347
  %v1444 = vpack.c.b16 %v1364, %v1348
  %v1445 = vpack.c.b16 %v1365, %v1349
  %v1446 = vpack.c.b16 %v1366, %v1350
  %v1447 = vpack.c.b16 %v1367, %v1351
  %v1448 = vpack.c.b16 %v1368, %v1352
  %v1449 = vpack.c.b16 %v1369, %v1353
  %v1450 = vpack.c.b16 %v1370, %v1354
  %v1451 = vpack.c.b16 %v1371, %v1355
  %v1452 = vpack.c.b16 %v1388, %v1372
  %v1453 = vpack.c.b16 %v1389, %v1373
  %v1454 = vpack.c.b16 %v1390, %v1374
  %v1455 = vpack.c.b16 %v1391, %v1375
  %v1456 = vpack.c.b16 %v1392, %v1376
  %v1457 = vpack.c.b16 %v1393, %v1377
  %v1458 = vpack.c.b16 %v1394, %v1378
  %v1459 = vpack.c.b16 %v1395, %v1379
  %v1460 = vpack.c.b16 %v1396, %v1380
  %v1461 = vpack.c.b16 %v1397, %v1381
  %v1462 = vpack.c.b16 %v1398, %v1382
  %v1463 = vpack.c.b16 %v1399, %v1383
  %v1464 = vpack.c.b16 %v1400, %v1384
  %v1465 = vpack.c.b16 %v1401, %v1385
  %v1466 = vpack.c.b16 %v1402, %v1386
  %v1467 = vpack.c.b16 %v1403, %v1387
  %v1533 = vsel %vm1034, %v1211, 0
  %1535 = vmatprep.subr.bf16.mxu0 %v1405
  %1536 = vmatpush1.bf16.msra.mxu0 %v1404
  %1537 = vmatprep.subr.bf16.mxu0 %v1421
  %1538 = vmatpush1.bf16.msra.mxu0 %v1420
  %1539 = vmatprep.subr.bf16.mxu0 %v1437
  %1540 = vmatpush1.bf16.msra.mxu0 %v1436
  %1541 = vmatprep.subr.bf16.mxu0 %v1453
  %1542 = vmatpush1.bf16.msra.mxu0 %v1452
  %1543 = vmatprep.subr.bf16.mxu0 0
  %1544 = vmatpush1.bf16.msra.mxu0 0
  %1545 = vmatprep.subr.bf16.mxu0 0
  %1546 = vmatpush1.bf16.msra.mxu0 0
  %1547 = vmatprep.subr.bf16.mxu0 0
  %1548 = vmatpush1.bf16.msra.mxu0 0
  %1549 = vmatprep.subr.bf16.mxu0 0
  %1550 = vmatpush1.bf16.msra.mxu0 0
  %1551 = vmatprep.subr.bf16.mxu0 0
  %1552 = vmatpush1.bf16.msra.mxu0 0
  %1553 = vmatprep.subr.bf16.mxu0 0
  %1554 = vmatpush1.bf16.msra.mxu0 0
  %1555 = vmatprep.subr.bf16.mxu0 0
  %1556 = vmatpush1.bf16.msra.mxu0 0
  %1557 = vmatprep.subr.bf16.mxu0 0
  %1558 = vmatpush1.bf16.msra.mxu0 0
  %1559 = vmatprep.subr.bf16.mxu0 0
  %1560 = vmatpush1.bf16.msra.mxu0 0
  %1561 = vmatprep.subr.bf16.mxu0 0
  %1562 = vmatpush1.bf16.msra.mxu0 0
  %1563 = vmatprep.subr.bf16.mxu0 0
  %1564 = vmatpush1.bf16.msra.mxu0 0
  %1565 = vmatprep.subr.bf16.mxu0 0
  %1566 = vmatpush1.bf16.msra.mxu0 0
  %1567 = vmatprep.mubr.bf16.mxu0 0
  %1568 = vmatmul.mubr.bf16.gmra.mrb[0].mxu0 %v1533
  %v1569 = vpop.f32.mrb[0].mxu0
  %v1570 = vadd.f32 0.0, %v1569
  %v1571 = vpop.f32.mrb[0].mxu0
  %v1572 = vadd.f32 0.0, %v1571
  %v1573 = vpop.f32.mrb[0].mxu0
  %v1574 = vpop.f32.mrb[0].mxu0
  %1575 = vdwg.mxu0
  %1576 = vmatprep.subr.bf16.mxu0 %v1407
  %1577 = vmatpush1.bf16.msra.mxu0 %v1406
  %1578 = vmatprep.subr.bf16.mxu0 %v1423
  %1579 = vmatpush1.bf16.msra.mxu0 %v1422
  %1580 = vmatprep.subr.bf16.mxu0 %v1439
  %1581 = vmatpush1.bf16.msra.mxu0 %v1438
  %1582 = vmatprep.subr.bf16.mxu0 %v1455
  %1583 = vmatpush1.bf16.msra.mxu0 %v1454
  %1584 = vmatprep.subr.bf16.mxu0 0
  %1585 = vmatpush1.bf16.msra.mxu0 0
  %1586 = vmatprep.subr.bf16.mxu0 0
  %1587 = vmatpush1.bf16.msra.mxu0 0
  %1588 = vmatprep.subr.bf16.mxu0 0
  %1589 = vmatpush1.bf16.msra.mxu0 0
  %1590 = vmatprep.subr.bf16.mxu0 0
  %1591 = vmatpush1.bf16.msra.mxu0 0
  %1592 = vmatprep.subr.bf16.mxu0 0
  %1593 = vmatpush1.bf16.msra.mxu0 0
  %1594 = vmatprep.subr.bf16.mxu0 0
  %1595 = vmatpush1.bf16.msra.mxu0 0
  %1596 = vmatprep.subr.bf16.mxu0 0
  %1597 = vmatpush1.bf16.msra.mxu0 0
  %1598 = vmatprep.subr.bf16.mxu0 0
  %1599 = vmatpush1.bf16.msra.mxu0 0
  %1600 = vmatprep.subr.bf16.mxu0 0
  %1601 = vmatpush1.bf16.msra.mxu0 0
  %1602 = vmatprep.subr.bf16.mxu0 0
  %1603 = vmatpush1.bf16.msra.mxu0 0
  %1604 = vmatprep.subr.bf16.mxu0 0
  %1605 = vmatpush1.bf16.msra.mxu0 0
  %1606 = vmatprep.subr.bf16.mxu0 0
  %1607 = vmatpush1.bf16.msra.mxu0 0
  %1608 = vmatprep.mubr.bf16.mxu0 0
  %1609 = vmatmul.mubr.bf16.gmra.mrb[0].mxu0 %v1533
  %v1610 = vpop.f32.mrb[0].mxu0
  %v1611 = vadd.f32 0.0, %v1610
  %v1612 = vpop.f32.mrb[0].mxu0
  %v1613 = vadd.f32 0.0, %v1612
  %v1614 = vpop.f32.mrb[0].mxu0
  %v1615 = vpop.f32.mrb[0].mxu0
  %1616 = vdwg.mxu0
  %1617 = vmatprep.subr.bf16.mxu0 %v1409
  %1618 = vmatpush1.bf16.msra.mxu0 %v1408
  %1619 = vmatprep.subr.bf16.mxu0 %v1425
  %1620 = vmatpush1.bf16.msra.mxu0 %v1424
  %1621 = vmatprep.subr.bf16.mxu0 %v1441
  %1622 = vmatpush1.bf16.msra.mxu0 %v1440
  %1623 = vmatprep.subr.bf16.mxu0 %v1457
  %1624 = vmatpush1.bf16.msra.mxu0 %v1456
  %1625 = vmatprep.subr.bf16.mxu0 0
  %1626 = vmatpush1.bf16.msra.mxu0 0
  %1627 = vmatprep.subr.bf16.mxu0 0
  %1628 = vmatpush1.bf16.msra.mxu0 0
  %1629 = vmatprep.subr.bf16.mxu0 0
  %1630 = vmatpush1.bf16.msra.mxu0 0
  %1631 = vmatprep.subr.bf16.mxu0 0
  %1632 = vmatpush1.bf16.msra.mxu0 0
  %1633 = vmatprep.subr.bf16.mxu0 0
  %1634 = vmatpush1.bf16.msra.mxu0 0
  %1635 = vmatprep.subr.bf16.mxu0 0
  %1636 = vmatpush1.bf16.msra.mxu0 0
  %1637 = vmatprep.subr.bf16.mxu0 0
  %1638 = vmatpush1.bf16.msra.mxu0 0
  %1639 = vmatprep.subr.bf16.mxu0 0
  %1640 = vmatpush1.bf16.msra.mxu0 0
  %1641 = vmatprep.subr.bf16.mxu0 0
  %1642 = vmatpush1.bf16.msra.mxu0 0
  %1643 = vmatprep.subr.bf16.mxu0 0
  %1644 = vmatpush1.bf16.msra.mxu0 0
  %1645 = vmatprep.subr.bf16.mxu0 0
  %1646 = vmatpush1.bf16.msra.mxu0 0
  %1647 = vmatprep.subr.bf16.mxu0 0
  %1648 = vmatpush1.bf16.msra.mxu0 0
  %1649 = vmatprep.mubr.bf16.mxu0 0
  %1650 = vmatmul.mubr.bf16.gmra.mrb[0].mxu0 %v1533
  %v1651 = vpop.f32.mrb[0].mxu0
  %v1652 = vadd.f32 0.0, %v1651
  %v1653 = vpop.f32.mrb[0].mxu0
  %v1654 = vadd.f32 0.0, %v1653
  %v1655 = vpop.f32.mrb[0].mxu0
  %v1656 = vpop.f32.mrb[0].mxu0
  %1657 = vdwg.mxu0
  %1658 = vmatprep.subr.bf16.mxu0 %v1411
  %1659 = vmatpush1.bf16.msra.mxu0 %v1410
  %1660 = vmatprep.subr.bf16.mxu0 %v1427
  %1661 = vmatpush1.bf16.msra.mxu0 %v1426
  %1662 = vmatprep.subr.bf16.mxu0 %v1443
  %1663 = vmatpush1.bf16.msra.mxu0 %v1442
  %1664 = vmatprep.subr.bf16.mxu0 %v1459
  %1665 = vmatpush1.bf16.msra.mxu0 %v1458
  %1666 = vmatprep.subr.bf16.mxu0 0
  %1667 = vmatpush1.bf16.msra.mxu0 0
  %1668 = vmatprep.subr.bf16.mxu0 0
  %1669 = vmatpush1.bf16.msra.mxu0 0
  %1670 = vmatprep.subr.bf16.mxu0 0
  %1671 = vmatpush1.bf16.msra.mxu0 0
  %1672 = vmatprep.subr.bf16.mxu0 0
  %1673 = vmatpush1.bf16.msra.mxu0 0
  %1674 = vmatprep.subr.bf16.mxu0 0
  %1675 = vmatpush1.bf16.msra.mxu0 0
  %1676 = vmatprep.subr.bf16.mxu0 0
  %1677 = vmatpush1.bf16.msra.mxu0 0
  %1678 = vmatprep.subr.bf16.mxu0 0
  %1679 = vmatpush1.bf16.msra.mxu0 0
  %1680 = vmatprep.subr.bf16.mxu0 0
  %1681 = vmatpush1.bf16.msra.mxu0 0
  %1682 = vmatprep.subr.bf16.mxu0 0
  %1683 = vmatpush1.bf16.msra.mxu0 0
  %1684 = vmatprep.subr.bf16.mxu0 0
  %1685 = vmatpush1.bf16.msra.mxu0 0
  %1686 = vmatprep.subr.bf16.mxu0 0
  %1687 = vmatpush1.bf16.msra.mxu0 0
  %1688 = vmatprep.subr.bf16.mxu0 0
  %1689 = vmatpush1.bf16.msra.mxu0 0
  %1690 = vmatprep.mubr.bf16.mxu0 0
  %1691 = vmatmul.mubr.bf16.gmra.mrb[0].mxu0 %v1533
  %v1692 = vpop.f32.mrb[0].mxu0
  %v1693 = vadd.f32 0.0, %v1692
  %v1694 = vpop.f32.mrb[0].mxu0
  %v1695 = vadd.f32 0.0, %v1694
  %v1696 = vpop.f32.mrb[0].mxu0
  %v1697 = vpop.f32.mrb[0].mxu0
  %1698 = vdwg.mxu0
  %1699 = vmatprep.subr.bf16.mxu0 %v1413
  %1700 = vmatpush1.bf16.msra.mxu0 %v1412
  %1701 = vmatprep.subr.bf16.mxu0 %v1429
  %1702 = vmatpush1.bf16.msra.mxu0 %v1428
  %1703 = vmatprep.subr.bf16.mxu0 %v1445
  %1704 = vmatpush1.bf16.msra.mxu0 %v1444
  %1705 = vmatprep.subr.bf16.mxu0 %v1461
  %1706 = vmatpush1.bf16.msra.mxu0 %v1460
  %1707 = vmatprep.subr.bf16.mxu0 0
  %1708 = vmatpush1.bf16.msra.mxu0 0
  %1709 = vmatprep.subr.bf16.mxu0 0
  %1710 = vmatpush1.bf16.msra.mxu0 0
  %1711 = vmatprep.subr.bf16.mxu0 0
  %1712 = vmatpush1.bf16.msra.mxu0 0
  %1713 = vmatprep.subr.bf16.mxu0 0
  %1714 = vmatpush1.bf16.msra.mxu0 0
  %1715 = vmatprep.subr.bf16.mxu0 0
  %1716 = vmatpush1.bf16.msra.mxu0 0
  %1717 = vmatprep.subr.bf16.mxu0 0
  %1718 = vmatpush1.bf16.msra.mxu0 0
  %1719 = vmatprep.subr.bf16.mxu0 0
  %1720 = vmatpush1.bf16.msra.mxu0 0
  %1721 = vmatprep.subr.bf16.mxu0 0
  %1722 = vmatpush1.bf16.msra.mxu0 0
  %1723 = vmatprep.subr.bf16.mxu0 0
  %1724 = vmatpush1.bf16.msra.mxu0 0
  %1725 = vmatprep.subr.bf16.mxu0 0
  %1726 = vmatpush1.bf16.msra.mxu0 0
  %1727 = vmatprep.subr.bf16.mxu0 0
  %1728 = vmatpush1.bf16.msra.mxu0 0
  %1729 = vmatprep.subr.bf16.mxu0 0
  %1730 = vmatpush1.bf16.msra.mxu0 0
  %1731 = vmatprep.mubr.bf16.mxu0 0
  %1732 = vmatmul.mubr.bf16.gmra.mrb[0].mxu0 %v1533
  %v1733 = vpop.f32.mrb[0].mxu0
  %v1734 = vadd.f32 0.0, %v1733
  %v1735 = vpop.f32.mrb[0].mxu0
  %v1736 = vadd.f32 0.0, %v1735
  %v1737 = vpop.f32.mrb[0].mxu0
  %v1738 = vpop.f32.mrb[0].mxu0
  %1739 = vdwg.mxu0
  %1740 = vmatprep.subr.bf16.mxu0 %v1415
  %1741 = vmatpush1.bf16.msra.mxu0 %v1414
  %1742 = vmatprep.subr.bf16.mxu0 %v1431
  %1743 = vmatpush1.bf16.msra.mxu0 %v1430
  %1744 = vmatprep.subr.bf16.mxu0 %v1447
  %1745 = vmatpush1.bf16.msra.mxu0 %v1446
  %1746 = vmatprep.subr.bf16.mxu0 %v1463
  %1747 = vmatpush1.bf16.msra.mxu0 %v1462
  %1748 = vmatprep.subr.bf16.mxu0 0
  %1749 = vmatpush1.bf16.msra.mxu0 0
  %1750 = vmatprep.subr.bf16.mxu0 0
  %1751 = vmatpush1.bf16.msra.mxu0 0
  %1752 = vmatprep.subr.bf16.mxu0 0
  %1753 = vmatpush1.bf16.msra.mxu0 0
  %1754 = vmatprep.subr.bf16.mxu0 0
  %1755 = vmatpush1.bf16.msra.mxu0 0
  %1756 = vmatprep.subr.bf16.mxu0 0
  %1757 = vmatpush1.bf16.msra.mxu0 0
  %1758 = vmatprep.subr.bf16.mxu0 0
  %1759 = vmatpush1.bf16.msra.mxu0 0
  %1760 = vmatprep.subr.bf16.mxu0 0
  %1761 = vmatpush1.bf16.msra.mxu0 0
  %1762 = vmatprep.subr.bf16.mxu0 0
  %1763 = vmatpush1.bf16.msra.mxu0 0
  %1764 = vmatprep.subr.bf16.mxu0 0
  %1765 = vmatpush1.bf16.msra.mxu0 0
  %1766 = vmatprep.subr.bf16.mxu0 0
  %1767 = vmatpush1.bf16.msra.mxu0 0
  %1768 = vmatprep.subr.bf16.mxu0 0
  %1769 = vmatpush1.bf16.msra.mxu0 0
  %1770 = vmatprep.subr.bf16.mxu0 0
  %1771 = vmatpush1.bf16.msra.mxu0 0
  %1772 = vmatprep.mubr.bf16.mxu0 0
  %1773 = vmatmul.mubr.bf16.gmra.mrb[0].mxu0 %v1533
  %v1774 = vpop.f32.mrb[0].mxu0
  %v1775 = vadd.f32 0.0, %v1774
  %v1776 = vpop.f32.mrb[0].mxu0
  %v1777 = vadd.f32 0.0, %v1776
  %v1778 = vpop.f32.mrb[0].mxu0
  %v1779 = vpop.f32.mrb[0].mxu0
  %1780 = vdwg.mxu0
  %1781 = vmatprep.subr.bf16.mxu0 %v1417
  %1782 = vmatpush1.bf16.msra.mxu0 %v1416
  %1783 = vmatprep.subr.bf16.mxu0 %v1433
  %1784 = vmatpush1.bf16.msra.mxu0 %v1432
  %1785 = vmatprep.subr.bf16.mxu0 %v1449
  %1786 = vmatpush1.bf16.msra.mxu0 %v1448
  %1787 = vmatprep.subr.bf16.mxu0 %v1465
  %1788 = vmatpush1.bf16.msra.mxu0 %v1464
  %1789 = vmatprep.subr.bf16.mxu0 0
  %1790 = vmatpush1.bf16.msra.mxu0 0
  %1791 = vmatprep.subr.bf16.mxu0 0
  %1792 = vmatpush1.bf16.msra.mxu0 0
  %1793 = vmatprep.subr.bf16.mxu0 0
  %1794 = vmatpush1.bf16.msra.mxu0 0
  %1795 = vmatprep.subr.bf16.mxu0 0
  %1796 = vmatpush1.bf16.msra.mxu0 0
  %1797 = vmatprep.subr.bf16.mxu0 0
  %1798 = vmatpush1.bf16.msra.mxu0 0
  %1799 = vmatprep.subr.bf16.mxu0 0
  %1800 = vmatpush1.bf16.msra.mxu0 0
  %1801 = vmatprep.subr.bf16.mxu0 0
  %1802 = vmatpush1.bf16.msra.mxu0 0
  %1803 = vmatprep.subr.bf16.mxu0 0
  %1804 = vmatpush1.bf16.msra.mxu0 0
  %1805 = vmatprep.subr.bf16.mxu0 0
  %1806 = vmatpush1.bf16.msra.mxu0 0
  %1807 = vmatprep.subr.bf16.mxu0 0
  %1808 = vmatpush1.bf16.msra.mxu0 0
  %1809 = vmatprep.subr.bf16.mxu0 0
  %1810 = vmatpush1.bf16.msra.mxu0 0
  %1811 = vmatprep.subr.bf16.mxu0 0
  %1812 = vmatpush1.bf16.msra.mxu0 0
  %1813 = vmatprep.mubr.bf16.mxu0 0
  %1814 = vmatmul.mubr.bf16.gmra.mrb[0].mxu0 %v1533
  %v1815 = vpop.f32.mrb[0].mxu0
  %v1816 = vadd.f32 0.0, %v1815
  %v1817 = vpop.f32.mrb[0].mxu0
  %v1818 = vadd.f32 0.0, %v1817
  %v1819 = vpop.f32.mrb[0].mxu0
  %v1820 = vpop.f32.mrb[0].mxu0
  %1821 = vdwg.mxu0
  %1822 = vmatprep.subr.bf16.mxu0 %v1419
  %1823 = vmatpush1.bf16.msra.mxu0 %v1418
  %1824 = vmatprep.subr.bf16.mxu0 %v1435
  %1825 = vmatpush1.bf16.msra.mxu0 %v1434
  %1826 = vmatprep.subr.bf16.mxu0 %v1451
  %1827 = vmatpush1.bf16.msra.mxu0 %v1450
  %1828 = vmatprep.subr.bf16.mxu0 %v1467
  %1829 = vmatpush1.bf16.msra.mxu0 %v1466
  %1830 = vmatprep.subr.bf16.mxu0 0
  %1831 = vmatpush1.bf16.msra.mxu0 0
  %1832 = vmatprep.subr.bf16.mxu0 0
  %1833 = vmatpush1.bf16.msra.mxu0 0
  %1834 = vmatprep.subr.bf16.mxu0 0
  %1835 = vmatpush1.bf16.msra.mxu0 0
  %1836 = vmatprep.subr.bf16.mxu0 0
  %1837 = vmatpush1.bf16.msra.mxu0 0
  %1838 = vmatprep.subr.bf16.mxu0 0
  %1839 = vmatpush1.bf16.msra.mxu0 0
  %1840 = vmatprep.subr.bf16.mxu0 0
  %1841 = vmatpush1.bf16.msra.mxu0 0
  %1842 = vmatprep.subr.bf16.mxu0 0
  %1843 = vmatpush1.bf16.msra.mxu0 0
  %1844 = vmatprep.subr.bf16.mxu0 0
  %1845 = vmatpush1.bf16.msra.mxu0 0
  %1846 = vmatprep.subr.bf16.mxu0 0
  %1847 = vmatpush1.bf16.msra.mxu0 0
  %1848 = vmatprep.subr.bf16.mxu0 0
  %1849 = vmatpush1.bf16.msra.mxu0 0
  %1850 = vmatprep.subr.bf16.mxu0 0
  %1851 = vmatpush1.bf16.msra.mxu0 0
  %1852 = vmatprep.subr.bf16.mxu0 0
  %1853 = vmatpush1.bf16.msra.mxu0 0
  %1854 = vmatprep.mubr.bf16.mxu0 0
  %1855 = vmatmul.mubr.bf16.gmra.mrb[0].mxu0 %v1533
  %v1856 = vpop.f32.mrb[0].mxu0
  %v1857 = vadd.f32 0.0, %v1856
  %v1858 = vpop.f32.mrb[0].mxu0
  %v1859 = vadd.f32 0.0, %v1858
  %v1860 = vpop.f32.mrb[0].mxu0
  %v1861 = vpop.f32.mrb[0].mxu0
  %1862 = vdwg.mxu0
  %v1863 = vpack.c.bf16 %v1570, %v1570
  %v1864 = vpack.c.bf16 %v1572, %v1572
  %v1865 = vpack.c.bf16 %v1611, %v1611
  %v1866 = vpack.c.bf16 %v1613, %v1613
  %v1867 = vpack.c.bf16 %v1652, %v1652
  %v1868 = vpack.c.bf16 %v1654, %v1654
  %v1869 = vpack.c.bf16 %v1693, %v1693
  %v1870 = vpack.c.bf16 %v1695, %v1695
  %v1871 = vpack.c.bf16 %v1734, %v1734
  %v1872 = vpack.c.bf16 %v1736, %v1736
  %v1873 = vpack.c.bf16 %v1775, %v1775
  %v1874 = vpack.c.bf16 %v1777, %v1777
  %v1875 = vpack.c.bf16 %v1816, %v1816
  %v1876 = vpack.c.bf16 %v1818, %v1818
  %v1877 = vpack.c.bf16 %v1857, %v1857
  %v1878 = vpack.c.bf16 %v1859, %v1859
  %v1895 = vunpack.c.l.b16 %v1863
  %v1896 = vunpack.c.l.b16 %v1864
  %v1897 = vunpack.c.l.b16 %v1865
  %v1898 = vunpack.c.l.b16 %v1866
  %v1899 = vunpack.c.l.b16 %v1867
  %v1900 = vunpack.c.l.b16 %v1868
  %v1901 = vunpack.c.l.b16 %v1869
  %v1902 = vunpack.c.l.b16 %v1870
  %v1903 = vunpack.c.l.b16 %v1871
  %v1904 = vunpack.c.l.b16 %v1872
  %v1905 = vunpack.c.l.b16 %v1873
  %v1906 = vunpack.c.l.b16 %v1874
  %v1907 = vunpack.c.l.b16 %v1875
  %v1908 = vunpack.c.l.b16 %v1876
  %v1909 = vunpack.c.l.b16 %v1877
  %v1910 = vunpack.c.l.b16 %v1878
  %v1911 = vpack.c.b16 %v1896, %v1895
  %v1912 = vpack.c.b16 %v1898, %v1897
  %v1913 = vpack.c.b16 %v1900, %v1899
  %v1914 = vpack.c.b16 %v1902, %v1901
  %v1915 = vpack.c.b16 %v1904, %v1903
  %v1916 = vpack.c.b16 %v1906, %v1905
  %v1917 = vpack.c.b16 %v1908, %v1907
  %v1918 = vpack.c.b16 %v1910, %v1909
  %1927 = vst [vmem:[%s3] sm:$0x77] %v1911
  %1928 = vst [vmem:[%s3 + $0x8] sm:$0x77] %v1912
  %1929 = vst [vmem:[%s3 + $0x10] sm:$0x77] %v1913
  %1930 = vst [vmem:[%s3 + $0x18] sm:$0x77] %v1914
  %1931 = vst [vmem:[%s3 + $0x20] sm:$0x77] %v1915
  %1932 = vst [vmem:[%s3 + $0x28] sm:$0x77] %v1916
  %1933 = vst [vmem:[%s3 + $0x30] sm:$0x77] %v1917
  %1934 = vst [vmem:[%s3 + $0x38] sm:$0x77] %v1918
  // Predicated region
  $region14: #{fibernet_forward.2} parent=0 // pred_check
    _
  $region15: #{fibernet_forward.2} parent=0 // pred_check_branch
    %1936 = sbr.rel (0) target = $region17
  $region16: #{fibernet_forward.2} parent=0 // pred_region
    _
  $region17: #{fibernet_forward.2} parent=0 // pred_fallthru
    _
  // Predicated region
  $region18: #{fibernet_forward.2} parent=0 // pred_check
    _
  $region19: #{fibernet_forward.2} parent=0 // pred_check_branch
    %1938 = sbr.rel (0) target = $region21
  $region20: #{fibernet_forward.2} parent=0 // pred_region
    _
  $region21: #{fibernet_forward.2} parent=0 // pred_fallthru
    _

// kernel: fibernet_forward.3
$region0: #{fibernet_forward.3}
  #allocation0 [shape = 'u32[]', space=smem, size = 0x4, offset = 0x4, fixed_abs, tag = 'smem constant byte address 0x4 - core index']
  #allocation1 [shape = 'u32[144,128]{1,0:T(1,128)}', space=vmem, size = 0x12000, scoped, tag = 'internal scratch']
  #allocation2 [shape = 'f32[1,1]{1,0:T(1,128)S(1)}', space=vmem, size = 0x200, scoped, tag = 'scoped memory for fibernet_forward.3']
  %s0 = inlined_call_operand.vmem [shape: bf16[2,3,2048], index: 0, kind: input, shape index: {}]
  %s1 = inlined_call_operand.vmem [shape: bf16[2048,512], index: 1, kind: input, shape index: {}]
  %s2 = inlined_call_operand.vmem [shape: f32[1,512], index: 2, kind: input, shape index: {}]
  %s3 = inlined_call_operand.vmem [shape: bf16[2048,128], index: 3, kind: input, shape index: {}]
  %s4 = inlined_call_operand.vmem [shape: f32[1,128], index: 4, kind: input, shape index: {}]
  %s5 = inlined_call_operand.vmem [shape: f32[1,128], index: 5, kind: input, shape index: {}]
  %s6 = inlined_call_operand.<no memory space> [shape: f32[1,1], index: 6, kind: input, shape index: {}]
  %s7 = inlined_call_operand.vmem [shape: bf16[512,128], index: 7, kind: input, shape index: {}]
  %s8 = inlined_call_operand.vmem [shape: f32[1,128], index: 8, kind: input, shape index: {}]
  %s9 = inlined_call_operand.hbm [shape: f32[2,1,128], index: 9, kind: output, shape index: {}]
  %s10 = sld [smem:[#allocation0]]
  $region69: #{fibernet_forward.3} parent=0
    _
  %s12 = ssub.s32 1, %s10
  %s13 = scalar_select 0, %s12, %s10
  %v14 = vstv %s6
  %15 = vst [vmem:[#allocation2] sm:$0x1] %v14
  $region1: #{fibernet_forward.3} parent=0
    #allocation3 [shape = 'u8[1024]{0}', space=vmem, size = 0x400, scoped, tag = 'output window, operand 0']
    #allocation4 [shape = 's32[2]{0}', space=sflag, size = 0x8, scoped, tag = 'scoped memory for fibernet_forward.3']
    %16 = vsyncpa [#allocation4], 0
    %s17 = scalar_lea.sflag [#allocation4], 1
    %18 = vsyncpa %s17, 0
    loop: start=0, step=1, limit=4
    $region2: #{fibernet_forward.3} parent=1 // loop_pre_header
      _
    $region3: #{fibernet_forward.3} parent=1 // loop_header
      %s20 = sphi 0, %s24
      %p21 = scmp.ge.s32.totalorder %s20, 4
      %s30 = sphi 0, %s32
      %s33 = sphi 0, %s30
      %s34 = sphi 0, %s33
      %s50 = sphi 0, %s34
      %s54 = sphi 0, %s54
      %s56 = sphi 0, %s54
      %s57 = sphi 0, %s56
      %s71 = sphi 0, %s57
      %s75 = sphi 0, %s75
      %s77 = sphi 0, %s75
      %s78 = sphi 0, %s77
      %s92 = sphi 0, %s78
      %s96 = sphi 0, %s96
      %s98 = sphi 0, %s96
      %s99 = sphi 0, %s98
      %s113 = sphi 0, %s99
      %s117 = sphi 0, %s117
      %s119 = sphi 0, %s117
      %s120 = sphi 0, %s119
      %s134 = sphi 0, %s120
      %s138 = sphi 0, %s138
      %s140 = sphi 0, %s138
      %s141 = sphi 0, %s140
      %s155 = sphi 0, %s141
      %s159 = sphi 0, %s159
      %s161 = sphi 0, %s159
      %s162 = sphi 0, %s161
      %s176 = sphi 0, %s162
      %s180 = sphi 0, %s180
      %s182 = sphi 0, %s180
      %s183 = sphi 0, %s182
      %s197 = sphi 0, %s183
      %s201 = sphi 0, %s201
      %s203 = sphi 0, %s201
      %s204 = sphi 0, %s203
      %s218 = sphi 0, %s204
      %s224 = sphi 0, %s226
      %s227 = sphi 0, %s224
      %s228 = sphi 0, %s227
      %s244 = sphi 0, %s228
    $region4: #{fibernet_forward.3} parent=1 // loop_header_branch
      %23 = sbr.rel (%p21) target = $region8
    $region5: #{fibernet_forward.3} parent=1 // loop_body
      %s25 = ssub.s32 %s20, 1
      %s26 = ssub.s32 %s20, 2
      %s27 = sadd.s32 %s20, 1
      %s28 = ssub.s32 %s20, %s27
      %p29 = scmp.eq.s32.totalorder %s28, 0
      %s31 = sadd.s32 %s30, 1
      %s32 = scalar_select %p29, %s30, %s31
      %p35 = pneg %p29
      %p36 = scmp.eq.s32.totalorder %s20, 1
      %p37 = por %p35, %p36
      %p38 = scmp.ne.s32.totalorder %s30, %s33
      %p39 = scmp.eq.s32.totalorder %s20, 0
      %p40 = por %p38, %p39
      %p41 = scmp.ne.s32.totalorder %s30, %s33
      %p42 = scmp.eq.s32.totalorder %s25, 1
      %p43 = por %p41, %p42
      %p44 = scmp.ne.s32.totalorder %s33, %s34
      %p45 = scmp.eq.s32.totalorder %s25, 0
      %p46 = por %p44, %p45
      %p47 = scmp.ne.s32.totalorder %s33, %s34
      %p48 = scmp.eq.s32.totalorder %s26, 1
      %p49 = por %p47, %p48
      %p51 = scmp.ne.s32.totalorder %s34, %s50
      %p52 = scmp.eq.s32.totalorder %s26, 0
      %p53 = por %p51, %p52
      %s55 = sadd.s32 %s54, 1
      %p58 = scmp.eq.s32.totalorder %s20, 1
      %p59 = scmp.ne.s32.totalorder %s54, %s56
      %p60 = scmp.eq.s32.totalorder %s20, 0
      %p61 = por %p59, %p60
      %p62 = scmp.ne.s32.totalorder %s54, %s56
      %p63 = scmp.eq.s32.totalorder %s25, 1
      %p64 = por %p62, %p63
      %p65 = scmp.ne.s32.totalorder %s56, %s57
      %p66 = scmp.eq.s32.totalorder %s25, 0
      %p67 = por %p65, %p66
      %p68 = scmp.ne.s32.totalorder %s56, %s57
      %p69 = scmp.eq.s32.totalorder %s26, 1
      %p70 = por %p68, %p69
      %p72 = scmp.ne.s32.totalorder %s57, %s71
      %p73 = scmp.eq.s32.totalorder %s26, 0
      %p74 = por %p72, %p73
      %s76 = sadd.s32 %s75, 1
      %p79 = scmp.eq.s32.totalorder %s20, 1
      %p80 = scmp.ne.s32.totalorder %s75, %s77
      %p81 = scmp.eq.s32.totalorder %s20, 0
      %p82 = por %p80, %p81
      %p83 = scmp.ne.s32.totalorder %s75, %s77
      %p84 = scmp.eq.s32.totalorder %s25, 1
      %p85 = por %p83, %p84
      %p86 = scmp.ne.s32.totalorder %s77, %s78
      %p87 = scmp.eq.s32.totalorder %s25, 0
      %p88 = por %p86, %p87
      %p89 = scmp.ne.s32.totalorder %s77, %s78
      %p90 = scmp.eq.s32.totalorder %s26, 1
      %p91 = por %p89, %p90
      %p93 = scmp.ne.s32.totalorder %s78, %s92
      %p94 = scmp.eq.s32.totalorder %s26, 0
      %p95 = por %p93, %p94
      %s97 = sadd.s32 %s96, 1
      %p100 = scmp.eq.s32.totalorder %s20, 1
      %p101 = scmp.ne.s32.totalorder %s96, %s98
      %p102 = scmp.eq.s32.totalorder %s20, 0
      %p103 = por %p101, %p102
      %p104 = scmp.ne.s32.totalorder %s96, %s98
      %p105 = scmp.eq.s32.totalorder %s25, 1
      %p106 = por %p104, %p105
      %p107 = scmp.ne.s32.totalorder %s98, %s99
      %p108 = scmp.eq.s32.totalorder %s25, 0
      %p109 = por %p107, %p108
      %p110 = scmp.ne.s32.totalorder %s98, %s99
      %p111 = scmp.eq.s32.totalorder %s26, 1
      %p112 = por %p110, %p111
      %p114 = scmp.ne.s32.totalorder %s99, %s113
      %p115 = scmp.eq.s32.totalorder %s26, 0
      %p116 = por %p114, %p115
      %s118 = sadd.s32 %s117, 1
      %p121 = scmp.eq.s32.totalorder %s20, 1
      %p122 = scmp.ne.s32.totalorder %s117, %s119
      %p123 = scmp.eq.s32.totalorder %s20, 0
      %p124 = por %p122, %p123
      %p125 = scmp.ne.s32.totalorder %s117, %s119
      %p126 = scmp.eq.s32.totalorder %s25, 1
      %p127 = por %p125, %p126
      %p128 = scmp.ne.s32.totalorder %s119, %s120
      %p129 = scmp.eq.s32.totalorder %s25, 0
      %p130 = por %p128, %p129
      %p131 = scmp.ne.s32.totalorder %s119, %s120
      %p132 = scmp.eq.s32.totalorder %s26, 1
      %p133 = por %p131, %p132
      %p135 = scmp.ne.s32.totalorder %s120, %s134
      %p136 = scmp.eq.s32.totalorder %s26, 0
      %p137 = por %p135, %p136
      %s139 = sadd.s32 %s138, 1
      %p142 = scmp.eq.s32.totalorder %s20, 1
      %p143 = scmp.ne.s32.totalorder %s138, %s140
      %p144 = scmp.eq.s32.totalorder %s20, 0
      %p145 = por %p143, %p144
      %p146 = scmp.ne.s32.totalorder %s138, %s140
      %p147 = scmp.eq.s32.totalorder %s25, 1
      %p148 = por %p146, %p147
      %p149 = scmp.ne.s32.totalorder %s140, %s141
      %p150 = scmp.eq.s32.totalorder %s25, 0
      %p151 = por %p149, %p150
      %p152 = scmp.ne.s32.totalorder %s140, %s141
      %p153 = scmp.eq.s32.totalorder %s26, 1
      %p154 = por %p152, %p153
      %p156 = scmp.ne.s32.totalorder %s141, %s155
      %p157 = scmp.eq.s32.totalorder %s26, 0
      %p158 = por %p156, %p157
      %s160 = sadd.s32 %s159, 1
      %p163 = scmp.eq.s32.totalorder %s20, 1
      %p164 = scmp.ne.s32.totalorder %s159, %s161
      %p165 = scmp.eq.s32.totalorder %s20, 0
      %p166 = por %p164, %p165
      %p167 = scmp.ne.s32.totalorder %s159, %s161
      %p168 = scmp.eq.s32.totalorder %s25, 1
      %p169 = por %p167, %p168
      %p170 = scmp.ne.s32.totalorder %s161, %s162
      %p171 = scmp.eq.s32.totalorder %s25, 0
      %p172 = por %p170, %p171
      %p173 = scmp.ne.s32.totalorder %s161, %s162
      %p174 = scmp.eq.s32.totalorder %s26, 1
      %p175 = por %p173, %p174
      %p177 = scmp.ne.s32.totalorder %s162, %s176
      %p178 = scmp.eq.s32.totalorder %s26, 0
      %p179 = por %p177, %p178
      %s181 = sadd.s32 %s180, 1
      %p184 = scmp.eq.s32.totalorder %s20, 1
      %p185 = scmp.ne.s32.totalorder %s180, %s182
      %p186 = scmp.eq.s32.totalorder %s20, 0
      %p187 = por %p185, %p186
      %p188 = scmp.ne.s32.totalorder %s180, %s182
      %p189 = scmp.eq.s32.totalorder %s25, 1
      %p190 = por %p188, %p189
      %p191 = scmp.ne.s32.totalorder %s182, %s183
      %p192 = scmp.eq.s32.totalorder %s25, 0
      %p193 = por %p191, %p192
      %p194 = scmp.ne.s32.totalorder %s182, %s183
      %p195 = scmp.eq.s32.totalorder %s26, 1
      %p196 = por %p194, %p195
      %p198 = scmp.ne.s32.totalorder %s183, %s197
      %p199 = scmp.eq.s32.totalorder %s26, 0
      %p200 = por %p198, %p199
      %s202 = sadd.s32 %s201, 1
      %p205 = scmp.eq.s32.totalorder %s20, 1
      %p206 = scmp.ne.s32.totalorder %s201, %s203
      %p207 = scmp.eq.s32.totalorder %s20, 0
      %p208 = por %p206, %p207
      %p209 = scmp.ne.s32.totalorder %s201, %s203
      %p210 = scmp.eq.s32.totalorder %s25, 1
      %p211 = por %p209, %p210
      %p212 = scmp.ne.s32.totalorder %s203, %s204
      %p213 = scmp.eq.s32.totalorder %s25, 0
      %p214 = por %p212, %p213
      %p215 = scmp.ne.s32.totalorder %s203, %s204
      %p216 = scmp.eq.s32.totalorder %s26, 1
      %p217 = por %p215, %p216
      %p219 = scmp.ne.s32.totalorder %s204, %s218
      %p220 = scmp.eq.s32.totalorder %s26, 0
      %p221 = por %p219, %p220
      %s222 = ssub.s32 %s20, %s27
      %p223 = scmp.eq.s32.totalorder %s222, 0
      %s225 = sadd.s32 %s224, 1
      %s226 = scalar_select %p223, %s224, %s225
      %p229 = pneg %p223
      %p230 = scmp.eq.s32.totalorder %s20, 1
      %p231 = por %p229, %p230
      %p232 = scmp.ne.s32.totalorder %s224, %s227
      %p233 = scmp.eq.s32.totalorder %s20, 0
      %p234 = por %p232, %p233
      %p235 = scmp.ne.s32.totalorder %s224, %s227
      %p236 = scmp.eq.s32.totalorder %s25, 1
      %p237 = por %p235, %p236
      %p238 = scmp.ne.s32.totalorder %s227, %s228
      %p239 = scmp.eq.s32.totalorder %s25, 0
      %p240 = por %p238, %p239
      %p241 = scmp.ne.s32.totalorder %s227, %s228
      %p242 = scmp.eq.s32.totalorder %s26, 1
      %p243 = por %p241, %p242
      %p245 = scmp.ne.s32.totalorder %s228, %s244
      %p246 = scmp.eq.s32.totalorder %s26, 0
      %p247 = por %p245, %p246
      %p248 = scmp.le.s32.totalorder 1, %s20
      %p249 = scmp.lt.s32.totalorder %s20, 3
      %p250 = pnand %p248, %p249
      %p251 = pneg %p250
      // Predicated region
      $region9: #{fibernet_forward.3} parent=5 // pred_check
        _
      $region10: #{fibernet_forward.3} parent=5 // pred_check_branch
        %253 = sbr.rel (%p250) target = $region12
      $region11: #{fibernet_forward.3} parent=5 // pred_region
        %s254 = ssub.s32 %s20, 1
        // Predicated region
        $region13: #{fibernet_forward.3} parent=11 // pred_check
          %p255 = pneg %p67
        $region14: #{fibernet_forward.3} parent=11 // pred_check_branch
          %257 = sbr.rel (%p255) target = $region16
        $region15: #{fibernet_forward.3} parent=11 // pred_region
          _
        $region16: #{fibernet_forward.3} parent=11 // pred_fallthru
          _
        // Predicated region
        $region17: #{fibernet_forward.3} parent=11 // pred_check
          %p258 = pneg %p88
        $region18: #{fibernet_forward.3} parent=11 // pred_check_branch
          %260 = sbr.rel (%p258) target = $region20
        $region19: #{fibernet_forward.3} parent=11 // pred_region
          _
        $region20: #{fibernet_forward.3} parent=11 // pred_fallthru
          _
        // Predicated region
        $region21: #{fibernet_forward.3} parent=11 // pred_check
          %p261 = pneg %p109
        $region22: #{fibernet_forward.3} parent=11 // pred_check_branch
          %263 = sbr.rel (%p261) target = $region24
        $region23: #{fibernet_forward.3} parent=11 // pred_region
          _
        $region24: #{fibernet_forward.3} parent=11 // pred_fallthru
          _
        // Predicated region
        $region25: #{fibernet_forward.3} parent=11 // pred_check
          %p264 = pneg %p130
        $region26: #{fibernet_forward.3} parent=11 // pred_check_branch
          %266 = sbr.rel (%p264) target = $region28
        $region27: #{fibernet_forward.3} parent=11 // pred_region
          _
        $region28: #{fibernet_forward.3} parent=11 // pred_fallthru
          _
        // Predicated region
        $region29: #{fibernet_forward.3} parent=11 // pred_check
          %p267 = pneg %p151
        $region30: #{fibernet_forward.3} parent=11 // pred_check_branch
          %269 = sbr.rel (%p267) target = $region32
        $region31: #{fibernet_forward.3} parent=11 // pred_region
          _
        $region32: #{fibernet_forward.3} parent=11 // pred_fallthru
          _
        // Predicated region
        $region33: #{fibernet_forward.3} parent=11 // pred_check
          %p270 = pneg %p172
        $region34: #{fibernet_forward.3} parent=11 // pred_check_branch
          %272 = sbr.rel (%p270) target = $region36
        $region35: #{fibernet_forward.3} parent=11 // pred_region
          _
        $region36: #{fibernet_forward.3} parent=11 // pred_fallthru
          _
        // Predicated region
        $region37: #{fibernet_forward.3} parent=11 // pred_check
          %p273 = pneg %p193
        $region38: #{fibernet_forward.3} parent=11 // pred_check_branch
          %275 = sbr.rel (%p273) target = $region40
        $region39: #{fibernet_forward.3} parent=11 // pred_region
          _
        $region40: #{fibernet_forward.3} parent=11 // pred_fallthru
          _
        // Predicated region
        $region41: #{fibernet_forward.3} parent=11 // pred_check
          %p276 = pneg %p214
        $region42: #{fibernet_forward.3} parent=11 // pred_check_branch
          %278 = sbr.rel (%p276) target = $region44
        $region43: #{fibernet_forward.3} parent=11 // pred_region
          _
        $region44: #{fibernet_forward.3} parent=11 // pred_fallthru
          _
      $region12: #{fibernet_forward.3} parent=5 // pred_fallthru
        _
      %p279 = scmp.lt.s32.totalorder %s20, 2
      // Predicated region
      $region45: #{fibernet_forward.3} parent=5 // pred_check
        %p280 = pneg %p279
      $region46: #{fibernet_forward.3} parent=5 // pred_check_branch
        %282 = sbr.rel (%p280) target = $region48
      $region47: #{fibernet_forward.3} parent=5 // pred_region
        // Predicated region
        $region49: #{fibernet_forward.3} parent=47 // pred_check
          %p283 = pneg %p40
        $region50: #{fibernet_forward.3} parent=47 // pred_check_branch
          %285 = sbr.rel (%p283) target = $region52
        $region51: #{fibernet_forward.3} parent=47 // pred_region
          %p286 = scmp.lt.s32.totalorder %s20, 1
          %s287 = scalar_select %p286, %s20, 1
          %s288 = smul.addr %s287, 16
          %s289 = smul.addr %s288, 2
          %s290 = scalar_lea.vmem %s0, %s289
        $region52: #{fibernet_forward.3} parent=47 // pred_fallthru
          _
      $region48: #{fibernet_forward.3} parent=5 // pred_fallthru
        _
      %p291 = scmp.le.s32.totalorder 1, %s20
      %p292 = scmp.lt.s32.totalorder %s20, 3
      %p293 = pnand %p291, %p292
      %p294 = pneg %p293
      // Predicated region
      $region53: #{fibernet_forward.3} parent=5 // pred_check
        _
      $region54: #{fibernet_forward.3} parent=5 // pred_check_branch
        %296 = sbr.rel (%p293) target = $region56
      $region55: #{fibernet_forward.3} parent=5 // pred_region
        %s297 = ssub.s32 %s20, 1
        %p298 = scmp.lt.s32.totalorder %s25, 1
        %s299 = scalar_select %p298, %s25, 1
        %s300 = smul.addr %s299, 16
        %s301 = smul.addr %s300, 2
        %s302 = scalar_lea.vmem %s0, %s301
        %p303 = pneg %p46
        %p304 = pneg %p43
        %p305 = pneg %p67
        %p306 = pneg %p64
        %p307 = pneg %p88
        %p308 = pneg %p85
        %p309 = pneg %p109
        %p310 = pneg %p106
        %p311 = pneg %p130
        %p312 = pneg %p127
        %p313 = pneg %p151
        %p314 = pneg %p148
        %p315 = pneg %p172
        %p316 = pneg %p169
        %p317 = pneg %p193
        %p318 = pneg %p190
        %p319 = pneg %p214
        %p320 = pneg %p211
        %p321 = pneg %p240
        %p322 = pneg %p237
        %s323 = sand.u32 %s227, 1
        %s324 = scalar_lea.sflag [#allocation4], %s323
        %s325 = sand.u32 %s227, 1
        %s326 = scalar_lea.vmem [#allocation3], %s325
        %p327 = scmp.lt.s32.totalorder %s25, 1
        %s328 = scalar_select %p327, %s25, 1
        %s329 = smul.addr %s328, 16
        %s330 = smul.addr %s329, 2
        %s331 = scalar_lea.vmem %s0, %s330
        %v333 = vld [vmem:[%s331] sm:$0xff]
        %v334 = vld [vmem:[%s331 + $0x8] sm:$0xff]
        %v335 = vld [vmem:[%s331 + $0x10] sm:$0xff]
        %v336 = vld [vmem:[%s331 + $0x18] sm:$0xff]
        %v337 = vld [vmem:[%s1] sm:$0xff]
        %v338 = vld [vmem:[%s1 + $0x8] sm:$0xff]
        %v339 = vld [vmem:[%s1 + $0x10] sm:$0xff]
        %v340 = vld [vmem:[%s1 + $0x18] sm:$0xff]
        %v341 = vld [vmem:[%s1 + $0x20] sm:$0xff]
        %v342 = vld [vmem:[%s1 + $0x28] sm:$0xff]
        %v343 = vld [vmem:[%s1 + $0x30] sm:$0xff]
        %v344 = vld [vmem:[%s1 + $0x38] sm:$0xff]
        %v345 = vld [vmem:[%s1 + $0x40] sm:$0xff]
        %v346 = vld [vmem:[%s1 + $0x48] sm:$0xff]
        %v347 = vld [vmem:[%s1 + $0x50] sm:$0xff]
        %v348 = vld [vmem:[%s1 + $0x58] sm:$0xff]
        %v349 = vld [vmem:[%s1 + $0x60] sm:$0xff]
        %v350 = vld [vmem:[%s1 + $0x68] sm:$0xff]
        %v351 = vld [vmem:[%s1 + $0x70] sm:$0xff]
        %v352 = vld [vmem:[%s1 + $0x78] sm:$0xff]
        %v353 = vld [vmem:[%s1 + $0x80] sm:$0xff]
        %v354 = vld [vmem:[%s1 + $0x88] sm:$0xff]
        %v355 = vld [vmem:[%s1 + $0x90] sm:$0xff]
        %v356 = vld [vmem:[%s1 + $0x98] sm:$0xff]
        %v357 = vld [vmem:[%s1 + $0xa0] sm:$0xff]
        %v358 = vld [vmem:[%s1 + $0xa8] sm:$0xff]
        %v359 = vld [vmem:[%s1 + $0xb0] sm:$0xff]
        %v360 = vld [vmem:[%s1 + $0xb8] sm:$0xff]
        %v361 = vld [vmem:[%s1 + $0xc0] sm:$0xff]
        %v362 = vld [vmem:[%s1 + $0xc8] sm:$0xff]
        %v363 = vld [vmem:[%s1 + $0xd0] sm:$0xff]
        %v364 = vld [vmem:[%s1 + $0xd8] sm:$0xff]
        %v365 = vld [vmem:[%s1 + $0xe0] sm:$0xff]
        %v366 = vld [vmem:[%s1 + $0xe8] sm:$0xff]
        %v367 = vld [vmem:[%s1 + $0xf0] sm:$0xff]
        %v368 = vld [vmem:[%s1 + $0xf8] sm:$0xff]
        %v369 = vld [vmem:[%s1 + $0x100] sm:$0xff]
        %v370 = vld [vmem:[%s1 + $0x108] sm:$0xff]
        %v371 = vld [vmem:[%s1 + $0x110] sm:$0xff]
        %v372 = vld [vmem:[%s1 + $0x118] sm:$0xff]
        %v373 = vld [vmem:[%s1 + $0x120] sm:$0xff]
        %v374 = vld [vmem:[%s1 + $0x128] sm:$0xff]
        %v375 = vld [vmem:[%s1 + $0x130] sm:$0xff]
        %v376 = vld [vmem:[%s1 + $0x138] sm:$0xff]
        %v377 = vld [vmem:[%s1 + $0x140] sm:$0xff]
        %v378 = vld [vmem:[%s1 + $0x148] sm:$0xff]
        %v379 = vld [vmem:[%s1 + $0x150] sm:$0xff]
        %v380 = vld [vmem:[%s1 + $0x158] sm:$0xff]
        %v381 = vld [vmem:[%s1 + $0x160] sm:$0xff]
        %v382 = vld [vmem:[%s1 + $0x168] sm:$0xff]
        %v383 = vld [vmem:[%s1 + $0x170] sm:$0xff]
        %v384 = vld [vmem:[%s1 + $0x178] sm:$0xff]
        %v385 = vld [vmem:[%s1 + $0x180] sm:$0xff]
        %v386 = vld [vmem:[%s1 + $0x188] sm:$0xff]
        %v387 = vld [vmem:[%s1 + $0x190] sm:$0xff]
        %v388 = vld [vmem:[%s1 + $0x198] sm:$0xff]
        %v389 = vld [vmem:[%s1 + $0x1a0] sm:$0xff]
        %v390 = vld [vmem:[%s1 + $0x1a8] sm:$0xff]
        %v391 = vld [vmem:[%s1 + $0x1b0] sm:$0xff]
        %v392 = vld [vmem:[%s1 + $0x1b8] sm:$0xff]
        %v393 = vld [vmem:[%s1 + $0x1c0] sm:$0xff]
        %v394 = vld [vmem:[%s1 + $0x1c8] sm:$0xff]
        %v395 = vld [vmem:[%s1 + $0x1d0] sm:$0xff]
        %v396 = vld [vmem:[%s1 + $0x1d8] sm:$0xff]
        %v397 = vld [vmem:[%s1 + $0x1e0] sm:$0xff]
        %v398 = vld [vmem:[%s1 + $0x1e8] sm:$0xff]
        %v399 = vld [vmem:[%s1 + $0x1f0] sm:$0xff]
        %v400 = vld [vmem:[%s1 + $0x1f8] sm:$0xff]
        %v401 = vld [vmem:[%s1 + $0x200] sm:$0xff]
        %v402 = vld [vmem:[%s1 + $0x208] sm:$0xff]
        %v403 = vld [vmem:[%s1 + $0x210] sm:$0xff]
        %v404 = vld [vmem:[%s1 + $0x218] sm:$0xff]
        %v405 = vld [vmem:[%s1 + $0x220] sm:$0xff]
        %v406 = vld [vmem:[%s1 + $0x228] sm:$0xff]
        %v407 = vld [vmem:[%s1 + $0x230] sm:$0xff]
        %v408 = vld [vmem:[%s1 + $0x238] sm:$0xff]
        %v409 = vld [vmem:[%s1 + $0x240] sm:$0xff]
        %v410 = vld [vmem:[%s1 + $0x248] sm:$0xff]
        %v411 = vld [vmem:[%s1 + $0x250] sm:$0xff]
        %v412 = vld [vmem:[%s1 + $0x258] sm:$0xff]
        %v413 = vld [vmem:[%s1 + $0x260] sm:$0xff]
        %v414 = vld [vmem:[%s1 + $0x268] sm:$0xff]
        %v415 = vld [vmem:[%s1 + $0x270] sm:$0xff]
        %v416 = vld [vmem:[%s1 + $0x278] sm:$0xff]
        %v417 = vld [vmem:[%s1 + $0x280] sm:$0xff]
        %v418 = vld [vmem:[%s1 + $0x288] sm:$0xff]
        %v419 = vld [vmem:[%s1 + $0x290] sm:$0xff]
        %v420 = vld [vmem:[%s1 + $0x298] sm:$0xff]
        %v421 = vld [vmem:[%s1 + $0x2a0] sm:$0xff]
        %v422 = vld [vmem:[%s1 + $0x2a8] sm:$0xff]
        %v423 = vld [vmem:[%s1 + $0x2b0] sm:$0xff]
        %v424 = vld [vmem:[%s1 + $0x2b8] sm:$0xff]
        %v425 = vld [vmem:[%s1 + $0x2c0] sm:$0xff]
        %v426 = vld [vmem:[%s1 + $0x2c8] sm:$0xff]
        %v427 = vld [vmem:[%s1 + $0x2d0] sm:$0xff]
        %v428 = vld [vmem:[%s1 + $0x2d8] sm:$0xff]
        %v429 = vld [vmem:[%s1 + $0x2e0] sm:$0xff]
        %v430 = vld [vmem:[%s1 + $0x2e8] sm:$0xff]
        %v431 = vld [vmem:[%s1 + $0x2f0] sm:$0xff]
        %v432 = vld [vmem:[%s1 + $0x2f8] sm:$0xff]
        %v433 = vld [vmem:[%s1 + $0x300] sm:$0xff]
        %v434 = vld [vmem:[%s1 + $0x308] sm:$0xff]
        %v435 = vld [vmem:[%s1 + $0x310] sm:$0xff]
        %v436 = vld [vmem:[%s1 + $0x318] sm:$0xff]
        %v437 = vld [vmem:[%s1 + $0x320] sm:$0xff]
        %v438 = vld [vmem:[%s1 + $0x328] sm:$0xff]
        %v439 = vld [vmem:[%s1 + $0x330] sm:$0xff]
        %v440 = vld [vmem:[%s1 + $0x338] sm:$0xff]
        %v441 = vld [vmem:[%s1 + $0x340] sm:$0xff]
        %v442 = vld [vmem:[%s1 + $0x348] sm:$0xff]
        %v443 = vld [vmem:[%s1 + $0x350] sm:$0xff]
        %v444 = vld [vmem:[%s1 + $0x358] sm:$0xff]
        %v445 = vld [vmem:[%s1 + $0x360] sm:$0xff]
        %v446 = vld [vmem:[%s1 + $0x368] sm:$0xff]
        %v447 = vld [vmem:[%s1 + $0x370] sm:$0xff]
        %v448 = vld [vmem:[%s1 + $0x378] sm:$0xff]
        %v449 = vld [vmem:[%s1 + $0x380] sm:$0xff]
        %v450 = vld [vmem:[%s1 + $0x388] sm:$0xff]
        %v451 = vld [vmem:[%s1 + $0x390] sm:$0xff]
        %v452 = vld [vmem:[%s1 + $0x398] sm:$0xff]
        %v453 = vld [vmem:[%s1 + $0x3a0] sm:$0xff]
        %v454 = vld [vmem:[%s1 + $0x3a8] sm:$0xff]
        %v455 = vld [vmem:[%s1 + $0x3b0] sm:$0xff]
        %v456 = vld [vmem:[%s1 + $0x3b8] sm:$0xff]
        %v457 = vld [vmem:[%s1 + $0x3c0] sm:$0xff]
        %v458 = vld [vmem:[%s1 + $0x3c8] sm:$0xff]
        %v459 = vld [vmem:[%s1 + $0x3d0] sm:$0xff]
        %v460 = vld [vmem:[%s1 + $0x3d8] sm:$0xff]
        %v461 = vld [vmem:[%s1 + $0x3e0] sm:$0xff]
        %v462 = vld [vmem:[%s1 + $0x3e8] sm:$0xff]
        %v463 = vld [vmem:[%s1 + $0x3f0] sm:$0xff]
        %v464 = vld [vmem:[%s1 + $0x3f8] sm:$0xff]
        %v465 = vld [vmem:[%s1 + $0x400] sm:$0xff]
        %v466 = vld [vmem:[%s1 + $0x408] sm:$0xff]
        %v467 = vld [vmem:[%s1 + $0x410] sm:$0xff]
        %v468 = vld [vmem:[%s1 + $0x418] sm:$0xff]
        %v469 = vld [vmem:[%s1 + $0x420] sm:$0xff]
        %v470 = vld [vmem:[%s1 + $0x428] sm:$0xff]
        %v471 = vld [vmem:[%s1 + $0x430] sm:$0xff]
        %v472 = vld [vmem:[%s1 + $0x438] sm:$0xff]
        %v473 = vld [vmem:[%s1 + $0x440] sm:$0xff]
        %v474 = vld [vmem:[%s1 + $0x448] sm:$0xff]
        %v475 = vld [vmem:[%s1 + $0x450] sm:$0xff]
        %v476 = vld [vmem:[%s1 + $0x458] sm:$0xff]
        %v477 = vld [vmem:[%s1 + $0x460] sm:$0xff]
        %v478 = vld [vmem:[%s1 + $0x468] sm:$0xff]
        %v479 = vld [vmem:[%s1 + $0x470] sm:$0xff]
        %v480 = vld [vmem:[%s1 + $0x478] sm:$0xff]
        %v481 = vld [vmem:[%s1 + $0x480] sm:$0xff]
        %v482 = vld [vmem:[%s1 + $0x488] sm:$0xff]
        %v483 = vld [vmem:[%s1 + $0x490] sm:$0xff]
        %v484 = vld [vmem:[%s1 + $0x498] sm:$0xff]
        %v485 = vld [vmem:[%s1 + $0x4a0] sm:$0xff]
        %v486 = vld [vmem:[%s1 + $0x4a8] sm:$0xff]
        %v487 = vld [vmem:[%s1 + $0x4b0] sm:$0xff]
        %v488 = vld [vmem:[%s1 + $0x4b8] sm:$0xff]
        %v489 = vld [vmem:[%s1 + $0x4c0] sm:$0xff]
        %v490 = vld [vmem:[%s1 + $0x4c8] sm:$0xff]
        %v491 = vld [vmem:[%s1 + $0x4d0] sm:$0xff]
        %v492 = vld [vmem:[%s1 + $0x4d8] sm:$0xff]
        %v493 = vld [vmem:[%s1 + $0x4e0] sm:$0xff]
        %v494 = vld [vmem:[%s1 + $0x4e8] sm:$0xff]
        %v495 = vld [vmem:[%s1 + $0x4f0] sm:$0xff]
        %v496 = vld [vmem:[%s1 + $0x4f8] sm:$0xff]
        %v497 = vld [vmem:[%s1 + $0x500] sm:$0xff]
        %v498 = vld [vmem:[%s1 + $0x508] sm:$0xff]
        %v499 = vld [vmem:[%s1 + $0x510] sm:$0xff]
        %v500 = vld [vmem:[%s1 + $0x518] sm:$0xff]
        %v501 = vld [vmem:[%s1 + $0x520] sm:$0xff]
        %v502 = vld [vmem:[%s1 + $0x528] sm:$0xff]
        %v503 = vld [vmem:[%s1 + $0x530] sm:$0xff]
        %v504 = vld [vmem:[%s1 + $0x538] sm:$0xff]
        %v505 = vld [vmem:[%s1 + $0x540] sm:$0xff]
        %v506 = vld [vmem:[%s1 + $0x548] sm:$0xff]
        %v507 = vld [vmem:[%s1 + $0x550] sm:$0xff]
        %v508 = vld [vmem:[%s1 + $0x558] sm:$0xff]
        %v509 = vld [vmem:[%s1 + $0x560] sm:$0xff]
        %v510 = vld [vmem:[%s1 + $0x568] sm:$0xff]
        %v511 = vld [vmem:[%s1 + $0x570] sm:$0xff]
        %v512 = vld [vmem:[%s1 + $0x578] sm:$0xff]
        %v513 = vld [vmem:[%s1 + $0x580] sm:$0xff]
        %v514 = vld [vmem:[%s1 + $0x588] sm:$0xff]
        %v515 = vld [vmem:[%s1 + $0x590] sm:$0xff]
        %v516 = vld [vmem:[%s1 + $0x598] sm:$0xff]
        %v517 = vld [vmem:[%s1 + $0x5a0] sm:$0xff]
        %v518 = vld [vmem:[%s1 + $0x5a8] sm:$0xff]
        %v519 = vld [vmem:[%s1 + $0x5b0] sm:$0xff]
        %v520 = vld [vmem:[%s1 + $0x5b8] sm:$0xff]
        %v521 = vld [vmem:[%s1 + $0x5c0] sm:$0xff]
        %v522 = vld [vmem:[%s1 + $0x5c8] sm:$0xff]
        %v523 = vld [vmem:[%s1 + $0x5d0] sm:$0xff]
        %v524 = vld [vmem:[%s1 + $0x5d8] sm:$0xff]
        %v525 = vld [vmem:[%s1 + $0x5e0] sm:$0xff]
        %v526 = vld [vmem:[%s1 + $0x5e8] sm:$0xff]
        %v527 = vld [vmem:[%s1 + $0x5f0] sm:$0xff]
        %v528 = vld [vmem:[%s1 + $0x5f8] sm:$0xff]
        %v529 = vld [vmem:[%s1 + $0x600] sm:$0xff]
        %v530 = vld [vmem:[%s1 + $0x608] sm:$0xff]
        %v531 = vld [vmem:[%s1 + $0x610] sm:$0xff]
        %v532 = vld [vmem:[%s1 + $0x618] sm:$0xff]
        %v533 = vld [vmem:[%s1 + $0x620] sm:$0xff]
        %v534 = vld [vmem:[%s1 + $0x628] sm:$0xff]
        %v535 = vld [vmem:[%s1 + $0x630] sm:$0xff]
        %v536 = vld [vmem:[%s1 + $0x638] sm:$0xff]
        %v537 = vld [vmem:[%s1 + $0x640] sm:$0xff]
        %v538 = vld [vmem:[%s1 + $0x648] sm:$0xff]
        %v539 = vld [vmem:[%s1 + $0x650] sm:$0xff]
        %v540 = vld [vmem:[%s1 + $0x658] sm:$0xff]
        %v541 = vld [vmem:[%s1 + $0x660] sm:$0xff]
        %v542 = vld [vmem:[%s1 + $0x668] sm:$0xff]
        %v543 = vld [vmem:[%s1 + $0x670] sm:$0xff]
        %v544 = vld [vmem:[%s1 + $0x678] sm:$0xff]
        %v545 = vld [vmem:[%s1 + $0x680] sm:$0xff]
        %v546 = vld [vmem:[%s1 + $0x688] sm:$0xff]
        %v547 = vld [vmem:[%s1 + $0x690] sm:$0xff]
        %v548 = vld [vmem:[%s1 + $0x698] sm:$0xff]
        %v549 = vld [vmem:[%s1 + $0x6a0] sm:$0xff]
        %v550 = vld [vmem:[%s1 + $0x6a8] sm:$0xff]
        %v551 = vld [vmem:[%s1 + $0x6b0] sm:$0xff]
        %v552 = vld [vmem:[%s1 + $0x6b8] sm:$0xff]
        %v553 = vld [vmem:[%s1 + $0x6c0] sm:$0xff]
        %v554 = vld [vmem:[%s1 + $0x6c8] sm:$0xff]
        %v555 = vld [vmem:[%s1 + $0x6d0] sm:$0xff]
        %v556 = vld [vmem:[%s1 + $0x6d8] sm:$0xff]
        %v557 = vld [vmem:[%s1 + $0x6e0] sm:$0xff]
        %v558 = vld [vmem:[%s1 + $0x6e8] sm:$0xff]
        %v559 = vld [vmem:[%s1 + $0x6f0] sm:$0xff]
        %v560 = vld [vmem:[%s1 + $0x6f8] sm:$0xff]
        %v561 = vld [vmem:[%s1 + $0x700] sm:$0xff]
        %v562 = vld [vmem:[%s1 + $0x708] sm:$0xff]
        %v563 = vld [vmem:[%s1 + $0x710] sm:$0xff]
        %v564 = vld [vmem:[%s1 + $0x718] sm:$0xff]
        %v565 = vld [vmem:[%s1 + $0x720] sm:$0xff]
        %v566 = vld [vmem:[%s1 + $0x728] sm:$0xff]
        %v567 = vld [vmem:[%s1 + $0x730] sm:$0xff]
        %v568 = vld [vmem:[%s1 + $0x738] sm:$0xff]
        %v569 = vld [vmem:[%s1 + $0x740] sm:$0xff]
        %v570 = vld [vmem:[%s1 + $0x748] sm:$0xff]
        %v571 = vld [vmem:[%s1 + $0x750] sm:$0xff]
        %v572 = vld [vmem:[%s1 + $0x758] sm:$0xff]
        %v573 = vld [vmem:[%s1 + $0x760] sm:$0xff]
        %v574 = vld [vmem:[%s1 + $0x768] sm:$0xff]
        %v575 = vld [vmem:[%s1 + $0x770] sm:$0xff]
        %v576 = vld [vmem:[%s1 + $0x778] sm:$0xff]
        %v577 = vld [vmem:[%s1 + $0x780] sm:$0xff]
        %v578 = vld [vmem:[%s1 + $0x788] sm:$0xff]
        %v579 = vld [vmem:[%s1 + $0x790] sm:$0xff]
        %v580 = vld [vmem:[%s1 + $0x798] sm:$0xff]
        %v581 = vld [vmem:[%s1 + $0x7a0] sm:$0xff]
        %v582 = vld [vmem:[%s1 + $0x7a8] sm:$0xff]
        %v583 = vld [vmem:[%s1 + $0x7b0] sm:$0xff]
        %v584 = vld [vmem:[%s1 + $0x7b8] sm:$0xff]
        %v585 = vld [vmem:[%s1 + $0x7c0] sm:$0xff]
        %v586 = vld [vmem:[%s1 + $0x7c8] sm:$0xff]
        %v587 = vld [vmem:[%s1 + $0x7d0] sm:$0xff]
        %v588 = vld [vmem:[%s1 + $0x7d8] sm:$0xff]
        %v589 = vld [vmem:[%s1 + $0x7e0] sm:$0xff]
        %v590 = vld [vmem:[%s1 + $0x7e8] sm:$0xff]
        %v591 = vld [vmem:[%s1 + $0x7f0] sm:$0xff]
        %v592 = vld [vmem:[%s1 + $0x7f8] sm:$0xff]
        %v593 = vld [vmem:[%s1 + $0x800] sm:$0xff]
        %v594 = vld [vmem:[%s1 + $0x808] sm:$0xff]
        %v595 = vld [vmem:[%s1 + $0x810] sm:$0xff]
        %v596 = vld [vmem:[%s1 + $0x818] sm:$0xff]
        %v597 = vld [vmem:[%s1 + $0x820] sm:$0xff]
        %v598 = vld [vmem:[%s1 + $0x828] sm:$0xff]
        %v599 = vld [vmem:[%s1 + $0x830] sm:$0xff]
        %v600 = vld [vmem:[%s1 + $0x838] sm:$0xff]
        %v601 = vld [vmem:[%s1 + $0x840] sm:$0xff]
        %v602 = vld [vmem:[%s1 + $0x848] sm:$0xff]
        %v603 = vld [vmem:[%s1 + $0x850] sm:$0xff]
        %v604 = vld [vmem:[%s1 + $0x858] sm:$0xff]
        %v605 = vld [vmem:[%s1 + $0x860] sm:$0xff]
        %v606 = vld [vmem:[%s1 + $0x868] sm:$0xff]
        %v607 = vld [vmem:[%s1 + $0x870] sm:$0xff]
        %v608 = vld [vmem:[%s1 + $0x878] sm:$0xff]
        %v609 = vld [vmem:[%s1 + $0x880] sm:$0xff]
        %v610 = vld [vmem:[%s1 + $0x888] sm:$0xff]
        %v611 = vld [vmem:[%s1 + $0x890] sm:$0xff]
        %v612 = vld [vmem:[%s1 + $0x898] sm:$0xff]
        %v613 = vld [vmem:[%s1 + $0x8a0] sm:$0xff]
        %v614 = vld [vmem:[%s1 + $0x8a8] sm:$0xff]
        %v615 = vld [vmem:[%s1 + $0x8b0] sm:$0xff]
        %v616 = vld [vmem:[%s1 + $0x8b8] sm:$0xff]
        %v617 = vld [vmem:[%s1 + $0x8c0] sm:$0xff]
        %v618 = vld [vmem:[%s1 + $0x8c8] sm:$0xff]
        %v619 = vld [vmem:[%s1 + $0x8d0] sm:$0xff]
        %v620 = vld [vmem:[%s1 + $0x8d8] sm:$0xff]
        %v621 = vld [vmem:[%s1 + $0x8e0] sm:$0xff]
        %v622 = vld [vmem:[%s1 + $0x8e8] sm:$0xff]
        %v623 = vld [vmem:[%s1 + $0x8f0] sm:$0xff]
        %v624 = vld [vmem:[%s1 + $0x8f8] sm:$0xff]
        %v625 = vld [vmem:[%s1 + $0x900] sm:$0xff]
        %v626 = vld [vmem:[%s1 + $0x908] sm:$0xff]
        %v627 = vld [vmem:[%s1 + $0x910] sm:$0xff]
        %v628 = vld [vmem:[%s1 + $0x918] sm:$0xff]
        %v629 = vld [vmem:[%s1 + $0x920] sm:$0xff]
        %v630 = vld [vmem:[%s1 + $0x928] sm:$0xff]
        %v631 = vld [vmem:[%s1 + $0x930] sm:$0xff]
        %v632 = vld [vmem:[%s1 + $0x938] sm:$0xff]
        %v633 = vld [vmem:[%s1 + $0x940] sm:$0xff]
        %v634 = vld [vmem:[%s1 + $0x948] sm:$0xff]
        %v635 = vld [vmem:[%s1 + $0x950] sm:$0xff]
        %v636 = vld [vmem:[%s1 + $0x958] sm:$0xff]
        %v637 = vld [vmem:[%s1 + $0x960] sm:$0xff]
        %v638 = vld [vmem:[%s1 + $0x968] sm:$0xff]
        %v639 = vld [vmem:[%s1 + $0x970] sm:$0xff]
        %v640 = vld [vmem:[%s1 + $0x978] sm:$0xff]
        %v641 = vld [vmem:[%s1 + $0x980] sm:$0xff]
        %v642 = vld [vmem:[%s1 + $0x988] sm:$0xff]
        %v643 = vld [vmem:[%s1 + $0x990] sm:$0xff]
        %v644 = vld [vmem:[%s1 + $0x998] sm:$0xff]
        %v645 = vld [vmem:[%s1 + $0x9a0] sm:$0xff]
        %v646 = vld [vmem:[%s1 + $0x9a8] sm:$0xff]
        %v647 = vld [vmem:[%s1 + $0x9b0] sm:$0xff]
        %v648 = vld [vmem:[%s1 + $0x9b8] sm:$0xff]
        %v649 = vld [vmem:[%s1 + $0x9c0] sm:$0xff]
        %v650 = vld [vmem:[%s1 + $0x9c8] sm:$0xff]
        %v651 = vld [vmem:[%s1 + $0x9d0] sm:$0xff]
        %v652 = vld [vmem:[%s1 + $0x9d8] sm:$0xff]
        %v653 = vld [vmem:[%s1 + $0x9e0] sm:$0xff]
        %v654 = vld [vmem:[%s1 + $0x9e8] sm:$0xff]
        %v655 = vld [vmem:[%s1 + $0x9f0] sm:$0xff]
        %v656 = vld [vmem:[%s1 + $0x9f8] sm:$0xff]
        %v657 = vld [vmem:[%s1 + $0xa00] sm:$0xff]
        %v658 = vld [vmem:[%s1 + $0xa08] sm:$0xff]
        %v659 = vld [vmem:[%s1 + $0xa10] sm:$0xff]
        %v660 = vld [vmem:[%s1 + $0xa18] sm:$0xff]
        %v661 = vld [vmem:[%s1 + $0xa20] sm:$0xff]
        %v662 = vld [vmem:[%s1 + $0xa28] sm:$0xff]
        %v663 = vld [vmem:[%s1 + $0xa30] sm:$0xff]
        %v664 = vld [vmem:[%s1 + $0xa38] sm:$0xff]
        %v665 = vld [vmem:[%s1 + $0xa40] sm:$0xff]
        %v666 = vld [vmem:[%s1 + $0xa48] sm:$0xff]
        %v667 = vld [vmem:[%s1 + $0xa50] sm:$0xff]
        %v668 = vld [vmem:[%s1 + $0xa58] sm:$0xff]
        %v669 = vld [vmem:[%s1 + $0xa60] sm:$0xff]
        %v670 = vld [vmem:[%s1 + $0xa68] sm:$0xff]
        %v671 = vld [vmem:[%s1 + $0xa70] sm:$0xff]
        %v672 = vld [vmem:[%s1 + $0xa78] sm:$0xff]
        %v673 = vld [vmem:[%s1 + $0xa80] sm:$0xff]
        %v674 = vld [vmem:[%s1 + $0xa88] sm:$0xff]
        %v675 = vld [vmem:[%s1 + $0xa90] sm:$0xff]
        %v676 = vld [vmem:[%s1 + $0xa98] sm:$0xff]
        %v677 = vld [vmem:[%s1 + $0xaa0] sm:$0xff]
        %v678 = vld [vmem:[%s1 + $0xaa8] sm:$0xff]
        %v679 = vld [vmem:[%s1 + $0xab0] sm:$0xff]
        %v680 = vld [vmem:[%s1 + $0xab8] sm:$0xff]
        %v681 = vld [vmem:[%s1 + $0xac0] sm:$0xff]
        %v682 = vld [vmem:[%s1 + $0xac8] sm:$0xff]
        %v683 = vld [vmem:[%s1 + $0xad0] sm:$0xff]
        %v684 = vld [vmem:[%s1 + $0xad8] sm:$0xff]
        %v685 = vld [vmem:[%s1 + $0xae0] sm:$0xff]
        %v686 = vld [vmem:[%s1 + $0xae8] sm:$0xff]
        %v687 = vld [vmem:[%s1 + $0xaf0] sm:$0xff]
        %v688 = vld [vmem:[%s1 + $0xaf8] sm:$0xff]
        %v689 = vld [vmem:[%s1 + $0xb00] sm:$0xff]
        %v690 = vld [vmem:[%s1 + $0xb08] sm:$0xff]
        %v691 = vld [vmem:[%s1 + $0xb10] sm:$0xff]
        %v692 = vld [vmem:[%s1 + $0xb18] sm:$0xff]
        %v693 = vld [vmem:[%s1 + $0xb20] sm:$0xff]
        %v694 = vld [vmem:[%s1 + $0xb28] sm:$0xff]
        %v695 = vld [vmem:[%s1 + $0xb30] sm:$0xff]
        %v696 = vld [vmem:[%s1 + $0xb38] sm:$0xff]
        %v697 = vld [vmem:[%s1 + $0xb40] sm:$0xff]
        %v698 = vld [vmem:[%s1 + $0xb48] sm:$0xff]
        %v699 = vld [vmem:[%s1 + $0xb50] sm:$0xff]
        %v700 = vld [vmem:[%s1 + $0xb58] sm:$0xff]
        %v701 = vld [vmem:[%s1 + $0xb60] sm:$0xff]
        %v702 = vld [vmem:[%s1 + $0xb68] sm:$0xff]
        %v703 = vld [vmem:[%s1 + $0xb70] sm:$0xff]
        %v704 = vld [vmem:[%s1 + $0xb78] sm:$0xff]
        %v705 = vld [vmem:[%s1 + $0xb80] sm:$0xff]
        %v706 = vld [vmem:[%s1 + $0xb88] sm:$0xff]
        %v707 = vld [vmem:[%s1 + $0xb90] sm:$0xff]
        %v708 = vld [vmem:[%s1 + $0xb98] sm:$0xff]
        %v709 = vld [vmem:[%s1 + $0xba0] sm:$0xff]
        %v710 = vld [vmem:[%s1 + $0xba8] sm:$0xff]
        %v711 = vld [vmem:[%s1 + $0xbb0] sm:$0xff]
        %v712 = vld [vmem:[%s1 + $0xbb8] sm:$0xff]
        %v713 = vld [vmem:[%s1 + $0xbc0] sm:$0xff]
        %v714 = vld [vmem:[%s1 + $0xbc8] sm:$0xff]
        %v715 = vld [vmem:[%s1 + $0xbd0] sm:$0xff]
        %v716 = vld [vmem:[%s1 + $0xbd8] sm:$0xff]
        %v717 = vld [vmem:[%s1 + $0xbe0] sm:$0xff]
        %v718 = vld [vmem:[%s1 + $0xbe8] sm:$0xff]
        %v719 = vld [vmem:[%s1 + $0xbf0] sm:$0xff]
        %v720 = vld [vmem:[%s1 + $0xbf8] sm:$0xff]
        %v721 = vld [vmem:[%s1 + $0xc00] sm:$0xff]
        %v722 = vld [vmem:[%s1 + $0xc08] sm:$0xff]
        %v723 = vld [vmem:[%s1 + $0xc10] sm:$0xff]
        %v724 = vld [vmem:[%s1 + $0xc18] sm:$0xff]
        %v725 = vld [vmem:[%s1 + $0xc20] sm:$0xff]
        %v726 = vld [vmem:[%s1 + $0xc28] sm:$0xff]
        %v727 = vld [vmem:[%s1 + $0xc30] sm:$0xff]
        %v728 = vld [vmem:[%s1 + $0xc38] sm:$0xff]
        %v729 = vld [vmem:[%s1 + $0xc40] sm:$0xff]
        %v730 = vld [vmem:[%s1 + $0xc48] sm:$0xff]
        %v731 = vld [vmem:[%s1 + $0xc50] sm:$0xff]
        %v732 = vld [vmem:[%s1 + $0xc58] sm:$0xff]
        %v733 = vld [vmem:[%s1 + $0xc60] sm:$0xff]
        %v734 = vld [vmem:[%s1 + $0xc68] sm:$0xff]
        %v735 = vld [vmem:[%s1 + $0xc70] sm:$0xff]
        %v736 = vld [vmem:[%s1 + $0xc78] sm:$0xff]
        %v737 = vld [vmem:[%s1 + $0xc80] sm:$0xff]
        %v738 = vld [vmem:[%s1 + $0xc88] sm:$0xff]
        %v739 = vld [vmem:[%s1 + $0xc90] sm:$0xff]
        %v740 = vld [vmem:[%s1 + $0xc98] sm:$0xff]
        %v741 = vld [vmem:[%s1 + $0xca0] sm:$0xff]
        %v742 = vld [vmem:[%s1 + $0xca8] sm:$0xff]
        %v743 = vld [vmem:[%s1 + $0xcb0] sm:$0xff]
        %v744 = vld [vmem:[%s1 + $0xcb8] sm:$0xff]
        %v745 = vld [vmem:[%s1 + $0xcc0] sm:$0xff]
        %v746 = vld [vmem:[%s1 + $0xcc8] sm:$0xff]
        %v747 = vld [vmem:[%s1 + $0xcd0] sm:$0xff]
        %v748 = vld [vmem:[%s1 + $0xcd8] sm:$0xff]
        %v749 = vld [vmem:[%s1 + $0xce0] sm:$0xff]
        %v750 = vld [vmem:[%s1 + $0xce8] sm:$0xff]
        %v751 = vld [vmem:[%s1 + $0xcf0] sm:$0xff]
        %v752 = vld [vmem:[%s1 + $0xcf8] sm:$0xff]
        %v753 = vld [vmem:[%s1 + $0xd00] sm:$0xff]
        %v754 = vld [vmem:[%s1 + $0xd08] sm:$0xff]
        %v755 = vld [vmem:[%s1 + $0xd10] sm:$0xff]
        %v756 = vld [vmem:[%s1 + $0xd18] sm:$0xff]
        %v757 = vld [vmem:[%s1 + $0xd20] sm:$0xff]
        %v758 = vld [vmem:[%s1 + $0xd28] sm:$0xff]
        %v759 = vld [vmem:[%s1 + $0xd30] sm:$0xff]
        %v760 = vld [vmem:[%s1 + $0xd38] sm:$0xff]
        %v761 = vld [vmem:[%s1 + $0xd40] sm:$0xff]
        %v762 = vld [vmem:[%s1 + $0xd48] sm:$0xff]
        %v763 = vld [vmem:[%s1 + $0xd50] sm:$0xff]
        %v764 = vld [vmem:[%s1 + $0xd58] sm:$0xff]
        %v765 = vld [vmem:[%s1 + $0xd60] sm:$0xff]
        %v766 = vld [vmem:[%s1 + $0xd68] sm:$0xff]
        %v767 = vld [vmem:[%s1 + $0xd70] sm:$0xff]
        %v768 = vld [vmem:[%s1 + $0xd78] sm:$0xff]
        %v769 = vld [vmem:[%s1 + $0xd80] sm:$0xff]
        %v770 = vld [vmem:[%s1 + $0xd88] sm:$0xff]
        %v771 = vld [vmem:[%s1 + $0xd90] sm:$0xff]
        %v772 = vld [vmem:[%s1 + $0xd98] sm:$0xff]
        %v773 = vld [vmem:[%s1 + $0xda0] sm:$0xff]
        %v774 = vld [vmem:[%s1 + $0xda8] sm:$0xff]
        %v775 = vld [vmem:[%s1 + $0xdb0] sm:$0xff]
        %v776 = vld [vmem:[%s1 + $0xdb8] sm:$0xff]
        %v777 = vld [vmem:[%s1 + $0xdc0] sm:$0xff]
        %v778 = vld [vmem:[%s1 + $0xdc8] sm:$0xff]
        %v779 = vld [vmem:[%s1 + $0xdd0] sm:$0xff]
        %v780 = vld [vmem:[%s1 + $0xdd8] sm:$0xff]
        %v781 = vld [vmem:[%s1 + $0xde0] sm:$0xff]
        %v782 = vld [vmem:[%s1 + $0xde8] sm:$0xff]
        %v783 = vld [vmem:[%s1 + $0xdf0] sm:$0xff]
        %v784 = vld [vmem:[%s1 + $0xdf8] sm:$0xff]
        %v785 = vld [vmem:[%s1 + $0xe00] sm:$0xff]
        %v786 = vld [vmem:[%s1 + $0xe08] sm:$0xff]
        %v787 = vld [vmem:[%s1 + $0xe10] sm:$0xff]
        %v788 = vld [vmem:[%s1 + $0xe18] sm:$0xff]
        %v789 = vld [vmem:[%s1 + $0xe20] sm:$0xff]
        %v790 = vld [vmem:[%s1 + $0xe28] sm:$0xff]
        %v791 = vld [vmem:[%s1 + $0xe30] sm:$0xff]
        %v792 = vld [vmem:[%s1 + $0xe38] sm:$0xff]
        %v793 = vld [vmem:[%s1 + $0xe40] sm:$0xff]
        %v794 = vld [vmem:[%s1 + $0xe48] sm:$0xff]
        %v795 = vld [vmem:[%s1 + $0xe50] sm:$0xff]
        %v796 = vld [vmem:[%s1 + $0xe58] sm:$0xff]
        %v797 = vld [vmem:[%s1 + $0xe60] sm:$0xff]
        %v798 = vld [vmem:[%s1 + $0xe68] sm:$0xff]
        %v799 = vld [vmem:[%s1 + $0xe70] sm:$0xff]
        %v800 = vld [vmem:[%s1 + $0xe78] sm:$0xff]
        %v801 = vld [vmem:[%s1 + $0xe80] sm:$0xff]
        %v802 = vld [vmem:[%s1 + $0xe88] sm:$0xff]
        %v803 = vld [vmem:[%s1 + $0xe90] sm:$0xff]
        %v804 = vld [vmem:[%s1 + $0xe98] sm:$0xff]
        %v805 = vld [vmem:[%s1 + $0xea0] sm:$0xff]
        %v806 = vld [vmem:[%s1 + $0xea8] sm:$0xff]
        %v807 = vld [vmem:[%s1 + $0xeb0] sm:$0xff]
        %v808 = vld [vmem:[%s1 + $0xeb8] sm:$0xff]
        %v809 = vld [vmem:[%s1 + $0xec0] sm:$0xff]
        %v810 = vld [vmem:[%s1 + $0xec8] sm:$0xff]
        %v811 = vld [vmem:[%s1 + $0xed0] sm:$0xff]
        %v812 = vld [vmem:[%s1 + $0xed8] sm:$0xff]
        %v813 = vld [vmem:[%s1 + $0xee0] sm:$0xff]
        %v814 = vld [vmem:[%s1 + $0xee8] sm:$0xff]
        %v815 = vld [vmem:[%s1 + $0xef0] sm:$0xff]
        %v816 = vld [vmem:[%s1 + $0xef8] sm:$0xff]
        %v817 = vld [vmem:[%s1 + $0xf00] sm:$0xff]
        %v818 = vld [vmem:[%s1 + $0xf08] sm:$0xff]
        %v819 = vld [vmem:[%s1 + $0xf10] sm:$0xff]
        %v820 = vld [vmem:[%s1 + $0xf18] sm:$0xff]
        %v821 = vld [vmem:[%s1 + $0xf20] sm:$0xff]
        %v822 = vld [vmem:[%s1 + $0xf28] sm:$0xff]
        %v823 = vld [vmem:[%s1 + $0xf30] sm:$0xff]
        %v824 = vld [vmem:[%s1 + $0xf38] sm:$0xff]
        %v825 = vld [vmem:[%s1 + $0xf40] sm:$0xff]
        %v826 = vld [vmem:[%s1 + $0xf48] sm:$0xff]
        %v827 = vld [vmem:[%s1 + $0xf50] sm:$0xff]
        %v828 = vld [vmem:[%s1 + $0xf58] sm:$0xff]
        %v829 = vld [vmem:[%s1 + $0xf60] sm:$0xff]
        %v830 = vld [vmem:[%s1 + $0xf68] sm:$0xff]
        %v831 = vld [vmem:[%s1 + $0xf70] sm:$0xff]
        %v832 = vld [vmem:[%s1 + $0xf78] sm:$0xff]
        %v833 = vld [vmem:[%s1 + $0xf80] sm:$0xff]
        %v834 = vld [vmem:[%s1 + $0xf88] sm:$0xff]
        %v835 = vld [vmem:[%s1 + $0xf90] sm:$0xff]
        %v836 = vld [vmem:[%s1 + $0xf98] sm:$0xff]
        %v837 = vld [vmem:[%s1 + $0xfa0] sm:$0xff]
        %v838 = vld [vmem:[%s1 + $0xfa8] sm:$0xff]
        %v839 = vld [vmem:[%s1 + $0xfb0] sm:$0xff]
        %v840 = vld [vmem:[%s1 + $0xfb8] sm:$0xff]
        %v841 = vld [vmem:[%s1 + $0xfc0] sm:$0xff]
        %v842 = vld [vmem:[%s1 + $0xfc8] sm:$0xff]
        %v843 = vld [vmem:[%s1 + $0xfd0] sm:$0xff]
        %v844 = vld [vmem:[%s1 + $0xfd8] sm:$0xff]
        %v845 = vld [vmem:[%s1 + $0xfe0] sm:$0xff]
        %v846 = vld [vmem:[%s1 + $0xfe8] sm:$0xff]
        %v847 = vld [vmem:[%s1 + $0xff0] sm:$0xff]
        %v848 = vld [vmem:[%s1 + $0xff8] sm:$0xff]
        %v849 = vld [vmem:[%s2] sm:$0xf]
        %v851 = vlaneseq
        %v852 = vshrl.u32 %v851, 7
        %v853 = vsub.s32 0, %v852
        %v854 = vrot.slane %v849, %v853
        %v855 = vlaneseq
        %v856 = vshrl.u32 %v855, 7
        %v857 = vsub.s32 1, %v856
        %v858 = vrot.slane %v849, %v857
        %v859 = vlaneseq
        %v860 = vshrl.u32 %v859, 7
        %v861 = vsub.s32 2, %v860
        %v862 = vrot.slane %v849, %v861
        %v863 = vlaneseq
        %v864 = vshrl.u32 %v863, 7
        %v865 = vsub.s32 3, %v864
        %v866 = vrot.slane %v849, %v865
        %v875 = vcombine.high %v333, %v333
        %v877 = vunpack.c.l.s4 1983009808
        %v878 = vunpack.c.0.s8 %v877
        %v879 = vlaneseq
        %v880 = vshrl.u32 %v879, 7
        %v881 = vsub.s32 %v878, %v880
        %v882 = vrot.slane %v333, %v881
        %v884 = vunpack.c.l.s4 1983009808
        %v885 = vunpack.c.0.s8 %v884
        %v886 = vlaneseq
        %v887 = vshrl.u32 %v886, 7
        %v888 = vsub.s32 %v885, %v887
        %v889 = vrot.slane %v875, %v888
        %v890 = vcombine.high %v882, %v882
        %v891 = vcombine.high %v889, %v889
        %v892 = vcombine.high %v334, %v334
        %v894 = vunpack.c.l.s4 1983009808
        %v895 = vunpack.c.0.s8 %v894
        %v896 = vlaneseq
        %v897 = vshrl.u32 %v896, 7
        %v898 = vsub.s32 %v895, %v897
        %v899 = vrot.slane %v334, %v898
        %v901 = vunpack.c.l.s4 1983009808
        %v902 = vunpack.c.0.s8 %v901
        %v903 = vlaneseq
        %v904 = vshrl.u32 %v903, 7
        %v905 = vsub.s32 %v902, %v904
        %v906 = vrot.slane %v892, %v905
        %v907 = vcombine.high %v899, %v899
        %v908 = vcombine.high %v906, %v906
        %v909 = vcombine.high %v335, %v335
        %v911 = vunpack.c.l.s4 1983009808
        %v912 = vunpack.c.0.s8 %v911
        %v913 = vlaneseq
        %v914 = vshrl.u32 %v913, 7
        %v915 = vsub.s32 %v912, %v914
        %v916 = vrot.slane %v335, %v915
        %v918 = vunpack.c.l.s4 1983009808
        %v919 = vunpack.c.0.s8 %v918
        %v920 = vlaneseq
        %v921 = vshrl.u32 %v920, 7
        %v922 = vsub.s32 %v919, %v921
        %v923 = vrot.slane %v909, %v922
        %v924 = vcombine.high %v916, %v916
        %v925 = vcombine.high %v923, %v923
        %v926 = vcombine.high %v336, %v336
        %v928 = vunpack.c.l.s4 1983009808
        %v929 = vunpack.c.0.s8 %v928
        %v930 = vlaneseq
        %v931 = vshrl.u32 %v930, 7
        %v932 = vsub.s32 %v929, %v931
        %v933 = vrot.slane %v336, %v932
        %v935 = vunpack.c.l.s4 1983009808
        %v936 = vunpack.c.0.s8 %v935
        %v937 = vlaneseq
        %v938 = vshrl.u32 %v937, 7
        %v939 = vsub.s32 %v936, %v938
        %v940 = vrot.slane %v926, %v939
        %v941 = vcombine.high %v933, %v933
        %v942 = vcombine.high %v940, %v940
        %v1471 = vunpack.c.l.b16 %v337
        %v1472 = vunpack.c.h.b16 %v337
        %v1473 = vunpack.c.l.b16 %v338
        %v1474 = vunpack.c.h.b16 %v338
        %v1475 = vunpack.c.l.b16 %v339
        %v1476 = vunpack.c.h.b16 %v339
        %v1477 = vunpack.c.l.b16 %v340
        %v1478 = vunpack.c.h.b16 %v340
        %v1479 = vunpack.c.l.b16 %v341
        %v1480 = vunpack.c.h.b16 %v341
        %v1481 = vunpack.c.l.b16 %v342
        %v1482 = vunpack.c.h.b16 %v342
        %v1483 = vunpack.c.l.b16 %v343
        %v1484 = vunpack.c.h.b16 %v343
        %v1485 = vunpack.c.l.b16 %v344
        %v1486 = vunpack.c.h.b16 %v344
        %v1487 = vunpack.c.l.b16 %v345
        %v1488 = vunpack.c.h.b16 %v345
        %v1489 = vunpack.c.l.b16 %v346
        %v1490 = vunpack.c.h.b16 %v346
        %v1491 = vunpack.c.l.b16 %v347
        %v1492 = vunpack.c.h.b16 %v347
        %v1493 = vunpack.c.l.b16 %v348
        %v1494 = vunpack.c.h.b16 %v348
        %v1495 = vunpack.c.l.b16 %v349
        %v1496 = vunpack.c.h.b16 %v349
        %v1497 = vunpack.c.l.b16 %v350
        %v1498 = vunpack.c.h.b16 %v350
        %v1499 = vunpack.c.l.b16 %v351
        %v1500 = vunpack.c.h.b16 %v351
        %v1501 = vunpack.c.l.b16 %v352
        %v1502 = vunpack.c.h.b16 %v352
        %v1503 = vunpack.c.l.b16 %v353
        %v1504 = vunpack.c.h.b16 %v353
        %v1505 = vunpack.c.l.b16 %v354
        %v1506 = vunpack.c.h.b16 %v354
        %v1507 = vunpack.c.l.b16 %v355
        %v1508 = vunpack.c.h.b16 %v355
        %v1509 = vunpack.c.l.b16 %v356
        %v1510 = vunpack.c.h.b16 %v356
        %v1511 = vunpack.c.l.b16 %v357
        %v1512 = vunpack.c.h.b16 %v357
        %v1513 = vunpack.c.l.b16 %v358
        %v1514 = vunpack.c.h.b16 %v358
        %v1515 = vunpack.c.l.b16 %v359
        %v1516 = vunpack.c.h.b16 %v359
        %v1517 = vunpack.c.l.b16 %v360
        %v1518 = vunpack.c.h.b16 %v360
        %v1519 = vunpack.c.l.b16 %v361
        %v1520 = vunpack.c.h.b16 %v361
        %v1521 = vunpack.c.l.b16 %v362
        %v1522 = vunpack.c.h.b16 %v362
        %v1523 = vunpack.c.l.b16 %v363
        %v1524 = vunpack.c.h.b16 %v363
        %v1525 = vunpack.c.l.b16 %v364
        %v1526 = vunpack.c.h.b16 %v364
        %v1527 = vunpack.c.l.b16 %v365
        %v1528 = vunpack.c.h.b16 %v365
        %v1529 = vunpack.c.l.b16 %v366
        %v1530 = vunpack.c.h.b16 %v366
        %v1531 = vunpack.c.l.b16 %v367
        %v1532 = vunpack.c.h.b16 %v367
        %v1533 = vunpack.c.l.b16 %v368
        %v1534 = vunpack.c.h.b16 %v368
        %v1535 = vunpack.c.l.b16 %v369
        %v1536 = vunpack.c.h.b16 %v369
        %v1537 = vunpack.c.l.b16 %v370
        %v1538 = vunpack.c.h.b16 %v370
        %v1539 = vunpack.c.l.b16 %v371
        %v1540 = vunpack.c.h.b16 %v371
        %v1541 = vunpack.c.l.b16 %v372
        %v1542 = vunpack.c.h.b16 %v372
        %v1543 = vunpack.c.l.b16 %v373
        %v1544 = vunpack.c.h.b16 %v373
        %v1545 = vunpack.c.l.b16 %v374
        %v1546 = vunpack.c.h.b16 %v374
        %v1547 = vunpack.c.l.b16 %v375
        %v1548 = vunpack.c.h.b16 %v375
        %v1549 = vunpack.c.l.b16 %v376
        %v1550 = vunpack.c.h.b16 %v376
        %v1551 = vunpack.c.l.b16 %v377
        %v1552 = vunpack.c.h.b16 %v377
        %v1553 = vunpack.c.l.b16 %v378
        %v1554 = vunpack.c.h.b16 %v378
        %v1555 = vunpack.c.l.b16 %v379
        %v1556 = vunpack.c.h.b16 %v379
        %v1557 = vunpack.c.l.b16 %v380
        %v1558 = vunpack.c.h.b16 %v380
        %v1559 = vunpack.c.l.b16 %v381
        %v1560 = vunpack.c.h.b16 %v381
        %v1561 = vunpack.c.l.b16 %v382
        %v1562 = vunpack.c.h.b16 %v382
        %v1563 = vunpack.c.l.b16 %v383
        %v1564 = vunpack.c.h.b16 %v383
        %v1565 = vunpack.c.l.b16 %v384
        %v1566 = vunpack.c.h.b16 %v384
        %v1567 = vunpack.c.l.b16 %v385
        %v1568 = vunpack.c.h.b16 %v385
        %v1569 = vunpack.c.l.b16 %v386
        %v1570 = vunpack.c.h.b16 %v386
        %v1571 = vunpack.c.l.b16 %v387
        %v1572 = vunpack.c.h.b16 %v387
        %v1573 = vunpack.c.l.b16 %v388
        %v1574 = vunpack.c.h.b16 %v388
        %v1575 = vunpack.c.l.b16 %v389
        %v1576 = vunpack.c.h.b16 %v389
        %v1577 = vunpack.c.l.b16 %v390
        %v1578 = vunpack.c.h.b16 %v390
        %v1579 = vunpack.c.l.b16 %v391
        %v1580 = vunpack.c.h.b16 %v391
        %v1581 = vunpack.c.l.b16 %v392
        %v1582 = vunpack.c.h.b16 %v392
        %v1583 = vunpack.c.l.b16 %v393
        %v1584 = vunpack.c.h.b16 %v393
        %v1585 = vunpack.c.l.b16 %v394
        %v1586 = vunpack.c.h.b16 %v394
        %v1587 = vunpack.c.l.b16 %v395
        %v1588 = vunpack.c.h.b16 %v395
        %v1589 = vunpack.c.l.b16 %v396
        %v1590 = vunpack.c.h.b16 %v396
        %v1591 = vunpack.c.l.b16 %v397
        %v1592 = vunpack.c.h.b16 %v397
        %v1593 = vunpack.c.l.b16 %v398
        %v1594 = vunpack.c.h.b16 %v398
        %v1595 = vunpack.c.l.b16 %v399
        %v1596 = vunpack.c.h.b16 %v399
        %v1597 = vunpack.c.l.b16 %v400
        %v1598 = vunpack.c.h.b16 %v400
        %v1599 = vunpack.c.l.b16 %v401
        %v1600 = vunpack.c.h.b16 %v401
        %v1601 = vunpack.c.l.b16 %v402
        %v1602 = vunpack.c.h.b16 %v402
        %v1603 = vunpack.c.l.b16 %v403
        %v1604 = vunpack.c.h.b16 %v403
        %v1605 = vunpack.c.l.b16 %v404
        %v1606 = vunpack.c.h.b16 %v404
        %v1607 = vunpack.c.l.b16 %v405
        %v1608 = vunpack.c.h.b16 %v405
        %v1609 = vunpack.c.l.b16 %v406
        %v1610 = vunpack.c.h.b16 %v406
        %v1611 = vunpack.c.l.b16 %v407
        %v1612 = vunpack.c.h.b16 %v407
        %v1613 = vunpack.c.l.b16 %v408
        %v1614 = vunpack.c.h.b16 %v408
        %v1615 = vunpack.c.l.b16 %v409
        %v1616 = vunpack.c.h.b16 %v409
        %v1617 = vunpack.c.l.b16 %v410
        %v1618 = vunpack.c.h.b16 %v410
        %v1619 = vunpack.c.l.b16 %v411
        %v1620 = vunpack.c.h.b16 %v411
        %v1621 = vunpack.c.l.b16 %v412
        %v1622 = vunpack.c.h.b16 %v412
        %v1623 = vunpack.c.l.b16 %v413
        %v1624 = vunpack.c.h.b16 %v413
        %v1625 = vunpack.c.l.b16 %v414
        %v1626 = vunpack.c.h.b16 %v414
        %v1627 = vunpack.c.l.b16 %v415
        %v1628 = vunpack.c.h.b16 %v415
        %v1629 = vunpack.c.l.b16 %v416
        %v1630 = vunpack.c.h.b16 %v416
        %v1631 = vunpack.c.l.b16 %v417
        %v1632 = vunpack.c.h.b16 %v417
        %v1633 = vunpack.c.l.b16 %v418
        %v1634 = vunpack.c.h.b16 %v418
        %v1635 = vunpack.c.l.b16 %v419
        %v1636 = vunpack.c.h.b16 %v419
        %v1637 = vunpack.c.l.b16 %v420
        %v1638 = vunpack.c.h.b16 %v420
        %v1639 = vunpack.c.l.b16 %v421
        %v1640 = vunpack.c.h.b16 %v421
        %v1641 = vunpack.c.l.b16 %v422
        %v1642 = vunpack.c.h.b16 %v422
        %v1643 = vunpack.c.l.b16 %v423
        %v1644 = vunpack.c.h.b16 %v423
        %v1645 = vunpack.c.l.b16 %v424
        %v1646 = vunpack.c.h.b16 %v424
        %v1647 = vunpack.c.l.b16 %v425
        %v1648 = vunpack.c.h.b16 %v425
        %v1649 = vunpack.c.l.b16 %v426
        %v1650 = vunpack.c.h.b16 %v426
        %v1651 = vunpack.c.l.b16 %v427
        %v1652 = vunpack.c.h.b16 %v427
        %v1653 = vunpack.c.l.b16 %v428
        %v1654 = vunpack.c.h.b16 %v428
        %v1655 = vunpack.c.l.b16 %v429
        %v1656 = vunpack.c.h.b16 %v429
        %v1657 = vunpack.c.l.b16 %v430
        %v1658 = vunpack.c.h.b16 %v430
        %v1659 = vunpack.c.l.b16 %v431
        %v1660 = vunpack.c.h.b16 %v431
        %v1661 = vunpack.c.l.b16 %v432
        %v1662 = vunpack.c.h.b16 %v432
        %v1663 = vunpack.c.l.b16 %v433
        %v1664 = vunpack.c.h.b16 %v433
        %v1665 = vunpack.c.l.b16 %v434
        %v1666 = vunpack.c.h.b16 %v434
        %v1667 = vunpack.c.l.b16 %v435
        %v1668 = vunpack.c.h.b16 %v435
        %v1669 = vunpack.c.l.b16 %v436
        %v1670 = vunpack.c.h.b16 %v436
        %v1671 = vunpack.c.l.b16 %v437
        %v1672 = vunpack.c.h.b16 %v437
        %v1673 = vunpack.c.l.b16 %v438
        %v1674 = vunpack.c.h.b16 %v438
        %v1675 = vunpack.c.l.b16 %v439
        %v1676 = vunpack.c.h.b16 %v439
        %v1677 = vunpack.c.l.b16 %v440
        %v1678 = vunpack.c.h.b16 %v440
        %v1679 = vunpack.c.l.b16 %v441
        %v1680 = vunpack.c.h.b16 %v441
        %v1681 = vunpack.c.l.b16 %v442
        %v1682 = vunpack.c.h.b16 %v442
        %v1683 = vunpack.c.l.b16 %v443
        %v1684 = vunpack.c.h.b16 %v443
        %v1685 = vunpack.c.l.b16 %v444
        %v1686 = vunpack.c.h.b16 %v444
        %v1687 = vunpack.c.l.b16 %v445
        %v1688 = vunpack.c.h.b16 %v445
        %v1689 = vunpack.c.l.b16 %v446
        %v1690 = vunpack.c.h.b16 %v446
        %v1691 = vunpack.c.l.b16 %v447
        %v1692 = vunpack.c.h.b16 %v447
        %v1693 = vunpack.c.l.b16 %v448
        %v1694 = vunpack.c.h.b16 %v448
        %v1695 = vunpack.c.l.b16 %v449
        %v1696 = vunpack.c.h.b16 %v449
        %v1697 = vunpack.c.l.b16 %v450
        %v1698 = vunpack.c.h.b16 %v450
        %v1699 = vunpack.c.l.b16 %v451
        %v1700 = vunpack.c.h.b16 %v451
        %v1701 = vunpack.c.l.b16 %v452
        %v1702 = vunpack.c.h.b16 %v452
        %v1703 = vunpack.c.l.b16 %v453
        %v1704 = vunpack.c.h.b16 %v453
        %v1705 = vunpack.c.l.b16 %v454
        %v1706 = vunpack.c.h.b16 %v454
        %v1707 = vunpack.c.l.b16 %v455
        %v1708 = vunpack.c.h.b16 %v455
        %v1709 = vunpack.c.l.b16 %v456
        %v1710 = vunpack.c.h.b16 %v456
        %v1711 = vunpack.c.l.b16 %v457
        %v1712 = vunpack.c.h.b16 %v457
        %v1713 = vunpack.c.l.b16 %v458
        %v1714 = vunpack.c.h.b16 %v458
        %v1715 = vunpack.c.l.b16 %v459
        %v1716 = vunpack.c.h.b16 %v459
        %v1717 = vunpack.c.l.b16 %v460
        %v1718 = vunpack.c.h.b16 %v460
        %v1719 = vunpack.c.l.b16 %v461
        %v1720 = vunpack.c.h.b16 %v461
        %v1721 = vunpack.c.l.b16 %v462
        %v1722 = vunpack.c.h.b16 %v462
        %v1723 = vunpack.c.l.b16 %v463
        %v1724 = vunpack.c.h.b16 %v463
        %v1725 = vunpack.c.l.b16 %v464
        %v1726 = vunpack.c.h.b16 %v464
        %v1727 = vunpack.c.l.b16 %v465
        %v1728 = vunpack.c.h.b16 %v465
        %v1729 = vunpack.c.l.b16 %v466
        %v1730 = vunpack.c.h.b16 %v466
        %v1731 = vunpack.c.l.b16 %v467
        %v1732 = vunpack.c.h.b16 %v467
        %v1733 = vunpack.c.l.b16 %v468
        %v1734 = vunpack.c.h.b16 %v468
        %v1735 = vunpack.c.l.b16 %v469
        %v1736 = vunpack.c.h.b16 %v469
        %v1737 = vunpack.c.l.b16 %v470
        %v1738 = vunpack.c.h.b16 %v470
        %v1739 = vunpack.c.l.b16 %v471
        %v1740 = vunpack.c.h.b16 %v471
        %v1741 = vunpack.c.l.b16 %v472
        %v1742 = vunpack.c.h.b16 %v472
        %v1743 = vunpack.c.l.b16 %v473
        %v1744 = vunpack.c.h.b16 %v473
        %v1745 = vunpack.c.l.b16 %v474
        %v1746 = vunpack.c.h.b16 %v474
        %v1747 = vunpack.c.l.b16 %v475
        %v1748 = vunpack.c.h.b16 %v475
        %v1749 = vunpack.c.l.b16 %v476
        %v1750 = vunpack.c.h.b16 %v476
        %v1751 = vunpack.c.l.b16 %v477
        %v1752 = vunpack.c.h.b16 %v477
        %v1753 = vunpack.c.l.b16 %v478
        %v1754 = vunpack.c.h.b16 %v478
        %v1755 = vunpack.c.l.b16 %v479
        %v1756 = vunpack.c.h.b16 %v479
        %v1757 = vunpack.c.l.b16 %v480
        %v1758 = vunpack.c.h.b16 %v480
        %v1759 = vunpack.c.l.b16 %v481
        %v1760 = vunpack.c.h.b16 %v481
        %v1761 = vunpack.c.l.b16 %v482
        %v1762 = vunpack.c.h.b16 %v482
        %v1763 = vunpack.c.l.b16 %v483
        %v1764 = vunpack.c.h.b16 %v483
        %v1765 = vunpack.c.l.b16 %v484
        %v1766 = vunpack.c.h.b16 %v484
        %v1767 = vunpack.c.l.b16 %v485
        %v1768 = vunpack.c.h.b16 %v485
        %v1769 = vunpack.c.l.b16 %v486
        %v1770 = vunpack.c.h.b16 %v486
        %v1771 = vunpack.c.l.b16 %v487
        %v1772 = vunpack.c.h.b16 %v487
        %v1773 = vunpack.c.l.b16 %v488
        %v1774 = vunpack.c.h.b16 %v488
        %v1775 = vunpack.c.l.b16 %v489
        %v1776 = vunpack.c.h.b16 %v489
        %v1777 = vunpack.c.l.b16 %v490
        %v1778 = vunpack.c.h.b16 %v490
        %v1779 = vunpack.c.l.b16 %v491
        %v1780 = vunpack.c.h.b16 %v491
        %v1781 = vunpack.c.l.b16 %v492
        %v1782 = vunpack.c.h.b16 %v492
        %v1783 = vunpack.c.l.b16 %v493
        %v1784 = vunpack.c.h.b16 %v493
        %v1785 = vunpack.c.l.b16 %v494
        %v1786 = vunpack.c.h.b16 %v494
        %v1787 = vunpack.c.l.b16 %v495
        %v1788 = vunpack.c.h.b16 %v495
        %v1789 = vunpack.c.l.b16 %v496
        %v1790 = vunpack.c.h.b16 %v496
        %v1791 = vunpack.c.l.b16 %v497
        %v1792 = vunpack.c.h.b16 %v497
        %v1793 = vunpack.c.l.b16 %v498
        %v1794 = vunpack.c.h.b16 %v498
        %v1795 = vunpack.c.l.b16 %v499
        %v1796 = vunpack.c.h.b16 %v499
        %v1797 = vunpack.c.l.b16 %v500
        %v1798 = vunpack.c.h.b16 %v500
        %v1799 = vunpack.c.l.b16 %v501
        %v1800 = vunpack.c.h.b16 %v501
        %v1801 = vunpack.c.l.b16 %v502
        %v1802 = vunpack.c.h.b16 %v502
        %v1803 = vunpack.c.l.b16 %v503
        %v1804 = vunpack.c.h.b16 %v503
        %v1805 = vunpack.c.l.b16 %v504
        %v1806 = vunpack.c.h.b16 %v504
        %v1807 = vunpack.c.l.b16 %v505
        %v1808 = vunpack.c.h.b16 %v505
        %v1809 = vunpack.c.l.b16 %v506
        %v1810 = vunpack.c.h.b16 %v506
        %v1811 = vunpack.c.l.b16 %v507
        %v1812 = vunpack.c.h.b16 %v507
        %v1813 = vunpack.c.l.b16 %v508
        %v1814 = vunpack.c.h.b16 %v508
        %v1815 = vunpack.c.l.b16 %v509
        %v1816 = vunpack.c.h.b16 %v509
        %v1817 = vunpack.c.l.b16 %v510
        %v1818 = vunpack.c.h.b16 %v510
        %v1819 = vunpack.c.l.b16 %v511
        %v1820 = vunpack.c.h.b16 %v511
        %v1821 = vunpack.c.l.b16 %v512
        %v1822 = vunpack.c.h.b16 %v512
        %v1823 = vunpack.c.l.b16 %v513
        %v1824 = vunpack.c.h.b16 %v513
        %v1825 = vunpack.c.l.b16 %v514
        %v1826 = vunpack.c.h.b16 %v514
        %v1827 = vunpack.c.l.b16 %v515
        %v1828 = vunpack.c.h.b16 %v515
        %v1829 = vunpack.c.l.b16 %v516
        %v1830 = vunpack.c.h.b16 %v516
        %v1831 = vunpack.c.l.b16 %v517
        %v1832 = vunpack.c.h.b16 %v517
        %v1833 = vunpack.c.l.b16 %v518
        %v1834 = vunpack.c.h.b16 %v518
        %v1835 = vunpack.c.l.b16 %v519
        %v1836 = vunpack.c.h.b16 %v519
        %v1837 = vunpack.c.l.b16 %v520
        %v1838 = vunpack.c.h.b16 %v520
        %v1839 = vunpack.c.l.b16 %v521
        %v1840 = vunpack.c.h.b16 %v521
        %v1841 = vunpack.c.l.b16 %v522
        %v1842 = vunpack.c.h.b16 %v522
        %v1843 = vunpack.c.l.b16 %v523
        %v1844 = vunpack.c.h.b16 %v523
        %v1845 = vunpack.c.l.b16 %v524
        %v1846 = vunpack.c.h.b16 %v524
        %v1847 = vunpack.c.l.b16 %v525
        %v1848 = vunpack.c.h.b16 %v525
        %v1849 = vunpack.c.l.b16 %v526
        %v1850 = vunpack.c.h.b16 %v526
        %v1851 = vunpack.c.l.b16 %v527
        %v1852 = vunpack.c.h.b16 %v527
        %v1853 = vunpack.c.l.b16 %v528
        %v1854 = vunpack.c.h.b16 %v528
        %v1855 = vunpack.c.l.b16 %v529
        %v1856 = vunpack.c.h.b16 %v529
        %v1857 = vunpack.c.l.b16 %v530
        %v1858 = vunpack.c.h.b16 %v530
        %v1859 = vunpack.c.l.b16 %v531
        %v1860 = vunpack.c.h.b16 %v531
        %v1861 = vunpack.c.l.b16 %v532
        %v1862 = vunpack.c.h.b16 %v532
        %v1863 = vunpack.c.l.b16 %v533
        %v1864 = vunpack.c.h.b16 %v533
        %v1865 = vunpack.c.l.b16 %v534
        %v1866 = vunpack.c.h.b16 %v534
        %v1867 = vunpack.c.l.b16 %v535
        %v1868 = vunpack.c.h.b16 %v535
        %v1869 = vunpack.c.l.b16 %v536
        %v1870 = vunpack.c.h.b16 %v536
        %v1871 = vunpack.c.l.b16 %v537
        %v1872 = vunpack.c.h.b16 %v537
        %v1873 = vunpack.c.l.b16 %v538
        %v1874 = vunpack.c.h.b16 %v538
        %v1875 = vunpack.c.l.b16 %v539
        %v1876 = vunpack.c.h.b16 %v539
        %v1877 = vunpack.c.l.b16 %v540
        %v1878 = vunpack.c.h.b16 %v540
        %v1879 = vunpack.c.l.b16 %v541
        %v1880 = vunpack.c.h.b16 %v541
        %v1881 = vunpack.c.l.b16 %v542
        %v1882 = vunpack.c.h.b16 %v542
        %v1883 = vunpack.c.l.b16 %v543
        %v1884 = vunpack.c.h.b16 %v543
        %v1885 = vunpack.c.l.b16 %v544
        %v1886 = vunpack.c.h.b16 %v544
        %v1887 = vunpack.c.l.b16 %v545
        %v1888 = vunpack.c.h.b16 %v545
        %v1889 = vunpack.c.l.b16 %v546
        %v1890 = vunpack.c.h.b16 %v546
        %v1891 = vunpack.c.l.b16 %v547
        %v1892 = vunpack.c.h.b16 %v547
        %v1893 = vunpack.c.l.b16 %v548
        %v1894 = vunpack.c.h.b16 %v548
        %v1895 = vunpack.c.l.b16 %v549
        %v1896 = vunpack.c.h.b16 %v549
        %v1897 = vunpack.c.l.b16 %v550
        %v1898 = vunpack.c.h.b16 %v550
        %v1899 = vunpack.c.l.b16 %v551
        %v1900 = vunpack.c.h.b16 %v551
        %v1901 = vunpack.c.l.b16 %v552
        %v1902 = vunpack.c.h.b16 %v552
        %v1903 = vunpack.c.l.b16 %v553
        %v1904 = vunpack.c.h.b16 %v553
        %v1905 = vunpack.c.l.b16 %v554
        %v1906 = vunpack.c.h.b16 %v554
        %v1907 = vunpack.c.l.b16 %v555
        %v1908 = vunpack.c.h.b16 %v555
        %v1909 = vunpack.c.l.b16 %v556
        %v1910 = vunpack.c.h.b16 %v556
        %v1911 = vunpack.c.l.b16 %v557
        %v1912 = vunpack.c.h.b16 %v557
        %v1913 = vunpack.c.l.b16 %v558
        %v1914 = vunpack.c.h.b16 %v558
        %v1915 = vunpack.c.l.b16 %v559
        %v1916 = vunpack.c.h.b16 %v559
        %v1917 = vunpack.c.l.b16 %v560
        %v1918 = vunpack.c.h.b16 %v560
        %v1919 = vunpack.c.l.b16 %v561
        %v1920 = vunpack.c.h.b16 %v561
        %v1921 = vunpack.c.l.b16 %v562
        %v1922 = vunpack.c.h.b16 %v562
        %v1923 = vunpack.c.l.b16 %v563
        %v1924 = vunpack.c.h.b16 %v563
        %v1925 = vunpack.c.l.b16 %v564
        %v1926 = vunpack.c.h.b16 %v564
        %v1927 = vunpack.c.l.b16 %v565
        %v1928 = vunpack.c.h.b16 %v565
        %v1929 = vunpack.c.l.b16 %v566
        %v1930 = vunpack.c.h.b16 %v566
        %v1931 = vunpack.c.l.b16 %v567
        %v1932 = vunpack.c.h.b16 %v567
        %v1933 = vunpack.c.l.b16 %v568
        %v1934 = vunpack.c.h.b16 %v568
        %v1935 = vunpack.c.l.b16 %v569
        %v1936 = vunpack.c.h.b16 %v569
        %v1937 = vunpack.c.l.b16 %v570
        %v1938 = vunpack.c.h.b16 %v570
        %v1939 = vunpack.c.l.b16 %v571
        %v1940 = vunpack.c.h.b16 %v571
        %v1941 = vunpack.c.l.b16 %v572
        %v1942 = vunpack.c.h.b16 %v572
        %v1943 = vunpack.c.l.b16 %v573
        %v1944 = vunpack.c.h.b16 %v573
        %v1945 = vunpack.c.l.b16 %v574
        %v1946 = vunpack.c.h.b16 %v574
        %v1947 = vunpack.c.l.b16 %v575
        %v1948 = vunpack.c.h.b16 %v575
        %v1949 = vunpack.c.l.b16 %v576
        %v1950 = vunpack.c.h.b16 %v576
        %v1951 = vunpack.c.l.b16 %v577
        %v1952 = vunpack.c.h.b16 %v577
        %v1953 = vunpack.c.l.b16 %v578
        %v1954 = vunpack.c.h.b16 %v578
        %v1955 = vunpack.c.l.b16 %v579
        %v1956 = vunpack.c.h.b16 %v579
        %v1957 = vunpack.c.l.b16 %v580
        %v1958 = vunpack.c.h.b16 %v580
        %v1959 = vunpack.c.l.b16 %v581
        %v1960 = vunpack.c.h.b16 %v581
        %v1961 = vunpack.c.l.b16 %v582
        %v1962 = vunpack.c.h.b16 %v582
        %v1963 = vunpack.c.l.b16 %v583
        %v1964 = vunpack.c.h.b16 %v583
        %v1965 = vunpack.c.l.b16 %v584
        %v1966 = vunpack.c.h.b16 %v584
        %v1967 = vunpack.c.l.b16 %v585
        %v1968 = vunpack.c.h.b16 %v585
        %v1969 = vunpack.c.l.b16 %v586
        %v1970 = vunpack.c.h.b16 %v586
        %v1971 = vunpack.c.l.b16 %v587
        %v1972 = vunpack.c.h.b16 %v587
        %v1973 = vunpack.c.l.b16 %v588
        %v1974 = vunpack.c.h.b16 %v588
        %v1975 = vunpack.c.l.b16 %v589
        %v1976 = vunpack.c.h.b16 %v589
        %v1977 = vunpack.c.l.b16 %v590
        %v1978 = vunpack.c.h.b16 %v590
        %v1979 = vunpack.c.l.b16 %v591
        %v1980 = vunpack.c.h.b16 %v591
        %v1981 = vunpack.c.l.b16 %v592
        %v1982 = vunpack.c.h.b16 %v592
        %v1983 = vunpack.c.l.b16 %v593
        %v1984 = vunpack.c.h.b16 %v593
        %v1985 = vunpack.c.l.b16 %v594
        %v1986 = vunpack.c.h.b16 %v594
        %v1987 = vunpack.c.l.b16 %v595
        %v1988 = vunpack.c.h.b16 %v595
        %v1989 = vunpack.c.l.b16 %v596
        %v1990 = vunpack.c.h.b16 %v596
        %v1991 = vunpack.c.l.b16 %v597
        %v1992 = vunpack.c.h.b16 %v597
        %v1993 = vunpack.c.l.b16 %v598
        %v1994 = vunpack.c.h.b16 %v598
        %v1995 = vunpack.c.l.b16 %v599
        %v1996 = vunpack.c.h.b16 %v599
        %v1997 = vunpack.c.l.b16 %v600
        %v1998 = vunpack.c.h.b16 %v600
        %v1999 = vunpack.c.l.b16 %v601
        %v2000 = vunpack.c.h.b16 %v601
        %v2001 = vunpack.c.l.b16 %v602
        %v2002 = vunpack.c.h.b16 %v602
        %v2003 = vunpack.c.l.b16 %v603
        %v2004 = vunpack.c.h.b16 %v603
        %v2005 = vunpack.c.l.b16 %v604
        %v2006 = vunpack.c.h.b16 %v604
        %v2007 = vunpack.c.l.b16 %v605
        %v2008 = vunpack.c.h.b16 %v605
        %v2009 = vunpack.c.l.b16 %v606
        %v2010 = vunpack.c.h.b16 %v606
        %v2011 = vunpack.c.l.b16 %v607
        %v2012 = vunpack.c.h.b16 %v607
        %v2013 = vunpack.c.l.b16 %v608
        %v2014 = vunpack.c.h.b16 %v608
        %v2015 = vunpack.c.l.b16 %v609
        %v2016 = vunpack.c.h.b16 %v609
        %v2017 = vunpack.c.l.b16 %v610
        %v2018 = vunpack.c.h.b16 %v610
        %v2019 = vunpack.c.l.b16 %v611
        %v2020 = vunpack.c.h.b16 %v611
        %v2021 = vunpack.c.l.b16 %v612
        %v2022 = vunpack.c.h.b16 %v612
        %v2023 = vunpack.c.l.b16 %v613
        %v2024 = vunpack.c.h.b16 %v613
        %v2025 = vunpack.c.l.b16 %v614
        %v2026 = vunpack.c.h.b16 %v614
        %v2027 = vunpack.c.l.b16 %v615
        %v2028 = vunpack.c.h.b16 %v615
        %v2029 = vunpack.c.l.b16 %v616
        %v2030 = vunpack.c.h.b16 %v616
        %v2031 = vunpack.c.l.b16 %v617
        %v2032 = vunpack.c.h.b16 %v617
        %v2033 = vunpack.c.l.b16 %v618
        %v2034 = vunpack.c.h.b16 %v618
        %v2035 = vunpack.c.l.b16 %v619
        %v2036 = vunpack.c.h.b16 %v619
        %v2037 = vunpack.c.l.b16 %v620
        %v2038 = vunpack.c.h.b16 %v620
        %v2039 = vunpack.c.l.b16 %v621
        %v2040 = vunpack.c.h.b16 %v621
        %v2041 = vunpack.c.l.b16 %v622
        %v2042 = vunpack.c.h.b16 %v622
        %v2043 = vunpack.c.l.b16 %v623
        %v2044 = vunpack.c.h.b16 %v623
        %v2045 = vunpack.c.l.b16 %v624
        %v2046 = vunpack.c.h.b16 %v624
        %v2047 = vunpack.c.l.b16 %v625
        %v2048 = vunpack.c.h.b16 %v625
        %v2049 = vunpack.c.l.b16 %v626
        %v2050 = vunpack.c.h.b16 %v626
        %v2051 = vunpack.c.l.b16 %v627
        %v2052 = vunpack.c.h.b16 %v627
        %v2053 = vunpack.c.l.b16 %v628
        %v2054 = vunpack.c.h.b16 %v628
        %v2055 = vunpack.c.l.b16 %v629
        %v2056 = vunpack.c.h.b16 %v629
        %v2057 = vunpack.c.l.b16 %v630
        %v2058 = vunpack.c.h.b16 %v630
        %v2059 = vunpack.c.l.b16 %v631
        %v2060 = vunpack.c.h.b16 %v631
        %v2061 = vunpack.c.l.b16 %v632
        %v2062 = vunpack.c.h.b16 %v632
        %v2063 = vunpack.c.l.b16 %v633
        %v2064 = vunpack.c.h.b16 %v633
        %v2065 = vunpack.c.l.b16 %v634
        %v2066 = vunpack.c.h.b16 %v634
        %v2067 = vunpack.c.l.b16 %v635
        %v2068 = vunpack.c.h.b16 %v635
        %v2069 = vunpack.c.l.b16 %v636
        %v2070 = vunpack.c.h.b16 %v636
        %v2071 = vunpack.c.l.b16 %v637
        %v2072 = vunpack.c.h.b16 %v637
        %v2073 = vunpack.c.l.b16 %v638
        %v2074 = vunpack.c.h.b16 %v638
        %v2075 = vunpack.c.l.b16 %v639
        %v2076 = vunpack.c.h.b16 %v639
        %v2077 = vunpack.c.l.b16 %v640
        %v2078 = vunpack.c.h.b16 %v640
        %v2079 = vunpack.c.l.b16 %v641
        %v2080 = vunpack.c.h.b16 %v641
        %v2081 = vunpack.c.l.b16 %v642
        %v2082 = vunpack.c.h.b16 %v642
        %v2083 = vunpack.c.l.b16 %v643
        %v2084 = vunpack.c.h.b16 %v643
        %v2085 = vunpack.c.l.b16 %v644
        %v2086 = vunpack.c.h.b16 %v644
        %v2087 = vunpack.c.l.b16 %v645
        %v2088 = vunpack.c.h.b16 %v645
        %v2089 = vunpack.c.l.b16 %v646
        %v2090 = vunpack.c.h.b16 %v646
        %v2091 = vunpack.c.l.b16 %v647
        %v2092 = vunpack.c.h.b16 %v647
        %v2093 = vunpack.c.l.b16 %v648
        %v2094 = vunpack.c.h.b16 %v648
        %v2095 = vunpack.c.l.b16 %v649
        %v2096 = vunpack.c.h.b16 %v649
        %v2097 = vunpack.c.l.b16 %v650
        %v2098 = vunpack.c.h.b16 %v650
        %v2099 = vunpack.c.l.b16 %v651
        %v2100 = vunpack.c.h.b16 %v651
        %v2101 = vunpack.c.l.b16 %v652
        %v2102 = vunpack.c.h.b16 %v652
        %v2103 = vunpack.c.l.b16 %v653
        %v2104 = vunpack.c.h.b16 %v653
        %v2105 = vunpack.c.l.b16 %v654
        %v2106 = vunpack.c.h.b16 %v654
        %v2107 = vunpack.c.l.b16 %v655
        %v2108 = vunpack.c.h.b16 %v655
        %v2109 = vunpack.c.l.b16 %v656
        %v2110 = vunpack.c.h.b16 %v656
        %v2111 = vunpack.c.l.b16 %v657
        %v2112 = vunpack.c.h.b16 %v657
        %v2113 = vunpack.c.l.b16 %v658
        %v2114 = vunpack.c.h.b16 %v658
        %v2115 = vunpack.c.l.b16 %v659
        %v2116 = vunpack.c.h.b16 %v659
        %v2117 = vunpack.c.l.b16 %v660
        %v2118 = vunpack.c.h.b16 %v660
        %v2119 = vunpack.c.l.b16 %v661
        %v2120 = vunpack.c.h.b16 %v661
        %v2121 = vunpack.c.l.b16 %v662
        %v2122 = vunpack.c.h.b16 %v662
        %v2123 = vunpack.c.l.b16 %v663
        %v2124 = vunpack.c.h.b16 %v663
        %v2125 = vunpack.c.l.b16 %v664
        %v2126 = vunpack.c.h.b16 %v664
        %v2127 = vunpack.c.l.b16 %v665
        %v2128 = vunpack.c.h.b16 %v665
        %v2129 = vunpack.c.l.b16 %v666
        %v2130 = vunpack.c.h.b16 %v666
        %v2131 = vunpack.c.l.b16 %v667
        %v2132 = vunpack.c.h.b16 %v667
        %v2133 = vunpack.c.l.b16 %v668
        %v2134 = vunpack.c.h.b16 %v668
        %v2135 = vunpack.c.l.b16 %v669
        %v2136 = vunpack.c.h.b16 %v669
        %v2137 = vunpack.c.l.b16 %v670
        %v2138 = vunpack.c.h.b16 %v670
        %v2139 = vunpack.c.l.b16 %v671
        %v2140 = vunpack.c.h.b16 %v671
        %v2141 = vunpack.c.l.b16 %v672
        %v2142 = vunpack.c.h.b16 %v672
        %v2143 = vunpack.c.l.b16 %v673
        %v2144 = vunpack.c.h.b16 %v673
        %v2145 = vunpack.c.l.b16 %v674
        %v2146 = vunpack.c.h.b16 %v674
        %v2147 = vunpack.c.l.b16 %v675
        %v2148 = vunpack.c.h.b16 %v675
        %v2149 = vunpack.c.l.b16 %v676
        %v2150 = vunpack.c.h.b16 %v676
        %v2151 = vunpack.c.l.b16 %v677
        %v2152 = vunpack.c.h.b16 %v677
        %v2153 = vunpack.c.l.b16 %v678
        %v2154 = vunpack.c.h.b16 %v678
        %v2155 = vunpack.c.l.b16 %v679
        %v2156 = vunpack.c.h.b16 %v679
        %v2157 = vunpack.c.l.b16 %v680
        %v2158 = vunpack.c.h.b16 %v680
        %v2159 = vunpack.c.l.b16 %v681
        %v2160 = vunpack.c.h.b16 %v681
        %v2161 = vunpack.c.l.b16 %v682
        %v2162 = vunpack.c.h.b16 %v682
        %v2163 = vunpack.c.l.b16 %v683
        %v2164 = vunpack.c.h.b16 %v683
        %v2165 = vunpack.c.l.b16 %v684
        %v2166 = vunpack.c.h.b16 %v684
        %v2167 = vunpack.c.l.b16 %v685
        %v2168 = vunpack.c.h.b16 %v685
        %v2169 = vunpack.c.l.b16 %v686
        %v2170 = vunpack.c.h.b16 %v686
        %v2171 = vunpack.c.l.b16 %v687
        %v2172 = vunpack.c.h.b16 %v687
        %v2173 = vunpack.c.l.b16 %v688
        %v2174 = vunpack.c.h.b16 %v688
        %v2175 = vunpack.c.l.b16 %v689
        %v2176 = vunpack.c.h.b16 %v689
        %v2177 = vunpack.c.l.b16 %v690
        %v2178 = vunpack.c.h.b16 %v690
        %v2179 = vunpack.c.l.b16 %v691
        %v2180 = vunpack.c.h.b16 %v691
        %v2181 = vunpack.c.l.b16 %v692
        %v2182 = vunpack.c.h.b16 %v692
        %v2183 = vunpack.c.l.b16 %v693
        %v2184 = vunpack.c.h.b16 %v693
        %v2185 = vunpack.c.l.b16 %v694
        %v2186 = vunpack.c.h.b16 %v694
        %v2187 = vunpack.c.l.b16 %v695
        %v2188 = vunpack.c.h.b16 %v695
        %v2189 = vunpack.c.l.b16 %v696
        %v2190 = vunpack.c.h.b16 %v696
        %v2191 = vunpack.c.l.b16 %v697
        %v2192 = vunpack.c.h.b16 %v697
        %v2193 = vunpack.c.l.b16 %v698
        %v2194 = vunpack.c.h.b16 %v698
        %v2195 = vunpack.c.l.b16 %v699
        %v2196 = vunpack.c.h.b16 %v699
        %v2197 = vunpack.c.l.b16 %v700
        %v2198 = vunpack.c.h.b16 %v700
        %v2199 = vunpack.c.l.b16 %v701
        %v2200 = vunpack.c.h.b16 %v701
        %v2201 = vunpack.c.l.b16 %v702
        %v2202 = vunpack.c.h.b16 %v702
        %v2203 = vunpack.c.l.b16 %v703
        %v2204 = vunpack.c.h.b16 %v703
        %v2205 = vunpack.c.l.b16 %v704
        %v2206 = vunpack.c.h.b16 %v704
        %v2207 = vunpack.c.l.b16 %v705
        %v2208 = vunpack.c.h.b16 %v705
        %v2209 = vunpack.c.l.b16 %v706
        %v2210 = vunpack.c.h.b16 %v706
        %v2211 = vunpack.c.l.b16 %v707
        %v2212 = vunpack.c.h.b16 %v707
        %v2213 = vunpack.c.l.b16 %v708
        %v2214 = vunpack.c.h.b16 %v708
        %v2215 = vunpack.c.l.b16 %v709
        %v2216 = vunpack.c.h.b16 %v709
        %v2217 = vunpack.c.l.b16 %v710
        %v2218 = vunpack.c.h.b16 %v710
        %v2219 = vunpack.c.l.b16 %v711
        %v2220 = vunpack.c.h.b16 %v711
        %v2221 = vunpack.c.l.b16 %v712
        %v2222 = vunpack.c.h.b16 %v712
        %v2223 = vunpack.c.l.b16 %v713
        %v2224 = vunpack.c.h.b16 %v713
        %v2225 = vunpack.c.l.b16 %v714
        %v2226 = vunpack.c.h.b16 %v714
        %v2227 = vunpack.c.l.b16 %v715
        %v2228 = vunpack.c.h.b16 %v715
        %v2229 = vunpack.c.l.b16 %v716
        %v2230 = vunpack.c.h.b16 %v716
        %v2231 = vunpack.c.l.b16 %v717
        %v2232 = vunpack.c.h.b16 %v717
        %v2233 = vunpack.c.l.b16 %v718
        %v2234 = vunpack.c.h.b16 %v718
        %v2235 = vunpack.c.l.b16 %v719
        %v2236 = vunpack.c.h.b16 %v719
        %v2237 = vunpack.c.l.b16 %v720
        %v2238 = vunpack.c.h.b16 %v720
        %v2239 = vunpack.c.l.b16 %v721
        %v2240 = vunpack.c.h.b16 %v721
        %v2241 = vunpack.c.l.b16 %v722
        %v2242 = vunpack.c.h.b16 %v722
        %v2243 = vunpack.c.l.b16 %v723
        %v2244 = vunpack.c.h.b16 %v723
        %v2245 = vunpack.c.l.b16 %v724
        %v2246 = vunpack.c.h.b16 %v724
        %v2247 = vunpack.c.l.b16 %v725
        %v2248 = vunpack.c.h.b16 %v725
        %v2249 = vunpack.c.l.b16 %v726
        %v2250 = vunpack.c.h.b16 %v726
        %v2251 = vunpack.c.l.b16 %v727
        %v2252 = vunpack.c.h.b16 %v727
        %v2253 = vunpack.c.l.b16 %v728
        %v2254 = vunpack.c.h.b16 %v728
        %v2255 = vunpack.c.l.b16 %v729
        %v2256 = vunpack.c.h.b16 %v729
        %v2257 = vunpack.c.l.b16 %v730
        %v2258 = vunpack.c.h.b16 %v730
        %v2259 = vunpack.c.l.b16 %v731
        %v2260 = vunpack.c.h.b16 %v731
        %v2261 = vunpack.c.l.b16 %v732
        %v2262 = vunpack.c.h.b16 %v732
        %v2263 = vunpack.c.l.b16 %v733
        %v2264 = vunpack.c.h.b16 %v733
        %v2265 = vunpack.c.l.b16 %v734
        %v2266 = vunpack.c.h.b16 %v734
        %v2267 = vunpack.c.l.b16 %v735
        %v2268 = vunpack.c.h.b16 %v735
        %v2269 = vunpack.c.l.b16 %v736
        %v2270 = vunpack.c.h.b16 %v736
        %v2271 = vunpack.c.l.b16 %v737
        %v2272 = vunpack.c.h.b16 %v737
        %v2273 = vunpack.c.l.b16 %v738
        %v2274 = vunpack.c.h.b16 %v738
        %v2275 = vunpack.c.l.b16 %v739
        %v2276 = vunpack.c.h.b16 %v739
        %v2277 = vunpack.c.l.b16 %v740
        %v2278 = vunpack.c.h.b16 %v740
        %v2279 = vunpack.c.l.b16 %v741
        %v2280 = vunpack.c.h.b16 %v741
        %v2281 = vunpack.c.l.b16 %v742
        %v2282 = vunpack.c.h.b16 %v742
        %v2283 = vunpack.c.l.b16 %v743
        %v2284 = vunpack.c.h.b16 %v743
        %v2285 = vunpack.c.l.b16 %v744
        %v2286 = vunpack.c.h.b16 %v744
        %v2287 = vunpack.c.l.b16 %v745
        %v2288 = vunpack.c.h.b16 %v745
        %v2289 = vunpack.c.l.b16 %v746
        %v2290 = vunpack.c.h.b16 %v746
        %v2291 = vunpack.c.l.b16 %v747
        %v2292 = vunpack.c.h.b16 %v747
        %v2293 = vunpack.c.l.b16 %v748
        %v2294 = vunpack.c.h.b16 %v748
        %v2295 = vunpack.c.l.b16 %v749
        %v2296 = vunpack.c.h.b16 %v749
        %v2297 = vunpack.c.l.b16 %v750
        %v2298 = vunpack.c.h.b16 %v750
        %v2299 = vunpack.c.l.b16 %v751
        %v2300 = vunpack.c.h.b16 %v751
        %v2301 = vunpack.c.l.b16 %v752
        %v2302 = vunpack.c.h.b16 %v752
        %v2303 = vunpack.c.l.b16 %v753
        %v2304 = vunpack.c.h.b16 %v753
        %v2305 = vunpack.c.l.b16 %v754
        %v2306 = vunpack.c.h.b16 %v754
        %v2307 = vunpack.c.l.b16 %v755
        %v2308 = vunpack.c.h.b16 %v755
        %v2309 = vunpack.c.l.b16 %v756
        %v2310 = vunpack.c.h.b16 %v756
        %v2311 = vunpack.c.l.b16 %v757
        %v2312 = vunpack.c.h.b16 %v757
        %v2313 = vunpack.c.l.b16 %v758
        %v2314 = vunpack.c.h.b16 %v758
        %v2315 = vunpack.c.l.b16 %v759
        %v2316 = vunpack.c.h.b16 %v759
        %v2317 = vunpack.c.l.b16 %v760
        %v2318 = vunpack.c.h.b16 %v760
        %v2319 = vunpack.c.l.b16 %v761
        %v2320 = vunpack.c.h.b16 %v761
        %v2321 = vunpack.c.l.b16 %v762
        %v2322 = vunpack.c.h.b16 %v762
        %v2323 = vunpack.c.l.b16 %v763
        %v2324 = vunpack.c.h.b16 %v763
        %v2325 = vunpack.c.l.b16 %v764
        %v2326 = vunpack.c.h.b16 %v764
        %v2327 = vunpack.c.l.b16 %v765
        %v2328 = vunpack.c.h.b16 %v765
        %v2329 = vunpack.c.l.b16 %v766
        %v2330 = vunpack.c.h.b16 %v766
        %v2331 = vunpack.c.l.b16 %v767
        %v2332 = vunpack.c.h.b16 %v767
        %v2333 = vunpack.c.l.b16 %v768
        %v2334 = vunpack.c.h.b16 %v768
        %v2335 = vunpack.c.l.b16 %v769
        %v2336 = vunpack.c.h.b16 %v769
        %v2337 = vunpack.c.l.b16 %v770
        %v2338 = vunpack.c.h.b16 %v770
        %v2339 = vunpack.c.l.b16 %v771
        %v2340 = vunpack.c.h.b16 %v771
        %v2341 = vunpack.c.l.b16 %v772
        %v2342 = vunpack.c.h.b16 %v772
        %v2343 = vunpack.c.l.b16 %v773
        %v2344 = vunpack.c.h.b16 %v773
        %v2345 = vunpack.c.l.b16 %v774
        %v2346 = vunpack.c.h.b16 %v774
        %v2347 = vunpack.c.l.b16 %v775
        %v2348 = vunpack.c.h.b16 %v775
        %v2349 = vunpack.c.l.b16 %v776
        %v2350 = vunpack.c.h.b16 %v776
        %v2351 = vunpack.c.l.b16 %v777
        %v2352 = vunpack.c.h.b16 %v777
        %v2353 = vunpack.c.l.b16 %v778
        %v2354 = vunpack.c.h.b16 %v778
        %v2355 = vunpack.c.l.b16 %v779
        %v2356 = vunpack.c.h.b16 %v779
        %v2357 = vunpack.c.l.b16 %v780
        %v2358 = vunpack.c.h.b16 %v780
        %v2359 = vunpack.c.l.b16 %v781
        %v2360 = vunpack.c.h.b16 %v781
        %v2361 = vunpack.c.l.b16 %v782
        %v2362 = vunpack.c.h.b16 %v782
        %v2363 = vunpack.c.l.b16 %v783
        %v2364 = vunpack.c.h.b16 %v783
        %v2365 = vunpack.c.l.b16 %v784
        %v2366 = vunpack.c.h.b16 %v784
        %v2367 = vunpack.c.l.b16 %v785
        %v2368 = vunpack.c.h.b16 %v785
        %v2369 = vunpack.c.l.b16 %v786
        %v2370 = vunpack.c.h.b16 %v786
        %v2371 = vunpack.c.l.b16 %v787
        %v2372 = vunpack.c.h.b16 %v787
        %v2373 = vunpack.c.l.b16 %v788
        %v2374 = vunpack.c.h.b16 %v788
        %v2375 = vunpack.c.l.b16 %v789
        %v2376 = vunpack.c.h.b16 %v789
        %v2377 = vunpack.c.l.b16 %v790
        %v2378 = vunpack.c.h.b16 %v790
        %v2379 = vunpack.c.l.b16 %v791
        %v2380 = vunpack.c.h.b16 %v791
        %v2381 = vunpack.c.l.b16 %v792
        %v2382 = vunpack.c.h.b16 %v792
        %v2383 = vunpack.c.l.b16 %v793
        %v2384 = vunpack.c.h.b16 %v793
        %v2385 = vunpack.c.l.b16 %v794
        %v2386 = vunpack.c.h.b16 %v794
        %v2387 = vunpack.c.l.b16 %v795
        %v2388 = vunpack.c.h.b16 %v795
        %v2389 = vunpack.c.l.b16 %v796
        %v2390 = vunpack.c.h.b16 %v796
        %v2391 = vunpack.c.l.b16 %v797
        %v2392 = vunpack.c.h.b16 %v797
        %v2393 = vunpack.c.l.b16 %v798
        %v2394 = vunpack.c.h.b16 %v798
        %v2395 = vunpack.c.l.b16 %v799
        %v2396 = vunpack.c.h.b16 %v799
        %v2397 = vunpack.c.l.b16 %v800
        %v2398 = vunpack.c.h.b16 %v800
        %v2399 = vunpack.c.l.b16 %v801
        %v2400 = vunpack.c.h.b16 %v801
        %v2401 = vunpack.c.l.b16 %v802
        %v2402 = vunpack.c.h.b16 %v802
        %v2403 = vunpack.c.l.b16 %v803
        %v2404 = vunpack.c.h.b16 %v803
        %v2405 = vunpack.c.l.b16 %v804
        %v2406 = vunpack.c.h.b16 %v804
        %v2407 = vunpack.c.l.b16 %v805
        %v2408 = vunpack.c.h.b16 %v805
        %v2409 = vunpack.c.l.b16 %v806
        %v2410 = vunpack.c.h.b16 %v806
        %v2411 = vunpack.c.l.b16 %v807
        %v2412 = vunpack.c.h.b16 %v807
        %v2413 = vunpack.c.l.b16 %v808
        %v2414 = vunpack.c.h.b16 %v808
        %v2415 = vunpack.c.l.b16 %v809
        %v2416 = vunpack.c.h.b16 %v809
        %v2417 = vunpack.c.l.b16 %v810
        %v2418 = vunpack.c.h.b16 %v810
        %v2419 = vunpack.c.l.b16 %v811
        %v2420 = vunpack.c.h.b16 %v811
        %v2421 = vunpack.c.l.b16 %v812
        %v2422 = vunpack.c.h.b16 %v812
        %v2423 = vunpack.c.l.b16 %v813
        %v2424 = vunpack.c.h.b16 %v813
        %v2425 = vunpack.c.l.b16 %v814
        %v2426 = vunpack.c.h.b16 %v814
        %v2427 = vunpack.c.l.b16 %v815
        %v2428 = vunpack.c.h.b16 %v815
        %v2429 = vunpack.c.l.b16 %v816
        %v2430 = vunpack.c.h.b16 %v816
        %v2431 = vunpack.c.l.b16 %v817
        %v2432 = vunpack.c.h.b16 %v817
        %v2433 = vunpack.c.l.b16 %v818
        %v2434 = vunpack.c.h.b16 %v818
        %v2435 = vunpack.c.l.b16 %v819
        %v2436 = vunpack.c.h.b16 %v819
        %v2437 = vunpack.c.l.b16 %v820
        %v2438 = vunpack.c.h.b16 %v820
        %v2439 = vunpack.c.l.b16 %v821
        %v2440 = vunpack.c.h.b16 %v821
        %v2441 = vunpack.c.l.b16 %v822
        %v2442 = vunpack.c.h.b16 %v822
        %v2443 = vunpack.c.l.b16 %v823
        %v2444 = vunpack.c.h.b16 %v823
        %v2445 = vunpack.c.l.b16 %v824
        %v2446 = vunpack.c.h.b16 %v824
        %v2447 = vunpack.c.l.b16 %v825
        %v2448 = vunpack.c.h.b16 %v825
        %v2449 = vunpack.c.l.b16 %v826
        %v2450 = vunpack.c.h.b16 %v826
        %v2451 = vunpack.c.l.b16 %v827
        %v2452 = vunpack.c.h.b16 %v827
        %v2453 = vunpack.c.l.b16 %v828
        %v2454 = vunpack.c.h.b16 %v828
        %v2455 = vunpack.c.l.b16 %v829
        %v2456 = vunpack.c.h.b16 %v829
        %v2457 = vunpack.c.l.b16 %v830
        %v2458 = vunpack.c.h.b16 %v830
        %v2459 = vunpack.c.l.b16 %v831
        %v2460 = vunpack.c.h.b16 %v831
        %v2461 = vunpack.c.l.b16 %v832
        %v2462 = vunpack.c.h.b16 %v832
        %v2463 = vunpack.c.l.b16 %v833
        %v2464 = vunpack.c.h.b16 %v833
        %v2465 = vunpack.c.l.b16 %v834
        %v2466 = vunpack.c.h.b16 %v834
        %v2467 = vunpack.c.l.b16 %v835
        %v2468 = vunpack.c.h.b16 %v835
        %v2469 = vunpack.c.l.b16 %v836
        %v2470 = vunpack.c.h.b16 %v836
        %v2471 = vunpack.c.l.b16 %v837
        %v2472 = vunpack.c.h.b16 %v837
        %v2473 = vunpack.c.l.b16 %v838
        %v2474 = vunpack.c.h.b16 %v838
        %v2475 = vunpack.c.l.b16 %v839
        %v2476 = vunpack.c.h.b16 %v839
        %v2477 = vunpack.c.l.b16 %v840
        %v2478 = vunpack.c.h.b16 %v840
        %v2479 = vunpack.c.l.b16 %v841
        %v2480 = vunpack.c.h.b16 %v841
        %v2481 = vunpack.c.l.b16 %v842
        %v2482 = vunpack.c.h.b16 %v842
        %v2483 = vunpack.c.l.b16 %v843
        %v2484 = vunpack.c.h.b16 %v843
        %v2485 = vunpack.c.l.b16 %v844
        %v2486 = vunpack.c.h.b16 %v844
        %v2487 = vunpack.c.l.b16 %v845
        %v2488 = vunpack.c.h.b16 %v845
        %v2489 = vunpack.c.l.b16 %v846
        %v2490 = vunpack.c.h.b16 %v846
        %v2491 = vunpack.c.l.b16 %v847
        %v2492 = vunpack.c.h.b16 %v847
        %v2493 = vunpack.c.l.b16 %v848
        %v2494 = vunpack.c.h.b16 %v848
        %v2495 = vpack.c.b16 %v1475, %v1471
        %v2496 = vpack.c.b16 %v1476, %v1472
        %v2497 = vpack.c.b16 %v1477, %v1473
        %v2498 = vpack.c.b16 %v1478, %v1474
        %v2499 = vpack.c.b16 %v1483, %v1479
        %v2500 = vpack.c.b16 %v1484, %v1480
        %v2501 = vpack.c.b16 %v1485, %v1481
        %v2502 = vpack.c.b16 %v1486, %v1482
        %v2503 = vpack.c.b16 %v1491, %v1487
        %v2504 = vpack.c.b16 %v1492, %v1488
        %v2505 = vpack.c.b16 %v1493, %v1489
        %v2506 = vpack.c.b16 %v1494, %v1490
        %v2507 = vpack.c.b16 %v1499, %v1495
        %v2508 = vpack.c.b16 %v1500, %v1496
        %v2509 = vpack.c.b16 %v1501, %v1497
        %v2510 = vpack.c.b16 %v1502, %v1498
        %v2511 = vpack.c.b16 %v1507, %v1503
        %v2512 = vpack.c.b16 %v1508, %v1504
        %v2513 = vpack.c.b16 %v1509, %v1505
        %v2514 = vpack.c.b16 %v1510, %v1506
        %v2515 = vpack.c.b16 %v1515, %v1511
        %v2516 = vpack.c.b16 %v1516, %v1512
        %v2517 = vpack.c.b16 %v1517, %v1513
        %v2518 = vpack.c.b16 %v1518, %v1514
        %v2519 = vpack.c.b16 %v1523, %v1519
        %v2520 = vpack.c.b16 %v1524, %v1520
        %v2521 = vpack.c.b16 %v1525, %v1521
        %v2522 = vpack.c.b16 %v1526, %v1522
        %v2523 = vpack.c.b16 %v1531, %v1527
        %v2524 = vpack.c.b16 %v1532, %v1528
        %v2525 = vpack.c.b16 %v1533, %v1529
        %v2526 = vpack.c.b16 %v1534, %v1530
        %v2527 = vpack.c.b16 %v1539, %v1535
        %v2528 = vpack.c.b16 %v1540, %v1536
        %v2529 = vpack.c.b16 %v1541, %v1537
        %v2530 = vpack.c.b16 %v1542, %v1538
        %v2531 = vpack.c.b16 %v1547, %v1543
        %v2532 = vpack.c.b16 %v1548, %v1544
        %v2533 = vpack.c.b16 %v1549, %v1545
        %v2534 = vpack.c.b16 %v1550, %v1546
        %v2535 = vpack.c.b16 %v1555, %v1551
        %v2536 = vpack.c.b16 %v1556, %v1552
        %v2537 = vpack.c.b16 %v1557, %v1553
        %v2538 = vpack.c.b16 %v1558, %v1554
        %v2539 = vpack.c.b16 %v1563, %v1559
        %v2540 = vpack.c.b16 %v1564, %v1560
        %v2541 = vpack.c.b16 %v1565, %v1561
        %v2542 = vpack.c.b16 %v1566, %v1562
        %v2543 = vpack.c.b16 %v1571, %v1567
        %v2544 = vpack.c.b16 %v1572, %v1568
        %v2545 = vpack.c.b16 %v1573, %v1569
        %v2546 = vpack.c.b16 %v1574, %v1570
        %v2547 = vpack.c.b16 %v1579, %v1575
        %v2548 = vpack.c.b16 %v1580, %v1576
        %v2549 = vpack.c.b16 %v1581, %v1577
        %v2550 = vpack.c.b16 %v1582, %v1578
        %v2551 = vpack.c.b16 %v1587, %v1583
        %v2552 = vpack.c.b16 %v1588, %v1584
        %v2553 = vpack.c.b16 %v1589, %v1585
        %v2554 = vpack.c.b16 %v1590, %v1586
        %v2555 = vpack.c.b16 %v1595, %v1591
        %v2556 = vpack.c.b16 %v1596, %v1592
        %v2557 = vpack.c.b16 %v1597, %v1593
        %v2558 = vpack.c.b16 %v1598, %v1594
        %v2559 = vpack.c.b16 %v1603, %v1599
        %v2560 = vpack.c.b16 %v1604, %v1600
        %v2561 = vpack.c.b16 %v1605, %v1601
        %v2562 = vpack.c.b16 %v1606, %v1602
        %v2563 = vpack.c.b16 %v1611, %v1607
        %v2564 = vpack.c.b16 %v1612, %v1608
        %v2565 = vpack.c.b16 %v1613, %v1609
        %v2566 = vpack.c.b16 %v1614, %v1610
        %v2567 = vpack.c.b16 %v1619, %v1615
        %v2568 = vpack.c.b16 %v1620, %v1616
        %v2569 = vpack.c.b16 %v1621, %v1617
        %v2570 = vpack.c.b16 %v1622, %v1618
        %v2571 = vpack.c.b16 %v1627, %v1623
        %v2572 = vpack.c.b16 %v1628, %v1624
        %v2573 = vpack.c.b16 %v1629, %v1625
        %v2574 = vpack.c.b16 %v1630, %v1626
        %v2575 = vpack.c.b16 %v1635, %v1631
        %v2576 = vpack.c.b16 %v1636, %v1632
        %v2577 = vpack.c.b16 %v1637, %v1633
        %v2578 = vpack.c.b16 %v1638, %v1634
        %v2579 = vpack.c.b16 %v1643, %v1639
        %v2580 = vpack.c.b16 %v1644, %v1640
        %v2581 = vpack.c.b16 %v1645, %v1641
        %v2582 = vpack.c.b16 %v1646, %v1642
        %v2583 = vpack.c.b16 %v1651, %v1647
        %v2584 = vpack.c.b16 %v1652, %v1648
        %v2585 = vpack.c.b16 %v1653, %v1649
        %v2586 = vpack.c.b16 %v1654, %v1650
        %v2587 = vpack.c.b16 %v1659, %v1655
        %v2588 = vpack.c.b16 %v1660, %v1656
        %v2589 = vpack.c.b16 %v1661, %v1657
        %v2590 = vpack.c.b16 %v1662, %v1658
        %v2591 = vpack.c.b16 %v1667, %v1663
        %v2592 = vpack.c.b16 %v1668, %v1664
        %v2593 = vpack.c.b16 %v1669, %v1665
        %v2594 = vpack.c.b16 %v1670, %v1666
        %v2595 = vpack.c.b16 %v1675, %v1671
        %v2596 = vpack.c.b16 %v1676, %v1672
        %v2597 = vpack.c.b16 %v1677, %v1673
        %v2598 = vpack.c.b16 %v1678, %v1674
        %v2599 = vpack.c.b16 %v1683, %v1679
        %v2600 = vpack.c.b16 %v1684, %v1680
        %v2601 = vpack.c.b16 %v1685, %v1681
        %v2602 = vpack.c.b16 %v1686, %v1682
        %v2603 = vpack.c.b16 %v1691, %v1687
        %v2604 = vpack.c.b16 %v1692, %v1688
        %v2605 = vpack.c.b16 %v1693, %v1689
        %v2606 = vpack.c.b16 %v1694, %v1690
        %v2607 = vpack.c.b16 %v1699, %v1695
        %v2608 = vpack.c.b16 %v1700, %v1696
        %v2609 = vpack.c.b16 %v1701, %v1697
        %v2610 = vpack.c.b16 %v1702, %v1698
        %v2611 = vpack.c.b16 %v1707, %v1703
        %v2612 = vpack.c.b16 %v1708, %v1704
        %v2613 = vpack.c.b16 %v1709, %v1705
        %v2614 = vpack.c.b16 %v1710, %v1706
        %v2615 = vpack.c.b16 %v1715, %v1711
        %v2616 = vpack.c.b16 %v1716, %v1712
        %v2617 = vpack.c.b16 %v1717, %v1713
        %v2618 = vpack.c.b16 %v1718, %v1714
        %v2619 = vpack.c.b16 %v1723, %v1719
        %v2620 = vpack.c.b16 %v1724, %v1720
        %v2621 = vpack.c.b16 %v1725, %v1721
        %v2622 = vpack.c.b16 %v1726, %v1722
        %v2623 = vpack.c.b16 %v1731, %v1727
        %v2624 = vpack.c.b16 %v1732, %v1728
        %v2625 = vpack.c.b16 %v1733, %v1729
        %v2626 = vpack.c.b16 %v1734, %v1730
        %v2627 = vpack.c.b16 %v1739, %v1735
        %v2628 = vpack.c.b16 %v1740, %v1736
        %v2629 = vpack.c.b16 %v1741, %v1737
        %v2630 = vpack.c.b16 %v1742, %v1738
        %v2631 = vpack.c.b16 %v1747, %v1743
        %v2632 = vpack.c.b16 %v1748, %v1744
        %v2633 = vpack.c.b16 %v1749, %v1745
        %v2634 = vpack.c.b16 %v1750, %v1746
        %v2635 = vpack.c.b16 %v1755, %v1751
        %v2636 = vpack.c.b16 %v1756, %v1752
        %v2637 = vpack.c.b16 %v1757, %v1753
        %v2638 = vpack.c.b16 %v1758, %v1754
        %v2639 = vpack.c.b16 %v1763, %v1759
        %v2640 = vpack.c.b16 %v1764, %v1760
        %v2641 = vpack.c.b16 %v1765, %v1761
        %v2642 = vpack.c.b16 %v1766, %v1762
        %v2643 = vpack.c.b16 %v1771, %v1767
        %v2644 = vpack.c.b16 %v1772, %v1768
        %v2645 = vpack.c.b16 %v1773, %v1769
        %v2646 = vpack.c.b16 %v1774, %v1770
        %v2647 = vpack.c.b16 %v1779, %v1775
        %v2648 = vpack.c.b16 %v1780, %v1776
        %v2649 = vpack.c.b16 %v1781, %v1777
        %v2650 = vpack.c.b16 %v1782, %v1778
        %v2651 = vpack.c.b16 %v1787, %v1783
        %v2652 = vpack.c.b16 %v1788, %v1784
        %v2653 = vpack.c.b16 %v1789, %v1785
        %v2654 = vpack.c.b16 %v1790, %v1786
        %v2655 = vpack.c.b16 %v1795, %v1791
        %v2656 = vpack.c.b16 %v1796, %v1792
        %v2657 = vpack.c.b16 %v1797, %v1793
        %v2658 = vpack.c.b16 %v1798, %v1794
        %v2659 = vpack.c.b16 %v1803, %v1799
        %v2660 = vpack.c.b16 %v1804, %v1800
        %v2661 = vpack.c.b16 %v1805, %v1801
        %v2662 = vpack.c.b16 %v1806, %v1802
        %v2663 = vpack.c.b16 %v1811, %v1807
        %v2664 = vpack.c.b16 %v1812, %v1808
        %v2665 = vpack.c.b16 %v1813, %v1809
        %v2666 = vpack.c.b16 %v1814, %v1810
        %v2667 = vpack.c.b16 %v1819, %v1815
        %v2668 = vpack.c.b16 %v1820, %v1816
        %v2669 = vpack.c.b16 %v1821, %v1817
        %v2670 = vpack.c.b16 %v1822, %v1818
        %v2671 = vpack.c.b16 %v1827, %v1823
        %v2672 = vpack.c.b16 %v1828, %v1824
        %v2673 = vpack.c.b16 %v1829, %v1825
        %v2674 = vpack.c.b16 %v1830, %v1826
        %v2675 = vpack.c.b16 %v1835, %v1831
        %v2676 = vpack.c.b16 %v1836, %v1832
        %v2677 = vpack.c.b16 %v1837, %v1833
        %v2678 = vpack.c.b16 %v1838, %v1834
        %v2679 = vpack.c.b16 %v1843, %v1839
        %v2680 = vpack.c.b16 %v1844, %v1840
        %v2681 = vpack.c.b16 %v1845, %v1841
        %v2682 = vpack.c.b16 %v1846, %v1842
        %v2683 = vpack.c.b16 %v1851, %v1847
        %v2684 = vpack.c.b16 %v1852, %v1848
        %v2685 = vpack.c.b16 %v1853, %v1849
        %v2686 = vpack.c.b16 %v1854, %v1850
        %v2687 = vpack.c.b16 %v1859, %v1855
        %v2688 = vpack.c.b16 %v1860, %v1856
        %v2689 = vpack.c.b16 %v1861, %v1857
        %v2690 = vpack.c.b16 %v1862, %v1858
        %v2691 = vpack.c.b16 %v1867, %v1863
        %v2692 = vpack.c.b16 %v1868, %v1864
        %v2693 = vpack.c.b16 %v1869, %v1865
        %v2694 = vpack.c.b16 %v1870, %v1866
        %v2695 = vpack.c.b16 %v1875, %v1871
        %v2696 = vpack.c.b16 %v1876, %v1872
        %v2697 = vpack.c.b16 %v1877, %v1873
        %v2698 = vpack.c.b16 %v1878, %v1874
        %v2699 = vpack.c.b16 %v1883, %v1879
        %v2700 = vpack.c.b16 %v1884, %v1880
        %v2701 = vpack.c.b16 %v1885, %v1881
        %v2702 = vpack.c.b16 %v1886, %v1882
        %v2703 = vpack.c.b16 %v1891, %v1887
        %v2704 = vpack.c.b16 %v1892, %v1888
        %v2705 = vpack.c.b16 %v1893, %v1889
        %v2706 = vpack.c.b16 %v1894, %v1890
        %v2707 = vpack.c.b16 %v1899, %v1895
        %v2708 = vpack.c.b16 %v1900, %v1896
        %v2709 = vpack.c.b16 %v1901, %v1897
        %v2710 = vpack.c.b16 %v1902, %v1898
        %v2711 = vpack.c.b16 %v1907, %v1903
        %v2712 = vpack.c.b16 %v1908, %v1904
        %v2713 = vpack.c.b16 %v1909, %v1905
        %v2714 = vpack.c.b16 %v1910, %v1906
        %v2715 = vpack.c.b16 %v1915, %v1911
        %v2716 = vpack.c.b16 %v1916, %v1912
        %v2717 = vpack.c.b16 %v1917, %v1913
        %v2718 = vpack.c.b16 %v1918, %v1914
        %v2719 = vpack.c.b16 %v1923, %v1919
        %v2720 = vpack.c.b16 %v1924, %v1920
        %v2721 = vpack.c.b16 %v1925, %v1921
        %v2722 = vpack.c.b16 %v1926, %v1922
        %v2723 = vpack.c.b16 %v1931, %v1927
        %v2724 = vpack.c.b16 %v1932, %v1928
        %v2725 = vpack.c.b16 %v1933, %v1929
        %v2726 = vpack.c.b16 %v1934, %v1930
        %v2727 = vpack.c.b16 %v1939, %v1935
        %v2728 = vpack.c.b16 %v1940, %v1936
        %v2729 = vpack.c.b16 %v1941, %v1937
        %v2730 = vpack.c.b16 %v1942, %v1938
        %v2731 = vpack.c.b16 %v1947, %v1943
        %v2732 = vpack.c.b16 %v1948, %v1944
        %v2733 = vpack.c.b16 %v1949, %v1945
        %v2734 = vpack.c.b16 %v1950, %v1946
        %v2735 = vpack.c.b16 %v1955, %v1951
        %v2736 = vpack.c.b16 %v1956, %v1952
        %v2737 = vpack.c.b16 %v1957, %v1953
        %v2738 = vpack.c.b16 %v1958, %v1954
        %v2739 = vpack.c.b16 %v1963, %v1959
        %v2740 = vpack.c.b16 %v1964, %v1960
        %v2741 = vpack.c.b16 %v1965, %v1961
        %v2742 = vpack.c.b16 %v1966, %v1962
        %v2743 = vpack.c.b16 %v1971, %v1967
        %v2744 = vpack.c.b16 %v1972, %v1968
        %v2745 = vpack.c.b16 %v1973, %v1969
        %v2746 = vpack.c.b16 %v1974, %v1970
        %v2747 = vpack.c.b16 %v1979, %v1975
        %v2748 = vpack.c.b16 %v1980, %v1976
        %v2749 = vpack.c.b16 %v1981, %v1977
        %v2750 = vpack.c.b16 %v1982, %v1978
        %v2751 = vpack.c.b16 %v1987, %v1983
        %v2752 = vpack.c.b16 %v1988, %v1984
        %v2753 = vpack.c.b16 %v1989, %v1985
        %v2754 = vpack.c.b16 %v1990, %v1986
        %v2755 = vpack.c.b16 %v1995, %v1991
        %v2756 = vpack.c.b16 %v1996, %v1992
        %v2757 = vpack.c.b16 %v1997, %v1993
        %v2758 = vpack.c.b16 %v1998, %v1994
        %v2759 = vpack.c.b16 %v2003, %v1999
        %v2760 = vpack.c.b16 %v2004, %v2000
        %v2761 = vpack.c.b16 %v2005, %v2001
        %v2762 = vpack.c.b16 %v2006, %v2002
        %v2763 = vpack.c.b16 %v2011, %v2007
        %v2764 = vpack.c.b16 %v2012, %v2008
        %v2765 = vpack.c.b16 %v2013, %v2009
        %v2766 = vpack.c.b16 %v2014, %v2010
        %v2767 = vpack.c.b16 %v2019, %v2015
        %v2768 = vpack.c.b16 %v2020, %v2016
        %v2769 = vpack.c.b16 %v2021, %v2017
        %v2770 = vpack.c.b16 %v2022, %v2018
        %v2771 = vpack.c.b16 %v2027, %v2023
        %v2772 = vpack.c.b16 %v2028, %v2024
        %v2773 = vpack.c.b16 %v2029, %v2025
        %v2774 = vpack.c.b16 %v2030, %v2026
        %v2775 = vpack.c.b16 %v2035, %v2031
        %v2776 = vpack.c.b16 %v2036, %v2032
        %v2777 = vpack.c.b16 %v2037, %v2033
        %v2778 = vpack.c.b16 %v2038, %v2034
        %v2779 = vpack.c.b16 %v2043, %v2039
        %v2780 = vpack.c.b16 %v2044, %v2040
        %v2781 = vpack.c.b16 %v2045, %v2041
        %v2782 = vpack.c.b16 %v2046, %v2042
        %v2783 = vpack.c.b16 %v2051, %v2047
        %v2784 = vpack.c.b16 %v2052, %v2048
        %v2785 = vpack.c.b16 %v2053, %v2049
        %v2786 = vpack.c.b16 %v2054, %v2050
        %v2787 = vpack.c.b16 %v2059, %v2055
        %v2788 = vpack.c.b16 %v2060, %v2056
        %v2789 = vpack.c.b16 %v2061, %v2057
        %v2790 = vpack.c.b16 %v2062, %v2058
        %v2791 = vpack.c.b16 %v2067, %v2063
        %v2792 = vpack.c.b16 %v2068, %v2064
        %v2793 = vpack.c.b16 %v2069, %v2065
        %v2794 = vpack.c.b16 %v2070, %v2066
        %v2795 = vpack.c.b16 %v2075, %v2071
        %v2796 = vpack.c.b16 %v2076, %v2072
        %v2797 = vpack.c.b16 %v2077, %v2073
        %v2798 = vpack.c.b16 %v2078, %v2074
        %v2799 = vpack.c.b16 %v2083, %v2079
        %v2800 = vpack.c.b16 %v2084, %v2080
        %v2801 = vpack.c.b16 %v2085, %v2081
        %v2802 = vpack.c.b16 %v2086, %v2082
        %v2803 = vpack.c.b16 %v2091, %v2087
        %v2804 = vpack.c.b16 %v2092, %v2088
        %v2805 = vpack.c.b16 %v2093, %v2089
        %v2806 = vpack.c.b16 %v2094, %v2090
        %v2807 = vpack.c.b16 %v2099, %v2095
        %v2808 = vpack.c.b16 %v2100, %v2096
        %v2809 = vpack.c.b16 %v2101, %v2097
        %v2810 = vpack.c.b16 %v2102, %v2098
        %v2811 = vpack.c.b16 %v2107, %v2103
        %v2812 = vpack.c.b16 %v2108, %v2104
        %v2813 = vpack.c.b16 %v2109, %v2105
        %v2814 = vpack.c.b16 %v2110, %v2106
        %v2815 = vpack.c.b16 %v2115, %v2111
        %v2816 = vpack.c.b16 %v2116, %v2112
        %v2817 = vpack.c.b16 %v2117, %v2113
        %v2818 = vpack.c.b16 %v2118, %v2114
        %v2819 = vpack.c.b16 %v2123, %v2119
        %v2820 = vpack.c.b16 %v2124, %v2120
        %v2821 = vpack.c.b16 %v2125, %v2121
        %v2822 = vpack.c.b16 %v2126, %v2122
        %v2823 = vpack.c.b16 %v2131, %v2127
        %v2824 = vpack.c.b16 %v2132, %v2128
        %v2825 = vpack.c.b16 %v2133, %v2129
        %v2826 = vpack.c.b16 %v2134, %v2130
        %v2827 = vpack.c.b16 %v2139, %v2135
        %v2828 = vpack.c.b16 %v2140, %v2136
        %v2829 = vpack.c.b16 %v2141, %v2137
        %v2830 = vpack.c.b16 %v2142, %v2138
        %v2831 = vpack.c.b16 %v2147, %v2143
        %v2832 = vpack.c.b16 %v2148, %v2144
        %v2833 = vpack.c.b16 %v2149, %v2145
        %v2834 = vpack.c.b16 %v2150, %v2146
        %v2835 = vpack.c.b16 %v2155, %v2151
        %v2836 = vpack.c.b16 %v2156, %v2152
        %v2837 = vpack.c.b16 %v2157, %v2153
        %v2838 = vpack.c.b16 %v2158, %v2154
        %v2839 = vpack.c.b16 %v2163, %v2159
        %v2840 = vpack.c.b16 %v2164, %v2160
        %v2841 = vpack.c.b16 %v2165, %v2161
        %v2842 = vpack.c.b16 %v2166, %v2162
        %v2843 = vpack.c.b16 %v2171, %v2167
        %v2844 = vpack.c.b16 %v2172, %v2168
        %v2845 = vpack.c.b16 %v2173, %v2169
        %v2846 = vpack.c.b16 %v2174, %v2170
        %v2847 = vpack.c.b16 %v2179, %v2175
        %v2848 = vpack.c.b16 %v2180, %v2176
        %v2849 = vpack.c.b16 %v2181, %v2177
        %v2850 = vpack.c.b16 %v2182, %v2178
        %v2851 = vpack.c.b16 %v2187, %v2183
        %v2852 = vpack.c.b16 %v2188, %v2184
        %v2853 = vpack.c.b16 %v2189, %v2185
        %v2854 = vpack.c.b16 %v2190, %v2186
        %v2855 = vpack.c.b16 %v2195, %v2191
        %v2856 = vpack.c.b16 %v2196, %v2192
        %v2857 = vpack.c.b16 %v2197, %v2193
        %v2858 = vpack.c.b16 %v2198, %v2194
        %v2859 = vpack.c.b16 %v2203, %v2199
        %v2860 = vpack.c.b16 %v2204, %v2200
        %v2861 = vpack.c.b16 %v2205, %v2201
        %v2862 = vpack.c.b16 %v2206, %v2202
        %v2863 = vpack.c.b16 %v2211, %v2207
        %v2864 = vpack.c.b16 %v2212, %v2208
        %v2865 = vpack.c.b16 %v2213, %v2209
        %v2866 = vpack.c.b16 %v2214, %v2210
        %v2867 = vpack.c.b16 %v2219, %v2215
        %v2868 = vpack.c.b16 %v2220, %v2216
        %v2869 = vpack.c.b16 %v2221, %v2217
        %v2870 = vpack.c.b16 %v2222, %v2218
        %v2871 = vpack.c.b16 %v2227, %v2223
        %v2872 = vpack.c.b16 %v2228, %v2224
        %v2873 = vpack.c.b16 %v2229, %v2225
        %v2874 = vpack.c.b16 %v2230, %v2226
        %v2875 = vpack.c.b16 %v2235, %v2231
        %v2876 = vpack.c.b16 %v2236, %v2232
        %v2877 = vpack.c.b16 %v2237, %v2233
        %v2878 = vpack.c.b16 %v2238, %v2234
        %v2879 = vpack.c.b16 %v2243, %v2239
        %v2880 = vpack.c.b16 %v2244, %v2240
        %v2881 = vpack.c.b16 %v2245, %v2241
        %v2882 = vpack.c.b16 %v2246, %v2242
        %v2883 = vpack.c.b16 %v2251, %v2247
        %v2884 = vpack.c.b16 %v2252, %v2248
        %v2885 = vpack.c.b16 %v2253, %v2249
        %v2886 = vpack.c.b16 %v2254, %v2250
        %v2887 = vpack.c.b16 %v2259, %v2255
        %v2888 = vpack.c.b16 %v2260, %v2256
        %v2889 = vpack.c.b16 %v2261, %v2257
        %v2890 = vpack.c.b16 %v2262, %v2258
        %v2891 = vpack.c.b16 %v2267, %v2263
        %v2892 = vpack.c.b16 %v2268, %v2264
        %v2893 = vpack.c.b16 %v2269, %v2265
        %v2894 = vpack.c.b16 %v2270, %v2266
        %v2895 = vpack.c.b16 %v2275, %v2271
        %v2896 = vpack.c.b16 %v2276, %v2272
        %v2897 = vpack.c.b16 %v2277, %v2273
        %v2898 = vpack.c.b16 %v2278, %v2274
        %v2899 = vpack.c.b16 %v2283, %v2279
        %v2900 = vpack.c.b16 %v2284, %v2280
        %v2901 = vpack.c.b16 %v2285, %v2281
        %v2902 = vpack.c.b16 %v2286, %v2282
        %v2903 = vpack.c.b16 %v2291, %v2287
        %v2904 = vpack.c.b16 %v2292, %v2288
        %v2905 = vpack.c.b16 %v2293, %v2289
        %v2906 = vpack.c.b16 %v2294, %v2290
        %v2907 = vpack.c.b16 %v2299, %v2295
        %v2908 = vpack.c.b16 %v2300, %v2296
        %v2909 = vpack.c.b16 %v2301, %v2297
        %v2910 = vpack.c.b16 %v2302, %v2298
        %v2911 = vpack.c.b16 %v2307, %v2303
        %v2912 = vpack.c.b16 %v2308, %v2304
        %v2913 = vpack.c.b16 %v2309, %v2305
        %v2914 = vpack.c.b16 %v2310, %v2306
        %v2915 = vpack.c.b16 %v2315, %v2311
        %v2916 = vpack.c.b16 %v2316, %v2312
        %v2917 = vpack.c.b16 %v2317, %v2313
        %v2918 = vpack.c.b16 %v2318, %v2314
        %v2919 = vpack.c.b16 %v2323, %v2319
        %v2920 = vpack.c.b16 %v2324, %v2320
        %v2921 = vpack.c.b16 %v2325, %v2321
        %v2922 = vpack.c.b16 %v2326, %v2322
        %v2923 = vpack.c.b16 %v2331, %v2327
        %v2924 = vpack.c.b16 %v2332, %v2328
        %v2925 = vpack.c.b16 %v2333, %v2329
        %v2926 = vpack.c.b16 %v2334, %v2330
        %v2927 = vpack.c.b16 %v2339, %v2335
        %v2928 = vpack.c.b16 %v2340, %v2336
        %v2929 = vpack.c.b16 %v2341, %v2337
        %v2930 = vpack.c.b16 %v2342, %v2338
        %v2931 = vpack.c.b16 %v2347, %v2343
        %v2932 = vpack.c.b16 %v2348, %v2344
        %v2933 = vpack.c.b16 %v2349, %v2345
        %v2934 = vpack.c.b16 %v2350, %v2346
        %v2935 = vpack.c.b16 %v2355, %v2351
        %v2936 = vpack.c.b16 %v2356, %v2352
        %v2937 = vpack.c.b16 %v2357, %v2353
        %v2938 = vpack.c.b16 %v2358, %v2354
        %v2939 = vpack.c.b16 %v2363, %v2359
        %v2940 = vpack.c.b16 %v2364, %v2360
        %v2941 = vpack.c.b16 %v2365, %v2361
        %v2942 = vpack.c.b16 %v2366, %v2362
        %v2943 = vpack.c.b16 %v2371, %v2367
        %v2944 = vpack.c.b16 %v2372, %v2368
        %v2945 = vpack.c.b16 %v2373, %v2369
        %v2946 = vpack.c.b16 %v2374, %v2370
        %v2947 = vpack.c.b16 %v2379, %v2375
        %v2948 = vpack.c.b16 %v2380, %v2376
        %v2949 = vpack.c.b16 %v2381, %v2377
        %v2950 = vpack.c.b16 %v2382, %v2378
        %v2951 = vpack.c.b16 %v2387, %v2383
        %v2952 = vpack.c.b16 %v2388, %v2384
        %v2953 = vpack.c.b16 %v2389, %v2385
        %v2954 = vpack.c.b16 %v2390, %v2386
        %v2955 = vpack.c.b16 %v2395, %v2391
        %v2956 = vpack.c.b16 %v2396, %v2392
        %v2957 = vpack.c.b16 %v2397, %v2393
        %v2958 = vpack.c.b16 %v2398, %v2394
        %v2959 = vpack.c.b16 %v2403, %v2399
        %v2960 = vpack.c.b16 %v2404, %v2400
        %v2961 = vpack.c.b16 %v2405, %v2401
        %v2962 = vpack.c.b16 %v2406, %v2402
        %v2963 = vpack.c.b16 %v2411, %v2407
        %v2964 = vpack.c.b16 %v2412, %v2408
        %v2965 = vpack.c.b16 %v2413, %v2409
        %v2966 = vpack.c.b16 %v2414, %v2410
        %v2967 = vpack.c.b16 %v2419, %v2415
        %v2968 = vpack.c.b16 %v2420, %v2416
        %v2969 = vpack.c.b16 %v2421, %v2417
        %v2970 = vpack.c.b16 %v2422, %v2418
        %v2971 = vpack.c.b16 %v2427, %v2423
        %v2972 = vpack.c.b16 %v2428, %v2424
        %v2973 = vpack.c.b16 %v2429, %v2425
        %v2974 = vpack.c.b16 %v2430, %v2426
        %v2975 = vpack.c.b16 %v2435, %v2431
        %v2976 = vpack.c.b16 %v2436, %v2432
        %v2977 = vpack.c.b16 %v2437, %v2433
        %v2978 = vpack.c.b16 %v2438, %v2434
        %v2979 = vpack.c.b16 %v2443, %v2439
        %v2980 = vpack.c.b16 %v2444, %v2440
        %v2981 = vpack.c.b16 %v2445, %v2441
        %v2982 = vpack.c.b16 %v2446, %v2442
        %v2983 = vpack.c.b16 %v2451, %v2447
        %v2984 = vpack.c.b16 %v2452, %v2448
        %v2985 = vpack.c.b16 %v2453, %v2449
        %v2986 = vpack.c.b16 %v2454, %v2450
        %v2987 = vpack.c.b16 %v2459, %v2455
        %v2988 = vpack.c.b16 %v2460, %v2456
        %v2989 = vpack.c.b16 %v2461, %v2457
        %v2990 = vpack.c.b16 %v2462, %v2458
        %v2991 = vpack.c.b16 %v2467, %v2463
        %v2992 = vpack.c.b16 %v2468, %v2464
        %v2993 = vpack.c.b16 %v2469, %v2465
        %v2994 = vpack.c.b16 %v2470, %v2466
        %v2995 = vpack.c.b16 %v2475, %v2471
        %v2996 = vpack.c.b16 %v2476, %v2472
        %v2997 = vpack.c.b16 %v2477, %v2473
        %v2998 = vpack.c.b16 %v2478, %v2474
        %v2999 = vpack.c.b16 %v2483, %v2479
        %v3000 = vpack.c.b16 %v2484, %v2480
        %v3001 = vpack.c.b16 %v2485, %v2481
        %v3002 = vpack.c.b16 %v2486, %v2482
        %v3003 = vpack.c.b16 %v2491, %v2487
        %v3004 = vpack.c.b16 %v2492, %v2488
        %v3005 = vpack.c.b16 %v2493, %v2489
        %v3006 = vpack.c.b16 %v2494, %v2490
        %3519 = vmatprep.subr.bf16.mxu0 %v2496
        %3520 = vmatpush1.bf16.msra.mxu0 %v2495
        %3521 = vmatprep.subr.bf16.mxu0 %v2500
        %3522 = vmatpush1.bf16.msra.mxu0 %v2499
        %3523 = vmatprep.subr.bf16.mxu0 %v2504
        %3524 = vmatpush1.bf16.msra.mxu0 %v2503
        %3525 = vmatprep.subr.bf16.mxu0 %v2508
        %3526 = vmatpush1.bf16.msra.mxu0 %v2507
        %3527 = vmatprep.subr.bf16.mxu0 %v2512
        %3528 = vmatpush1.bf16.msra.mxu0 %v2511
        %3529 = vmatprep.subr.bf16.mxu0 %v2516
        %3530 = vmatpush1.bf16.msra.mxu0 %v2515
        %3531 = vmatprep.subr.bf16.mxu0 %v2520
        %3532 = vmatpush1.bf16.msra.mxu0 %v2519
        %3533 = vmatprep.subr.bf16.mxu0 %v2524
        %3534 = vmatpush1.bf16.msra.mxu0 %v2523
        %3535 = vmatprep.subr.bf16.mxu0 %v2528
        %3536 = vmatpush1.bf16.msra.mxu0 %v2527
        %3537 = vmatprep.subr.bf16.mxu0 %v2532
        %3538 = vmatpush1.bf16.msra.mxu0 %v2531
        %3539 = vmatprep.subr.bf16.mxu0 %v2536
        %3540 = vmatpush1.bf16.msra.mxu0 %v2535
        %3541 = vmatprep.subr.bf16.mxu0 %v2540
        %3542 = vmatpush1.bf16.msra.mxu0 %v2539
        %3543 = vmatprep.subr.bf16.mxu0 %v2544
        %3544 = vmatpush1.bf16.msra.mxu0 %v2543
        %3545 = vmatprep.subr.bf16.mxu0 %v2548
        %3546 = vmatpush1.bf16.msra.mxu0 %v2547
        %3547 = vmatprep.subr.bf16.mxu0 %v2552
        %3548 = vmatpush1.bf16.msra.mxu0 %v2551
        %3549 = vmatprep.subr.bf16.mxu0 %v2556
        %3550 = vmatpush1.bf16.msra.mxu0 %v2555
        %3551 = vmatprep.mubr.bf16.mxu0 %v890
        %3552 = vmatmul.mubr.bf16.gmra.mrb[0].mxu0 %v882
        %v3553 = vpop.f32.mrb[0].mxu0
        %v3554 = vadd.f32 %v854, %v3553
        %v3555 = vpop.f32.mrb[0].mxu0
        %v3556 = vadd.f32 %v858, %v3555
        %v3557 = vpop.f32.mrb[0].mxu0
        %v3558 = vpop.f32.mrb[0].mxu0
        %3559 = vdwg.mxu0
        %3560 = vmatprep.subr.bf16.mxu0 %v2560
        %3561 = vmatpush1.bf16.msra.mxu0 %v2559
        %3562 = vmatprep.subr.bf16.mxu0 %v2564
        %3563 = vmatpush1.bf16.msra.mxu0 %v2563
        %3564 = vmatprep.subr.bf16.mxu0 %v2568
        %3565 = vmatpush1.bf16.msra.mxu0 %v2567
        %3566 = vmatprep.subr.bf16.mxu0 %v2572
        %3567 = vmatpush1.bf16.msra.mxu0 %v2571
        %3568 = vmatprep.subr.bf16.mxu0 %v2576
        %3569 = vmatpush1.bf16.msra.mxu0 %v2575
        %3570 = vmatprep.subr.bf16.mxu0 %v2580
        %3571 = vmatpush1.bf16.msra.mxu0 %v2579
        %3572 = vmatprep.subr.bf16.mxu0 %v2584
        %3573 = vmatpush1.bf16.msra.mxu0 %v2583
        %3574 = vmatprep.subr.bf16.mxu0 %v2588
        %3575 = vmatpush1.bf16.msra.mxu0 %v2587
        %3576 = vmatprep.subr.bf16.mxu0 %v2592
        %3577 = vmatpush1.bf16.msra.mxu0 %v2591
        %3578 = vmatprep.subr.bf16.mxu0 %v2596
        %3579 = vmatpush1.bf16.msra.mxu0 %v2595
        %3580 = vmatprep.subr.bf16.mxu0 %v2600
        %3581 = vmatpush1.bf16.msra.mxu0 %v2599
        %3582 = vmatprep.subr.bf16.mxu0 %v2604
        %3583 = vmatpush1.bf16.msra.mxu0 %v2603
        %3584 = vmatprep.subr.bf16.mxu0 %v2608
        %3585 = vmatpush1.bf16.msra.mxu0 %v2607
        %3586 = vmatprep.subr.bf16.mxu0 %v2612
        %3587 = vmatpush1.bf16.msra.mxu0 %v2611
        %3588 = vmatprep.subr.bf16.mxu0 %v2616
        %3589 = vmatpush1.bf16.msra.mxu0 %v2615
        %3590 = vmatprep.subr.bf16.mxu0 %v2620
        %3591 = vmatpush1.bf16.msra.mxu0 %v2619
        %3592 = vmatprep.mubr.bf16.mxu0 %v891
        %3593 = vmatmul.mubr.bf16.gmra.mrb[0].mxu0 %v889
        %v3594 = vpop.f32.mrb[0].mxu0
        %v3595 = vadd.f32 %v3554, %v3594
        %v3596 = vpop.f32.mrb[0].mxu0
        %v3597 = vadd.f32 %v3556, %v3596
        %v3598 = vpop.f32.mrb[0].mxu0
        %v3599 = vpop.f32.mrb[0].mxu0
        %3600 = vdwg.mxu0
        %3601 = vmatprep.subr.bf16.mxu0 %v2624
        %3602 = vmatpush1.bf16.msra.mxu0 %v2623
        %3603 = vmatprep.subr.bf16.mxu0 %v2628
        %3604 = vmatpush1.bf16.msra.mxu0 %v2627
        %3605 = vmatprep.subr.bf16.mxu0 %v2632
        %3606 = vmatpush1.bf16.msra.mxu0 %v2631
        %3607 = vmatprep.subr.bf16.mxu0 %v2636
        %3608 = vmatpush1.bf16.msra.mxu0 %v2635
        %3609 = vmatprep.subr.bf16.mxu0 %v2640
        %3610 = vmatpush1.bf16.msra.mxu0 %v2639
        %3611 = vmatprep.subr.bf16.mxu0 %v2644
        %3612 = vmatpush1.bf16.msra.mxu0 %v2643
        %3613 = vmatprep.subr.bf16.mxu0 %v2648
        %3614 = vmatpush1.bf16.msra.mxu0 %v2647
        %3615 = vmatprep.subr.bf16.mxu0 %v2652
        %3616 = vmatpush1.bf16.msra.mxu0 %v2651
        %3617 = vmatprep.subr.bf16.mxu0 %v2656
        %3618 = vmatpush1.bf16.msra.mxu0 %v2655
        %3619 = vmatprep.subr.bf16.mxu0 %v2660
        %3620 = vmatpush1.bf16.msra.mxu0 %v2659
        %3621 = vmatprep.subr.bf16.mxu0 %v2664
        %3622 = vmatpush1.bf16.msra.mxu0 %v2663
        %3623 = vmatprep.subr.bf16.mxu0 %v2668
        %3624 = vmatpush1.bf16.msra.mxu0 %v2667
        %3625 = vmatprep.subr.bf16.mxu0 %v2672
        %3626 = vmatpush1.bf16.msra.mxu0 %v2671
        %3627 = vmatprep.subr.bf16.mxu0 %v2676
        %3628 = vmatpush1.bf16.msra.mxu0 %v2675
        %3629 = vmatprep.subr.bf16.mxu0 %v2680
        %3630 = vmatpush1.bf16.msra.mxu0 %v2679
        %3631 = vmatprep.subr.bf16.mxu0 %v2684
        %3632 = vmatpush1.bf16.msra.mxu0 %v2683
        %3633 = vmatprep.mubr.bf16.mxu0 %v907
        %3634 = vmatmul.mubr.bf16.gmra.mrb[0].mxu0 %v899
        %v3635 = vpop.f32.mrb[0].mxu0
        %v3636 = vadd.f32 %v3595, %v3635
        %v3637 = vpop.f32.mrb[0].mxu0
        %v3638 = vadd.f32 %v3597, %v3637
        %v3639 = vpop.f32.mrb[0].mxu0
        %v3640 = vpop.f32.mrb[0].mxu0
        %3641 = vdwg.mxu0
        %3642 = vmatprep.subr.bf16.mxu0 %v2688
        %3643 = vmatpush1.bf16.msra.mxu0 %v2687
        %3644 = vmatprep.subr.bf16.mxu0 %v2692
        %3645 = vmatpush1.bf16.msra.mxu0 %v2691
        %3646 = vmatprep.subr.bf16.mxu0 %v2696
        %3647 = vmatpush1.bf16.msra.mxu0 %v2695
        %3648 = vmatprep.subr.bf16.mxu0 %v2700
        %3649 = vmatpush1.bf16.msra.mxu0 %v2699
        %3650 = vmatprep.subr.bf16.mxu0 %v2704
        %3651 = vmatpush1.bf16.msra.mxu0 %v2703
        %3652 = vmatprep.subr.bf16.mxu0 %v2708
        %3653 = vmatpush1.bf16.msra.mxu0 %v2707
        %3654 = vmatprep.subr.bf16.mxu0 %v2712
        %3655 = vmatpush1.bf16.msra.mxu0 %v2711
        %3656 = vmatprep.subr.bf16.mxu0 %v2716
        %3657 = vmatpush1.bf16.msra.mxu0 %v2715
        %3658 = vmatprep.subr.bf16.mxu0 %v2720
        %3659 = vmatpush1.bf16.msra.mxu0 %v2719
        %3660 = vmatprep.subr.bf16.mxu0 %v2724
        %3661 = vmatpush1.bf16.msra.mxu0 %v2723
        %3662 = vmatprep.subr.bf16.mxu0 %v2728
        %3663 = vmatpush1.bf16.msra.mxu0 %v2727
        %3664 = vmatprep.subr.bf16.mxu0 %v2732
        %3665 = vmatpush1.bf16.msra.mxu0 %v2731
        %3666 = vmatprep.subr.bf16.mxu0 %v2736
        %3667 = vmatpush1.bf16.msra.mxu0 %v2735
        %3668 = vmatprep.subr.bf16.mxu0 %v2740
        %3669 = vmatpush1.bf16.msra.mxu0 %v2739
        %3670 = vmatprep.subr.bf16.mxu0 %v2744
        %3671 = vmatpush1.bf16.msra.mxu0 %v2743
        %3672 = vmatprep.subr.bf16.mxu0 %v2748
        %3673 = vmatpush1.bf16.msra.mxu0 %v2747
        %3674 = vmatprep.mubr.bf16.mxu0 %v908
        %3675 = vmatmul.mubr.bf16.gmra.mrb[0].mxu0 %v906
        %v3676 = vpop.f32.mrb[0].mxu0
        %v3677 = vadd.f32 %v3636, %v3676
        %v3678 = vpop.f32.mrb[0].mxu0
        %v3679 = vadd.f32 %v3638, %v3678
        %v3680 = vpop.f32.mrb[0].mxu0
        %v3681 = vpop.f32.mrb[0].mxu0
        %3682 = vdwg.mxu0
        %3683 = vmatprep.subr.bf16.mxu0 %v2752
        %3684 = vmatpush1.bf16.msra.mxu0 %v2751
        %3685 = vmatprep.subr.bf16.mxu0 %v2756
        %3686 = vmatpush1.bf16.msra.mxu0 %v2755
        %3687 = vmatprep.subr.bf16.mxu0 %v2760
        %3688 = vmatpush1.bf16.msra.mxu0 %v2759
        %3689 = vmatprep.subr.bf16.mxu0 %v2764
        %3690 = vmatpush1.bf16.msra.mxu0 %v2763
        %3691 = vmatprep.subr.bf16.mxu0 %v2768
        %3692 = vmatpush1.bf16.msra.mxu0 %v2767
        %3693 = vmatprep.subr.bf16.mxu0 %v2772
        %3694 = vmatpush1.bf16.msra.mxu0 %v2771
        %3695 = vmatprep.subr.bf16.mxu0 %v2776
        %3696 = vmatpush1.bf16.msra.mxu0 %v2775
        %3697 = vmatprep.subr.bf16.mxu0 %v2780
        %3698 = vmatpush1.bf16.msra.mxu0 %v2779
        %3699 = vmatprep.subr.bf16.mxu0 %v2784
        %3700 = vmatpush1.bf16.msra.mxu0 %v2783
        %3701 = vmatprep.subr.bf16.mxu0 %v2788
        %3702 = vmatpush1.bf16.msra.mxu0 %v2787
        %3703 = vmatprep.subr.bf16.mxu0 %v2792
        %3704 = vmatpush1.bf16.msra.mxu0 %v2791
        %3705 = vmatprep.subr.bf16.mxu0 %v2796
        %3706 = vmatpush1.bf16.msra.mxu0 %v2795
        %3707 = vmatprep.subr.bf16.mxu0 %v2800
        %3708 = vmatpush1.bf16.msra.mxu0 %v2799
        %3709 = vmatprep.subr.bf16.mxu0 %v2804
        %3710 = vmatpush1.bf16.msra.mxu0 %v2803
        %3711 = vmatprep.subr.bf16.mxu0 %v2808
        %3712 = vmatpush1.bf16.msra.mxu0 %v2807
        %3713 = vmatprep.subr.bf16.mxu0 %v2812
        %3714 = vmatpush1.bf16.msra.mxu0 %v2811
        %3715 = vmatprep.mubr.bf16.mxu0 %v924
        %3716 = vmatmul.mubr.bf16.gmra.mrb[0].mxu0 %v916
        %v3717 = vpop.f32.mrb[0].mxu0
        %v3718 = vadd.f32 %v3677, %v3717
        %v3719 = vpop.f32.mrb[0].mxu0
        %v3720 = vadd.f32 %v3679, %v3719
        %v3721 = vpop.f32.mrb[0].mxu0
        %v3722 = vpop.f32.mrb[0].mxu0
        %3723 = vdwg.mxu0
        %3724 = vmatprep.subr.bf16.mxu0 %v2816
        %3725 = vmatpush1.bf16.msra.mxu0 %v2815
        %3726 = vmatprep.subr.bf16.mxu0 %v2820
        %3727 = vmatpush1.bf16.msra.mxu0 %v2819
        %3728 = vmatprep.subr.bf16.mxu0 %v2824
        %3729 = vmatpush1.bf16.msra.mxu0 %v2823
        %3730 = vmatprep.subr.bf16.mxu0 %v2828
        %3731 = vmatpush1.bf16.msra.mxu0 %v2827
        %3732 = vmatprep.subr.bf16.mxu0 %v2832
        %3733 = vmatpush1.bf16.msra.mxu0 %v2831
        %3734 = vmatprep.subr.bf16.mxu0 %v2836
        %3735 = vmatpush1.bf16.msra.mxu0 %v2835
        %3736 = vmatprep.subr.bf16.mxu0 %v2840
        %3737 = vmatpush1.bf16.msra.mxu0 %v2839
        %3738 = vmatprep.subr.bf16.mxu0 %v2844
        %3739 = vmatpush1.bf16.msra.mxu0 %v2843
        %3740 = vmatprep.subr.bf16.mxu0 %v2848
        %3741 = vmatpush1.bf16.msra.mxu0 %v2847
        %3742 = vmatprep.subr.bf16.mxu0 %v2852
        %3743 = vmatpush1.bf16.msra.mxu0 %v2851
        %3744 = vmatprep.subr.bf16.mxu0 %v2856
        %3745 = vmatpush1.bf16.msra.mxu0 %v2855
        %3746 = vmatprep.subr.bf16.mxu0 %v2860
        %3747 = vmatpush1.bf16.msra.mxu0 %v2859
        %3748 = vmatprep.subr.bf16.mxu0 %v2864
        %3749 = vmatpush1.bf16.msra.mxu0 %v2863
        %3750 = vmatprep.subr.bf16.mxu0 %v2868
        %3751 = vmatpush1.bf16.msra.mxu0 %v2867
        %3752 = vmatprep.subr.bf16.mxu0 %v2872
        %3753 = vmatpush1.bf16.msra.mxu0 %v2871
        %3754 = vmatprep.subr.bf16.mxu0 %v2876
        %3755 = vmatpush1.bf16.msra.mxu0 %v2875
        %3756 = vmatprep.mubr.bf16.mxu0 %v925
        %3757 = vmatmul.mubr.bf16.gmra.mrb[0].mxu0 %v923
        %v3758 = vpop.f32.mrb[0].mxu0
        %v3759 = vadd.f32 %v3718, %v3758
        %v3760 = vpop.f32.mrb[0].mxu0
        %v3761 = vadd.f32 %v3720, %v3760
        %v3762 = vpop.f32.mrb[0].mxu0
        %v3763 = vpop.f32.mrb[0].mxu0
        %3764 = vdwg.mxu0
        %3765 = vmatprep.subr.bf16.mxu0 %v2880
        %3766 = vmatpush1.bf16.msra.mxu0 %v2879
        %3767 = vmatprep.subr.bf16.mxu0 %v2884
        %3768 = vmatpush1.bf16.msra.mxu0 %v2883
        %3769 = vmatprep.subr.bf16.mxu0 %v2888
        %3770 = vmatpush1.bf16.msra.mxu0 %v2887
        %3771 = vmatprep.subr.bf16.mxu0 %v2892
        %3772 = vmatpush1.bf16.msra.mxu0 %v2891
        %3773 = vmatprep.subr.bf16.mxu0 %v2896
        %3774 = vmatpush1.bf16.msra.mxu0 %v2895
        %3775 = vmatprep.subr.bf16.mxu0 %v2900
        %3776 = vmatpush1.bf16.msra.mxu0 %v2899
        %3777 = vmatprep.subr.bf16.mxu0 %v2904
        %3778 = vmatpush1.bf16.msra.mxu0 %v2903
        %3779 = vmatprep.subr.bf16.mxu0 %v2908
        %3780 = vmatpush1.bf16.msra.mxu0 %v2907
        %3781 = vmatprep.subr.bf16.mxu0 %v2912
        %3782 = vmatpush1.bf16.msra.mxu0 %v2911
        %3783 = vmatprep.subr.bf16.mxu0 %v2916
        %3784 = vmatpush1.bf16.msra.mxu0 %v2915
        %3785 = vmatprep.subr.bf16.mxu0 %v2920
        %3786 = vmatpush1.bf16.msra.mxu0 %v2919
        %3787 = vmatprep.subr.bf16.mxu0 %v2924
        %3788 = vmatpush1.bf16.msra.mxu0 %v2923
        %3789 = vmatprep.subr.bf16.mxu0 %v2928
        %3790 = vmatpush1.bf16.msra.mxu0 %v2927
        %3791 = vmatprep.subr.bf16.mxu0 %v2932
        %3792 = vmatpush1.bf16.msra.mxu0 %v2931
        %3793 = vmatprep.subr.bf16.mxu0 %v2936
        %3794 = vmatpush1.bf16.msra.mxu0 %v2935
        %3795 = vmatprep.subr.bf16.mxu0 %v2940
        %3796 = vmatpush1.bf16.msra.mxu0 %v2939
        %3797 = vmatprep.mubr.bf16.mxu0 %v941
        %3798 = vmatmul.mubr.bf16.gmra.mrb[0].mxu0 %v933
        %v3799 = vpop.f32.mrb[0].mxu0
        %v3800 = vadd.f32 %v3759, %v3799
        %v3801 = vpop.f32.mrb[0].mxu0
        %v3802 = vadd.f32 %v3761, %v3801
        %v3803 = vpop.f32.mrb[0].mxu0
        %v3804 = vpop.f32.mrb[0].mxu0
        %3805 = vdwg.mxu0
        %3806 = vmatprep.subr.bf16.mxu0 %v2944
        %3807 = vmatpush1.bf16.msra.mxu0 %v2943
        %3808 = vmatprep.subr.bf16.mxu0 %v2948
        %3809 = vmatpush1.bf16.msra.mxu0 %v2947
        %3810 = vmatprep.subr.bf16.mxu0 %v2952
        %3811 = vmatpush1.bf16.msra.mxu0 %v2951
        %3812 = vmatprep.subr.bf16.mxu0 %v2956
        %3813 = vmatpush1.bf16.msra.mxu0 %v2955
        %3814 = vmatprep.subr.bf16.mxu0 %v2960
        %3815 = vmatpush1.bf16.msra.mxu0 %v2959
        %3816 = vmatprep.subr.bf16.mxu0 %v2964
        %3817 = vmatpush1.bf16.msra.mxu0 %v2963
        %3818 = vmatprep.subr.bf16.mxu0 %v2968
        %3819 = vmatpush1.bf16.msra.mxu0 %v2967
        %3820 = vmatprep.subr.bf16.mxu0 %v2972
        %3821 = vmatpush1.bf16.msra.mxu0 %v2971
        %3822 = vmatprep.subr.bf16.mxu0 %v2976
        %3823 = vmatpush1.bf16.msra.mxu0 %v2975
        %3824 = vmatprep.subr.bf16.mxu0 %v2980
        %3825 = vmatpush1.bf16.msra.mxu0 %v2979
        %3826 = vmatprep.subr.bf16.mxu0 %v2984
        %3827 = vmatpush1.bf16.msra.mxu0 %v2983
        %3828 = vmatprep.subr.bf16.mxu0 %v2988
        %3829 = vmatpush1.bf16.msra.mxu0 %v2987
        %3830 = vmatprep.subr.bf16.mxu0 %v2992
        %3831 = vmatpush1.bf16.msra.mxu0 %v2991
        %3832 = vmatprep.subr.bf16.mxu0 %v2996
        %3833 = vmatpush1.bf16.msra.mxu0 %v2995
        %3834 = vmatprep.subr.bf16.mxu0 %v3000
        %3835 = vmatpush1.bf16.msra.mxu0 %v2999
        %3836 = vmatprep.subr.bf16.mxu0 %v3004
        %3837 = vmatpush1.bf16.msra.mxu0 %v3003
        %3838 = vmatprep.mubr.bf16.mxu0 %v942
        %3839 = vmatmul.mubr.bf16.gmra.mrb[0].mxu0 %v940
        %v3840 = vpop.f32.mrb[0].mxu0
        %v3841 = vadd.f32 %v3800, %v3840
        %v3842 = vpop.f32.mrb[0].mxu0
        %v3843 = vadd.f32 %v3802, %v3842
        %v3844 = vpop.f32.mrb[0].mxu0
        %v3845 = vpop.f32.mrb[0].mxu0
        %3846 = vdwg.mxu0
        %3847 = vmatprep.subr.bf16.mxu0 %v2498
        %3848 = vmatpush1.bf16.msra.mxu0 %v2497
        %3849 = vmatprep.subr.bf16.mxu0 %v2502
        %3850 = vmatpush1.bf16.msra.mxu0 %v2501
        %3851 = vmatprep.subr.bf16.mxu0 %v2506
        %3852 = vmatpush1.bf16.msra.mxu0 %v2505
        %3853 = vmatprep.subr.bf16.mxu0 %v2510
        %3854 = vmatpush1.bf16.msra.mxu0 %v2509
        %3855 = vmatprep.subr.bf16.mxu0 %v2514
        %3856 = vmatpush1.bf16.msra.mxu0 %v2513
        %3857 = vmatprep.subr.bf16.mxu0 %v2518
        %3858 = vmatpush1.bf16.msra.mxu0 %v2517
        %3859 = vmatprep.subr.bf16.mxu0 %v2522
        %3860 = vmatpush1.bf16.msra.mxu0 %v2521
        %3861 = vmatprep.subr.bf16.mxu0 %v2526
        %3862 = vmatpush1.bf16.msra.mxu0 %v2525
        %3863 = vmatprep.subr.bf16.mxu0 %v2530
        %3864 = vmatpush1.bf16.msra.mxu0 %v2529
        %3865 = vmatprep.subr.bf16.mxu0 %v2534
        %3866 = vmatpush1.bf16.msra.mxu0 %v2533
        %3867 = vmatprep.subr.bf16.mxu0 %v2538
        %3868 = vmatpush1.bf16.msra.mxu0 %v2537
        %3869 = vmatprep.subr.bf16.mxu0 %v2542
        %3870 = vmatpush1.bf16.msra.mxu0 %v2541
        %3871 = vmatprep.subr.bf16.mxu0 %v2546
        %3872 = vmatpush1.bf16.msra.mxu0 %v2545
        %3873 = vmatprep.subr.bf16.mxu0 %v2550
        %3874 = vmatpush1.bf16.msra.mxu0 %v2549
        %3875 = vmatprep.subr.bf16.mxu0 %v2554
        %3876 = vmatpush1.bf16.msra.mxu0 %v2553
        %3877 = vmatprep.subr.bf16.mxu0 %v2558
        %3878 = vmatpush1.bf16.msra.mxu0 %v2557
        %3879 = vmatprep.mubr.bf16.mxu0 %v890
        %3880 = vmatmul.mubr.bf16.gmra.mrb[0].mxu0 %v882
        %v3881 = vpop.f32.mrb[0].mxu0
        %v3882 = vadd.f32 %v862, %v3881
        %v3883 = vpop.f32.mrb[0].mxu0
        %v3884 = vadd.f32 %v866, %v3883
        %v3885 = vpop.f32.mrb[0].mxu0
        %v3886 = vpop.f32.mrb[0].mxu0
        %3887 = vdwg.mxu0
        %3888 = vmatprep.subr.bf16.mxu0 %v2562
        %3889 = vmatpush1.bf16.msra.mxu0 %v2561
        %3890 = vmatprep.subr.bf16.mxu0 %v2566
        %3891 = vmatpush1.bf16.msra.mxu0 %v2565
        %3892 = vmatprep.subr.bf16.mxu0 %v2570
        %3893 = vmatpush1.bf16.msra.mxu0 %v2569
        %3894 = vmatprep.subr.bf16.mxu0 %v2574
        %3895 = vmatpush1.bf16.msra.mxu0 %v2573
        %3896 = vmatprep.subr.bf16.mxu0 %v2578
        %3897 = vmatpush1.bf16.msra.mxu0 %v2577
        %3898 = vmatprep.subr.bf16.mxu0 %v2582
        %3899 = vmatpush1.bf16.msra.mxu0 %v2581
        %3900 = vmatprep.subr.bf16.mxu0 %v2586
        %3901 = vmatpush1.bf16.msra.mxu0 %v2585
        %3902 = vmatprep.subr.bf16.mxu0 %v2590
        %3903 = vmatpush1.bf16.msra.mxu0 %v2589
        %3904 = vmatprep.subr.bf16.mxu0 %v2594
        %3905 = vmatpush1.bf16.msra.mxu0 %v2593
        %3906 = vmatprep.subr.bf16.mxu0 %v2598
        %3907 = vmatpush1.bf16.msra.mxu0 %v2597
        %3908 = vmatprep.subr.bf16.mxu0 %v2602
        %3909 = vmatpush1.bf16.msra.mxu0 %v2601
        %3910 = vmatprep.subr.bf16.mxu0 %v2606
        %3911 = vmatpush1.bf16.msra.mxu0 %v2605
        %3912 = vmatprep.subr.bf16.mxu0 %v2610
        %3913 = vmatpush1.bf16.msra.mxu0 %v2609
        %3914 = vmatprep.subr.bf16.mxu0 %v2614
        %3915 = vmatpush1.bf16.msra.mxu0 %v2613
        %3916 = vmatprep.subr.bf16.mxu0 %v2618
        %3917 = vmatpush1.bf16.msra.mxu0 %v2617
        %3918 = vmatprep.subr.bf16.mxu0 %v2622
        %3919 = vmatpush1.bf16.msra.mxu0 %v2621
        %3920 = vmatprep.mubr.bf16.mxu0 %v891
        %3921 = vmatmul.mubr.bf16.gmra.mrb[0].mxu0 %v889
        %v3922 = vpop.f32.mrb[0].mxu0
        %v3923 = vadd.f32 %v3882, %v3922
        %v3924 = vpop.f32.mrb[0].mxu0
        %v3925 = vadd.f32 %v3884, %v3924
        %v3926 = vpop.f32.mrb[0].mxu0
        %v3927 = vpop.f32.mrb[0].mxu0
        %3928 = vdwg.mxu0
        %3929 = vmatprep.subr.bf16.mxu0 %v2626
        %3930 = vmatpush1.bf16.msra.mxu0 %v2625
        %3931 = vmatprep.subr.bf16.mxu0 %v2630
        %3932 = vmatpush1.bf16.msra.mxu0 %v2629
        %3933 = vmatprep.subr.bf16.mxu0 %v2634
        %3934 = vmatpush1.bf16.msra.mxu0 %v2633
        %3935 = vmatprep.subr.bf16.mxu0 %v2638
        %3936 = vmatpush1.bf16.msra.mxu0 %v2637
        %3937 = vmatprep.subr.bf16.mxu0 %v2642
        %3938 = vmatpush1.bf16.msra.mxu0 %v2641
        %3939 = vmatprep.subr.bf16.mxu0 %v2646
        %3940 = vmatpush1.bf16.msra.mxu0 %v2645
        %3941 = vmatprep.subr.bf16.mxu0 %v2650
        %3942 = vmatpush1.bf16.msra.mxu0 %v2649
        %3943 = vmatprep.subr.bf16.mxu0 %v2654
        %3944 = vmatpush1.bf16.msra.mxu0 %v2653
        %3945 = vmatprep.subr.bf16.mxu0 %v2658
        %3946 = vmatpush1.bf16.msra.mxu0 %v2657
        %3947 = vmatprep.subr.bf16.mxu0 %v2662
        %3948 = vmatpush1.bf16.msra.mxu0 %v2661
        %3949 = vmatprep.subr.bf16.mxu0 %v2666
        %3950 = vmatpush1.bf16.msra.mxu0 %v2665
        %3951 = vmatprep.subr.bf16.mxu0 %v2670
        %3952 = vmatpush1.bf16.msra.mxu0 %v2669
        %3953 = vmatprep.subr.bf16.mxu0 %v2674
        %3954 = vmatpush1.bf16.msra.mxu0 %v2673
        %3955 = vmatprep.subr.bf16.mxu0 %v2678
        %3956 = vmatpush1.bf16.msra.mxu0 %v2677
        %3957 = vmatprep.subr.bf16.mxu0 %v2682
        %3958 = vmatpush1.bf16.msra.mxu0 %v2681
        %3959 = vmatprep.subr.bf16.mxu0 %v2686
        %3960 = vmatpush1.bf16.msra.mxu0 %v2685
        %3961 = vmatprep.mubr.bf16.mxu0 %v907
        %3962 = vmatmul.mubr.bf16.gmra.mrb[0].mxu0 %v899
        %v3963 = vpop.f32.mrb[0].mxu0
        %v3964 = vadd.f32 %v3923, %v3963
        %v3965 = vpop.f32.mrb[0].mxu0
        %v3966 = vadd.f32 %v3925, %v3965
        %v3967 = vpop.f32.mrb[0].mxu0
        %v3968 = vpop.f32.mrb[0].mxu0
        %3969 = vdwg.mxu0
        %3970 = vmatprep.subr.bf16.mxu0 %v2690
        %3971 = vmatpush1.bf16.msra.mxu0 %v2689
        %3972 = vmatprep.subr.bf16.mxu0 %v2694
        %3973 = vmatpush1.bf16.msra.mxu0 %v2693
        %3974 = vmatprep.subr.bf16.mxu0 %v2698
        %3975 = vmatpush1.bf16.msra.mxu0 %v2697
        %3976 = vmatprep.subr.bf16.mxu0 %v2702
        %3977 = vmatpush1.bf16.msra.mxu0 %v2701
        %3978 = vmatprep.subr.bf16.mxu0 %v2706
        %3979 = vmatpush1.bf16.msra.mxu0 %v2705
        %3980 = vmatprep.subr.bf16.mxu0 %v2710
        %3981 = vmatpush1.bf16.msra.mxu0 %v2709
        %3982 = vmatprep.subr.bf16.mxu0 %v2714
        %3983 = vmatpush1.bf16.msra.mxu0 %v2713
        %3984 = vmatprep.subr.bf16.mxu0 %v2718
        %3985 = vmatpush1.bf16.msra.mxu0 %v2717
        %3986 = vmatprep.subr.bf16.mxu0 %v2722
        %3987 = vmatpush1.bf16.msra.mxu0 %v2721
        %3988 = vmatprep.subr.bf16.mxu0 %v2726
        %3989 = vmatpush1.bf16.msra.mxu0 %v2725
        %3990 = vmatprep.subr.bf16.mxu0 %v2730
        %3991 = vmatpush1.bf16.msra.mxu0 %v2729
        %3992 = vmatprep.subr.bf16.mxu0 %v2734
        %3993 = vmatpush1.bf16.msra.mxu0 %v2733
        %3994 = vmatprep.subr.bf16.mxu0 %v2738
        %3995 = vmatpush1.bf16.msra.mxu0 %v2737
        %3996 = vmatprep.subr.bf16.mxu0 %v2742
        %3997 = vmatpush1.bf16.msra.mxu0 %v2741
        %3998 = vmatprep.subr.bf16.mxu0 %v2746
        %3999 = vmatpush1.bf16.msra.mxu0 %v2745
        %4000 = vmatprep.subr.bf16.mxu0 %v2750
        %4001 = vmatpush1.bf16.msra.mxu0 %v2749
        %4002 = vmatprep.mubr.bf16.mxu0 %v908
        %4003 = vmatmul.mubr.bf16.gmra.mrb[0].mxu0 %v906
        %v4004 = vpop.f32.mrb[0].mxu0
        %v4005 = vadd.f32 %v3964, %v4004
        %v4006 = vpop.f32.mrb[0].mxu0
        %v4007 = vadd.f32 %v3966, %v4006
        %v4008 = vpop.f32.mrb[0].mxu0
        %v4009 = vpop.f32.mrb[0].mxu0
        %4010 = vdwg.mxu0
        %4011 = vmatprep.subr.bf16.mxu0 %v2754
        %4012 = vmatpush1.bf16.msra.mxu0 %v2753
        %4013 = vmatprep.subr.bf16.mxu0 %v2758
        %4014 = vmatpush1.bf16.msra.mxu0 %v2757
        %4015 = vmatprep.subr.bf16.mxu0 %v2762
        %4016 = vmatpush1.bf16.msra.mxu0 %v2761
        %4017 = vmatprep.subr.bf16.mxu0 %v2766
        %4018 = vmatpush1.bf16.msra.mxu0 %v2765
        %4019 = vmatprep.subr.bf16.mxu0 %v2770
        %4020 = vmatpush1.bf16.msra.mxu0 %v2769
        %4021 = vmatprep.subr.bf16.mxu0 %v2774
        %4022 = vmatpush1.bf16.msra.mxu0 %v2773
        %4023 = vmatprep.subr.bf16.mxu0 %v2778
        %4024 = vmatpush1.bf16.msra.mxu0 %v2777
        %4025 = vmatprep.subr.bf16.mxu0 %v2782
        %4026 = vmatpush1.bf16.msra.mxu0 %v2781
        %4027 = vmatprep.subr.bf16.mxu0 %v2786
        %4028 = vmatpush1.bf16.msra.mxu0 %v2785
        %4029 = vmatprep.subr.bf16.mxu0 %v2790
        %4030 = vmatpush1.bf16.msra.mxu0 %v2789
        %4031 = vmatprep.subr.bf16.mxu0 %v2794
        %4032 = vmatpush1.bf16.msra.mxu0 %v2793
        %4033 = vmatprep.subr.bf16.mxu0 %v2798
        %4034 = vmatpush1.bf16.msra.mxu0 %v2797
        %4035 = vmatprep.subr.bf16.mxu0 %v2802
        %4036 = vmatpush1.bf16.msra.mxu0 %v2801
        %4037 = vmatprep.subr.bf16.mxu0 %v2806
        %4038 = vmatpush1.bf16.msra.mxu0 %v2805
        %4039 = vmatprep.subr.bf16.mxu0 %v2810
        %4040 = vmatpush1.bf16.msra.mxu0 %v2809
        %4041 = vmatprep.subr.bf16.mxu0 %v2814
        %4042 = vmatpush1.bf16.msra.mxu0 %v2813
        %4043 = vmatprep.mubr.bf16.mxu0 %v924
        %4044 = vmatmul.mubr.bf16.gmra.mrb[0].mxu0 %v916
        %v4045 = vpop.f32.mrb[0].mxu0
        %v4046 = vadd.f32 %v4005, %v4045
        %v4047 = vpop.f32.mrb[0].mxu0
        %v4048 = vadd.f32 %v4007, %v4047
        %v4049 = vpop.f32.mrb[0].mxu0
        %v4050 = vpop.f32.mrb[0].mxu0
        %4051 = vdwg.mxu0
        %4052 = vmatprep.subr.bf16.mxu0 %v2818
        %4053 = vmatpush1.bf16.msra.mxu0 %v2817
        %4054 = vmatprep.subr.bf16.mxu0 %v2822
        %4055 = vmatpush1.bf16.msra.mxu0 %v2821
        %4056 = vmatprep.subr.bf16.mxu0 %v2826
        %4057 = vmatpush1.bf16.msra.mxu0 %v2825
        %4058 = vmatprep.subr.bf16.mxu0 %v2830
        %4059 = vmatpush1.bf16.msra.mxu0 %v2829
        %4060 = vmatprep.subr.bf16.mxu0 %v2834
        %4061 = vmatpush1.bf16.msra.mxu0 %v2833
        %4062 = vmatprep.subr.bf16.mxu0 %v2838
        %4063 = vmatpush1.bf16.msra.mxu0 %v2837
        %4064 = vmatprep.subr.bf16.mxu0 %v2842
        %4065 = vmatpush1.bf16.msra.mxu0 %v2841
        %4066 = vmatprep.subr.bf16.mxu0 %v2846
        %4067 = vmatpush1.bf16.msra.mxu0 %v2845
        %4068 = vmatprep.subr.bf16.mxu0 %v2850
        %4069 = vmatpush1.bf16.msra.mxu0 %v2849
        %4070 = vmatprep.subr.bf16.mxu0 %v2854
        %4071 = vmatpush1.bf16.msra.mxu0 %v2853
        %4072 = vmatprep.subr.bf16.mxu0 %v2858
        %4073 = vmatpush1.bf16.msra.mxu0 %v2857
        %4074 = vmatprep.subr.bf16.mxu0 %v2862
        %4075 = vmatpush1.bf16.msra.mxu0 %v2861
        %4076 = vmatprep.subr.bf16.mxu0 %v2866
        %4077 = vmatpush1.bf16.msra.mxu0 %v2865
        %4078 = vmatprep.subr.bf16.mxu0 %v2870
        %4079 = vmatpush1.bf16.msra.mxu0 %v2869
        %4080 = vmatprep.subr.bf16.mxu0 %v2874
        %4081 = vmatpush1.bf16.msra.mxu0 %v2873
        %4082 = vmatprep.subr.bf16.mxu0 %v2878
        %4083 = vmatpush1.bf16.msra.mxu0 %v2877
        %4084 = vmatprep.mubr.bf16.mxu0 %v925
        %4085 = vmatmul.mubr.bf16.gmra.mrb[0].mxu0 %v923
        %v4086 = vpop.f32.mrb[0].mxu0
        %v4087 = vadd.f32 %v4046, %v4086
        %v4088 = vpop.f32.mrb[0].mxu0
        %v4089 = vadd.f32 %v4048, %v4088
        %v4090 = vpop.f32.mrb[0].mxu0
        %v4091 = vpop.f32.mrb[0].mxu0
        %4092 = vdwg.mxu0
        %4093 = vmatprep.subr.bf16.mxu0 %v2882
        %4094 = vmatpush1.bf16.msra.mxu0 %v2881
        %4095 = vmatprep.subr.bf16.mxu0 %v2886
        %4096 = vmatpush1.bf16.msra.mxu0 %v2885
        %4097 = vmatprep.subr.bf16.mxu0 %v2890
        %4098 = vmatpush1.bf16.msra.mxu0 %v2889
        %4099 = vmatprep.subr.bf16.mxu0 %v2894
        %4100 = vmatpush1.bf16.msra.mxu0 %v2893
        %4101 = vmatprep.subr.bf16.mxu0 %v2898
        %4102 = vmatpush1.bf16.msra.mxu0 %v2897
        %4103 = vmatprep.subr.bf16.mxu0 %v2902
        %4104 = vmatpush1.bf16.msra.mxu0 %v2901
        %4105 = vmatprep.subr.bf16.mxu0 %v2906
        %4106 = vmatpush1.bf16.msra.mxu0 %v2905
        %4107 = vmatprep.subr.bf16.mxu0 %v2910
        %4108 = vmatpush1.bf16.msra.mxu0 %v2909
        %4109 = vmatprep.subr.bf16.mxu0 %v2914
        %4110 = vmatpush1.bf16.msra.mxu0 %v2913
        %4111 = vmatprep.subr.bf16.mxu0 %v2918
        %4112 = vmatpush1.bf16.msra.mxu0 %v2917
        %4113 = vmatprep.subr.bf16.mxu0 %v2922
        %4114 = vmatpush1.bf16.msra.mxu0 %v2921
        %4115 = vmatprep.subr.bf16.mxu0 %v2926
        %4116 = vmatpush1.bf16.msra.mxu0 %v2925
        %4117 = vmatprep.subr.bf16.mxu0 %v2930
        %4118 = vmatpush1.bf16.msra.mxu0 %v2929
        %4119 = vmatprep.subr.bf16.mxu0 %v2934
        %4120 = vmatpush1.bf16.msra.mxu0 %v2933
        %4121 = vmatprep.subr.bf16.mxu0 %v2938
        %4122 = vmatpush1.bf16.msra.mxu0 %v2937
        %4123 = vmatprep.subr.bf16.mxu0 %v2942
        %4124 = vmatpush1.bf16.msra.mxu0 %v2941
        %4125 = vmatprep.mubr.bf16.mxu0 %v941
        %4126 = vmatmul.mubr.bf16.gmra.mrb[0].mxu0 %v933
        %v4127 = vpop.f32.mrb[0].mxu0
        %v4128 = vadd.f32 %v4087, %v4127
        %v4129 = vpop.f32.mrb[0].mxu0
        %v4130 = vadd.f32 %v4089, %v4129
        %v4131 = vpop.f32.mrb[0].mxu0
        %v4132 = vpop.f32.mrb[0].mxu0
        %4133 = vdwg.mxu0
        %4134 = vmatprep.subr.bf16.mxu0 %v2946
        %4135 = vmatpush1.bf16.msra.mxu0 %v2945
        %4136 = vmatprep.subr.bf16.mxu0 %v2950
        %4137 = vmatpush1.bf16.msra.mxu0 %v2949
        %4138 = vmatprep.subr.bf16.mxu0 %v2954
        %4139 = vmatpush1.bf16.msra.mxu0 %v2953
        %4140 = vmatprep.subr.bf16.mxu0 %v2958
        %4141 = vmatpush1.bf16.msra.mxu0 %v2957
        %4142 = vmatprep.subr.bf16.mxu0 %v2962
        %4143 = vmatpush1.bf16.msra.mxu0 %v2961
        %4144 = vmatprep.subr.bf16.mxu0 %v2966
        %4145 = vmatpush1.bf16.msra.mxu0 %v2965
        %4146 = vmatprep.subr.bf16.mxu0 %v2970
        %4147 = vmatpush1.bf16.msra.mxu0 %v2969
        %4148 = vmatprep.subr.bf16.mxu0 %v2974
        %4149 = vmatpush1.bf16.msra.mxu0 %v2973
        %4150 = vmatprep.subr.bf16.mxu0 %v2978
        %4151 = vmatpush1.bf16.msra.mxu0 %v2977
        %4152 = vmatprep.subr.bf16.mxu0 %v2982
        %4153 = vmatpush1.bf16.msra.mxu0 %v2981
        %4154 = vmatprep.subr.bf16.mxu0 %v2986
        %4155 = vmatpush1.bf16.msra.mxu0 %v2985
        %4156 = vmatprep.subr.bf16.mxu0 %v2990
        %4157 = vmatpush1.bf16.msra.mxu0 %v2989
        %4158 = vmatprep.subr.bf16.mxu0 %v2994
        %4159 = vmatpush1.bf16.msra.mxu0 %v2993
        %4160 = vmatprep.subr.bf16.mxu0 %v2998
        %4161 = vmatpush1.bf16.msra.mxu0 %v2997
        %4162 = vmatprep.subr.bf16.mxu0 %v3002
        %4163 = vmatpush1.bf16.msra.mxu0 %v3001
        %4164 = vmatprep.subr.bf16.mxu0 %v3006
        %4165 = vmatpush1.bf16.msra.mxu0 %v3005
        %4166 = vmatprep.mubr.bf16.mxu0 %v942
        %4167 = vmatmul.mubr.bf16.gmra.mrb[0].mxu0 %v940
        %v4168 = vpop.f32.mrb[0].mxu0
        %v4169 = vadd.f32 %v4128, %v4168
        %v4170 = vpop.f32.mrb[0].mxu0
        %v4171 = vadd.f32 %v4130, %v4170
        %v4172 = vpop.f32.mrb[0].mxu0
        %v4173 = vpop.f32.mrb[0].mxu0
        %4174 = vdwg.mxu0
        %v4175 = vld [vmem:[%s3] sm:$0xf]
        %v4176 = vld [vmem:[%s3 + $0x4] sm:$0xf]
        %v4177 = vld [vmem:[%s3 + $0x8] sm:$0xf]
        %v4178 = vld [vmem:[%s3 + $0xc] sm:$0xf]
        %v4179 = vld [vmem:[%s3 + $0x10] sm:$0xf]
        %v4180 = vld [vmem:[%s3 + $0x14] sm:$0xf]
        %v4181 = vld [vmem:[%s3 + $0x18] sm:$0xf]
        %v4182 = vld [vmem:[%s3 + $0x1c] sm:$0xf]
        %v4183 = vld [vmem:[%s3 + $0x20] sm:$0xf]
        %v4184 = vld [vmem:[%s3 + $0x24] sm:$0xf]
        %v4185 = vld [vmem:[%s3 + $0x28] sm:$0xf]
        %v4186 = vld [vmem:[%s3 + $0x2c] sm:$0xf]
        %v4187 = vld [vmem:[%s3 + $0x30] sm:$0xf]
        %v4188 = vld [vmem:[%s3 + $0x34] sm:$0xf]
        %v4189 = vld [vmem:[%s3 + $0x38] sm:$0xf]
        %v4190 = vld [vmem:[%s3 + $0x3c] sm:$0xf]
        %v4191 = vld [vmem:[%s3 + $0x40] sm:$0xf]
        %v4192 = vld [vmem:[%s3 + $0x44] sm:$0xf]
        %v4193 = vld [vmem:[%s3 + $0x48] sm:$0xf]
        %v4194 = vld [vmem:[%s3 + $0x4c] sm:$0xf]
        %v4195 = vld [vmem:[%s3 + $0x50] sm:$0xf]
        %v4196 = vld [vmem:[%s3 + $0x54] sm:$0xf]
        %v4197 = vld [vmem:[%s3 + $0x58] sm:$0xf]
        %v4198 = vld [vmem:[%s3 + $0x5c] sm:$0xf]
        %v4199 = vld [vmem:[%s3 + $0x60] sm:$0xf]
        %v4200 = vld [vmem:[%s3 + $0x64] sm:$0xf]
        %v4201 = vld [vmem:[%s3 + $0x68] sm:$0xf]
        %v4202 = vld [vmem:[%s3 + $0x6c] sm:$0xf]
        %v4203 = vld [vmem:[%s3 + $0x70] sm:$0xf]
        %v4204 = vld [vmem:[%s3 + $0x74] sm:$0xf]
        %v4205 = vld [vmem:[%s3 + $0x78] sm:$0xf]
        %v4206 = vld [vmem:[%s3 + $0x7c] sm:$0xf]
        %v4207 = vld [vmem:[%s3 + $0x80] sm:$0xf]
        %v4208 = vld [vmem:[%s3 + $0x84] sm:$0xf]
        %v4209 = vld [vmem:[%s3 + $0x88] sm:$0xf]
        %v4210 = vld [vmem:[%s3 + $0x8c] sm:$0xf]
        %v4211 = vld [vmem:[%s3 + $0x90] sm:$0xf]
        %v4212 = vld [vmem:[%s3 + $0x94] sm:$0xf]
        %v4213 = vld [vmem:[%s3 + $0x98] sm:$0xf]
        %v4214 = vld [vmem:[%s3 + $0x9c] sm:$0xf]
        %v4215 = vld [vmem:[%s3 + $0xa0] sm:$0xf]
        %v4216 = vld [vmem:[%s3 + $0xa4] sm:$0xf]
        %v4217 = vld [vmem:[%s3 + $0xa8] sm:$0xf]
        %v4218 = vld [vmem:[%s3 + $0xac] sm:$0xf]
        %v4219 = vld [vmem:[%s3 + $0xb0] sm:$0xf]
        %v4220 = vld [vmem:[%s3 + $0xb4] sm:$0xf]
        %v4221 = vld [vmem:[%s3 + $0xb8] sm:$0xf]
        %v4222 = vld [vmem:[%s3 + $0xbc] sm:$0xf]
        %v4223 = vld [vmem:[%s3 + $0xc0] sm:$0xf]
        %v4224 = vld [vmem:[%s3 + $0xc4] sm:$0xf]
        %v4225 = vld [vmem:[%s3 + $0xc8] sm:$0xf]
        %v4226 = vld [vmem:[%s3 + $0xcc] sm:$0xf]
        %v4227 = vld [vmem:[%s3 + $0xd0] sm:$0xf]
        %v4228 = vld [vmem:[%s3 + $0xd4] sm:$0xf]
        %v4229 = vld [vmem:[%s3 + $0xd8] sm:$0xf]
        %v4230 = vld [vmem:[%s3 + $0xdc] sm:$0xf]
        %v4231 = vld [vmem:[%s3 + $0xe0] sm:$0xf]
        %v4232 = vld [vmem:[%s3 + $0xe4] sm:$0xf]
        %v4233 = vld [vmem:[%s3 + $0xe8] sm:$0xf]
        %v4234 = vld [vmem:[%s3 + $0xec] sm:$0xf]
        %v4235 = vld [vmem:[%s3 + $0xf0] sm:$0xf]
        %v4236 = vld [vmem:[%s3 + $0xf4] sm:$0xf]
        %v4237 = vld [vmem:[%s3 + $0xf8] sm:$0xf]
        %v4238 = vld [vmem:[%s3 + $0xfc] sm:$0xf]
        %v4239 = vld [vmem:[%s3 + $0x100] sm:$0xf]
        %v4240 = vld [vmem:[%s3 + $0x104] sm:$0xf]
        %v4241 = vld [vmem:[%s3 + $0x108] sm:$0xf]
        %v4242 = vld [vmem:[%s3 + $0x10c] sm:$0xf]
        %v4243 = vld [vmem:[%s3 + $0x110] sm:$0xf]
        %v4244 = vld [vmem:[%s3 + $0x114] sm:$0xf]
        %v4245 = vld [vmem:[%s3 + $0x118] sm:$0xf]
        %v4246 = vld [vmem:[%s3 + $0x11c] sm:$0xf]
        %v4247 = vld [vmem:[%s3 + $0x120] sm:$0xf]
        %v4248 = vld [vmem:[%s3 + $0x124] sm:$0xf]
        %v4249 = vld [vmem:[%s3 + $0x128] sm:$0xf]
        %v4250 = vld [vmem:[%s3 + $0x12c] sm:$0xf]
        %v4251 = vld [vmem:[%s3 + $0x130] sm:$0xf]
        %v4252 = vld [vmem:[%s3 + $0x134] sm:$0xf]
        %v4253 = vld [vmem:[%s3 + $0x138] sm:$0xf]
        %v4254 = vld [vmem:[%s3 + $0x13c] sm:$0xf]
        %v4255 = vld [vmem:[%s3 + $0x140] sm:$0xf]
        %v4256 = vld [vmem:[%s3 + $0x144] sm:$0xf]
        %v4257 = vld [vmem:[%s3 + $0x148] sm:$0xf]
        %v4258 = vld [vmem:[%s3 + $0x14c] sm:$0xf]
        %v4259 = vld [vmem:[%s3 + $0x150] sm:$0xf]
        %v4260 = vld [vmem:[%s3 + $0x154] sm:$0xf]
        %v4261 = vld [vmem:[%s3 + $0x158] sm:$0xf]
        %v4262 = vld [vmem:[%s3 + $0x15c] sm:$0xf]
        %v4263 = vld [vmem:[%s3 + $0x160] sm:$0xf]
        %v4264 = vld [vmem:[%s3 + $0x164] sm:$0xf]
        %v4265 = vld [vmem:[%s3 + $0x168] sm:$0xf]
        %v4266 = vld [vmem:[%s3 + $0x16c] sm:$0xf]
        %v4267 = vld [vmem:[%s3 + $0x170] sm:$0xf]
        %v4268 = vld [vmem:[%s3 + $0x174] sm:$0xf]
        %v4269 = vld [vmem:[%s3 + $0x178] sm:$0xf]
        %v4270 = vld [vmem:[%s3 + $0x17c] sm:$0xf]
        %v4271 = vld [vmem:[%s3 + $0x180] sm:$0xf]
        %v4272 = vld [vmem:[%s3 + $0x184] sm:$0xf]
        %v4273 = vld [vmem:[%s3 + $0x188] sm:$0xf]
        %v4274 = vld [vmem:[%s3 + $0x18c] sm:$0xf]
        %v4275 = vld [vmem:[%s3 + $0x190] sm:$0xf]
        %v4276 = vld [vmem:[%s3 + $0x194] sm:$0xf]
        %v4277 = vld [vmem:[%s3 + $0x198] sm:$0xf]
        %v4278 = vld [vmem:[%s3 + $0x19c] sm:$0xf]
        %v4279 = vld [vmem:[%s3 + $0x1a0] sm:$0xf]
        %v4280 = vld [vmem:[%s3 + $0x1a4] sm:$0xf]
        %v4281 = vld [vmem:[%s3 + $0x1a8] sm:$0xf]
        %v4282 = vld [vmem:[%s3 + $0x1ac] sm:$0xf]
        %v4283 = vld [vmem:[%s3 + $0x1b0] sm:$0xf]
        %v4284 = vld [vmem:[%s3 + $0x1b4] sm:$0xf]
        %v4285 = vld [vmem:[%s3 + $0x1b8] sm:$0xf]
        %v4286 = vld [vmem:[%s3 + $0x1bc] sm:$0xf]
        %v4287 = vld [vmem:[%s3 + $0x1c0] sm:$0xf]
        %v4288 = vld [vmem:[%s3 + $0x1c4] sm:$0xf]
        %v4289 = vld [vmem:[%s3 + $0x1c8] sm:$0xf]
        %v4290 = vld [vmem:[%s3 + $0x1cc] sm:$0xf]
        %v4291 = vld [vmem:[%s3 + $0x1d0] sm:$0xf]
        %v4292 = vld [vmem:[%s3 + $0x1d4] sm:$0xf]
        %v4293 = vld [vmem:[%s3 + $0x1d8] sm:$0xf]
        %v4294 = vld [vmem:[%s3 + $0x1dc] sm:$0xf]
        %v4295 = vld [vmem:[%s3 + $0x1e0] sm:$0xf]
        %v4296 = vld [vmem:[%s3 + $0x1e4] sm:$0xf]
        %v4297 = vld [vmem:[%s3 + $0x1e8] sm:$0xf]
        %v4298 = vld [vmem:[%s3 + $0x1ec] sm:$0xf]
        %v4299 = vld [vmem:[%s3 + $0x1f0] sm:$0xf]
        %v4300 = vld [vmem:[%s3 + $0x1f4] sm:$0xf]
        %v4301 = vld [vmem:[%s3 + $0x1f8] sm:$0xf]
        %v4302 = vld [vmem:[%s3 + $0x1fc] sm:$0xf]
        %v4303 = vld [vmem:[%s3 + $0x200] sm:$0xf]
        %v4304 = vld [vmem:[%s3 + $0x204] sm:$0xf]
        %v4305 = vld [vmem:[%s3 + $0x208] sm:$0xf]
        %v4306 = vld [vmem:[%s3 + $0x20c] sm:$0xf]
        %v4307 = vld [vmem:[%s3 + $0x210] sm:$0xf]
        %v4308 = vld [vmem:[%s3 + $0x214] sm:$0xf]
        %v4309 = vld [vmem:[%s3 + $0x218] sm:$0xf]
        %v4310 = vld [vmem:[%s3 + $0x21c] sm:$0xf]
        %v4311 = vld [vmem:[%s3 + $0x220] sm:$0xf]
        %v4312 = vld [vmem:[%s3 + $0x224] sm:$0xf]
        %v4313 = vld [vmem:[%s3 + $0x228] sm:$0xf]
        %v4314 = vld [vmem:[%s3 + $0x22c] sm:$0xf]
        %v4315 = vld [vmem:[%s3 + $0x230] sm:$0xf]
        %v4316 = vld [vmem:[%s3 + $0x234] sm:$0xf]
        %v4317 = vld [vmem:[%s3 + $0x238] sm:$0xf]
        %v4318 = vld [vmem:[%s3 + $0x23c] sm:$0xf]
        %v4319 = vld [vmem:[%s3 + $0x240] sm:$0xf]
        %v4320 = vld [vmem:[%s3 + $0x244] sm:$0xf]
        %v4321 = vld [vmem:[%s3 + $0x248] sm:$0xf]
        %v4322 = vld [vmem:[%s3 + $0x24c] sm:$0xf]
        %v4323 = vld [vmem:[%s3 + $0x250] sm:$0xf]
        %v4324 = vld [vmem:[%s3 + $0x254] sm:$0xf]
        %v4325 = vld [vmem:[%s3 + $0x258] sm:$0xf]
        %v4326 = vld [vmem:[%s3 + $0x25c] sm:$0xf]
        %v4327 = vld [vmem:[%s3 + $0x260] sm:$0xf]
        %v4328 = vld [vmem:[%s3 + $0x264] sm:$0xf]
        %v4329 = vld [vmem:[%s3 + $0x268] sm:$0xf]
        %v4330 = vld [vmem:[%s3 + $0x26c] sm:$0xf]
        %v4331 = vld [vmem:[%s3 + $0x270] sm:$0xf]
        %v4332 = vld [vmem:[%s3 + $0x274] sm:$0xf]
        %v4333 = vld [vmem:[%s3 + $0x278] sm:$0xf]
        %v4334 = vld [vmem:[%s3 + $0x27c] sm:$0xf]
        %v4335 = vld [vmem:[%s3 + $0x280] sm:$0xf]
        %v4336 = vld [vmem:[%s3 + $0x284] sm:$0xf]
        %v4337 = vld [vmem:[%s3 + $0x288] sm:$0xf]
        %v4338 = vld [vmem:[%s3 + $0x28c] sm:$0xf]
        %v4339 = vld [vmem:[%s3 + $0x290] sm:$0xf]
        %v4340 = vld [vmem:[%s3 + $0x294] sm:$0xf]
        %v4341 = vld [vmem:[%s3 + $0x298] sm:$0xf]
        %v4342 = vld [vmem:[%s3 + $0x29c] sm:$0xf]
        %v4343 = vld [vmem:[%s3 + $0x2a0] sm:$0xf]
        %v4344 = vld [vmem:[%s3 + $0x2a4] sm:$0xf]
        %v4345 = vld [vmem:[%s3 + $0x2a8] sm:$0xf]
        %v4346 = vld [vmem:[%s3 + $0x2ac] sm:$0xf]
        %v4347 = vld [vmem:[%s3 + $0x2b0] sm:$0xf]
        %v4348 = vld [vmem:[%s3 + $0x2b4] sm:$0xf]
        %v4349 = vld [vmem:[%s3 + $0x2b8] sm:$0xf]
        %v4350 = vld [vmem:[%s3 + $0x2bc] sm:$0xf]
        %v4351 = vld [vmem:[%s3 + $0x2c0] sm:$0xf]
        %v4352 = vld [vmem:[%s3 + $0x2c4] sm:$0xf]
        %v4353 = vld [vmem:[%s3 + $0x2c8] sm:$0xf]
        %v4354 = vld [vmem:[%s3 + $0x2cc] sm:$0xf]
        %v4355 = vld [vmem:[%s3 + $0x2d0] sm:$0xf]
        %v4356 = vld [vmem:[%s3 + $0x2d4] sm:$0xf]
        %v4357 = vld [vmem:[%s3 + $0x2d8] sm:$0xf]
        %v4358 = vld [vmem:[%s3 + $0x2dc] sm:$0xf]
        %v4359 = vld [vmem:[%s3 + $0x2e0] sm:$0xf]
        %v4360 = vld [vmem:[%s3 + $0x2e4] sm:$0xf]
        %v4361 = vld [vmem:[%s3 + $0x2e8] sm:$0xf]
        %v4362 = vld [vmem:[%s3 + $0x2ec] sm:$0xf]
        %v4363 = vld [vmem:[%s3 + $0x2f0] sm:$0xf]
        %v4364 = vld [vmem:[%s3 + $0x2f4] sm:$0xf]
        %v4365 = vld [vmem:[%s3 + $0x2f8] sm:$0xf]
        %v4366 = vld [vmem:[%s3 + $0x2fc] sm:$0xf]
        %v4367 = vld [vmem:[%s3 + $0x300] sm:$0xf]
        %v4368 = vld [vmem:[%s3 + $0x304] sm:$0xf]
        %v4369 = vld [vmem:[%s3 + $0x308] sm:$0xf]
        %v4370 = vld [vmem:[%s3 + $0x30c] sm:$0xf]
        %v4371 = vld [vmem:[%s3 + $0x310] sm:$0xf]
        %v4372 = vld [vmem:[%s3 + $0x314] sm:$0xf]
        %v4373 = vld [vmem:[%s3 + $0x318] sm:$0xf]
        %v4374 = vld [vmem:[%s3 + $0x31c] sm:$0xf]
        %v4375 = vld [vmem:[%s3 + $0x320] sm:$0xf]
        %v4376 = vld [vmem:[%s3 + $0x324] sm:$0xf]
        %v4377 = vld [vmem:[%s3 + $0x328] sm:$0xf]
        %v4378 = vld [vmem:[%s3 + $0x32c] sm:$0xf]
        %v4379 = vld [vmem:[%s3 + $0x330] sm:$0xf]
        %v4380 = vld [vmem:[%s3 + $0x334] sm:$0xf]
        %v4381 = vld [vmem:[%s3 + $0x338] sm:$0xf]
        %v4382 = vld [vmem:[%s3 + $0x33c] sm:$0xf]
        %v4383 = vld [vmem:[%s3 + $0x340] sm:$0xf]
        %v4384 = vld [vmem:[%s3 + $0x344] sm:$0xf]
        %v4385 = vld [vmem:[%s3 + $0x348] sm:$0xf]
        %v4386 = vld [vmem:[%s3 + $0x34c] sm:$0xf]
        %v4387 = vld [vmem:[%s3 + $0x350] sm:$0xf]
        %v4388 = vld [vmem:[%s3 + $0x354] sm:$0xf]
        %v4389 = vld [vmem:[%s3 + $0x358] sm:$0xf]
        %v4390 = vld [vmem:[%s3 + $0x35c] sm:$0xf]
        %v4391 = vld [vmem:[%s3 + $0x360] sm:$0xf]
        %v4392 = vld [vmem:[%s3 + $0x364] sm:$0xf]
        %v4393 = vld [vmem:[%s3 + $0x368] sm:$0xf]
        %v4394 = vld [vmem:[%s3 + $0x36c] sm:$0xf]
        %v4395 = vld [vmem:[%s3 + $0x370] sm:$0xf]
        %v4396 = vld [vmem:[%s3 + $0x374] sm:$0xf]
        %v4397 = vld [vmem:[%s3 + $0x378] sm:$0xf]
        %v4398 = vld [vmem:[%s3 + $0x37c] sm:$0xf]
        %v4399 = vld [vmem:[%s3 + $0x380] sm:$0xf]
        %v4400 = vld [vmem:[%s3 + $0x384] sm:$0xf]
        %v4401 = vld [vmem:[%s3 + $0x388] sm:$0xf]
        %v4402 = vld [vmem:[%s3 + $0x38c] sm:$0xf]
        %v4403 = vld [vmem:[%s3 + $0x390] sm:$0xf]
        %v4404 = vld [vmem:[%s3 + $0x394] sm:$0xf]
        %v4405 = vld [vmem:[%s3 + $0x398] sm:$0xf]
        %v4406 = vld [vmem:[%s3 + $0x39c] sm:$0xf]
        %v4407 = vld [vmem:[%s3 + $0x3a0] sm:$0xf]
        %v4408 = vld [vmem:[%s3 + $0x3a4] sm:$0xf]
        %v4409 = vld [vmem:[%s3 + $0x3a8] sm:$0xf]
        %v4410 = vld [vmem:[%s3 + $0x3ac] sm:$0xf]
        %v4411 = vld [vmem:[%s3 + $0x3b0] sm:$0xf]
        %v4412 = vld [vmem:[%s3 + $0x3b4] sm:$0xf]
        %v4413 = vld [vmem:[%s3 + $0x3b8] sm:$0xf]
        %v4414 = vld [vmem:[%s3 + $0x3bc] sm:$0xf]
        %v4415 = vld [vmem:[%s3 + $0x3c0] sm:$0xf]
        %v4416 = vld [vmem:[%s3 + $0x3c4] sm:$0xf]
        %v4417 = vld [vmem:[%s3 + $0x3c8] sm:$0xf]
        %v4418 = vld [vmem:[%s3 + $0x3cc] sm:$0xf]
        %v4419 = vld [vmem:[%s3 + $0x3d0] sm:$0xf]
        %v4420 = vld [vmem:[%s3 + $0x3d4] sm:$0xf]
        %v4421 = vld [vmem:[%s3 + $0x3d8] sm:$0xf]
        %v4422 = vld [vmem:[%s3 + $0x3dc] sm:$0xf]
        %v4423 = vld [vmem:[%s3 + $0x3e0] sm:$0xf]
        %v4424 = vld [vmem:[%s3 + $0x3e4] sm:$0xf]
        %v4425 = vld [vmem:[%s3 + $0x3e8] sm:$0xf]
        %v4426 = vld [vmem:[%s3 + $0x3ec] sm:$0xf]
        %v4427 = vld [vmem:[%s3 + $0x3f0] sm:$0xf]
        %v4428 = vld [vmem:[%s3 + $0x3f4] sm:$0xf]
        %v4429 = vld [vmem:[%s3 + $0x3f8] sm:$0xf]
        %v4430 = vld [vmem:[%s3 + $0x3fc] sm:$0xf]
        %v4431 = vld [vmem:[%s4] sm:$0x1]
        %v4433 = vlaneseq
        %v4434 = vshrl.u32 %v4433, 7
        %v4435 = vsub.s32 0, %v4434
        %v4436 = vrot.slane %v4431, %v4435
        %v4694 = vunpack.c.l.b16 %v4175
        %v4695 = vunpack.c.l.b16 %v4176
        %v4696 = vunpack.c.l.b16 %v4177
        %v4697 = vunpack.c.l.b16 %v4178
        %v4698 = vunpack.c.l.b16 %v4179
        %v4699 = vunpack.c.l.b16 %v4180
        %v4700 = vunpack.c.l.b16 %v4181
        %v4701 = vunpack.c.l.b16 %v4182
        %v4702 = vunpack.c.l.b16 %v4183
        %v4703 = vunpack.c.l.b16 %v4184
        %v4704 = vunpack.c.l.b16 %v4185
        %v4705 = vunpack.c.l.b16 %v4186
        %v4706 = vunpack.c.l.b16 %v4187
        %v4707 = vunpack.c.l.b16 %v4188
        %v4708 = vunpack.c.l.b16 %v4189
        %v4709 = vunpack.c.l.b16 %v4190
        %v4710 = vunpack.c.l.b16 %v4191
        %v4711 = vunpack.c.l.b16 %v4192
        %v4712 = vunpack.c.l.b16 %v4193
        %v4713 = vunpack.c.l.b16 %v4194
        %v4714 = vunpack.c.l.b16 %v4195
        %v4715 = vunpack.c.l.b16 %v4196
        %v4716 = vunpack.c.l.b16 %v4197
        %v4717 = vunpack.c.l.b16 %v4198
        %v4718 = vunpack.c.l.b16 %v4199
        %v4719 = vunpack.c.l.b16 %v4200
        %v4720 = vunpack.c.l.b16 %v4201
        %v4721 = vunpack.c.l.b16 %v4202
        %v4722 = vunpack.c.l.b16 %v4203
        %v4723 = vunpack.c.l.b16 %v4204
        %v4724 = vunpack.c.l.b16 %v4205
        %v4725 = vunpack.c.l.b16 %v4206
        %v4726 = vunpack.c.l.b16 %v4207
        %v4727 = vunpack.c.l.b16 %v4208
        %v4728 = vunpack.c.l.b16 %v4209
        %v4729 = vunpack.c.l.b16 %v4210
        %v4730 = vunpack.c.l.b16 %v4211
        %v4731 = vunpack.c.l.b16 %v4212
        %v4732 = vunpack.c.l.b16 %v4213
        %v4733 = vunpack.c.l.b16 %v4214
        %v4734 = vunpack.c.l.b16 %v4215
        %v4735 = vunpack.c.l.b16 %v4216
        %v4736 = vunpack.c.l.b16 %v4217
        %v4737 = vunpack.c.l.b16 %v4218
        %v4738 = vunpack.c.l.b16 %v4219
        %v4739 = vunpack.c.l.b16 %v4220
        %v4740 = vunpack.c.l.b16 %v4221
        %v4741 = vunpack.c.l.b16 %v4222
        %v4742 = vunpack.c.l.b16 %v4223
        %v4743 = vunpack.c.l.b16 %v4224
        %v4744 = vunpack.c.l.b16 %v4225
        %v4745 = vunpack.c.l.b16 %v4226
        %v4746 = vunpack.c.l.b16 %v4227
        %v4747 = vunpack.c.l.b16 %v4228
        %v4748 = vunpack.c.l.b16 %v4229
        %v4749 = vunpack.c.l.b16 %v4230
        %v4750 = vunpack.c.l.b16 %v4231
        %v4751 = vunpack.c.l.b16 %v4232
        %v4752 = vunpack.c.l.b16 %v4233
        %v4753 = vunpack.c.l.b16 %v4234
        %v4754 = vunpack.c.l.b16 %v4235
        %v4755 = vunpack.c.l.b16 %v4236
        %v4756 = vunpack.c.l.b16 %v4237
        %v4757 = vunpack.c.l.b16 %v4238
        %v4758 = vunpack.c.l.b16 %v4239
        %v4759 = vunpack.c.l.b16 %v4240
        %v4760 = vunpack.c.l.b16 %v4241
        %v4761 = vunpack.c.l.b16 %v4242
        %v4762 = vunpack.c.l.b16 %v4243
        %v4763 = vunpack.c.l.b16 %v4244
        %v4764 = vunpack.c.l.b16 %v4245
        %v4765 = vunpack.c.l.b16 %v4246
        %v4766 = vunpack.c.l.b16 %v4247
        %v4767 = vunpack.c.l.b16 %v4248
        %v4768 = vunpack.c.l.b16 %v4249
        %v4769 = vunpack.c.l.b16 %v4250
        %v4770 = vunpack.c.l.b16 %v4251
        %v4771 = vunpack.c.l.b16 %v4252
        %v4772 = vunpack.c.l.b16 %v4253
        %v4773 = vunpack.c.l.b16 %v4254
        %v4774 = vunpack.c.l.b16 %v4255
        %v4775 = vunpack.c.l.b16 %v4256
        %v4776 = vunpack.c.l.b16 %v4257
        %v4777 = vunpack.c.l.b16 %v4258
        %v4778 = vunpack.c.l.b16 %v4259
        %v4779 = vunpack.c.l.b16 %v4260
        %v4780 = vunpack.c.l.b16 %v4261
        %v4781 = vunpack.c.l.b16 %v4262
        %v4782 = vunpack.c.l.b16 %v4263
        %v4783 = vunpack.c.l.b16 %v4264
        %v4784 = vunpack.c.l.b16 %v4265
        %v4785 = vunpack.c.l.b16 %v4266
        %v4786 = vunpack.c.l.b16 %v4267
        %v4787 = vunpack.c.l.b16 %v4268
        %v4788 = vunpack.c.l.b16 %v4269
        %v4789 = vunpack.c.l.b16 %v4270
        %v4790 = vunpack.c.l.b16 %v4271
        %v4791 = vunpack.c.l.b16 %v4272
        %v4792 = vunpack.c.l.b16 %v4273
        %v4793 = vunpack.c.l.b16 %v4274
        %v4794 = vunpack.c.l.b16 %v4275
        %v4795 = vunpack.c.l.b16 %v4276
        %v4796 = vunpack.c.l.b16 %v4277
        %v4797 = vunpack.c.l.b16 %v4278
        %v4798 = vunpack.c.l.b16 %v4279
        %v4799 = vunpack.c.l.b16 %v4280
        %v4800 = vunpack.c.l.b16 %v4281
        %v4801 = vunpack.c.l.b16 %v4282
        %v4802 = vunpack.c.l.b16 %v4283
        %v4803 = vunpack.c.l.b16 %v4284
        %v4804 = vunpack.c.l.b16 %v4285
        %v4805 = vunpack.c.l.b16 %v4286
        %v4806 = vunpack.c.l.b16 %v4287
        %v4807 = vunpack.c.l.b16 %v4288
        %v4808 = vunpack.c.l.b16 %v4289
        %v4809 = vunpack.c.l.b16 %v4290
        %v4810 = vunpack.c.l.b16 %v4291
        %v4811 = vunpack.c.l.b16 %v4292
        %v4812 = vunpack.c.l.b16 %v4293
        %v4813 = vunpack.c.l.b16 %v4294
        %v4814 = vunpack.c.l.b16 %v4295
        %v4815 = vunpack.c.l.b16 %v4296
        %v4816 = vunpack.c.l.b16 %v4297
        %v4817 = vunpack.c.l.b16 %v4298
        %v4818 = vunpack.c.l.b16 %v4299
        %v4819 = vunpack.c.l.b16 %v4300
        %v4820 = vunpack.c.l.b16 %v4301
        %v4821 = vunpack.c.l.b16 %v4302
        %v4822 = vunpack.c.l.b16 %v4303
        %v4823 = vunpack.c.l.b16 %v4304
        %v4824 = vunpack.c.l.b16 %v4305
        %v4825 = vunpack.c.l.b16 %v4306
        %v4826 = vunpack.c.l.b16 %v4307
        %v4827 = vunpack.c.l.b16 %v4308
        %v4828 = vunpack.c.l.b16 %v4309
        %v4829 = vunpack.c.l.b16 %v4310
        %v4830 = vunpack.c.l.b16 %v4311
        %v4831 = vunpack.c.l.b16 %v4312
        %v4832 = vunpack.c.l.b16 %v4313
        %v4833 = vunpack.c.l.b16 %v4314
        %v4834 = vunpack.c.l.b16 %v4315
        %v4835 = vunpack.c.l.b16 %v4316
        %v4836 = vunpack.c.l.b16 %v4317
        %v4837 = vunpack.c.l.b16 %v4318
        %v4838 = vunpack.c.l.b16 %v4319
        %v4839 = vunpack.c.l.b16 %v4320
        %v4840 = vunpack.c.l.b16 %v4321
        %v4841 = vunpack.c.l.b16 %v4322
        %v4842 = vunpack.c.l.b16 %v4323
        %v4843 = vunpack.c.l.b16 %v4324
        %v4844 = vunpack.c.l.b16 %v4325
        %v4845 = vunpack.c.l.b16 %v4326
        %v4846 = vunpack.c.l.b16 %v4327
        %v4847 = vunpack.c.l.b16 %v4328
        %v4848 = vunpack.c.l.b16 %v4329
        %v4849 = vunpack.c.l.b16 %v4330
        %v4850 = vunpack.c.l.b16 %v4331
        %v4851 = vunpack.c.l.b16 %v4332
        %v4852 = vunpack.c.l.b16 %v4333
        %v4853 = vunpack.c.l.b16 %v4334
        %v4854 = vunpack.c.l.b16 %v4335
        %v4855 = vunpack.c.l.b16 %v4336
        %v4856 = vunpack.c.l.b16 %v4337
        %v4857 = vunpack.c.l.b16 %v4338
        %v4858 = vunpack.c.l.b16 %v4339
        %v4859 = vunpack.c.l.b16 %v4340
        %v4860 = vunpack.c.l.b16 %v4341
        %v4861 = vunpack.c.l.b16 %v4342
        %v4862 = vunpack.c.l.b16 %v4343
        %v4863 = vunpack.c.l.b16 %v4344
        %v4864 = vunpack.c.l.b16 %v4345
        %v4865 = vunpack.c.l.b16 %v4346
        %v4866 = vunpack.c.l.b16 %v4347
        %v4867 = vunpack.c.l.b16 %v4348
        %v4868 = vunpack.c.l.b16 %v4349
        %v4869 = vunpack.c.l.b16 %v4350
        %v4870 = vunpack.c.l.b16 %v4351
        %v4871 = vunpack.c.l.b16 %v4352
        %v4872 = vunpack.c.l.b16 %v4353
        %v4873 = vunpack.c.l.b16 %v4354
        %v4874 = vunpack.c.l.b16 %v4355
        %v4875 = vunpack.c.l.b16 %v4356
        %v4876 = vunpack.c.l.b16 %v4357
        %v4877 = vunpack.c.l.b16 %v4358
        %v4878 = vunpack.c.l.b16 %v4359
        %v4879 = vunpack.c.l.b16 %v4360
        %v4880 = vunpack.c.l.b16 %v4361
        %v4881 = vunpack.c.l.b16 %v4362
        %v4882 = vunpack.c.l.b16 %v4363
        %v4883 = vunpack.c.l.b16 %v4364
        %v4884 = vunpack.c.l.b16 %v4365
        %v4885 = vunpack.c.l.b16 %v4366
        %v4886 = vunpack.c.l.b16 %v4367
        %v4887 = vunpack.c.l.b16 %v4368
        %v4888 = vunpack.c.l.b16 %v4369
        %v4889 = vunpack.c.l.b16 %v4370
        %v4890 = vunpack.c.l.b16 %v4371
        %v4891 = vunpack.c.l.b16 %v4372
        %v4892 = vunpack.c.l.b16 %v4373
        %v4893 = vunpack.c.l.b16 %v4374
        %v4894 = vunpack.c.l.b16 %v4375
        %v4895 = vunpack.c.l.b16 %v4376
        %v4896 = vunpack.c.l.b16 %v4377
        %v4897 = vunpack.c.l.b16 %v4378
        %v4898 = vunpack.c.l.b16 %v4379
        %v4899 = vunpack.c.l.b16 %v4380
        %v4900 = vunpack.c.l.b16 %v4381
        %v4901 = vunpack.c.l.b16 %v4382
        %v4902 = vunpack.c.l.b16 %v4383
        %v4903 = vunpack.c.l.b16 %v4384
        %v4904 = vunpack.c.l.b16 %v4385
        %v4905 = vunpack.c.l.b16 %v4386
        %v4906 = vunpack.c.l.b16 %v4387
        %v4907 = vunpack.c.l.b16 %v4388
        %v4908 = vunpack.c.l.b16 %v4389
        %v4909 = vunpack.c.l.b16 %v4390
        %v4910 = vunpack.c.l.b16 %v4391
        %v4911 = vunpack.c.l.b16 %v4392
        %v4912 = vunpack.c.l.b16 %v4393
        %v4913 = vunpack.c.l.b16 %v4394
        %v4914 = vunpack.c.l.b16 %v4395
        %v4915 = vunpack.c.l.b16 %v4396
        %v4916 = vunpack.c.l.b16 %v4397
        %v4917 = vunpack.c.l.b16 %v4398
        %v4918 = vunpack.c.l.b16 %v4399
        %v4919 = vunpack.c.l.b16 %v4400
        %v4920 = vunpack.c.l.b16 %v4401
        %v4921 = vunpack.c.l.b16 %v4402
        %v4922 = vunpack.c.l.b16 %v4403
        %v4923 = vunpack.c.l.b16 %v4404
        %v4924 = vunpack.c.l.b16 %v4405
        %v4925 = vunpack.c.l.b16 %v4406
        %v4926 = vunpack.c.l.b16 %v4407
        %v4927 = vunpack.c.l.b16 %v4408
        %v4928 = vunpack.c.l.b16 %v4409
        %v4929 = vunpack.c.l.b16 %v4410
        %v4930 = vunpack.c.l.b16 %v4411
        %v4931 = vunpack.c.l.b16 %v4412
        %v4932 = vunpack.c.l.b16 %v4413
        %v4933 = vunpack.c.l.b16 %v4414
        %v4934 = vunpack.c.l.b16 %v4415
        %v4935 = vunpack.c.l.b16 %v4416
        %v4936 = vunpack.c.l.b16 %v4417
        %v4937 = vunpack.c.l.b16 %v4418
        %v4938 = vunpack.c.l.b16 %v4419
        %v4939 = vunpack.c.l.b16 %v4420
        %v4940 = vunpack.c.l.b16 %v4421
        %v4941 = vunpack.c.l.b16 %v4422
        %v4942 = vunpack.c.l.b16 %v4423
        %v4943 = vunpack.c.l.b16 %v4424
        %v4944 = vunpack.c.l.b16 %v4425
        %v4945 = vunpack.c.l.b16 %v4426
        %v4946 = vunpack.c.l.b16 %v4427
        %v4947 = vunpack.c.l.b16 %v4428
        %v4948 = vunpack.c.l.b16 %v4429
        %v4949 = vunpack.c.l.b16 %v4430
        %v4950 = vpack.c.b16 %v4695, %v4694
        %v4951 = vpack.c.b16 %v4697, %v4696
        %v4952 = vpack.c.b16 %v4699, %v4698
        %v4953 = vpack.c.b16 %v4701, %v4700
        %v4954 = vpack.c.b16 %v4703, %v4702
        %v4955 = vpack.c.b16 %v4705, %v4704
        %v4956 = vpack.c.b16 %v4707, %v4706
        %v4957 = vpack.c.b16 %v4709, %v4708
        %v4958 = vpack.c.b16 %v4711, %v4710
        %v4959 = vpack.c.b16 %v4713, %v4712
        %v4960 = vpack.c.b16 %v4715, %v4714
        %v4961 = vpack.c.b16 %v4717, %v4716
        %v4962 = vpack.c.b16 %v4719, %v4718
        %v4963 = vpack.c.b16 %v4721, %v4720
        %v4964 = vpack.c.b16 %v4723, %v4722
        %v4965 = vpack.c.b16 %v4725, %v4724
        %v4966 = vpack.c.b16 %v4727, %v4726
        %v4967 = vpack.c.b16 %v4729, %v4728
        %v4968 = vpack.c.b16 %v4731, %v4730
        %v4969 = vpack.c.b16 %v4733, %v4732
        %v4970 = vpack.c.b16 %v4735, %v4734
        %v4971 = vpack.c.b16 %v4737, %v4736
        %v4972 = vpack.c.b16 %v4739, %v4738
        %v4973 = vpack.c.b16 %v4741, %v4740
        %v4974 = vpack.c.b16 %v4743, %v4742
        %v4975 = vpack.c.b16 %v4745, %v4744
        %v4976 = vpack.c.b16 %v4747, %v4746
        %v4977 = vpack.c.b16 %v4749, %v4748
        %v4978 = vpack.c.b16 %v4751, %v4750
        %v4979 = vpack.c.b16 %v4753, %v4752
        %v4980 = vpack.c.b16 %v4755, %v4754
        %v4981 = vpack.c.b16 %v4757, %v4756
        %v4982 = vpack.c.b16 %v4759, %v4758
        %v4983 = vpack.c.b16 %v4761, %v4760
        %v4984 = vpack.c.b16 %v4763, %v4762
        %v4985 = vpack.c.b16 %v4765, %v4764
        %v4986 = vpack.c.b16 %v4767, %v4766
        %v4987 = vpack.c.b16 %v4769, %v4768
        %v4988 = vpack.c.b16 %v4771, %v4770
        %v4989 = vpack.c.b16 %v4773, %v4772
        %v4990 = vpack.c.b16 %v4775, %v4774
        %v4991 = vpack.c.b16 %v4777, %v4776
        %v4992 = vpack.c.b16 %v4779, %v4778
        %v4993 = vpack.c.b16 %v4781, %v4780
        %v4994 = vpack.c.b16 %v4783, %v4782
        %v4995 = vpack.c.b16 %v4785, %v4784
        %v4996 = vpack.c.b16 %v4787, %v4786
        %v4997 = vpack.c.b16 %v4789, %v4788
        %v4998 = vpack.c.b16 %v4791, %v4790
        %v4999 = vpack.c.b16 %v4793, %v4792
        %v5000 = vpack.c.b16 %v4795, %v4794
        %v5001 = vpack.c.b16 %v4797, %v4796
        %v5002 = vpack.c.b16 %v4799, %v4798
        %v5003 = vpack.c.b16 %v4801, %v4800
        %v5004 = vpack.c.b16 %v4803, %v4802
        %v5005 = vpack.c.b16 %v4805, %v4804
        %v5006 = vpack.c.b16 %v4807, %v4806
        %v5007 = vpack.c.b16 %v4809, %v4808
        %v5008 = vpack.c.b16 %v4811, %v4810
        %v5009 = vpack.c.b16 %v4813, %v4812
        %v5010 = vpack.c.b16 %v4815, %v4814
        %v5011 = vpack.c.b16 %v4817, %v4816
        %v5012 = vpack.c.b16 %v4819, %v4818
        %v5013 = vpack.c.b16 %v4821, %v4820
        %v5014 = vpack.c.b16 %v4823, %v4822
        %v5015 = vpack.c.b16 %v4825, %v4824
        %v5016 = vpack.c.b16 %v4827, %v4826
        %v5017 = vpack.c.b16 %v4829, %v4828
        %v5018 = vpack.c.b16 %v4831, %v4830
        %v5019 = vpack.c.b16 %v4833, %v4832
        %v5020 = vpack.c.b16 %v4835, %v4834
        %v5021 = vpack.c.b16 %v4837, %v4836
        %v5022 = vpack.c.b16 %v4839, %v4838
        %v5023 = vpack.c.b16 %v4841, %v4840
        %v5024 = vpack.c.b16 %v4843, %v4842
        %v5025 = vpack.c.b16 %v4845, %v4844
        %v5026 = vpack.c.b16 %v4847, %v4846
        %v5027 = vpack.c.b16 %v4849, %v4848
        %v5028 = vpack.c.b16 %v4851, %v4850
        %v5029 = vpack.c.b16 %v4853, %v4852
        %v5030 = vpack.c.b16 %v4855, %v4854
        %v5031 = vpack.c.b16 %v4857, %v4856
        %v5032 = vpack.c.b16 %v4859, %v4858
        %v5033 = vpack.c.b16 %v4861, %v4860
        %v5034 = vpack.c.b16 %v4863, %v4862
        %v5035 = vpack.c.b16 %v4865, %v4864
        %v5036 = vpack.c.b16 %v4867, %v4866
        %v5037 = vpack.c.b16 %v4869, %v4868
        %v5038 = vpack.c.b16 %v4871, %v4870
        %v5039 = vpack.c.b16 %v4873, %v4872
        %v5040 = vpack.c.b16 %v4875, %v4874
        %v5041 = vpack.c.b16 %v4877, %v4876
        %v5042 = vpack.c.b16 %v4879, %v4878
        %v5043 = vpack.c.b16 %v4881, %v4880
        %v5044 = vpack.c.b16 %v4883, %v4882
        %v5045 = vpack.c.b16 %v4885, %v4884
        %v5046 = vpack.c.b16 %v4887, %v4886
        %v5047 = vpack.c.b16 %v4889, %v4888
        %v5048 = vpack.c.b16 %v4891, %v4890
        %v5049 = vpack.c.b16 %v4893, %v4892
        %v5050 = vpack.c.b16 %v4895, %v4894
        %v5051 = vpack.c.b16 %v4897, %v4896
        %v5052 = vpack.c.b16 %v4899, %v4898
        %v5053 = vpack.c.b16 %v4901, %v4900
        %v5054 = vpack.c.b16 %v4903, %v4902
        %v5055 = vpack.c.b16 %v4905, %v4904
        %v5056 = vpack.c.b16 %v4907, %v4906
        %v5057 = vpack.c.b16 %v4909, %v4908
        %v5058 = vpack.c.b16 %v4911, %v4910
        %v5059 = vpack.c.b16 %v4913, %v4912
        %v5060 = vpack.c.b16 %v4915, %v4914
        %v5061 = vpack.c.b16 %v4917, %v4916
        %v5062 = vpack.c.b16 %v4919, %v4918
        %v5063 = vpack.c.b16 %v4921, %v4920
        %v5064 = vpack.c.b16 %v4923, %v4922
        %v5065 = vpack.c.b16 %v4925, %v4924
        %v5066 = vpack.c.b16 %v4927, %v4926
        %v5067 = vpack.c.b16 %v4929, %v4928
        %v5068 = vpack.c.b16 %v4931, %v4930
        %v5069 = vpack.c.b16 %v4933, %v4932
        %v5070 = vpack.c.b16 %v4935, %v4934
        %v5071 = vpack.c.b16 %v4937, %v4936
        %v5072 = vpack.c.b16 %v4939, %v4938
        %v5073 = vpack.c.b16 %v4941, %v4940
        %v5074 = vpack.c.b16 %v4943, %v4942
        %v5075 = vpack.c.b16 %v4945, %v4944
        %v5076 = vpack.c.b16 %v4947, %v4946
        %v5077 = vpack.c.b16 %v4949, %v4948
        %5206 = vmatprep.subr.bf16.mxu0 0
        %5207 = vmatpush1.bf16.msra.mxu0 %v4950
        %5208 = vmatprep.subr.bf16.mxu0 0
        %5209 = vmatpush1.bf16.msra.mxu0 %v4951
        %5210 = vmatprep.subr.bf16.mxu0 0
        %5211 = vmatpush1.bf16.msra.mxu0 %v4952
        %5212 = vmatprep.subr.bf16.mxu0 0
        %5213 = vmatpush1.bf16.msra.mxu0 %v4953
        %5214 = vmatprep.subr.bf16.mxu0 0
        %5215 = vmatpush1.bf16.msra.mxu0 %v4954
        %5216 = vmatprep.subr.bf16.mxu0 0
        %5217 = vmatpush1.bf16.msra.mxu0 %v4955
        %5218 = vmatprep.subr.bf16.mxu0 0
        %5219 = vmatpush1.bf16.msra.mxu0 %v4956
        %5220 = vmatprep.subr.bf16.mxu0 0
        %5221 = vmatpush1.bf16.msra.mxu0 %v4957
        %5222 = vmatprep.subr.bf16.mxu0 0
        %5223 = vmatpush1.bf16.msra.mxu0 %v4958
        %5224 = vmatprep.subr.bf16.mxu0 0
        %5225 = vmatpush1.bf16.msra.mxu0 %v4959
        %5226 = vmatprep.subr.bf16.mxu0 0
        %5227 = vmatpush1.bf16.msra.mxu0 %v4960
        %5228 = vmatprep.subr.bf16.mxu0 0
        %5229 = vmatpush1.bf16.msra.mxu0 %v4961
        %5230 = vmatprep.subr.bf16.mxu0 0
        %5231 = vmatpush1.bf16.msra.mxu0 %v4962
        %5232 = vmatprep.subr.bf16.mxu0 0
        %5233 = vmatpush1.bf16.msra.mxu0 %v4963
        %5234 = vmatprep.subr.bf16.mxu0 0
        %5235 = vmatpush1.bf16.msra.mxu0 %v4964
        %5236 = vmatprep.subr.bf16.mxu0 0
        %5237 = vmatpush1.bf16.msra.mxu0 %v4965
        %5238 = vmatprep.mubr.bf16.mxu0 %v890
        %5239 = vmatmul.mubr.bf16.gmra.mrb[0].mxu0 %v882
        %v5240 = vpop.f32.mrb[0].mxu0
        %v5241 = vadd.f32 %v4436, %v5240
        %v5242 = vpop.f32.mrb[0].mxu0
        %v5243 = vpop.f32.mrb[0].mxu0
        %v5244 = vpop.f32.mrb[0].mxu0
        %5245 = vdwg.mxu0
        %5246 = vmatprep.subr.bf16.mxu0 0
        %5247 = vmatpush1.bf16.msra.mxu0 %v4966
        %5248 = vmatprep.subr.bf16.mxu0 0
        %5249 = vmatpush1.bf16.msra.mxu0 %v4967
        %5250 = vmatprep.subr.bf16.mxu0 0
        %5251 = vmatpush1.bf16.msra.mxu0 %v4968
        %5252 = vmatprep.subr.bf16.mxu0 0
        %5253 = vmatpush1.bf16.msra.mxu0 %v4969
        %5254 = vmatprep.subr.bf16.mxu0 0
        %5255 = vmatpush1.bf16.msra.mxu0 %v4970
        %5256 = vmatprep.subr.bf16.mxu0 0
        %5257 = vmatpush1.bf16.msra.mxu0 %v4971
        %5258 = vmatprep.subr.bf16.mxu0 0
        %5259 = vmatpush1.bf16.msra.mxu0 %v4972
        %5260 = vmatprep.subr.bf16.mxu0 0
        %5261 = vmatpush1.bf16.msra.mxu0 %v4973
        %5262 = vmatprep.subr.bf16.mxu0 0
        %5263 = vmatpush1.bf16.msra.mxu0 %v4974
        %5264 = vmatprep.subr.bf16.mxu0 0
        %5265 = vmatpush1.bf16.msra.mxu0 %v4975
        %5266 = vmatprep.subr.bf16.mxu0 0
        %5267 = vmatpush1.bf16.msra.mxu0 %v4976
        %5268 = vmatprep.subr.bf16.mxu0 0
        %5269 = vmatpush1.bf16.msra.mxu0 %v4977
        %5270 = vmatprep.subr.bf16.mxu0 0
        %5271 = vmatpush1.bf16.msra.mxu0 %v4978
        %5272 = vmatprep.subr.bf16.mxu0 0
        %5273 = vmatpush1.bf16.msra.mxu0 %v4979
        %5274 = vmatprep.subr.bf16.mxu0 0
        %5275 = vmatpush1.bf16.msra.mxu0 %v4980
        %5276 = vmatprep.subr.bf16.mxu0 0
        %5277 = vmatpush1.bf16.msra.mxu0 %v4981
        %5278 = vmatprep.mubr.bf16.mxu0 %v891
        %5279 = vmatmul.mubr.bf16.gmra.mrb[0].mxu0 %v889
        %v5280 = vpop.f32.mrb[0].mxu0
        %v5281 = vadd.f32 %v5241, %v5280
        %v5282 = vpop.f32.mrb[0].mxu0
        %v5283 = vpop.f32.mrb[0].mxu0
        %v5284 = vpop.f32.mrb[0].mxu0
        %5285 = vdwg.mxu0
        %5286 = vmatprep.subr.bf16.mxu0 0
        %5287 = vmatpush1.bf16.msra.mxu0 %v4982
        %5288 = vmatprep.subr.bf16.mxu0 0
        %5289 = vmatpush1.bf16.msra.mxu0 %v4983
        %5290 = vmatprep.subr.bf16.mxu0 0
        %5291 = vmatpush1.bf16.msra.mxu0 %v4984
        %5292 = vmatprep.subr.bf16.mxu0 0
        %5293 = vmatpush1.bf16.msra.mxu0 %v4985
        %5294 = vmatprep.subr.bf16.mxu0 0
        %5295 = vmatpush1.bf16.msra.mxu0 %v4986
        %5296 = vmatprep.subr.bf16.mxu0 0
        %5297 = vmatpush1.bf16.msra.mxu0 %v4987
        %5298 = vmatprep.subr.bf16.mxu0 0
        %5299 = vmatpush1.bf16.msra.mxu0 %v4988
        %5300 = vmatprep.subr.bf16.mxu0 0
        %5301 = vmatpush1.bf16.msra.mxu0 %v4989
        %5302 = vmatprep.subr.bf16.mxu0 0
        %5303 = vmatpush1.bf16.msra.mxu0 %v4990
        %5304 = vmatprep.subr.bf16.mxu0 0
        %5305 = vmatpush1.bf16.msra.mxu0 %v4991
        %5306 = vmatprep.subr.bf16.mxu0 0
        %5307 = vmatpush1.bf16.msra.mxu0 %v4992
        %5308 = vmatprep.subr.bf16.mxu0 0
        %5309 = vmatpush1.bf16.msra.mxu0 %v4993
        %5310 = vmatprep.subr.bf16.mxu0 0
        %5311 = vmatpush1.bf16.msra.mxu0 %v4994
        %5312 = vmatprep.subr.bf16.mxu0 0
        %5313 = vmatpush1.bf16.msra.mxu0 %v4995
        %5314 = vmatprep.subr.bf16.mxu0 0
        %5315 = vmatpush1.bf16.msra.mxu0 %v4996
        %5316 = vmatprep.subr.bf16.mxu0 0
        %5317 = vmatpush1.bf16.msra.mxu0 %v4997
        %5318 = vmatprep.mubr.bf16.mxu0 %v907
        %5319 = vmatmul.mubr.bf16.gmra.mrb[0].mxu0 %v899
        %v5320 = vpop.f32.mrb[0].mxu0
        %v5321 = vadd.f32 %v5281, %v5320
        %v5322 = vpop.f32.mrb[0].mxu0
        %v5323 = vpop.f32.mrb[0].mxu0
        %v5324 = vpop.f32.mrb[0].mxu0
        %5325 = vdwg.mxu0
        %5326 = vmatprep.subr.bf16.mxu0 0
        %5327 = vmatpush1.bf16.msra.mxu0 %v4998
        %5328 = vmatprep.subr.bf16.mxu0 0
        %5329 = vmatpush1.bf16.msra.mxu0 %v4999
        %5330 = vmatprep.subr.bf16.mxu0 0
        %5331 = vmatpush1.bf16.msra.mxu0 %v5000
        %5332 = vmatprep.subr.bf16.mxu0 0
        %5333 = vmatpush1.bf16.msra.mxu0 %v5001
        %5334 = vmatprep.subr.bf16.mxu0 0
        %5335 = vmatpush1.bf16.msra.mxu0 %v5002
        %5336 = vmatprep.subr.bf16.mxu0 0
        %5337 = vmatpush1.bf16.msra.mxu0 %v5003
        %5338 = vmatprep.subr.bf16.mxu0 0
        %5339 = vmatpush1.bf16.msra.mxu0 %v5004
        %5340 = vmatprep.subr.bf16.mxu0 0
        %5341 = vmatpush1.bf16.msra.mxu0 %v5005
        %5342 = vmatprep.subr.bf16.mxu0 0
        %5343 = vmatpush1.bf16.msra.mxu0 %v5006
        %5344 = vmatprep.subr.bf16.mxu0 0
        %5345 = vmatpush1.bf16.msra.mxu0 %v5007
        %5346 = vmatprep.subr.bf16.mxu0 0
        %5347 = vmatpush1.bf16.msra.mxu0 %v5008
        %5348 = vmatprep.subr.bf16.mxu0 0
        %5349 = vmatpush1.bf16.msra.mxu0 %v5009
        %5350 = vmatprep.subr.bf16.mxu0 0
        %5351 = vmatpush1.bf16.msra.mxu0 %v5010
        %5352 = vmatprep.subr.bf16.mxu0 0
        %5353 = vmatpush1.bf16.msra.mxu0 %v5011
        %5354 = vmatprep.subr.bf16.mxu0 0
        %5355 = vmatpush1.bf16.msra.mxu0 %v5012
        %5356 = vmatprep.subr.bf16.mxu0 0
        %5357 = vmatpush1.bf16.msra.mxu0 %v5013
        %5358 = vmatprep.mubr.bf16.mxu0 %v908
        %5359 = vmatmul.mubr.bf16.gmra.mrb[0].mxu0 %v906
        %v5360 = vpop.f32.mrb[0].mxu0
        %v5361 = vadd.f32 %v5321, %v5360
        %v5362 = vpop.f32.mrb[0].mxu0
        %v5363 = vpop.f32.mrb[0].mxu0
        %v5364 = vpop.f32.mrb[0].mxu0
        %5365 = vdwg.mxu0
        %5366 = vmatprep.subr.bf16.mxu0 0
        %5367 = vmatpush1.bf16.msra.mxu0 %v5014
        %5368 = vmatprep.subr.bf16.mxu0 0
        %5369 = vmatpush1.bf16.msra.mxu0 %v5015
        %5370 = vmatprep.subr.bf16.mxu0 0
        %5371 = vmatpush1.bf16.msra.mxu0 %v5016
        %5372 = vmatprep.subr.bf16.mxu0 0
        %5373 = vmatpush1.bf16.msra.mxu0 %v5017
        %5374 = vmatprep.subr.bf16.mxu0 0
        %5375 = vmatpush1.bf16.msra.mxu0 %v5018
        %5376 = vmatprep.subr.bf16.mxu0 0
        %5377 = vmatpush1.bf16.msra.mxu0 %v5019
        %5378 = vmatprep.subr.bf16.mxu0 0
        %5379 = vmatpush1.bf16.msra.mxu0 %v5020
        %5380 = vmatprep.subr.bf16.mxu0 0
        %5381 = vmatpush1.bf16.msra.mxu0 %v5021
        %5382 = vmatprep.subr.bf16.mxu0 0
        %5383 = vmatpush1.bf16.msra.mxu0 %v5022
        %5384 = vmatprep.subr.bf16.mxu0 0
        %5385 = vmatpush1.bf16.msra.mxu0 %v5023
        %5386 = vmatprep.subr.bf16.mxu0 0
        %5387 = vmatpush1.bf16.msra.mxu0 %v5024
        %5388 = vmatprep.subr.bf16.mxu0 0
        %5389 = vmatpush1.bf16.msra.mxu0 %v5025
        %5390 = vmatprep.subr.bf16.mxu0 0
        %5391 = vmatpush1.bf16.msra.mxu0 %v5026
        %5392 = vmatprep.subr.bf16.mxu0 0
        %5393 = vmatpush1.bf16.msra.mxu0 %v5027
        %5394 = vmatprep.subr.bf16.mxu0 0
        %5395 = vmatpush1.bf16.msra.mxu0 %v5028
        %5396 = vmatprep.subr.bf16.mxu0 0
        %5397 = vmatpush1.bf16.msra.mxu0 %v5029
        %5398 = vmatprep.mubr.bf16.mxu0 %v924
        %5399 = vmatmul.mubr.bf16.gmra.mrb[0].mxu0 %v916
        %v5400 = vpop.f32.mrb[0].mxu0
        %v5401 = vadd.f32 %v5361, %v5400
        %v5402 = vpop.f32.mrb[0].mxu0
        %v5403 = vpop.f32.mrb[0].mxu0
        %v5404 = vpop.f32.mrb[0].mxu0
        %5405 = vdwg.mxu0
        %5406 = vmatprep.subr.bf16.mxu0 0
        %5407 = vmatpush1.bf16.msra.mxu0 %v5030
        %5408 = vmatprep.subr.bf16.mxu0 0
        %5409 = vmatpush1.bf16.msra.mxu0 %v5031
        %5410 = vmatprep.subr.bf16.mxu0 0
        %5411 = vmatpush1.bf16.msra.mxu0 %v5032
        %5412 = vmatprep.subr.bf16.mxu0 0
        %5413 = vmatpush1.bf16.msra.mxu0 %v5033
        %5414 = vmatprep.subr.bf16.mxu0 0
        %5415 = vmatpush1.bf16.msra.mxu0 %v5034
        %5416 = vmatprep.subr.bf16.mxu0 0
        %5417 = vmatpush1.bf16.msra.mxu0 %v5035
        %5418 = vmatprep.subr.bf16.mxu0 0
        %5419 = vmatpush1.bf16.msra.mxu0 %v5036
        %5420 = vmatprep.subr.bf16.mxu0 0
        %5421 = vmatpush1.bf16.msra.mxu0 %v5037
        %5422 = vmatprep.subr.bf16.mxu0 0
        %5423 = vmatpush1.bf16.msra.mxu0 %v5038
        %5424 = vmatprep.subr.bf16.mxu0 0
        %5425 = vmatpush1.bf16.msra.mxu0 %v5039
        %5426 = vmatprep.subr.bf16.mxu0 0
        %5427 = vmatpush1.bf16.msra.mxu0 %v5040
        %5428 = vmatprep.subr.bf16.mxu0 0
        %5429 = vmatpush1.bf16.msra.mxu0 %v5041
        %5430 = vmatprep.subr.bf16.mxu0 0
        %5431 = vmatpush1.bf16.msra.mxu0 %v5042
        %5432 = vmatprep.subr.bf16.mxu0 0
        %5433 = vmatpush1.bf16.msra.mxu0 %v5043
        %5434 = vmatprep.subr.bf16.mxu0 0
        %5435 = vmatpush1.bf16.msra.mxu0 %v5044
        %5436 = vmatprep.subr.bf16.mxu0 0
        %5437 = vmatpush1.bf16.msra.mxu0 %v5045
        %5438 = vmatprep.mubr.bf16.mxu0 %v925
        %5439 = vmatmul.mubr.bf16.gmra.mrb[0].mxu0 %v923
        %v5440 = vpop.f32.mrb[0].mxu0
        %v5441 = vadd.f32 %v5401, %v5440
        %v5442 = vpop.f32.mrb[0].mxu0
        %v5443 = vpop.f32.mrb[0].mxu0
        %v5444 = vpop.f32.mrb[0].mxu0
        %5445 = vdwg.mxu0
        %5446 = vmatprep.subr.bf16.mxu0 0
        %5447 = vmatpush1.bf16.msra.mxu0 %v5046
        %5448 = vmatprep.subr.bf16.mxu0 0
        %5449 = vmatpush1.bf16.msra.mxu0 %v5047
        %5450 = vmatprep.subr.bf16.mxu0 0
        %5451 = vmatpush1.bf16.msra.mxu0 %v5048
        %5452 = vmatprep.subr.bf16.mxu0 0
        %5453 = vmatpush1.bf16.msra.mxu0 %v5049
        %5454 = vmatprep.subr.bf16.mxu0 0
        %5455 = vmatpush1.bf16.msra.mxu0 %v5050
        %5456 = vmatprep.subr.bf16.mxu0 0
        %5457 = vmatpush1.bf16.msra.mxu0 %v5051
        %5458 = vmatprep.subr.bf16.mxu0 0
        %5459 = vmatpush1.bf16.msra.mxu0 %v5052
        %5460 = vmatprep.subr.bf16.mxu0 0
        %5461 = vmatpush1.bf16.msra.mxu0 %v5053
        %5462 = vmatprep.subr.bf16.mxu0 0
        %5463 = vmatpush1.bf16.msra.mxu0 %v5054
        %5464 = vmatprep.subr.bf16.mxu0 0
        %5465 = vmatpush1.bf16.msra.mxu0 %v5055
        %5466 = vmatprep.subr.bf16.mxu0 0
        %5467 = vmatpush1.bf16.msra.mxu0 %v5056
        %5468 = vmatprep.subr.bf16.mxu0 0
        %5469 = vmatpush1.bf16.msra.mxu0 %v5057
        %5470 = vmatprep.subr.bf16.mxu0 0
        %5471 = vmatpush1.bf16.msra.mxu0 %v5058
        %5472 = vmatprep.subr.bf16.mxu0 0
        %5473 = vmatpush1.bf16.msra.mxu0 %v5059
        %5474 = vmatprep.subr.bf16.mxu0 0
        %5475 = vmatpush1.bf16.msra.mxu0 %v5060
        %5476 = vmatprep.subr.bf16.mxu0 0
        %5477 = vmatpush1.bf16.msra.mxu0 %v5061
        %5478 = vmatprep.mubr.bf16.mxu0 %v941
        %5479 = vmatmul.mubr.bf16.gmra.mrb[0].mxu0 %v933
        %v5480 = vpop.f32.mrb[0].mxu0
        %v5481 = vadd.f32 %v5441, %v5480
        %v5482 = vpop.f32.mrb[0].mxu0
        %v5483 = vpop.f32.mrb[0].mxu0
        %v5484 = vpop.f32.mrb[0].mxu0
        %5485 = vdwg.mxu0
        %5486 = vmatprep.subr.bf16.mxu0 0
        %5487 = vmatpush1.bf16.msra.mxu0 %v5062
        %5488 = vmatprep.subr.bf16.mxu0 0
        %5489 = vmatpush1.bf16.msra.mxu0 %v5063
        %5490 = vmatprep.subr.bf16.mxu0 0
        %5491 = vmatpush1.bf16.msra.mxu0 %v5064
        %5492 = vmatprep.subr.bf16.mxu0 0
        %5493 = vmatpush1.bf16.msra.mxu0 %v5065
        %5494 = vmatprep.subr.bf16.mxu0 0
        %5495 = vmatpush1.bf16.msra.mxu0 %v5066
        %5496 = vmatprep.subr.bf16.mxu0 0
        %5497 = vmatpush1.bf16.msra.mxu0 %v5067
        %5498 = vmatprep.subr.bf16.mxu0 0
        %5499 = vmatpush1.bf16.msra.mxu0 %v5068
        %5500 = vmatprep.subr.bf16.mxu0 0
        %5501 = vmatpush1.bf16.msra.mxu0 %v5069
        %5502 = vmatprep.subr.bf16.mxu0 0
        %5503 = vmatpush1.bf16.msra.mxu0 %v5070
        %5504 = vmatprep.subr.bf16.mxu0 0
        %5505 = vmatpush1.bf16.msra.mxu0 %v5071
        %5506 = vmatprep.subr.bf16.mxu0 0
        %5507 = vmatpush1.bf16.msra.mxu0 %v5072
        %5508 = vmatprep.subr.bf16.mxu0 0
        %5509 = vmatpush1.bf16.msra.mxu0 %v5073
        %5510 = vmatprep.subr.bf16.mxu0 0
        %5511 = vmatpush1.bf16.msra.mxu0 %v5074
        %5512 = vmatprep.subr.bf16.mxu0 0
        %5513 = vmatpush1.bf16.msra.mxu0 %v5075
        %5514 = vmatprep.subr.bf16.mxu0 0
        %5515 = vmatpush1.bf16.msra.mxu0 %v5076
        %5516 = vmatprep.subr.bf16.mxu0 0
        %5517 = vmatpush1.bf16.msra.mxu0 %v5077
        %5518 = vmatprep.mubr.bf16.mxu0 %v942
        %5519 = vmatmul.mubr.bf16.gmra.mrb[0].mxu0 %v940
        %v5520 = vpop.f32.mrb[0].mxu0
        %v5521 = vadd.f32 %v5481, %v5520
        %v5522 = vpop.f32.mrb[0].mxu0
        %v5523 = vpop.f32.mrb[0].mxu0
        %v5524 = vpop.f32.mrb[0].mxu0
        %5525 = vdwg.mxu0
        %v5526 = vtanh.pop %v5521
        %v5527 = vld [vmem:[%s5] sm:$0x1]
        %v5529 = vlaneseq
        %v5530 = vshrl.u32 %v5529, 7
        %v5531 = vsub.s32 0, %v5530
        %v5532 = vrot.slane %v5527, %v5531
        %v5534 = vmul.f32 %v5526, %v5532
        %vm5535 = vcmask 1042432
        %v5536 = vsel %vm5535, %v5534, 0.0
        %5537 = vadd.xlane.f32.xlu0 %v5536
        %v5538 = vpop.xlane.xlu0 %5537
        %v5539 = vld [vmem:[#allocation2] sm:$0x1]
        %v5541 = vlaneseq
        %v5542 = vshrl.u32 %v5541, 7
        %v5543 = vsub.s32 0, %v5542
        %v5544 = vrot.slane %v5539, %v5543
        %v5546 = vadd.f32 %v5538, %v5544
        %vm5547 = vcmask 2048
        %v5548 = vsel %vm5547, %v5546, -inf
        %v5549 = vrot.slane %v5548, 4
        %v5550 = vmax.f32 %v5548, %v5549
        %v5551 = vrot.slane %v5550, 2
        %v5552 = vmax.f32 %v5550, %v5551
        %v5553 = vrot.slane %v5552, 1
        %v5554 = vmax.f32 %v5552, %v5553
        %v5555 = vsub.f32 %v5546, %v5554
        %v5556 = vmul.f32 %v5555, 1.442695
        %v5557 = vpow.pop %v5556
        %v5558 = vsel %vm5547, %v5557, 0.0
        %v5559 = vrot.slane %v5558, 4
        %v5560 = vadd.f32 %v5558, %v5559
        %v5561 = vrot.slane %v5560, 2
        %v5562 = vadd.f32 %v5560, %v5561
        %v5563 = vrot.slane %v5562, 1
        %v5564 = vadd.f32 %v5562, %v5563
        %v5565 = vrcp.pop %v5564
        %v5566 = vmul.f32 %v5557, %v5565
        %5568 = vset.pattern.permute.xlu0 0
        %5569 = vperm.xlu0 %5568, %v5566
        %v5570 = vpop.permute.xlu0 %5569
        %v5572 = vmul.f32 %v5570, %v3841
        %v5573 = vmul.f32 %v5570, %v3843
        %v5574 = vmul.f32 %v5570, %v4169
        %v5575 = vmul.f32 %v5570, %v4171
        %v5576 = vsel %vm5535, %v5572, 0.0
        %v5577 = vrot.slane %v5576, 4
        %v5578 = vadd.f32 %v5576, %v5577
        %v5579 = vrot.slane %v5578, 2
        %v5580 = vadd.f32 %v5578, %v5579
        %v5581 = vrot.slane %v5580, 1
        %v5582 = vadd.f32 %v5580, %v5581
        %v5583 = vsel %vm5535, %v5573, 0.0
        %v5584 = vrot.slane %v5583, 4
        %v5585 = vadd.f32 %v5583, %v5584
        %v5586 = vrot.slane %v5585, 2
        %v5587 = vadd.f32 %v5585, %v5586
        %v5588 = vrot.slane %v5587, 1
        %v5589 = vadd.f32 %v5587, %v5588
        %v5590 = vsel %vm5535, %v5574, 0.0
        %v5591 = vrot.slane %v5590, 4
        %v5592 = vadd.f32 %v5590, %v5591
        %v5593 = vrot.slane %v5592, 2
        %v5594 = vadd.f32 %v5592, %v5593
        %v5595 = vrot.slane %v5594, 1
        %v5596 = vadd.f32 %v5594, %v5595
        %v5597 = vsel %vm5535, %v5575, 0.0
        %v5598 = vrot.slane %v5597, 4
        %v5599 = vadd.f32 %v5597, %v5598
        %v5600 = vrot.slane %v5599, 2
        %v5601 = vadd.f32 %v5599, %v5600
        %v5602 = vrot.slane %v5601, 1
        %v5603 = vadd.f32 %v5601, %v5602
        %v5604 = vpack.c.bf16 %v5582, %v5582
        %v5605 = vpack.c.bf16 %v5589, %v5589
        %v5606 = vpack.c.bf16 %v5596, %v5596
        %v5607 = vpack.c.bf16 %v5603, %v5603
        %v5608 = vld [vmem:[%s7] sm:$0xf]
        %v5609 = vld [vmem:[%s7 + $0x4] sm:$0xf]
        %v5610 = vld [vmem:[%s7 + $0x8] sm:$0xf]
        %v5611 = vld [vmem:[%s7 + $0xc] sm:$0xf]
        %v5612 = vld [vmem:[%s7 + $0x10] sm:$0xf]
        %v5613 = vld [vmem:[%s7 + $0x14] sm:$0xf]
        %v5614 = vld [vmem:[%s7 + $0x18] sm:$0xf]
        %v5615 = vld [vmem:[%s7 + $0x1c] sm:$0xf]
        %v5616 = vld [vmem:[%s7 + $0x20] sm:$0xf]
        %v5617 = vld [vmem:[%s7 + $0x24] sm:$0xf]
        %v5618 = vld [vmem:[%s7 + $0x28] sm:$0xf]
        %v5619 = vld [vmem:[%s7 + $0x2c] sm:$0xf]
        %v5620 = vld [vmem:[%s7 + $0x30] sm:$0xf]
        %v5621 = vld [vmem:[%s7 + $0x34] sm:$0xf]
        %v5622 = vld [vmem:[%s7 + $0x38] sm:$0xf]
        %v5623 = vld [vmem:[%s7 + $0x3c] sm:$0xf]
        %v5624 = vld [vmem:[%s7 + $0x40] sm:$0xf]
        %v5625 = vld [vmem:[%s7 + $0x44] sm:$0xf]
        %v5626 = vld [vmem:[%s7 + $0x48] sm:$0xf]
        %v5627 = vld [vmem:[%s7 + $0x4c] sm:$0xf]
        %v5628 = vld [vmem:[%s7 + $0x50] sm:$0xf]
        %v5629 = vld [vmem:[%s7 + $0x54] sm:$0xf]
        %v5630 = vld [vmem:[%s7 + $0x58] sm:$0xf]
        %v5631 = vld [vmem:[%s7 + $0x5c] sm:$0xf]
        %v5632 = vld [vmem:[%s7 + $0x60] sm:$0xf]
        %v5633 = vld [vmem:[%s7 + $0x64] sm:$0xf]
        %v5634 = vld [vmem:[%s7 + $0x68] sm:$0xf]
        %v5635 = vld [vmem:[%s7 + $0x6c] sm:$0xf]
        %v5636 = vld [vmem:[%s7 + $0x70] sm:$0xf]
        %v5637 = vld [vmem:[%s7 + $0x74] sm:$0xf]
        %v5638 = vld [vmem:[%s7 + $0x78] sm:$0xf]
        %v5639 = vld [vmem:[%s7 + $0x7c] sm:$0xf]
        %v5640 = vld [vmem:[%s7 + $0x80] sm:$0xf]
        %v5641 = vld [vmem:[%s7 + $0x84] sm:$0xf]
        %v5642 = vld [vmem:[%s7 + $0x88] sm:$0xf]
        %v5643 = vld [vmem:[%s7 + $0x8c] sm:$0xf]
        %v5644 = vld [vmem:[%s7 + $0x90] sm:$0xf]
        %v5645 = vld [vmem:[%s7 + $0x94] sm:$0xf]
        %v5646 = vld [vmem:[%s7 + $0x98] sm:$0xf]
        %v5647 = vld [vmem:[%s7 + $0x9c] sm:$0xf]
        %v5648 = vld [vmem:[%s7 + $0xa0] sm:$0xf]
        %v5649 = vld [vmem:[%s7 + $0xa4] sm:$0xf]
        %v5650 = vld [vmem:[%s7 + $0xa8] sm:$0xf]
        %v5651 = vld [vmem:[%s7 + $0xac] sm:$0xf]
        %v5652 = vld [vmem:[%s7 + $0xb0] sm:$0xf]
        %v5653 = vld [vmem:[%s7 + $0xb4] sm:$0xf]
        %v5654 = vld [vmem:[%s7 + $0xb8] sm:$0xf]
        %v5655 = vld [vmem:[%s7 + $0xbc] sm:$0xf]
        %v5656 = vld [vmem:[%s7 + $0xc0] sm:$0xf]
        %v5657 = vld [vmem:[%s7 + $0xc4] sm:$0xf]
        %v5658 = vld [vmem:[%s7 + $0xc8] sm:$0xf]
        %v5659 = vld [vmem:[%s7 + $0xcc] sm:$0xf]
        %v5660 = vld [vmem:[%s7 + $0xd0] sm:$0xf]
        %v5661 = vld [vmem:[%s7 + $0xd4] sm:$0xf]
        %v5662 = vld [vmem:[%s7 + $0xd8] sm:$0xf]
        %v5663 = vld [vmem:[%s7 + $0xdc] sm:$0xf]
        %v5664 = vld [vmem:[%s7 + $0xe0] sm:$0xf]
        %v5665 = vld [vmem:[%s7 + $0xe4] sm:$0xf]
        %v5666 = vld [vmem:[%s7 + $0xe8] sm:$0xf]
        %v5667 = vld [vmem:[%s7 + $0xec] sm:$0xf]
        %v5668 = vld [vmem:[%s7 + $0xf0] sm:$0xf]
        %v5669 = vld [vmem:[%s7 + $0xf4] sm:$0xf]
        %v5670 = vld [vmem:[%s7 + $0xf8] sm:$0xf]
        %v5671 = vld [vmem:[%s7 + $0xfc] sm:$0xf]
        %v5672 = vld [vmem:[%s8] sm:$0x1]
        %v5737 = vunpack.c.l.b16 %v5608
        %v5738 = vunpack.c.l.b16 %v5609
        %v5739 = vunpack.c.l.b16 %v5610
        %v5740 = vunpack.c.l.b16 %v5611
        %v5741 = vunpack.c.l.b16 %v5612
        %v5742 = vunpack.c.l.b16 %v5613
        %v5743 = vunpack.c.l.b16 %v5614
        %v5744 = vunpack.c.l.b16 %v5615
        %v5745 = vunpack.c.l.b16 %v5616
        %v5746 = vunpack.c.l.b16 %v5617
        %v5747 = vunpack.c.l.b16 %v5618
        %v5748 = vunpack.c.l.b16 %v5619
        %v5749 = vunpack.c.l.b16 %v5620
        %v5750 = vunpack.c.l.b16 %v5621
        %v5751 = vunpack.c.l.b16 %v5622
        %v5752 = vunpack.c.l.b16 %v5623
        %v5753 = vunpack.c.l.b16 %v5624
        %v5754 = vunpack.c.l.b16 %v5625
        %v5755 = vunpack.c.l.b16 %v5626
        %v5756 = vunpack.c.l.b16 %v5627
        %v5757 = vunpack.c.l.b16 %v5628
        %v5758 = vunpack.c.l.b16 %v5629
        %v5759 = vunpack.c.l.b16 %v5630
        %v5760 = vunpack.c.l.b16 %v5631
        %v5761 = vunpack.c.l.b16 %v5632
        %v5762 = vunpack.c.l.b16 %v5633
        %v5763 = vunpack.c.l.b16 %v5634
        %v5764 = vunpack.c.l.b16 %v5635
        %v5765 = vunpack.c.l.b16 %v5636
        %v5766 = vunpack.c.l.b16 %v5637
        %v5767 = vunpack.c.l.b16 %v5638
        %v5768 = vunpack.c.l.b16 %v5639
        %v5769 = vunpack.c.l.b16 %v5640
        %v5770 = vunpack.c.l.b16 %v5641
        %v5771 = vunpack.c.l.b16 %v5642
        %v5772 = vunpack.c.l.b16 %v5643
        %v5773 = vunpack.c.l.b16 %v5644
        %v5774 = vunpack.c.l.b16 %v5645
        %v5775 = vunpack.c.l.b16 %v5646
        %v5776 = vunpack.c.l.b16 %v5647
        %v5777 = vunpack.c.l.b16 %v5648
        %v5778 = vunpack.c.l.b16 %v5649
        %v5779 = vunpack.c.l.b16 %v5650
        %v5780 = vunpack.c.l.b16 %v5651
        %v5781 = vunpack.c.l.b16 %v5652
        %v5782 = vunpack.c.l.b16 %v5653
        %v5783 = vunpack.c.l.b16 %v5654
        %v5784 = vunpack.c.l.b16 %v5655
        %v5785 = vunpack.c.l.b16 %v5656
        %v5786 = vunpack.c.l.b16 %v5657
        %v5787 = vunpack.c.l.b16 %v5658
        %v5788 = vunpack.c.l.b16 %v5659
        %v5789 = vunpack.c.l.b16 %v5660
        %v5790 = vunpack.c.l.b16 %v5661
        %v5791 = vunpack.c.l.b16 %v5662
        %v5792 = vunpack.c.l.b16 %v5663
        %v5793 = vunpack.c.l.b16 %v5664
        %v5794 = vunpack.c.l.b16 %v5665
        %v5795 = vunpack.c.l.b16 %v5666
        %v5796 = vunpack.c.l.b16 %v5667
        %v5797 = vunpack.c.l.b16 %v5668
        %v5798 = vunpack.c.l.b16 %v5669
        %v5799 = vunpack.c.l.b16 %v5670
        %v5800 = vunpack.c.l.b16 %v5671
        %v5801 = vpack.c.b16 %v5738, %v5737
        %v5802 = vpack.c.b16 %v5740, %v5739
        %v5803 = vpack.c.b16 %v5742, %v5741
        %v5804 = vpack.c.b16 %v5744, %v5743
        %v5805 = vpack.c.b16 %v5746, %v5745
        %v5806 = vpack.c.b16 %v5748, %v5747
        %v5807 = vpack.c.b16 %v5750, %v5749
        %v5808 = vpack.c.b16 %v5752, %v5751
        %v5809 = vpack.c.b16 %v5754, %v5753
        %v5810 = vpack.c.b16 %v5756, %v5755
        %v5811 = vpack.c.b16 %v5758, %v5757
        %v5812 = vpack.c.b16 %v5760, %v5759
        %v5813 = vpack.c.b16 %v5762, %v5761
        %v5814 = vpack.c.b16 %v5764, %v5763
        %v5815 = vpack.c.b16 %v5766, %v5765
        %v5816 = vpack.c.b16 %v5768, %v5767
        %v5817 = vpack.c.b16 %v5770, %v5769
        %v5818 = vpack.c.b16 %v5772, %v5771
        %v5819 = vpack.c.b16 %v5774, %v5773
        %v5820 = vpack.c.b16 %v5776, %v5775
        %v5821 = vpack.c.b16 %v5778, %v5777
        %v5822 = vpack.c.b16 %v5780, %v5779
        %v5823 = vpack.c.b16 %v5782, %v5781
        %v5824 = vpack.c.b16 %v5784, %v5783
        %v5825 = vpack.c.b16 %v5786, %v5785
        %v5826 = vpack.c.b16 %v5788, %v5787
        %v5827 = vpack.c.b16 %v5790, %v5789
        %v5828 = vpack.c.b16 %v5792, %v5791
        %v5829 = vpack.c.b16 %v5794, %v5793
        %v5830 = vpack.c.b16 %v5796, %v5795
        %v5831 = vpack.c.b16 %v5798, %v5797
        %v5832 = vpack.c.b16 %v5800, %v5799
        %5865 = vmatprep.subr.bf16.mxu0 0
        %5866 = vmatpush1.bf16.msra.mxu0 %v5801
        %5867 = vmatprep.subr.bf16.mxu0 0
        %5868 = vmatpush1.bf16.msra.mxu0 %v5802
        %5869 = vmatprep.subr.bf16.mxu0 0
        %5870 = vmatpush1.bf16.msra.mxu0 %v5803
        %5871 = vmatprep.subr.bf16.mxu0 0
        %5872 = vmatpush1.bf16.msra.mxu0 %v5804
        %5873 = vmatprep.subr.bf16.mxu0 0
        %5874 = vmatpush1.bf16.msra.mxu0 %v5805
        %5875 = vmatprep.subr.bf16.mxu0 0
        %5876 = vmatpush1.bf16.msra.mxu0 %v5806
        %5877 = vmatprep.subr.bf16.mxu0 0
        %5878 = vmatpush1.bf16.msra.mxu0 %v5807
        %5879 = vmatprep.subr.bf16.mxu0 0
        %5880 = vmatpush1.bf16.msra.mxu0 %v5808
        %5881 = vmatprep.subr.bf16.mxu0 0
        %5882 = vmatpush1.bf16.msra.mxu0 %v5809
        %5883 = vmatprep.subr.bf16.mxu0 0
        %5884 = vmatpush1.bf16.msra.mxu0 %v5810
        %5885 = vmatprep.subr.bf16.mxu0 0
        %5886 = vmatpush1.bf16.msra.mxu0 %v5811
        %5887 = vmatprep.subr.bf16.mxu0 0
        %5888 = vmatpush1.bf16.msra.mxu0 %v5812
        %5889 = vmatprep.subr.bf16.mxu0 0
        %5890 = vmatpush1.bf16.msra.mxu0 %v5813
        %5891 = vmatprep.subr.bf16.mxu0 0
        %5892 = vmatpush1.bf16.msra.mxu0 %v5814
        %5893 = vmatprep.subr.bf16.mxu0 0
        %5894 = vmatpush1.bf16.msra.mxu0 %v5815
        %5895 = vmatprep.subr.bf16.mxu0 0
        %5896 = vmatpush1.bf16.msra.mxu0 %v5816
        %5897 = vmatprep.mubr.bf16.mxu0 %v5605
        %5898 = vmatmul.mubr.bf16.gmra.mrb[0].mxu0 %v5604
        %v5899 = vpop.f32.mrb[0].mxu0
        %v5900 = vadd.f32 %v5672, %v5899
        %v5901 = vpop.f32.mrb[0].mxu0
        %v5902 = vpop.f32.mrb[0].mxu0
        %v5903 = vpop.f32.mrb[0].mxu0
        %5904 = vdwg.mxu0
        %5905 = vmatprep.subr.bf16.mxu0 0
        %5906 = vmatpush1.bf16.msra.mxu0 %v5817
        %5907 = vmatprep.subr.bf16.mxu0 0
        %5908 = vmatpush1.bf16.msra.mxu0 %v5818
        %5909 = vmatprep.subr.bf16.mxu0 0
        %5910 = vmatpush1.bf16.msra.mxu0 %v5819
        %5911 = vmatprep.subr.bf16.mxu0 0
        %5912 = vmatpush1.bf16.msra.mxu0 %v5820
        %5913 = vmatprep.subr.bf16.mxu0 0
        %5914 = vmatpush1.bf16.msra.mxu0 %v5821
        %5915 = vmatprep.subr.bf16.mxu0 0
        %5916 = vmatpush1.bf16.msra.mxu0 %v5822
        %5917 = vmatprep.subr.bf16.mxu0 0
        %5918 = vmatpush1.bf16.msra.mxu0 %v5823
        %5919 = vmatprep.subr.bf16.mxu0 0
        %5920 = vmatpush1.bf16.msra.mxu0 %v5824
        %5921 = vmatprep.subr.bf16.mxu0 0
        %5922 = vmatpush1.bf16.msra.mxu0 %v5825
        %5923 = vmatprep.subr.bf16.mxu0 0
        %5924 = vmatpush1.bf16.msra.mxu0 %v5826
        %5925 = vmatprep.subr.bf16.mxu0 0
        %5926 = vmatpush1.bf16.msra.mxu0 %v5827
        %5927 = vmatprep.subr.bf16.mxu0 0
        %5928 = vmatpush1.bf16.msra.mxu0 %v5828
        %5929 = vmatprep.subr.bf16.mxu0 0
        %5930 = vmatpush1.bf16.msra.mxu0 %v5829
        %5931 = vmatprep.subr.bf16.mxu0 0
        %5932 = vmatpush1.bf16.msra.mxu0 %v5830
        %5933 = vmatprep.subr.bf16.mxu0 0
        %5934 = vmatpush1.bf16.msra.mxu0 %v5831
        %5935 = vmatprep.subr.bf16.mxu0 0
        %5936 = vmatpush1.bf16.msra.mxu0 %v5832
        %5937 = vmatprep.mubr.bf16.mxu0 %v5607
        %5938 = vmatmul.mubr.bf16.gmra.mrb[0].mxu0 %v5606
        %v5939 = vpop.f32.mrb[0].mxu0
        %v5940 = vadd.f32 %v5900, %v5939
        %v5941 = vpop.f32.mrb[0].mxu0
        %v5942 = vpop.f32.mrb[0].mxu0
        %v5943 = vpop.f32.mrb[0].mxu0
        %5944 = vdwg.mxu0
        %5945 = vst [vmem:[%s326] sm:$0x1] %v5940
        %s5946 = sand.u32 %s227, 1
        %s5947 = scalar_lea.sflag [#allocation4], %s5946
        %s5948 = sand.u32 %s227, 1
        %s5949 = scalar_lea.vmem [#allocation3], %s5948
        // Predicated region
        $region57: #{fibernet_forward.3} parent=55 // pred_check
          %p5950 = pneg %p237
        $region58: #{fibernet_forward.3} parent=55 // pred_check_branch
          %5952 = sbr.rel (%p5950) target = $region60
        $region59: #{fibernet_forward.3} parent=55 // pred_region
          %s5954 = ssub.s32 16, 16
          %5955 = vsyncadd %s5947, %s5954
          %s5956 = smul.addr %s25, 16
          %s5957 = scalar_lea.hbm %s9, %s5956
          %s5959 = sshll.u32 %s5949, 4
          %s5960 = int_to_ptr.vmem [resolvable:$true] %s5959
          %5962 = dma.vmem_to_hbm [thread:$0]  %s5960, 16, %s5957, %s5947
        $region60: #{fibernet_forward.3} parent=55 // pred_fallthru
          _
      $region56: #{fibernet_forward.3} parent=5 // pred_fallthru
        _
      %p5963 = scmp.le.s32.totalorder 2, %s20
      // Predicated region
      $region61: #{fibernet_forward.3} parent=5 // pred_check
        %p5964 = pneg %p5963
      $region62: #{fibernet_forward.3} parent=5 // pred_check_branch
        %5966 = sbr.rel (%p5964) target = $region64
      $region63: #{fibernet_forward.3} parent=5 // pred_region
        %s5967 = ssub.s32 %s20, 2
        // Predicated region
        $region65: #{fibernet_forward.3} parent=63 // pred_check
          %p5968 = pneg %p243
        $region66: #{fibernet_forward.3} parent=63 // pred_check_branch
          %5970 = sbr.rel (%p5968) target = $region68
        $region67: #{fibernet_forward.3} parent=63 // pred_region
          %s5971 = sand.u32 %s228, 1
          %s5972 = scalar_lea.sflag [#allocation4], %s5971
          %s5973 = sand.u32 %s228, 1
          %s5974 = scalar_lea.vmem [#allocation3], %s5973
          %5975 = dma.done %s5972, 16
        $region68: #{fibernet_forward.3} parent=63 // pred_fallthru
          _
      $region64: #{fibernet_forward.3} parent=5 // pred_fallthru
        _
    $region6: #{fibernet_forward.3} parent=1 // loop_footer
      %s24 = sadd.s32 1, %s20
    $region7: #{fibernet_forward.3} parent=1 // loop_footer_branch
      %19 = sbr.rel target = $region3
    $region8: #{fibernet_forward.3} parent=1 // loop_exit
      _
    %5976 = vsyncpa [#allocation4], 1
    %s5977 = scalar_lea.sflag [#allocation4], 1
    %5978 = vsyncpa %s5977, 1

</llo_original>
